<compile_context>
chip_gen: v6e
topology: v6e:2x2x1
jax: 0.10.0
libtpu: 0.0.40
codegen_flags: <defaults>
</compile_context>

<pallas_src>
import functools

import jax
import jax.numpy as jnp
from jax import lax
from jax.experimental import pallas as pl
from jax.experimental.pallas import tpu as pltpu


def _round_up(v, m):
    return ((v + m - 1) // m) * m


# ----------------------------- Pallas kernel -------------------------------

def _gated_conv_kernel(x_ref, m_ref, w_ref, b_ref, o_ref, *,
                       k, wp, pad, out_rows, cin, k_pad, n_pad):
    """One padded image per grid step.

    x_ref: (1, L_in, Cin)      bf16  zero-padded image, (Hp*Wp) flattened.
    m_ref: (1, L_in, 1)        f32   zero-padded mask, same flattening.
    w_ref: (K_pad, 2*NPAD)     bf16  resident block-diag [[wf, 0], [0, wm]].
    b_ref: (1, 2*NPAD)         f32   [b_feat | b_mask] (zeros in padding lanes).
    o_ref: (1, OUT_ROWS, NPAD) bf16.

    Output flat row r = h_out*Wp + w_out; tap (kh, kw) of that pixel lives at
    flat offset r + kh*Wp + kw in the padded slab, so the patch matrix is
    rebuilt in VMEM with static slices (im2col never touches HBM).  Rows with
    w_out >= W_out and the slab's tail padding rows produce junk that is never
    reduced over and is sliced off by the wrapper.
    """
    xf = x_ref[0].astype(jnp.float32)                 # (L_in, Cin) f32
    mf = m_ref[0]                                     # (L_in, 1)   f32

    # Mask at the output-pixel centre (blend kept in f32: exact for soft masks).
    c_shift = pad * wp + pad
    mc = mf[c_shift:c_shift + out_rows, :]            # (R, 1)
    one_minus_mc = 1.0 - mc

    patch_parts = []
    blend_parts = []
    for kh in range(k):
        for kw in range(k):
            s = kh * wp + kw
            xt = xf[s:s + out_rows, :]                # (R, Cin)
            mt = mf[s:s + out_rows, :]                # (R, 1)
            # alpha = m_tap*(1-mc) + mc ; bias needs no blend since it sums to 1.
            alpha = mt * one_minus_mc + mc
            patch_parts.append(xt)
            blend_parts.append(xt * alpha)

    parts = patch_parts + blend_parts
    lane_pad = k_pad - 2 * k * k * cin
    if lane_pad > 0:
        parts.append(jnp.zeros((out_rows, lane_pad), jnp.float32))
    lhs = jnp.concatenate(parts, axis=-1).astype(jnp.bfloat16)   # (R, K_pad)

    # One MXU matmul for both convolutions (N = 2*NPAD = 256 wide).
    res = jnp.dot(lhs, w_ref[...], preferred_element_type=jnp.float32)
    res = res + b_ref[...]
    features = res[:, :n_pad]                         # lane-tile aligned split
    mask_features = res[:, n_pad:]

    gate = jax.nn.sigmoid(mask_features)
    out = features * gate
    # LeakyReLU(0.2).  Padding lanes: features == 0, gate == 0.5 -> out == 0.
    o_ref[0, :, :] = jnp.where(out >= 0.0, out, 0.2 * out).astype(o_ref.dtype)


# --------------------------- one-time param prep -----------------------------

def prepare_gated_conv_params(w_feat, b_feat, w_mask, b_mask):
    """Hoisted, once-per-model weight/bias prep (kept out of the forward path).

    Builds the resident block-diagonal RHS (K_pad, 2*NPAD) in bf16 and the
    fused bias (1, 2*NPAD) in f32, with K padded to a 128-lane tile.
    """
    cout, cin, k, _ = w_feat.shape
    kkc = k * k * cin
    n_pad = max(128, _round_up(cout, 128))
    k_pad = max(128, _round_up(2 * kkc, 128))

    def _mat(w):  # OIHW -> rows ordered (kh, kw, cin), cols = cout
        return jnp.transpose(w, (2, 3, 1, 0)).reshape(kkc, cout)

    rhs = jnp.zeros((k_pad, 2 * n_pad), jnp.float32)
    rhs = rhs.at[:kkc, :cout].set(_mat(w_feat))
    rhs = rhs.at[kkc:2 * kkc, n_pad:n_pad + cout].set(_mat(w_mask))
    rhs = rhs.astype(jnp.bfloat16)

    bias = jnp.zeros((1, 2 * n_pad), jnp.float32)
    bias = bias.at[0, :cout].set(b_feat)
    bias = bias.at[0, n_pad:n_pad + cout].set(b_mask)
    return rhs, bias


# ------------------------------ JAX wrapper ---------------------------------

def gated_conv2d(x_nchw, mask_n1hw, params, *, cout, kernel_size=3, padding=1):
    """Gated conv forward. x: (N,Cin,H,W), mask: (N,1,H,W) or None."""
    rhs, bias = params
    k, p = kernel_size, padding
    N, Cin, H, W = x_nchw.shape
    k_pad, two_n_pad = rhs.shape
    n_pad = two_n_pad // 2

    Hp, Wp = H + 2 * p, W + 2 * p
    H_out = H + 2 * p - k + 1
    W_out = W + 2 * p - k + 1
    out_rows = H_out * Wp
    max_shift = max((k - 1) * Wp + (k - 1), p * Wp + p)
    l_in = _round_up(out_rows + max_shift, 8)          # >= Hp*Wp + (k-1)

    if mask_n1hw is None:
        mask_n1hw = jnp.ones((N, 1, H, W), dtype=x_nchw.dtype)

    # NCHW -> NHWC, spatial zero pad, flatten (Hp, Wp) -> one row axis.
    # Linear-cost prep that fuses into the caller's jit; the 9x patch
    # expansion only ever exists in VMEM, inside the kernel.
    def _prep(a, dtype):
        a = jnp.transpose(a, (0, 2, 3, 1))
        a = jnp.pad(a, ((0, 0), (p, p), (p, p), (0, 0)))
        a = a.reshape(N, Hp * Wp, a.shape[-1])
        a = jnp.pad(a, ((0, 0), (0, l_in - Hp * Wp), (0, 0)))
        return a.astype(dtype)

    x_flat = _prep(x_nchw, jnp.bfloat16)                # (N, L_in, Cin)
    m_flat = _prep(mask_n1hw, jnp.float32)              # (N, L_in, 1), f32 blend

    kernel = functools.partial(
        _gated_conv_kernel, k=k, wp=Wp, pad=p, out_rows=out_rows,
        cin=Cin, k_pad=k_pad, n_pad=n_pad)

    out_flat = pl.pallas_call(
        kernel,
        out_shape=jax.ShapeDtypeStruct((N, out_rows, n_pad), jnp.bfloat16),
        grid_spec=pltpu.PrefetchScalarGridSpec(
            num_scalar_prefetch=0,
            grid=(N,),
            in_specs=[
                pl.BlockSpec((1, l_in, Cin), lambda n: (n, 0, 0)),       # x slab
                pl.BlockSpec((1, l_in, 1), lambda n: (n, 0, 0)),         # mask slab
                pl.BlockSpec((k_pad, 2 * n_pad), lambda n: (0, 0)),      # fused W (resident)
                pl.BlockSpec((1, 2 * n_pad), lambda n: (0, 0)),          # fused bias
            ],
            out_specs=pl.BlockSpec((1, out_rows, n_pad), lambda n: (n, 0, 0)),
        ),
        compiler_params=pltpu.CompilerParams(
            dimension_semantics=("parallel",)),
    )(x_flat, m_flat, rhs, bias)

    # (N, H_out*Wp, NPAD) -> (N, Cout, H_out, W_out); slice / transpose / cast
    # stay in the caller's jit (fused with whatever consumes the output).
    out = out_flat.reshape(N, H_out, Wp, n_pad)[:, :, :W_out, :cout]
    return jnp.transpose(out, (0, 3, 1, 2)).astype(x_nchw.dtype)


# ------------------------------ reference -----------------------------------

def _conv_ref(x_nchw, w_oihw, bias, padding):
    out = lax.conv_general_dilated(
        x_nchw, w_oihw, window_strides=(1, 1),
        padding=[(padding, padding), (padding, padding)],
        dimension_numbers=("NCHW", "OIHW", "NCHW"))
    return out + bias.reshape(1, -1, 1, 1)


def gated_conv2d_ref(x, mask, w_feat, b_feat, w_mask, b_mask, padding=1):
    features = _conv_ref(x, w_feat, b_feat, padding)
    if mask is None:
        mask_features = _conv_ref(x, w_mask, b_mask, padding)
    else:
        mask_features = (_conv_ref(x * mask, w_mask, b_mask, padding) * (1.0 - mask)
                         + _conv_ref(x, w_mask, b_mask, padding) * mask)
    gate = jax.nn.sigmoid(mask_features)
    out = features * gate
    return jnp.where(out >= 0.0, out, 0.2 * out)   # LeakyReLU(0.2)


# -------------------------------- main ---------------------------------------

if __name__ == "__main__":
    N, Cin, H, W = 2, 4, 16, 16
    Cout, k, pad = 8, 3, 1

    key = jax.random.PRNGKey(0)
    k1, k2, k3, k4, k5, k6 = jax.random.split(key, 6)

    x = jax.random.normal(k1, (N, Cin, H, W), dtype=jnp.float32)
    # binary mask, broadcastable over channels (1 = valid, 0 = masked)
    mask = (jax.random.uniform(k2, (N, 1, H, W)) > 0.3).astype(jnp.float32)

    fan_in = Cin * k * k
    scale = 1.0 / jnp.sqrt(fan_in)
    w_feat = jax.random.normal(k3, (Cout, Cin, k, k), dtype=jnp.float32) * scale
    b_feat = jax.random.normal(k4, (Cout,), dtype=jnp.float32) * scale
    w_mask = jax.random.normal(k5, (Cout, Cin, k, k), dtype=jnp.float32) * scale
    b_mask = jax.random.normal(k6, (Cout,), dtype=jnp.float32) * scale

    # One-time weight/bias prep (hoisted out of the per-forward hot path).
    params = prepare_gated_conv_params(w_feat, b_feat, w_mask, b_mask)

    fwd = jax.jit(functools.partial(gated_conv2d, cout=Cout,
                                    kernel_size=k, padding=pad))
    out = jax.block_until_ready(fwd(x, mask, params))

    ref = jax.block_until_ready(
        gated_conv2d_ref(x, mask, w_feat, b_feat, w_mask, b_mask, padding=pad))

    assert out.shape == (N, Cout, H, W)
    # bf16 operand streams + bf16 output store -> loosened tolerance vs f32 ref.
    if not jnp.allclose(out, ref, atol=5e-2, rtol=5e-2):
        raise AssertionError("Pallas kernel does not match reference")

    print("KERNEL_OK")
</pallas_src>

<mosaic_0001>
module attributes {stable_mosaic.version = 11 : i64} {
  func.func @_gated_conv_kernel(%arg0: i32, %arg1: memref<1x328x4xbf16, #tpu.memory_space<vmem>>, %arg2: memref<1x328x1xf32, #tpu.memory_space<vmem>>, %arg3: memref<128x256xbf16, #tpu.memory_space<vmem>>, %arg4: memref<1x256xf32, #tpu.memory_space<vmem>>, %arg5: memref<1x288x128xbf16, #tpu.memory_space<vmem>>) attributes {dimension_semantics = [#tpu.dimension_semantics<parallel>], iteration_bounds = array<i64: 2>, scalar_prefetch = 0 : i64, scratch_operands = 0 : i64, tpu.core_type = #tpu.core_type<tc>, window_params = [{transform_indices = @transform_0, window_bounds = array<i64: 1, 328, 4>}, {transform_indices = @transform_1, window_bounds = array<i64: 1, 328, 1>}, {pipeline_mode = #tpu.pipeline_mode<synchronous>, transform_indices = @transform_2, window_bounds = array<i64: 128, 256>}, {pipeline_mode = #tpu.pipeline_mode<synchronous>, transform_indices = @transform_3, window_bounds = array<i64: 1, 256>}, {transform_indices = @transform_4, window_bounds = array<i64: 1, 288, 128>}]} {
    %c0 = arith.constant 0 : index
    %c0_0 = arith.constant 0 : index
    %c0_1 = arith.constant 0 : index
    %0 = vector.load %arg1[%c0, %c0_0, %c0_1] : memref<1x328x4xbf16, #tpu.memory_space<vmem>>, vector<1x328x4xbf16>
    %1 = vector.shape_cast %0 : vector<1x328x4xbf16> to vector<328x4xbf16>
    %2 = arith.extf %1 : vector<328x4xbf16> to vector<328x4xf32>
    %c0_2 = arith.constant 0 : index
    %c0_3 = arith.constant 0 : index
    %c0_4 = arith.constant 0 : index
    %3 = vector.load %arg2[%c0_2, %c0_3, %c0_4] : memref<1x328x1xf32, #tpu.memory_space<vmem>>, vector<1x328x1xf32>
    %4 = vector.shape_cast %3 : vector<1x328x1xf32> to vector<328x1xf32>
    %5 = vector.extract_strided_slice %4 {offsets = [19, 0], sizes = [288, 1], strides = [1, 1]} : vector<328x1xf32> to vector<288x1xf32>
    %cst = arith.constant 1.000000e+00 : f32
    %6 = vector.broadcast %cst : f32 to vector<288x1xf32>
    %7 = arith.subf %6, %5 : vector<288x1xf32>
    %8 = vector.extract_strided_slice %2 {offsets = [0, 0], sizes = [288, 4], strides = [1, 1]} : vector<328x4xf32> to vector<288x4xf32>
    %9 = vector.extract_strided_slice %4 {offsets = [0, 0], sizes = [288, 1], strides = [1, 1]} : vector<328x1xf32> to vector<288x1xf32>
    %10 = arith.mulf %9, %7 : vector<288x1xf32>
    %11 = arith.addf %10, %5 : vector<288x1xf32>
    %12 = vector.broadcast %11 : vector<288x1xf32> to vector<288x4xf32>
    %13 = arith.mulf %8, %12 : vector<288x4xf32>
    %14 = vector.extract_strided_slice %2 {offsets = [1, 0], sizes = [288, 4], strides = [1, 1]} : vector<328x4xf32> to vector<288x4xf32>
    %15 = vector.extract_strided_slice %4 {offsets = [1, 0], sizes = [288, 1], strides = [1, 1]} : vector<328x1xf32> to vector<288x1xf32>
    %16 = arith.mulf %15, %7 : vector<288x1xf32>
    %17 = arith.addf %16, %5 : vector<288x1xf32>
    %18 = vector.broadcast %17 : vector<288x1xf32> to vector<288x4xf32>
    %19 = arith.mulf %14, %18 : vector<288x4xf32>
    %20 = vector.extract_strided_slice %2 {offsets = [2, 0], sizes = [288, 4], strides = [1, 1]} : vector<328x4xf32> to vector<288x4xf32>
    %21 = vector.extract_strided_slice %4 {offsets = [2, 0], sizes = [288, 1], strides = [1, 1]} : vector<328x1xf32> to vector<288x1xf32>
    %22 = arith.mulf %21, %7 : vector<288x1xf32>
    %23 = arith.addf %22, %5 : vector<288x1xf32>
    %24 = vector.broadcast %23 : vector<288x1xf32> to vector<288x4xf32>
    %25 = arith.mulf %20, %24 : vector<288x4xf32>
    %26 = vector.extract_strided_slice %2 {offsets = [18, 0], sizes = [288, 4], strides = [1, 1]} : vector<328x4xf32> to vector<288x4xf32>
    %27 = vector.extract_strided_slice %4 {offsets = [18, 0], sizes = [288, 1], strides = [1, 1]} : vector<328x1xf32> to vector<288x1xf32>
    %28 = arith.mulf %27, %7 : vector<288x1xf32>
    %29 = arith.addf %28, %5 : vector<288x1xf32>
    %30 = vector.broadcast %29 : vector<288x1xf32> to vector<288x4xf32>
    %31 = arith.mulf %26, %30 : vector<288x4xf32>
    %32 = vector.extract_strided_slice %2 {offsets = [19, 0], sizes = [288, 4], strides = [1, 1]} : vector<328x4xf32> to vector<288x4xf32>
    %33 = vector.extract_strided_slice %4 {offsets = [19, 0], sizes = [288, 1], strides = [1, 1]} : vector<328x1xf32> to vector<288x1xf32>
    %34 = arith.mulf %33, %7 : vector<288x1xf32>
    %35 = arith.addf %34, %5 : vector<288x1xf32>
    %36 = vector.broadcast %35 : vector<288x1xf32> to vector<288x4xf32>
    %37 = arith.mulf %32, %36 : vector<288x4xf32>
    %38 = vector.extract_strided_slice %2 {offsets = [20, 0], sizes = [288, 4], strides = [1, 1]} : vector<328x4xf32> to vector<288x4xf32>
    %39 = vector.extract_strided_slice %4 {offsets = [20, 0], sizes = [288, 1], strides = [1, 1]} : vector<328x1xf32> to vector<288x1xf32>
    %40 = arith.mulf %39, %7 : vector<288x1xf32>
    %41 = arith.addf %40, %5 : vector<288x1xf32>
    %42 = vector.broadcast %41 : vector<288x1xf32> to vector<288x4xf32>
    %43 = arith.mulf %38, %42 : vector<288x4xf32>
    %44 = vector.extract_strided_slice %2 {offsets = [36, 0], sizes = [288, 4], strides = [1, 1]} : vector<328x4xf32> to vector<288x4xf32>
    %45 = vector.extract_strided_slice %4 {offsets = [36, 0], sizes = [288, 1], strides = [1, 1]} : vector<328x1xf32> to vector<288x1xf32>
    %46 = arith.mulf %45, %7 : vector<288x1xf32>
    %47 = arith.addf %46, %5 : vector<288x1xf32>
    %48 = vector.broadcast %47 : vector<288x1xf32> to vector<288x4xf32>
    %49 = arith.mulf %44, %48 : vector<288x4xf32>
    %50 = vector.extract_strided_slice %2 {offsets = [37, 0], sizes = [288, 4], strides = [1, 1]} : vector<328x4xf32> to vector<288x4xf32>
    %51 = vector.extract_strided_slice %4 {offsets = [37, 0], sizes = [288, 1], strides = [1, 1]} : vector<328x1xf32> to vector<288x1xf32>
    %52 = arith.mulf %51, %7 : vector<288x1xf32>
    %53 = arith.addf %52, %5 : vector<288x1xf32>
    %54 = vector.broadcast %53 : vector<288x1xf32> to vector<288x4xf32>
    %55 = arith.mulf %50, %54 : vector<288x4xf32>
    %56 = vector.extract_strided_slice %2 {offsets = [38, 0], sizes = [288, 4], strides = [1, 1]} : vector<328x4xf32> to vector<288x4xf32>
    %57 = vector.extract_strided_slice %4 {offsets = [38, 0], sizes = [288, 1], strides = [1, 1]} : vector<328x1xf32> to vector<288x1xf32>
    %58 = arith.mulf %57, %7 : vector<288x1xf32>
    %59 = arith.addf %58, %5 : vector<288x1xf32>
    %60 = vector.broadcast %59 : vector<288x1xf32> to vector<288x4xf32>
    %61 = arith.mulf %56, %60 : vector<288x4xf32>
    %cst_5 = arith.constant 0.000000e+00 : f32
    %62 = vector.broadcast %cst_5 : f32 to vector<288x56xf32>
    %63 = tpu.concatenate %8, %14, %20, %26, %32, %38, %44, %50, %56, %13, %19, %25, %31, %37, %43, %49 in 1 : vector<288x4xf32>, vector<288x4xf32>, vector<288x4xf32>, vector<288x4xf32>, vector<288x4xf32>, vector<288x4xf32>, vector<288x4xf32>, vector<288x4xf32>, vector<288x4xf32>, vector<288x4xf32>, vector<288x4xf32>, vector<288x4xf32>, vector<288x4xf32>, vector<288x4xf32>, vector<288x4xf32>, vector<288x4xf32> -> vector<288x64xf32>
    %64 = tpu.concatenate %55, %61, %62 in 1 : vector<288x4xf32>, vector<288x4xf32>, vector<288x56xf32> -> vector<288x64xf32>
    %65 = tpu.concatenate %63, %64 in 1 : vector<288x64xf32>, vector<288x64xf32> -> vector<288x128xf32>
    %66 = arith.truncf %65 : vector<288x128xf32> to vector<288x128xbf16>
    %c0_6 = arith.constant 0 : index
    %c0_7 = arith.constant 0 : index
    %67 = vector.load %arg3[%c0_6, %c0_7] : memref<128x256xbf16, #tpu.memory_space<vmem>>, vector<128x256xbf16>
    %cst_8 = arith.constant dense<0.000000e+00> : vector<288x256xf32>
    %68 = tpu.matmul %66, %67, %cst_8 {dimension_numbers = #tpu.dot_dimension_numbers<[1], [0], [0], [1], [0, 0, 1, 1], [], []>} : vector<288x128xbf16>, vector<128x256xbf16>, vector<288x256xf32> -> vector<288x256xf32>
    %c0_9 = arith.constant 0 : index
    %c0_10 = arith.constant 0 : index
    %69 = vector.load %arg4[%c0_9, %c0_10] : memref<1x256xf32, #tpu.memory_space<vmem>>, vector<1x256xf32>
    %70 = vector.broadcast %69 : vector<1x256xf32> to vector<288x256xf32>
    %71 = arith.addf %68, %70 : vector<288x256xf32>
    %72 = vector.extract_strided_slice %71 {offsets = [0, 0], sizes = [288, 128], strides = [1, 1]} : vector<288x256xf32> to vector<288x128xf32>
    %73 = vector.extract_strided_slice %71 {offsets = [0, 128], sizes = [288, 128], strides = [1, 1]} : vector<288x256xf32> to vector<288x128xf32>
    %74 = arith.negf %73 : vector<288x128xf32>
    %75 = math.exp %74 : vector<288x128xf32>
    %cst_11 = arith.constant 1.000000e+00 : f32
    %76 = vector.broadcast %cst_11 : f32 to vector<288x128xf32>
    %77 = arith.addf %76, %75 : vector<288x128xf32>
    %78 = arith.divf %76, %77 : vector<288x128xf32>
    %79 = arith.mulf %72, %78 : vector<288x128xf32>
    %cst_12 = arith.constant 0.000000e+00 : f32
    %80 = vector.broadcast %cst_12 : f32 to vector<288x128xf32>
    %81 = arith.cmpf oge, %79, %80 : vector<288x128xf32>
    %cst_13 = arith.constant 2.000000e-01 : f32
    %82 = vector.broadcast %cst_13 : f32 to vector<288x128xf32>
    %83 = arith.mulf %82, %79 : vector<288x128xf32>
    %84 = arith.select %81, %79, %83 : vector<288x128xi1>, vector<288x128xf32>
    %85 = arith.truncf %84 : vector<288x128xf32> to vector<288x128xbf16>
    %c0_14 = arith.constant 0 : index
    %c0_15 = arith.constant 0 : index
    %c0_16 = arith.constant 0 : index
    %86 = vector.load %arg5[%c0_14, %c0_15, %c0_16] : memref<1x288x128xbf16, #tpu.memory_space<vmem>>, vector<1x288x128xbf16>
    %87 = vector.shape_cast %86 : vector<1x288x128xbf16> to vector<288x128xbf16>
    %88 = vector.shape_cast %85 : vector<288x128xbf16> to vector<1x288x128xbf16>
    tpu.vector_store %arg5[%c0_14, %c0_15, %c0_16], %88 {strides = array<i32>} : memref<1x288x128xbf16, #tpu.memory_space<vmem>>, vector<1x288x128xbf16>,
    return
  }
  func.func @transform_0(%arg0: i32) -> (i32, i32, i32) {
    %c0_i32 = arith.constant 0 : i32
    %c0_i32_0 = arith.constant 0 : i32
    %c0_i32_1 = arith.constant 0 : i32
    return %arg0, %c0_i32, %c0_i32_0 : i32, i32, i32
  }
  func.func @transform_1(%arg0: i32) -> (i32, i32, i32) {
    %c0_i32 = arith.constant 0 : i32
    %c0_i32_0 = arith.constant 0 : i32
    %c0_i32_1 = arith.constant 0 : i32
    return %arg0, %c0_i32, %c0_i32_0 : i32, i32, i32
  }
  func.func @transform_2(%arg0: i32) -> (i32, i32) {
    %c0_i32 = arith.constant 0 : i32
    %c0_i32_0 = arith.constant 0 : i32
    %c0_i32_1 = arith.constant 0 : i32
    return %c0_i32, %c0_i32_0 : i32, i32
  }
  func.func @transform_3(%arg0: i32) -> (i32, i32) {
    %c0_i32 = arith.constant 0 : i32
    %c0_i32_0 = arith.constant 0 : i32
    %c0_i32_1 = arith.constant 0 : i32
    return %c0_i32, %c0_i32_0 : i32, i32
  }
  func.func @transform_4(%arg0: i32) -> (i32, i32, i32) {
    %c0_i32 = arith.constant 0 : i32
    %c0_i32_0 = arith.constant 0 : i32
    %c0_i32_1 = arith.constant 0 : i32
    return %arg0, %c0_i32, %c0_i32_0 : i32, i32, i32
  }
}

</mosaic_0001>

<llo_original>
// kernel: gated_conv2d.1
$region0: #{gated_conv2d.1}
  #allocation0 [shape = 'u32[]', space=smem, size = 0x4, offset = 0x4, fixed_abs, tag = 'smem constant byte address 0x4 - core index']
  #allocation1 [shape = 'u32[144,128]{1,0:T(1,128)}', space=vmem, size = 0x12000, scoped, tag = 'internal scratch']
  %s0 = inlined_call_operand.vmem [shape: bf16[2,328,4], index: 0, kind: input, shape index: {}]
  %s1 = inlined_call_operand.vmem [shape: f32[2,328,1], index: 1, kind: input, shape index: {}]
  %s2 = inlined_call_operand.vmem [shape: bf16[128,256], index: 2, kind: input, shape index: {}]
  %s3 = inlined_call_operand.vmem [shape: f32[1,256], index: 3, kind: input, shape index: {}]
  %s4 = inlined_call_operand.vmem [shape: bf16[2,288,128], index: 4, kind: output, shape index: {}]
  %s5 = sld [smem:[#allocation0]]
  $region49: #{gated_conv2d.1} parent=0
    _
  %s7 = ssub.s32 1, %s5
  %s8 = scalar_select 0, %s7, %s5
  loop: start=0, step=1, limit=4
  $region2: #{gated_conv2d.1} parent=0 // loop_pre_header
    _
  $region3: #{gated_conv2d.1} parent=0 // loop_header
    %s10 = sphi 0, %s14
    %p11 = scmp.ge.s32.totalorder %s10, 4
    %s20 = sphi 0, %s22
    %s23 = sphi 0, %s20
    %s24 = sphi 0, %s23
    %s40 = sphi 0, %s24
    %s46 = sphi 0, %s48
    %s49 = sphi 0, %s46
    %s50 = sphi 0, %s49
    %s66 = sphi 0, %s50
    %s70 = sphi 0, %s70
    %s72 = sphi 0, %s70
    %s73 = sphi 0, %s72
    %s87 = sphi 0, %s73
    %s91 = sphi 0, %s91
    %s93 = sphi 0, %s91
    %s94 = sphi 0, %s93
    %s108 = sphi 0, %s94
    %s114 = sphi 0, %s116
    %s117 = sphi 0, %s114
    %s118 = sphi 0, %s117
    %s134 = sphi 0, %s118
  $region4: #{gated_conv2d.1} parent=0 // loop_header_branch
    %13 = sbr.rel (%p11) target = $region8
  $region5: #{gated_conv2d.1} parent=0 // loop_body
    %s15 = ssub.s32 %s10, 1
    %s16 = ssub.s32 %s10, 2
    %s17 = sadd.s32 %s10, 1
    %s18 = ssub.s32 %s10, %s17
    %p19 = scmp.eq.s32.totalorder %s18, 0
    %s21 = sadd.s32 %s20, 1
    %s22 = scalar_select %p19, %s20, %s21
    %p25 = pneg %p19
    %p26 = scmp.eq.s32.totalorder %s10, 1
    %p27 = por %p25, %p26
    %p28 = scmp.ne.s32.totalorder %s20, %s23
    %p29 = scmp.eq.s32.totalorder %s10, 0
    %p30 = por %p28, %p29
    %p31 = scmp.ne.s32.totalorder %s20, %s23
    %p32 = scmp.eq.s32.totalorder %s15, 1
    %p33 = por %p31, %p32
    %p34 = scmp.ne.s32.totalorder %s23, %s24
    %p35 = scmp.eq.s32.totalorder %s15, 0
    %p36 = por %p34, %p35
    %p37 = scmp.ne.s32.totalorder %s23, %s24
    %p38 = scmp.eq.s32.totalorder %s16, 1
    %p39 = por %p37, %p38
    %p41 = scmp.ne.s32.totalorder %s24, %s40
    %p42 = scmp.eq.s32.totalorder %s16, 0
    %p43 = por %p41, %p42
    %s44 = ssub.s32 %s10, %s17
    %p45 = scmp.eq.s32.totalorder %s44, 0
    %s47 = sadd.s32 %s46, 1
    %s48 = scalar_select %p45, %s46, %s47
    %p51 = pneg %p45
    %p52 = scmp.eq.s32.totalorder %s10, 1
    %p53 = por %p51, %p52
    %p54 = scmp.ne.s32.totalorder %s46, %s49
    %p55 = scmp.eq.s32.totalorder %s10, 0
    %p56 = por %p54, %p55
    %p57 = scmp.ne.s32.totalorder %s46, %s49
    %p58 = scmp.eq.s32.totalorder %s15, 1
    %p59 = por %p57, %p58
    %p60 = scmp.ne.s32.totalorder %s49, %s50
    %p61 = scmp.eq.s32.totalorder %s15, 0
    %p62 = por %p60, %p61
    %p63 = scmp.ne.s32.totalorder %s49, %s50
    %p64 = scmp.eq.s32.totalorder %s16, 1
    %p65 = por %p63, %p64
    %p67 = scmp.ne.s32.totalorder %s50, %s66
    %p68 = scmp.eq.s32.totalorder %s16, 0
    %p69 = por %p67, %p68
    %s71 = sadd.s32 %s70, 1
    %p74 = scmp.eq.s32.totalorder %s10, 1
    %p75 = scmp.ne.s32.totalorder %s70, %s72
    %p76 = scmp.eq.s32.totalorder %s10, 0
    %p77 = por %p75, %p76
    %p78 = scmp.ne.s32.totalorder %s70, %s72
    %p79 = scmp.eq.s32.totalorder %s15, 1
    %p80 = por %p78, %p79
    %p81 = scmp.ne.s32.totalorder %s72, %s73
    %p82 = scmp.eq.s32.totalorder %s15, 0
    %p83 = por %p81, %p82
    %p84 = scmp.ne.s32.totalorder %s72, %s73
    %p85 = scmp.eq.s32.totalorder %s16, 1
    %p86 = por %p84, %p85
    %p88 = scmp.ne.s32.totalorder %s73, %s87
    %p89 = scmp.eq.s32.totalorder %s16, 0
    %p90 = por %p88, %p89
    %s92 = sadd.s32 %s91, 1
    %p95 = scmp.eq.s32.totalorder %s10, 1
    %p96 = scmp.ne.s32.totalorder %s91, %s93
    %p97 = scmp.eq.s32.totalorder %s10, 0
    %p98 = por %p96, %p97
    %p99 = scmp.ne.s32.totalorder %s91, %s93
    %p100 = scmp.eq.s32.totalorder %s15, 1
    %p101 = por %p99, %p100
    %p102 = scmp.ne.s32.totalorder %s93, %s94
    %p103 = scmp.eq.s32.totalorder %s15, 0
    %p104 = por %p102, %p103
    %p105 = scmp.ne.s32.totalorder %s93, %s94
    %p106 = scmp.eq.s32.totalorder %s16, 1
    %p107 = por %p105, %p106
    %p109 = scmp.ne.s32.totalorder %s94, %s108
    %p110 = scmp.eq.s32.totalorder %s16, 0
    %p111 = por %p109, %p110
    %s112 = ssub.s32 %s10, %s17
    %p113 = scmp.eq.s32.totalorder %s112, 0
    %s115 = sadd.s32 %s114, 1
    %s116 = scalar_select %p113, %s114, %s115
    %p119 = pneg %p113
    %p120 = scmp.eq.s32.totalorder %s10, 1
    %p121 = por %p119, %p120
    %p122 = scmp.ne.s32.totalorder %s114, %s117
    %p123 = scmp.eq.s32.totalorder %s10, 0
    %p124 = por %p122, %p123
    %p125 = scmp.ne.s32.totalorder %s114, %s117
    %p126 = scmp.eq.s32.totalorder %s15, 1
    %p127 = por %p125, %p126
    %p128 = scmp.ne.s32.totalorder %s117, %s118
    %p129 = scmp.eq.s32.totalorder %s15, 0
    %p130 = por %p128, %p129
    %p131 = scmp.ne.s32.totalorder %s117, %s118
    %p132 = scmp.eq.s32.totalorder %s16, 1
    %p133 = por %p131, %p132
    %p135 = scmp.ne.s32.totalorder %s118, %s134
    %p136 = scmp.eq.s32.totalorder %s16, 0
    %p137 = por %p135, %p136
    %p138 = scmp.le.s32.totalorder 1, %s10
    %p139 = scmp.lt.s32.totalorder %s10, 3
    %p140 = pnand %p138, %p139
    %p141 = pneg %p140
    // Predicated region
    $region9: #{gated_conv2d.1} parent=5 // pred_check
      _
    $region10: #{gated_conv2d.1} parent=5 // pred_check_branch
      %143 = sbr.rel (%p140) target = $region12
    $region11: #{gated_conv2d.1} parent=5 // pred_region
      %s144 = ssub.s32 %s10, 1
      // Predicated region
      $region13: #{gated_conv2d.1} parent=11 // pred_check
        %p145 = pneg %p83
      $region14: #{gated_conv2d.1} parent=11 // pred_check_branch
        %147 = sbr.rel (%p145) target = $region16
      $region15: #{gated_conv2d.1} parent=11 // pred_region
        _
      $region16: #{gated_conv2d.1} parent=11 // pred_fallthru
        _
      // Predicated region
      $region17: #{gated_conv2d.1} parent=11 // pred_check
        %p148 = pneg %p104
      $region18: #{gated_conv2d.1} parent=11 // pred_check_branch
        %150 = sbr.rel (%p148) target = $region20
      $region19: #{gated_conv2d.1} parent=11 // pred_region
        _
      $region20: #{gated_conv2d.1} parent=11 // pred_fallthru
        _
    $region12: #{gated_conv2d.1} parent=5 // pred_fallthru
      _
    %p151 = scmp.lt.s32.totalorder %s10, 2
    // Predicated region
    $region21: #{gated_conv2d.1} parent=5 // pred_check
      %p152 = pneg %p151
    $region22: #{gated_conv2d.1} parent=5 // pred_check_branch
      %154 = sbr.rel (%p152) target = $region24
    $region23: #{gated_conv2d.1} parent=5 // pred_region
      // Predicated region
      $region25: #{gated_conv2d.1} parent=23 // pred_check
        %p155 = pneg %p30
      $region26: #{gated_conv2d.1} parent=23 // pred_check_branch
        %157 = sbr.rel (%p155) target = $region28
      $region27: #{gated_conv2d.1} parent=23 // pred_region
        %p158 = scmp.lt.s32.totalorder %s10, 1
        %s159 = scalar_select %p158, %s10, 1
        %s160 = smul.addr %s159, 41
        %s161 = smul.addr %s160, 4
        %s162 = scalar_lea.vmem %s0, %s161
      $region28: #{gated_conv2d.1} parent=23 // pred_fallthru
        _
      // Predicated region
      $region29: #{gated_conv2d.1} parent=23 // pred_check
        %p163 = pneg %p56
      $region30: #{gated_conv2d.1} parent=23 // pred_check_branch
        %165 = sbr.rel (%p163) target = $region32
      $region31: #{gated_conv2d.1} parent=23 // pred_region
        %p166 = scmp.lt.s32.totalorder %s10, 1
        %s167 = scalar_select %p166, %s10, 1
        %s168 = smul.addr %s167, 41
        %s169 = smul.addr %s168, 8
        %s170 = scalar_lea.vmem %s1, %s169
      $region32: #{gated_conv2d.1} parent=23 // pred_fallthru
        _
    $region24: #{gated_conv2d.1} parent=5 // pred_fallthru
      _
    %p171 = scmp.le.s32.totalorder 1, %s10
    %p172 = scmp.lt.s32.totalorder %s10, 3
    %p173 = pnand %p171, %p172
    %p174 = pneg %p173
    // Predicated region
    $region33: #{gated_conv2d.1} parent=5 // pred_check
      _
    $region34: #{gated_conv2d.1} parent=5 // pred_check_branch
      %176 = sbr.rel (%p173) target = $region36
    $region35: #{gated_conv2d.1} parent=5 // pred_region
      %s177 = ssub.s32 %s10, 1
      %p178 = scmp.lt.s32.totalorder %s15, 1
      %s179 = scalar_select %p178, %s15, 1
      %s180 = smul.addr %s179, 41
      %s181 = smul.addr %s180, 4
      %s182 = scalar_lea.vmem %s0, %s181
      %p183 = pneg %p36
      %p184 = pneg %p33
      %p185 = scmp.lt.s32.totalorder %s15, 1
      %s186 = scalar_select %p185, %s15, 1
      %s187 = smul.addr %s186, 41
      %s188 = smul.addr %s187, 8
      %s189 = scalar_lea.vmem %s1, %s188
      %p190 = pneg %p62
      %p191 = pneg %p59
      %p192 = pneg %p83
      %p193 = pneg %p80
      %p194 = pneg %p104
      %p195 = pneg %p101
      %p196 = pneg %p130
      %p197 = pneg %p127
      %p198 = scmp.lt.s32.totalorder %s15, 1
      %s199 = scalar_select %p198, %s15, 1
      %s200 = smul.addr %s199, 36
      %s201 = smul.addr %s200, 4
      %s202 = scalar_lea.vmem %s4, %s201
      %p203 = scmp.lt.s32.totalorder %s15, 1
      %s204 = scalar_select %p203, %s15, 1
      %s205 = smul.addr %s204, 41
      %s206 = smul.addr %s205, 4
      %s207 = scalar_lea.vmem %s0, %s206
      %p208 = scmp.lt.s32.totalorder %s15, 1
      %s209 = scalar_select %p208, %s15, 1
      %s210 = smul.addr %s209, 41
      %s211 = smul.addr %s210, 8
      %s212 = scalar_lea.vmem %s1, %s211
      %p213 = scmp.lt.s32.totalorder %s15, 1
      %s214 = scalar_select %p213, %s15, 1
      %s215 = smul.addr %s214, 36
      %s216 = smul.addr %s215, 4
      %s217 = scalar_lea.vmem %s4, %s216
      %v219 = vld [vmem:[%s207] sm:$0xf]
      %v220 = vld [vmem:[%s207 + $0x4] sm:$0xf]
      %v221 = vld [vmem:[%s207 + $0x8] sm:$0xf]
      %v222 = vld [vmem:[%s207 + $0xc] sm:$0xf]
      %v223 = vld [vmem:[%s207 + $0x10] sm:$0xf]
      %v224 = vld [vmem:[%s207 + $0x14] sm:$0xf]
      %v225 = vld [vmem:[%s207 + $0x18] sm:$0xf]
      %v226 = vld [vmem:[%s207 + $0x1c] sm:$0xf]
      %v227 = vld [vmem:[%s207 + $0x20] sm:$0xf]
      %v228 = vld [vmem:[%s207 + $0x24] sm:$0xf]
      %v229 = vld [vmem:[%s207 + $0x28] sm:$0xf]
      %v230 = vld [vmem:[%s207 + $0x2c] sm:$0xf]
      %v231 = vld [vmem:[%s207 + $0x30] sm:$0xf]
      %v232 = vld [vmem:[%s207 + $0x34] sm:$0xf]
      %v233 = vld [vmem:[%s207 + $0x38] sm:$0xf]
      %v234 = vld [vmem:[%s207 + $0x3c] sm:$0xf]
      %v235 = vld [vmem:[%s207 + $0x40] sm:$0xf]
      %v236 = vld [vmem:[%s207 + $0x44] sm:$0xf]
      %v237 = vld [vmem:[%s207 + $0x48] sm:$0xf]
      %v238 = vld [vmem:[%s207 + $0x4c] sm:$0xf]
      %v239 = vld [vmem:[%s207 + $0x50] sm:$0xf]
      %v240 = vld [vmem:[%s207 + $0x54] sm:$0xf]
      %v241 = vld [vmem:[%s207 + $0x58] sm:$0xf]
      %v242 = vld [vmem:[%s207 + $0x5c] sm:$0xf]
      %v243 = vld [vmem:[%s207 + $0x60] sm:$0xf]
      %v244 = vld [vmem:[%s207 + $0x64] sm:$0xf]
      %v245 = vld [vmem:[%s207 + $0x68] sm:$0xf]
      %v246 = vld [vmem:[%s207 + $0x6c] sm:$0xf]
      %v247 = vld [vmem:[%s207 + $0x70] sm:$0xf]
      %v248 = vld [vmem:[%s207 + $0x74] sm:$0xf]
      %v249 = vld [vmem:[%s207 + $0x78] sm:$0xf]
      %v250 = vld [vmem:[%s207 + $0x7c] sm:$0xf]
      %v251 = vld [vmem:[%s207 + $0x80] sm:$0xf]
      %v252 = vld [vmem:[%s207 + $0x84] sm:$0xf]
      %v253 = vld [vmem:[%s207 + $0x88] sm:$0xf]
      %v254 = vld [vmem:[%s207 + $0x8c] sm:$0xf]
      %v255 = vld [vmem:[%s207 + $0x90] sm:$0xf]
      %v256 = vld [vmem:[%s207 + $0x94] sm:$0xf]
      %v257 = vld [vmem:[%s207 + $0x98] sm:$0xf]
      %v258 = vld [vmem:[%s207 + $0x9c] sm:$0xf]
      %v259 = vld [vmem:[%s207 + $0xa0] sm:$0xf]
      %v260 = vunpack.c.l.bf16 %v219
      %v261 = vunpack.c.l.bf16 %v220
      %v262 = vunpack.c.l.bf16 %v221
      %v263 = vunpack.c.l.bf16 %v222
      %v264 = vunpack.c.l.bf16 %v223
      %v265 = vunpack.c.l.bf16 %v224
      %v266 = vunpack.c.l.bf16 %v225
      %v267 = vunpack.c.l.bf16 %v226
      %v268 = vunpack.c.l.bf16 %v227
      %v269 = vunpack.c.l.bf16 %v228
      %v270 = vunpack.c.l.bf16 %v229
      %v271 = vunpack.c.l.bf16 %v230
      %v272 = vunpack.c.l.bf16 %v231
      %v273 = vunpack.c.l.bf16 %v232
      %v274 = vunpack.c.l.bf16 %v233
      %v275 = vunpack.c.l.bf16 %v234
      %v276 = vunpack.c.l.bf16 %v235
      %v277 = vunpack.c.l.bf16 %v236
      %v278 = vunpack.c.l.bf16 %v237
      %v279 = vunpack.c.l.bf16 %v238
      %v280 = vunpack.c.l.bf16 %v239
      %v281 = vunpack.c.l.bf16 %v240
      %v282 = vunpack.c.l.bf16 %v241
      %v283 = vunpack.c.l.bf16 %v242
      %v284 = vunpack.c.l.bf16 %v243
      %v285 = vunpack.c.l.bf16 %v244
      %v286 = vunpack.c.l.bf16 %v245
      %v287 = vunpack.c.l.bf16 %v246
      %v288 = vunpack.c.l.bf16 %v247
      %v289 = vunpack.c.l.bf16 %v248
      %v290 = vunpack.c.l.bf16 %v249
      %v291 = vunpack.c.l.bf16 %v250
      %v292 = vunpack.c.l.bf16 %v251
      %v293 = vunpack.c.l.bf16 %v252
      %v294 = vunpack.c.l.bf16 %v253
      %v295 = vunpack.c.l.bf16 %v254
      %v296 = vunpack.c.l.bf16 %v255
      %v297 = vunpack.c.l.bf16 %v256
      %v298 = vunpack.c.l.bf16 %v257
      %v299 = vunpack.c.l.bf16 %v258
      %v300 = vunpack.c.l.bf16 %v259
      %v301 = vld [vmem:[%s212] sm:$0xff]
      %v302 = vld [vmem:[%s212 + $0x8] sm:$0xff]
      %v303 = vld [vmem:[%s212 + $0x10] sm:$0xff]
      %v304 = vld [vmem:[%s212 + $0x18] sm:$0xff]
      %v305 = vld [vmem:[%s212 + $0x20] sm:$0xff]
      %v306 = vld [vmem:[%s212 + $0x28] sm:$0xff]
      %v307 = vld [vmem:[%s212 + $0x30] sm:$0xff]
      %v308 = vld [vmem:[%s212 + $0x38] sm:$0xff]
      %v309 = vld [vmem:[%s212 + $0x40] sm:$0xff]
      %v310 = vld [vmem:[%s212 + $0x48] sm:$0xff]
      %v311 = vld [vmem:[%s212 + $0x50] sm:$0xff]
      %v312 = vld [vmem:[%s212 + $0x58] sm:$0xff]
      %v313 = vld [vmem:[%s212 + $0x60] sm:$0xff]
      %v314 = vld [vmem:[%s212 + $0x68] sm:$0xff]
      %v315 = vld [vmem:[%s212 + $0x70] sm:$0xff]
      %v316 = vld [vmem:[%s212 + $0x78] sm:$0xff]
      %v317 = vld [vmem:[%s212 + $0x80] sm:$0xff]
      %v318 = vld [vmem:[%s212 + $0x88] sm:$0xff]
      %v319 = vld [vmem:[%s212 + $0x90] sm:$0xff]
      %v320 = vld [vmem:[%s212 + $0x98] sm:$0xff]
      %v321 = vld [vmem:[%s212 + $0xa0] sm:$0xff]
      %v322 = vld [vmem:[%s212 + $0xa8] sm:$0xff]
      %v323 = vld [vmem:[%s212 + $0xb0] sm:$0xff]
      %v324 = vld [vmem:[%s212 + $0xb8] sm:$0xff]
      %v325 = vld [vmem:[%s212 + $0xc0] sm:$0xff]
      %v326 = vld [vmem:[%s212 + $0xc8] sm:$0xff]
      %v327 = vld [vmem:[%s212 + $0xd0] sm:$0xff]
      %v328 = vld [vmem:[%s212 + $0xd8] sm:$0xff]
      %v329 = vld [vmem:[%s212 + $0xe0] sm:$0xff]
      %v330 = vld [vmem:[%s212 + $0xe8] sm:$0xff]
      %v331 = vld [vmem:[%s212 + $0xf0] sm:$0xff]
      %v332 = vld [vmem:[%s212 + $0xf8] sm:$0xff]
      %v333 = vld [vmem:[%s212 + $0x100] sm:$0xff]
      %v334 = vld [vmem:[%s212 + $0x108] sm:$0xff]
      %v335 = vld [vmem:[%s212 + $0x110] sm:$0xff]
      %v336 = vld [vmem:[%s212 + $0x118] sm:$0xff]
      %v337 = vld [vmem:[%s212 + $0x120] sm:$0xff]
      %v338 = vld [vmem:[%s212 + $0x128] sm:$0xff]
      %v339 = vld [vmem:[%s212 + $0x130] sm:$0xff]
      %v340 = vld [vmem:[%s212 + $0x138] sm:$0xff]
      %v341 = vld [vmem:[%s212 + $0x140] sm:$0xff]
      %v342 = vsub.f32 1.0, %v303
      %v343 = vsub.f32 1.0, %v304
      %v344 = vsub.f32 1.0, %v305
      %v345 = vsub.f32 1.0, %v306
      %v346 = vsub.f32 1.0, %v307
      %v347 = vsub.f32 1.0, %v308
      %v348 = vsub.f32 1.0, %v309
      %v349 = vsub.f32 1.0, %v310
      %v350 = vsub.f32 1.0, %v311
      %v351 = vsub.f32 1.0, %v312
      %v352 = vsub.f32 1.0, %v313
      %v353 = vsub.f32 1.0, %v314
      %v354 = vsub.f32 1.0, %v315
      %v355 = vsub.f32 1.0, %v316
      %v356 = vsub.f32 1.0, %v317
      %v357 = vsub.f32 1.0, %v318
      %v358 = vsub.f32 1.0, %v319
      %v359 = vsub.f32 1.0, %v320
      %v360 = vsub.f32 1.0, %v321
      %v361 = vsub.f32 1.0, %v322
      %v362 = vsub.f32 1.0, %v323
      %v363 = vsub.f32 1.0, %v324
      %v364 = vsub.f32 1.0, %v325
      %v365 = vsub.f32 1.0, %v326
      %v366 = vsub.f32 1.0, %v327
      %v367 = vsub.f32 1.0, %v328
      %v368 = vsub.f32 1.0, %v329
      %v369 = vsub.f32 1.0, %v330
      %v370 = vsub.f32 1.0, %v331
      %v371 = vsub.f32 1.0, %v332
      %v372 = vsub.f32 1.0, %v333
      %v373 = vsub.f32 1.0, %v334
      %v374 = vsub.f32 1.0, %v335
      %v375 = vsub.f32 1.0, %v336
      %v376 = vsub.f32 1.0, %v337
      %v377 = vsub.f32 1.0, %v338
      %v378 = vsub.f32 1.0, %v339
      %vm416 = vcmask 1044480
      %v417 = vrot.slane %v342, 3
      %v418 = vrot.slane %v343, 3
      %v419 = vsel %vm416, %v417, %v418
      %v420 = vrot.slane %v344, 3
      %v421 = vsel %vm416, %v418, %v420
      %v422 = vrot.slane %v345, 3
      %v423 = vsel %vm416, %v420, %v422
      %v424 = vrot.slane %v346, 3
      %v425 = vsel %vm416, %v422, %v424
      %v426 = vrot.slane %v347, 3
      %v427 = vsel %vm416, %v424, %v426
      %v428 = vrot.slane %v348, 3
      %v429 = vsel %vm416, %v426, %v428
      %v430 = vrot.slane %v349, 3
      %v431 = vsel %vm416, %v428, %v430
      %v432 = vrot.slane %v350, 3
      %v433 = vsel %vm416, %v430, %v432
      %v434 = vrot.slane %v351, 3
      %v435 = vsel %vm416, %v432, %v434
      %v436 = vrot.slane %v352, 3
      %v437 = vsel %vm416, %v434, %v436
      %v438 = vrot.slane %v353, 3
      %v439 = vsel %vm416, %v436, %v438
      %v440 = vrot.slane %v354, 3
      %v441 = vsel %vm416, %v438, %v440
      %v442 = vrot.slane %v355, 3
      %v443 = vsel %vm416, %v440, %v442
      %v444 = vrot.slane %v356, 3
      %v445 = vsel %vm416, %v442, %v444
      %v446 = vrot.slane %v357, 3
      %v447 = vsel %vm416, %v444, %v446
      %v448 = vrot.slane %v358, 3
      %v449 = vsel %vm416, %v446, %v448
      %v450 = vrot.slane %v359, 3
      %v451 = vsel %vm416, %v448, %v450
      %v452 = vrot.slane %v360, 3
      %v453 = vsel %vm416, %v450, %v452
      %v454 = vrot.slane %v361, 3
      %v455 = vsel %vm416, %v452, %v454
      %v456 = vrot.slane %v362, 3
      %v457 = vsel %vm416, %v454, %v456
      %v458 = vrot.slane %v363, 3
      %v459 = vsel %vm416, %v456, %v458
      %v460 = vrot.slane %v364, 3
      %v461 = vsel %vm416, %v458, %v460
      %v462 = vrot.slane %v365, 3
      %v463 = vsel %vm416, %v460, %v462
      %v464 = vrot.slane %v366, 3
      %v465 = vsel %vm416, %v462, %v464
      %v466 = vrot.slane %v367, 3
      %v467 = vsel %vm416, %v464, %v466
      %v468 = vrot.slane %v368, 3
      %v469 = vsel %vm416, %v466, %v468
      %v470 = vrot.slane %v369, 3
      %v471 = vsel %vm416, %v468, %v470
      %v472 = vrot.slane %v370, 3
      %v473 = vsel %vm416, %v470, %v472
      %v474 = vrot.slane %v371, 3
      %v475 = vsel %vm416, %v472, %v474
      %v476 = vrot.slane %v372, 3
      %v477 = vsel %vm416, %v474, %v476
      %v478 = vrot.slane %v373, 3
      %v479 = vsel %vm416, %v476, %v478
      %v480 = vrot.slane %v374, 3
      %v481 = vsel %vm416, %v478, %v480
      %v482 = vrot.slane %v375, 3
      %v483 = vsel %vm416, %v480, %v482
      %v484 = vrot.slane %v376, 3
      %v485 = vsel %vm416, %v482, %v484
      %v486 = vrot.slane %v377, 3
      %v487 = vsel %vm416, %v484, %v486
      %v488 = vrot.slane %v378, 3
      %v489 = vsel %vm416, %v486, %v488
      %v526 = vmul.f32 %v301, %v419
      %v527 = vmul.f32 %v302, %v421
      %v528 = vmul.f32 %v303, %v423
      %v529 = vmul.f32 %v304, %v425
      %v530 = vmul.f32 %v305, %v427
      %v531 = vmul.f32 %v306, %v429
      %v532 = vmul.f32 %v307, %v431
      %v533 = vmul.f32 %v308, %v433
      %v534 = vmul.f32 %v309, %v435
      %v535 = vmul.f32 %v310, %v437
      %v536 = vmul.f32 %v311, %v439
      %v537 = vmul.f32 %v312, %v441
      %v538 = vmul.f32 %v313, %v443
      %v539 = vmul.f32 %v314, %v445
      %v540 = vmul.f32 %v315, %v447
      %v541 = vmul.f32 %v316, %v449
      %v542 = vmul.f32 %v317, %v451
      %v543 = vmul.f32 %v318, %v453
      %v544 = vmul.f32 %v319, %v455
      %v545 = vmul.f32 %v320, %v457
      %v546 = vmul.f32 %v321, %v459
      %v547 = vmul.f32 %v322, %v461
      %v548 = vmul.f32 %v323, %v463
      %v549 = vmul.f32 %v324, %v465
      %v550 = vmul.f32 %v325, %v467
      %v551 = vmul.f32 %v326, %v469
      %v552 = vmul.f32 %v327, %v471
      %v553 = vmul.f32 %v328, %v473
      %v554 = vmul.f32 %v329, %v475
      %v555 = vmul.f32 %v330, %v477
      %v556 = vmul.f32 %v331, %v479
      %v557 = vmul.f32 %v332, %v481
      %v558 = vmul.f32 %v333, %v483
      %v559 = vmul.f32 %v334, %v485
      %v560 = vmul.f32 %v335, %v487
      %v561 = vmul.f32 %v336, %v489
      %v599 = vrot.slane %v303, 3
      %v600 = vrot.slane %v304, 3
      %v601 = vsel %vm416, %v599, %v600
      %v602 = vrot.slane %v305, 3
      %v603 = vsel %vm416, %v600, %v602
      %v604 = vrot.slane %v306, 3
      %v605 = vsel %vm416, %v602, %v604
      %v606 = vrot.slane %v307, 3
      %v607 = vsel %vm416, %v604, %v606
      %v608 = vrot.slane %v308, 3
      %v609 = vsel %vm416, %v606, %v608
      %v610 = vrot.slane %v309, 3
      %v611 = vsel %vm416, %v608, %v610
      %v612 = vrot.slane %v310, 3
      %v613 = vsel %vm416, %v610, %v612
      %v614 = vrot.slane %v311, 3
      %v615 = vsel %vm416, %v612, %v614
      %v616 = vrot.slane %v312, 3
      %v617 = vsel %vm416, %v614, %v616
      %v618 = vrot.slane %v313, 3
      %v619 = vsel %vm416, %v616, %v618
      %v620 = vrot.slane %v314, 3
      %v621 = vsel %vm416, %v618, %v620
      %v622 = vrot.slane %v315, 3
      %v623 = vsel %vm416, %v620, %v622
      %v624 = vrot.slane %v316, 3
      %v625 = vsel %vm416, %v622, %v624
      %v626 = vrot.slane %v317, 3
      %v627 = vsel %vm416, %v624, %v626
      %v628 = vrot.slane %v318, 3
      %v629 = vsel %vm416, %v626, %v628
      %v630 = vrot.slane %v319, 3
      %v631 = vsel %vm416, %v628, %v630
      %v632 = vrot.slane %v320, 3
      %v633 = vsel %vm416, %v630, %v632
      %v634 = vrot.slane %v321, 3
      %v635 = vsel %vm416, %v632, %v634
      %v636 = vrot.slane %v322, 3
      %v637 = vsel %vm416, %v634, %v636
      %v638 = vrot.slane %v323, 3
      %v639 = vsel %vm416, %v636, %v638
      %v640 = vrot.slane %v324, 3
      %v641 = vsel %vm416, %v638, %v640
      %v642 = vrot.slane %v325, 3
      %v643 = vsel %vm416, %v640, %v642
      %v644 = vrot.slane %v326, 3
      %v645 = vsel %vm416, %v642, %v644
      %v646 = vrot.slane %v327, 3
      %v647 = vsel %vm416, %v644, %v646
      %v648 = vrot.slane %v328, 3
      %v649 = vsel %vm416, %v646, %v648
      %v650 = vrot.slane %v329, 3
      %v651 = vsel %vm416, %v648, %v650
      %v652 = vrot.slane %v330, 3
      %v653 = vsel %vm416, %v650, %v652
      %v654 = vrot.slane %v331, 3
      %v655 = vsel %vm416, %v652, %v654
      %v656 = vrot.slane %v332, 3
      %v657 = vsel %vm416, %v654, %v656
      %v658 = vrot.slane %v333, 3
      %v659 = vsel %vm416, %v656, %v658
      %v660 = vrot.slane %v334, 3
      %v661 = vsel %vm416, %v658, %v660
      %v662 = vrot.slane %v335, 3
      %v663 = vsel %vm416, %v660, %v662
      %v664 = vrot.slane %v336, 3
      %v665 = vsel %vm416, %v662, %v664
      %v666 = vrot.slane %v337, 3
      %v667 = vsel %vm416, %v664, %v666
      %v668 = vrot.slane %v338, 3
      %v669 = vsel %vm416, %v666, %v668
      %v670 = vrot.slane %v339, 3
      %v671 = vsel %vm416, %v668, %v670
      %v708 = vadd.f32 %v526, %v601
      %v709 = vadd.f32 %v527, %v603
      %v710 = vadd.f32 %v528, %v605
      %v711 = vadd.f32 %v529, %v607
      %v712 = vadd.f32 %v530, %v609
      %v713 = vadd.f32 %v531, %v611
      %v714 = vadd.f32 %v532, %v613
      %v715 = vadd.f32 %v533, %v615
      %v716 = vadd.f32 %v534, %v617
      %v717 = vadd.f32 %v535, %v619
      %v718 = vadd.f32 %v536, %v621
      %v719 = vadd.f32 %v537, %v623
      %v720 = vadd.f32 %v538, %v625
      %v721 = vadd.f32 %v539, %v627
      %v722 = vadd.f32 %v540, %v629
      %v723 = vadd.f32 %v541, %v631
      %v724 = vadd.f32 %v542, %v633
      %v725 = vadd.f32 %v543, %v635
      %v726 = vadd.f32 %v544, %v637
      %v727 = vadd.f32 %v545, %v639
      %v728 = vadd.f32 %v546, %v641
      %v729 = vadd.f32 %v547, %v643
      %v730 = vadd.f32 %v548, %v645
      %v731 = vadd.f32 %v549, %v647
      %v732 = vadd.f32 %v550, %v649
      %v733 = vadd.f32 %v551, %v651
      %v734 = vadd.f32 %v552, %v653
      %v735 = vadd.f32 %v553, %v655
      %v736 = vadd.f32 %v554, %v657
      %v737 = vadd.f32 %v555, %v659
      %v738 = vadd.f32 %v556, %v661
      %v739 = vadd.f32 %v557, %v663
      %v740 = vadd.f32 %v558, %v665
      %v741 = vadd.f32 %v559, %v667
      %v742 = vadd.f32 %v560, %v669
      %v743 = vadd.f32 %v561, %v671
      %745 = vset.pattern.permute.xlu0 0
      %746 = vperm.xlu0 %745, %v708
      %v747 = vpop.permute.xlu0 %746
      %750 = vset.pattern.permute.xlu0 0
      %751 = vperm.xlu0 %750, %v709
      %v752 = vpop.permute.xlu0 %751
      %755 = vset.pattern.permute.xlu0 0
      %756 = vperm.xlu0 %755, %v710
      %v757 = vpop.permute.xlu0 %756
      %760 = vset.pattern.permute.xlu0 0
      %761 = vperm.xlu0 %760, %v711
      %v762 = vpop.permute.xlu0 %761
      %765 = vset.pattern.permute.xlu0 0
      %766 = vperm.xlu0 %765, %v712
      %v767 = vpop.permute.xlu0 %766
      %770 = vset.pattern.permute.xlu0 0
      %771 = vperm.xlu0 %770, %v713
      %v772 = vpop.permute.xlu0 %771
      %775 = vset.pattern.permute.xlu0 0
      %776 = vperm.xlu0 %775, %v714
      %v777 = vpop.permute.xlu0 %776
      %780 = vset.pattern.permute.xlu0 0
      %781 = vperm.xlu0 %780, %v715
      %v782 = vpop.permute.xlu0 %781
      %785 = vset.pattern.permute.xlu0 0
      %786 = vperm.xlu0 %785, %v716
      %v787 = vpop.permute.xlu0 %786
      %790 = vset.pattern.permute.xlu0 0
      %791 = vperm.xlu0 %790, %v717
      %v792 = vpop.permute.xlu0 %791
      %795 = vset.pattern.permute.xlu0 0
      %796 = vperm.xlu0 %795, %v718
      %v797 = vpop.permute.xlu0 %796
      %800 = vset.pattern.permute.xlu0 0
      %801 = vperm.xlu0 %800, %v719
      %v802 = vpop.permute.xlu0 %801
      %805 = vset.pattern.permute.xlu0 0
      %806 = vperm.xlu0 %805, %v720
      %v807 = vpop.permute.xlu0 %806
      %810 = vset.pattern.permute.xlu0 0
      %811 = vperm.xlu0 %810, %v721
      %v812 = vpop.permute.xlu0 %811
      %815 = vset.pattern.permute.xlu0 0
      %816 = vperm.xlu0 %815, %v722
      %v817 = vpop.permute.xlu0 %816
      %820 = vset.pattern.permute.xlu0 0
      %821 = vperm.xlu0 %820, %v723
      %v822 = vpop.permute.xlu0 %821
      %825 = vset.pattern.permute.xlu0 0
      %826 = vperm.xlu0 %825, %v724
      %v827 = vpop.permute.xlu0 %826
      %830 = vset.pattern.permute.xlu0 0
      %831 = vperm.xlu0 %830, %v725
      %v832 = vpop.permute.xlu0 %831
      %835 = vset.pattern.permute.xlu0 0
      %836 = vperm.xlu0 %835, %v726
      %v837 = vpop.permute.xlu0 %836
      %840 = vset.pattern.permute.xlu0 0
      %841 = vperm.xlu0 %840, %v727
      %v842 = vpop.permute.xlu0 %841
      %845 = vset.pattern.permute.xlu0 0
      %846 = vperm.xlu0 %845, %v728
      %v847 = vpop.permute.xlu0 %846
      %850 = vset.pattern.permute.xlu0 0
      %851 = vperm.xlu0 %850, %v729
      %v852 = vpop.permute.xlu0 %851
      %855 = vset.pattern.permute.xlu0 0
      %856 = vperm.xlu0 %855, %v730
      %v857 = vpop.permute.xlu0 %856
      %860 = vset.pattern.permute.xlu0 0
      %861 = vperm.xlu0 %860, %v731
      %v862 = vpop.permute.xlu0 %861
      %865 = vset.pattern.permute.xlu0 0
      %866 = vperm.xlu0 %865, %v732
      %v867 = vpop.permute.xlu0 %866
      %870 = vset.pattern.permute.xlu0 0
      %871 = vperm.xlu0 %870, %v733
      %v872 = vpop.permute.xlu0 %871
      %875 = vset.pattern.permute.xlu0 0
      %876 = vperm.xlu0 %875, %v734
      %v877 = vpop.permute.xlu0 %876
      %880 = vset.pattern.permute.xlu0 0
      %881 = vperm.xlu0 %880, %v735
      %v882 = vpop.permute.xlu0 %881
      %885 = vset.pattern.permute.xlu0 0
      %886 = vperm.xlu0 %885, %v736
      %v887 = vpop.permute.xlu0 %886
      %890 = vset.pattern.permute.xlu0 0
      %891 = vperm.xlu0 %890, %v737
      %v892 = vpop.permute.xlu0 %891
      %895 = vset.pattern.permute.xlu0 0
      %896 = vperm.xlu0 %895, %v738
      %v897 = vpop.permute.xlu0 %896
      %900 = vset.pattern.permute.xlu0 0
      %901 = vperm.xlu0 %900, %v739
      %v902 = vpop.permute.xlu0 %901
      %905 = vset.pattern.permute.xlu0 0
      %906 = vperm.xlu0 %905, %v740
      %v907 = vpop.permute.xlu0 %906
      %910 = vset.pattern.permute.xlu0 0
      %911 = vperm.xlu0 %910, %v741
      %v912 = vpop.permute.xlu0 %911
      %915 = vset.pattern.permute.xlu0 0
      %916 = vperm.xlu0 %915, %v742
      %v917 = vpop.permute.xlu0 %916
      %920 = vset.pattern.permute.xlu0 0
      %921 = vperm.xlu0 %920, %v743
      %v922 = vpop.permute.xlu0 %921
      %v924 = vmul.f32 %v260, %v747
      %v925 = vmul.f32 %v261, %v752
      %v926 = vmul.f32 %v262, %v757
      %v927 = vmul.f32 %v263, %v762
      %v928 = vmul.f32 %v264, %v767
      %v929 = vmul.f32 %v265, %v772
      %v930 = vmul.f32 %v266, %v777
      %v931 = vmul.f32 %v267, %v782
      %v932 = vmul.f32 %v268, %v787
      %v933 = vmul.f32 %v269, %v792
      %v934 = vmul.f32 %v270, %v797
      %v935 = vmul.f32 %v271, %v802
      %v936 = vmul.f32 %v272, %v807
      %v937 = vmul.f32 %v273, %v812
      %v938 = vmul.f32 %v274, %v817
      %v939 = vmul.f32 %v275, %v822
      %v940 = vmul.f32 %v276, %v827
      %v941 = vmul.f32 %v277, %v832
      %v942 = vmul.f32 %v278, %v837
      %v943 = vmul.f32 %v279, %v842
      %v944 = vmul.f32 %v280, %v847
      %v945 = vmul.f32 %v281, %v852
      %v946 = vmul.f32 %v282, %v857
      %v947 = vmul.f32 %v283, %v862
      %v948 = vmul.f32 %v284, %v867
      %v949 = vmul.f32 %v285, %v872
      %v950 = vmul.f32 %v286, %v877
      %v951 = vmul.f32 %v287, %v882
      %v952 = vmul.f32 %v288, %v887
      %v953 = vmul.f32 %v289, %v892
      %v954 = vmul.f32 %v290, %v897
      %v955 = vmul.f32 %v291, %v902
      %v956 = vmul.f32 %v292, %v907
      %v957 = vmul.f32 %v293, %v912
      %v958 = vmul.f32 %v294, %v917
      %v959 = vmul.f32 %v295, %v922
      %vm960 = vcmask 1045504
      %v961 = vrot.slane %v342, 2
      %v962 = vrot.slane %v343, 2
      %v963 = vsel %vm960, %v961, %v962
      %v964 = vrot.slane %v344, 2
      %v965 = vsel %vm960, %v962, %v964
      %v966 = vrot.slane %v345, 2
      %v967 = vsel %vm960, %v964, %v966
      %v968 = vrot.slane %v346, 2
      %v969 = vsel %vm960, %v966, %v968
      %v970 = vrot.slane %v347, 2
      %v971 = vsel %vm960, %v968, %v970
      %v972 = vrot.slane %v348, 2
      %v973 = vsel %vm960, %v970, %v972
      %v974 = vrot.slane %v349, 2
      %v975 = vsel %vm960, %v972, %v974
      %v976 = vrot.slane %v350, 2
      %v977 = vsel %vm960, %v974, %v976
      %v978 = vrot.slane %v351, 2
      %v979 = vsel %vm960, %v976, %v978
      %v980 = vrot.slane %v352, 2
      %v981 = vsel %vm960, %v978, %v980
      %v982 = vrot.slane %v353, 2
      %v983 = vsel %vm960, %v980, %v982
      %v984 = vrot.slane %v354, 2
      %v985 = vsel %vm960, %v982, %v984
      %v986 = vrot.slane %v355, 2
      %v987 = vsel %vm960, %v984, %v986
      %v988 = vrot.slane %v356, 2
      %v989 = vsel %vm960, %v986, %v988
      %v990 = vrot.slane %v357, 2
      %v991 = vsel %vm960, %v988, %v990
      %v992 = vrot.slane %v358, 2
      %v993 = vsel %vm960, %v990, %v992
      %v994 = vrot.slane %v359, 2
      %v995 = vsel %vm960, %v992, %v994
      %v996 = vrot.slane %v360, 2
      %v997 = vsel %vm960, %v994, %v996
      %v998 = vrot.slane %v361, 2
      %v999 = vsel %vm960, %v996, %v998
      %v1000 = vrot.slane %v362, 2
      %v1001 = vsel %vm960, %v998, %v1000
      %v1002 = vrot.slane %v363, 2
      %v1003 = vsel %vm960, %v1000, %v1002
      %v1004 = vrot.slane %v364, 2
      %v1005 = vsel %vm960, %v1002, %v1004
      %v1006 = vrot.slane %v365, 2
      %v1007 = vsel %vm960, %v1004, %v1006
      %v1008 = vrot.slane %v366, 2
      %v1009 = vsel %vm960, %v1006, %v1008
      %v1010 = vrot.slane %v367, 2
      %v1011 = vsel %vm960, %v1008, %v1010
      %v1012 = vrot.slane %v368, 2
      %v1013 = vsel %vm960, %v1010, %v1012
      %v1014 = vrot.slane %v369, 2
      %v1015 = vsel %vm960, %v1012, %v1014
      %v1016 = vrot.slane %v370, 2
      %v1017 = vsel %vm960, %v1014, %v1016
      %v1018 = vrot.slane %v371, 2
      %v1019 = vsel %vm960, %v1016, %v1018
      %v1020 = vrot.slane %v372, 2
      %v1021 = vsel %vm960, %v1018, %v1020
      %v1022 = vrot.slane %v373, 2
      %v1023 = vsel %vm960, %v1020, %v1022
      %v1024 = vrot.slane %v374, 2
      %v1025 = vsel %vm960, %v1022, %v1024
      %v1026 = vrot.slane %v375, 2
      %v1027 = vsel %vm960, %v1024, %v1026
      %v1028 = vrot.slane %v376, 2
      %v1029 = vsel %vm960, %v1026, %v1028
      %v1030 = vrot.slane %v377, 2
      %v1031 = vsel %vm960, %v1028, %v1030
      %v1032 = vrot.slane %v378, 2
      %v1033 = vsel %vm960, %v1030, %v1032
      %v1071 = vmul.f32 %v301, %v963
      %v1072 = vmul.f32 %v302, %v965
      %v1073 = vmul.f32 %v303, %v967
      %v1074 = vmul.f32 %v304, %v969
      %v1075 = vmul.f32 %v305, %v971
      %v1076 = vmul.f32 %v306, %v973
      %v1077 = vmul.f32 %v307, %v975
      %v1078 = vmul.f32 %v308, %v977
      %v1079 = vmul.f32 %v309, %v979
      %v1080 = vmul.f32 %v310, %v981
      %v1081 = vmul.f32 %v311, %v983
      %v1082 = vmul.f32 %v312, %v985
      %v1083 = vmul.f32 %v313, %v987
      %v1084 = vmul.f32 %v314, %v989
      %v1085 = vmul.f32 %v315, %v991
      %v1086 = vmul.f32 %v316, %v993
      %v1087 = vmul.f32 %v317, %v995
      %v1088 = vmul.f32 %v318, %v997
      %v1089 = vmul.f32 %v319, %v999
      %v1090 = vmul.f32 %v320, %v1001
      %v1091 = vmul.f32 %v321, %v1003
      %v1092 = vmul.f32 %v322, %v1005
      %v1093 = vmul.f32 %v323, %v1007
      %v1094 = vmul.f32 %v324, %v1009
      %v1095 = vmul.f32 %v325, %v1011
      %v1096 = vmul.f32 %v326, %v1013
      %v1097 = vmul.f32 %v327, %v1015
      %v1098 = vmul.f32 %v328, %v1017
      %v1099 = vmul.f32 %v329, %v1019
      %v1100 = vmul.f32 %v330, %v1021
      %v1101 = vmul.f32 %v331, %v1023
      %v1102 = vmul.f32 %v332, %v1025
      %v1103 = vmul.f32 %v333, %v1027
      %v1104 = vmul.f32 %v334, %v1029
      %v1105 = vmul.f32 %v335, %v1031
      %v1106 = vmul.f32 %v336, %v1033
      %v1107 = vmul.f32 %v337, %v1032
      %v1108 = vrot.slane %v303, 2
      %v1109 = vrot.slane %v304, 2
      %v1110 = vsel %vm960, %v1108, %v1109
      %v1111 = vrot.slane %v305, 2
      %v1112 = vsel %vm960, %v1109, %v1111
      %v1113 = vrot.slane %v306, 2
      %v1114 = vsel %vm960, %v1111, %v1113
      %v1115 = vrot.slane %v307, 2
      %v1116 = vsel %vm960, %v1113, %v1115
      %v1117 = vrot.slane %v308, 2
      %v1118 = vsel %vm960, %v1115, %v1117
      %v1119 = vrot.slane %v309, 2
      %v1120 = vsel %vm960, %v1117, %v1119
      %v1121 = vrot.slane %v310, 2
      %v1122 = vsel %vm960, %v1119, %v1121
      %v1123 = vrot.slane %v311, 2
      %v1124 = vsel %vm960, %v1121, %v1123
      %v1125 = vrot.slane %v312, 2
      %v1126 = vsel %vm960, %v1123, %v1125
      %v1127 = vrot.slane %v313, 2
      %v1128 = vsel %vm960, %v1125, %v1127
      %v1129 = vrot.slane %v314, 2
      %v1130 = vsel %vm960, %v1127, %v1129
      %v1131 = vrot.slane %v315, 2
      %v1132 = vsel %vm960, %v1129, %v1131
      %v1133 = vrot.slane %v316, 2
      %v1134 = vsel %vm960, %v1131, %v1133
      %v1135 = vrot.slane %v317, 2
      %v1136 = vsel %vm960, %v1133, %v1135
      %v1137 = vrot.slane %v318, 2
      %v1138 = vsel %vm960, %v1135, %v1137
      %v1139 = vrot.slane %v319, 2
      %v1140 = vsel %vm960, %v1137, %v1139
      %v1141 = vrot.slane %v320, 2
      %v1142 = vsel %vm960, %v1139, %v1141
      %v1143 = vrot.slane %v321, 2
      %v1144 = vsel %vm960, %v1141, %v1143
      %v1145 = vrot.slane %v322, 2
      %v1146 = vsel %vm960, %v1143, %v1145
      %v1147 = vrot.slane %v323, 2
      %v1148 = vsel %vm960, %v1145, %v1147
      %v1149 = vrot.slane %v324, 2
      %v1150 = vsel %vm960, %v1147, %v1149
      %v1151 = vrot.slane %v325, 2
      %v1152 = vsel %vm960, %v1149, %v1151
      %v1153 = vrot.slane %v326, 2
      %v1154 = vsel %vm960, %v1151, %v1153
      %v1155 = vrot.slane %v327, 2
      %v1156 = vsel %vm960, %v1153, %v1155
      %v1157 = vrot.slane %v328, 2
      %v1158 = vsel %vm960, %v1155, %v1157
      %v1159 = vrot.slane %v329, 2
      %v1160 = vsel %vm960, %v1157, %v1159
      %v1161 = vrot.slane %v330, 2
      %v1162 = vsel %vm960, %v1159, %v1161
      %v1163 = vrot.slane %v331, 2
      %v1164 = vsel %vm960, %v1161, %v1163
      %v1165 = vrot.slane %v332, 2
      %v1166 = vsel %vm960, %v1163, %v1165
      %v1167 = vrot.slane %v333, 2
      %v1168 = vsel %vm960, %v1165, %v1167
      %v1169 = vrot.slane %v334, 2
      %v1170 = vsel %vm960, %v1167, %v1169
      %v1171 = vrot.slane %v335, 2
      %v1172 = vsel %vm960, %v1169, %v1171
      %v1173 = vrot.slane %v336, 2
      %v1174 = vsel %vm960, %v1171, %v1173
      %v1175 = vrot.slane %v337, 2
      %v1176 = vsel %vm960, %v1173, %v1175
      %v1177 = vrot.slane %v338, 2
      %v1178 = vsel %vm960, %v1175, %v1177
      %v1179 = vrot.slane %v339, 2
      %v1180 = vsel %vm960, %v1177, %v1179
      %v1218 = vadd.f32 %v1071, %v1110
      %v1219 = vadd.f32 %v1072, %v1112
      %v1220 = vadd.f32 %v1073, %v1114
      %v1221 = vadd.f32 %v1074, %v1116
      %v1222 = vadd.f32 %v1075, %v1118
      %v1223 = vadd.f32 %v1076, %v1120
      %v1224 = vadd.f32 %v1077, %v1122
      %v1225 = vadd.f32 %v1078, %v1124
      %v1226 = vadd.f32 %v1079, %v1126
      %v1227 = vadd.f32 %v1080, %v1128
      %v1228 = vadd.f32 %v1081, %v1130
      %v1229 = vadd.f32 %v1082, %v1132
      %v1230 = vadd.f32 %v1083, %v1134
      %v1231 = vadd.f32 %v1084, %v1136
      %v1232 = vadd.f32 %v1085, %v1138
      %v1233 = vadd.f32 %v1086, %v1140
      %v1234 = vadd.f32 %v1087, %v1142
      %v1235 = vadd.f32 %v1088, %v1144
      %v1236 = vadd.f32 %v1089, %v1146
      %v1237 = vadd.f32 %v1090, %v1148
      %v1238 = vadd.f32 %v1091, %v1150
      %v1239 = vadd.f32 %v1092, %v1152
      %v1240 = vadd.f32 %v1093, %v1154
      %v1241 = vadd.f32 %v1094, %v1156
      %v1242 = vadd.f32 %v1095, %v1158
      %v1243 = vadd.f32 %v1096, %v1160
      %v1244 = vadd.f32 %v1097, %v1162
      %v1245 = vadd.f32 %v1098, %v1164
      %v1246 = vadd.f32 %v1099, %v1166
      %v1247 = vadd.f32 %v1100, %v1168
      %v1248 = vadd.f32 %v1101, %v1170
      %v1249 = vadd.f32 %v1102, %v1172
      %v1250 = vadd.f32 %v1103, %v1174
      %v1251 = vadd.f32 %v1104, %v1176
      %v1252 = vadd.f32 %v1105, %v1178
      %v1253 = vadd.f32 %v1106, %v1180
      %v1254 = vadd.f32 %v1107, %v1179
      %1256 = vset.pattern.permute.xlu0 0
      %1257 = vperm.xlu0 %1256, %v1218
      %v1258 = vpop.permute.xlu0 %1257
      %1261 = vset.pattern.permute.xlu0 0
      %1262 = vperm.xlu0 %1261, %v1219
      %v1263 = vpop.permute.xlu0 %1262
      %1266 = vset.pattern.permute.xlu0 0
      %1267 = vperm.xlu0 %1266, %v1220
      %v1268 = vpop.permute.xlu0 %1267
      %1271 = vset.pattern.permute.xlu0 0
      %1272 = vperm.xlu0 %1271, %v1221
      %v1273 = vpop.permute.xlu0 %1272
      %1276 = vset.pattern.permute.xlu0 0
      %1277 = vperm.xlu0 %1276, %v1222
      %v1278 = vpop.permute.xlu0 %1277
      %1281 = vset.pattern.permute.xlu0 0
      %1282 = vperm.xlu0 %1281, %v1223
      %v1283 = vpop.permute.xlu0 %1282
      %1286 = vset.pattern.permute.xlu0 0
      %1287 = vperm.xlu0 %1286, %v1224
      %v1288 = vpop.permute.xlu0 %1287
      %1291 = vset.pattern.permute.xlu0 0
      %1292 = vperm.xlu0 %1291, %v1225
      %v1293 = vpop.permute.xlu0 %1292
      %1296 = vset.pattern.permute.xlu0 0
      %1297 = vperm.xlu0 %1296, %v1226
      %v1298 = vpop.permute.xlu0 %1297
      %1301 = vset.pattern.permute.xlu0 0
      %1302 = vperm.xlu0 %1301, %v1227
      %v1303 = vpop.permute.xlu0 %1302
      %1306 = vset.pattern.permute.xlu0 0
      %1307 = vperm.xlu0 %1306, %v1228
      %v1308 = vpop.permute.xlu0 %1307
      %1311 = vset.pattern.permute.xlu0 0
      %1312 = vperm.xlu0 %1311, %v1229
      %v1313 = vpop.permute.xlu0 %1312
      %1316 = vset.pattern.permute.xlu0 0
      %1317 = vperm.xlu0 %1316, %v1230
      %v1318 = vpop.permute.xlu0 %1317
      %1321 = vset.pattern.permute.xlu0 0
      %1322 = vperm.xlu0 %1321, %v1231
      %v1323 = vpop.permute.xlu0 %1322
      %1326 = vset.pattern.permute.xlu0 0
      %1327 = vperm.xlu0 %1326, %v1232
      %v1328 = vpop.permute.xlu0 %1327
      %1331 = vset.pattern.permute.xlu0 0
      %1332 = vperm.xlu0 %1331, %v1233
      %v1333 = vpop.permute.xlu0 %1332
      %1336 = vset.pattern.permute.xlu0 0
      %1337 = vperm.xlu0 %1336, %v1234
      %v1338 = vpop.permute.xlu0 %1337
      %1341 = vset.pattern.permute.xlu0 0
      %1342 = vperm.xlu0 %1341, %v1235
      %v1343 = vpop.permute.xlu0 %1342
      %1346 = vset.pattern.permute.xlu0 0
      %1347 = vperm.xlu0 %1346, %v1236
      %v1348 = vpop.permute.xlu0 %1347
      %1351 = vset.pattern.permute.xlu0 0
      %1352 = vperm.xlu0 %1351, %v1237
      %v1353 = vpop.permute.xlu0 %1352
      %1356 = vset.pattern.permute.xlu0 0
      %1357 = vperm.xlu0 %1356, %v1238
      %v1358 = vpop.permute.xlu0 %1357
      %1361 = vset.pattern.permute.xlu0 0
      %1362 = vperm.xlu0 %1361, %v1239
      %v1363 = vpop.permute.xlu0 %1362
      %1366 = vset.pattern.permute.xlu0 0
      %1367 = vperm.xlu0 %1366, %v1240
      %v1368 = vpop.permute.xlu0 %1367
      %1371 = vset.pattern.permute.xlu0 0
      %1372 = vperm.xlu0 %1371, %v1241
      %v1373 = vpop.permute.xlu0 %1372
      %1376 = vset.pattern.permute.xlu0 0
      %1377 = vperm.xlu0 %1376, %v1242
      %v1378 = vpop.permute.xlu0 %1377
      %1381 = vset.pattern.permute.xlu0 0
      %1382 = vperm.xlu0 %1381, %v1243
      %v1383 = vpop.permute.xlu0 %1382
      %1386 = vset.pattern.permute.xlu0 0
      %1387 = vperm.xlu0 %1386, %v1244
      %v1388 = vpop.permute.xlu0 %1387
      %1391 = vset.pattern.permute.xlu0 0
      %1392 = vperm.xlu0 %1391, %v1245
      %v1393 = vpop.permute.xlu0 %1392
      %1396 = vset.pattern.permute.xlu0 0
      %1397 = vperm.xlu0 %1396, %v1246
      %v1398 = vpop.permute.xlu0 %1397
      %1401 = vset.pattern.permute.xlu0 0
      %1402 = vperm.xlu0 %1401, %v1247
      %v1403 = vpop.permute.xlu0 %1402
      %1406 = vset.pattern.permute.xlu0 0
      %1407 = vperm.xlu0 %1406, %v1248
      %v1408 = vpop.permute.xlu0 %1407
      %1411 = vset.pattern.permute.xlu0 0
      %1412 = vperm.xlu0 %1411, %v1249
      %v1413 = vpop.permute.xlu0 %1412
      %1416 = vset.pattern.permute.xlu0 0
      %1417 = vperm.xlu0 %1416, %v1250
      %v1418 = vpop.permute.xlu0 %1417
      %1421 = vset.pattern.permute.xlu0 0
      %1422 = vperm.xlu0 %1421, %v1251
      %v1423 = vpop.permute.xlu0 %1422
      %1426 = vset.pattern.permute.xlu0 0
      %1427 = vperm.xlu0 %1426, %v1252
      %v1428 = vpop.permute.xlu0 %1427
      %1431 = vset.pattern.permute.xlu0 0
      %1432 = vperm.xlu0 %1431, %v1253
      %v1433 = vpop.permute.xlu0 %1432
      %1436 = vset.pattern.permute.xlu0 0
      %1437 = vperm.xlu0 %1436, %v1254
      %v1438 = vpop.permute.xlu0 %1437
      %v1440 = vmul.f32 %v260, %v1258
      %v1441 = vmul.f32 %v261, %v1263
      %v1442 = vmul.f32 %v262, %v1268
      %v1443 = vmul.f32 %v263, %v1273
      %v1444 = vmul.f32 %v264, %v1278
      %v1445 = vmul.f32 %v265, %v1283
      %v1446 = vmul.f32 %v266, %v1288
      %v1447 = vmul.f32 %v267, %v1293
      %v1448 = vmul.f32 %v268, %v1298
      %v1449 = vmul.f32 %v269, %v1303
      %v1450 = vmul.f32 %v270, %v1308
      %v1451 = vmul.f32 %v271, %v1313
      %v1452 = vmul.f32 %v272, %v1318
      %v1453 = vmul.f32 %v273, %v1323
      %v1454 = vmul.f32 %v274, %v1328
      %v1455 = vmul.f32 %v275, %v1333
      %v1456 = vmul.f32 %v276, %v1338
      %v1457 = vmul.f32 %v277, %v1343
      %v1458 = vmul.f32 %v278, %v1348
      %v1459 = vmul.f32 %v279, %v1353
      %v1460 = vmul.f32 %v280, %v1358
      %v1461 = vmul.f32 %v281, %v1363
      %v1462 = vmul.f32 %v282, %v1368
      %v1463 = vmul.f32 %v283, %v1373
      %v1464 = vmul.f32 %v284, %v1378
      %v1465 = vmul.f32 %v285, %v1383
      %v1466 = vmul.f32 %v286, %v1388
      %v1467 = vmul.f32 %v287, %v1393
      %v1468 = vmul.f32 %v288, %v1398
      %v1469 = vmul.f32 %v289, %v1403
      %v1470 = vmul.f32 %v290, %v1408
      %v1471 = vmul.f32 %v291, %v1413
      %v1472 = vmul.f32 %v292, %v1418
      %v1473 = vmul.f32 %v293, %v1423
      %v1474 = vmul.f32 %v294, %v1428
      %v1475 = vmul.f32 %v295, %v1433
      %v1476 = vmul.f32 %v296, %v1438
      %vm1477 = vcmask 1046528
      %v1478 = vrot.slane %v342, 1
      %v1479 = vrot.slane %v343, 1
      %v1480 = vsel %vm1477, %v1478, %v1479
      %v1481 = vrot.slane %v344, 1
      %v1482 = vsel %vm1477, %v1479, %v1481
      %v1483 = vrot.slane %v345, 1
      %v1484 = vsel %vm1477, %v1481, %v1483
      %v1485 = vrot.slane %v346, 1
      %v1486 = vsel %vm1477, %v1483, %v1485
      %v1487 = vrot.slane %v347, 1
      %v1488 = vsel %vm1477, %v1485, %v1487
      %v1489 = vrot.slane %v348, 1
      %v1490 = vsel %vm1477, %v1487, %v1489
      %v1491 = vrot.slane %v349, 1
      %v1492 = vsel %vm1477, %v1489, %v1491
      %v1493 = vrot.slane %v350, 1
      %v1494 = vsel %vm1477, %v1491, %v1493
      %v1495 = vrot.slane %v351, 1
      %v1496 = vsel %vm1477, %v1493, %v1495
      %v1497 = vrot.slane %v352, 1
      %v1498 = vsel %vm1477, %v1495, %v1497
      %v1499 = vrot.slane %v353, 1
      %v1500 = vsel %vm1477, %v1497, %v1499
      %v1501 = vrot.slane %v354, 1
      %v1502 = vsel %vm1477, %v1499, %v1501
      %v1503 = vrot.slane %v355, 1
      %v1504 = vsel %vm1477, %v1501, %v1503
      %v1505 = vrot.slane %v356, 1
      %v1506 = vsel %vm1477, %v1503, %v1505
      %v1507 = vrot.slane %v357, 1
      %v1508 = vsel %vm1477, %v1505, %v1507
      %v1509 = vrot.slane %v358, 1
      %v1510 = vsel %vm1477, %v1507, %v1509
      %v1511 = vrot.slane %v359, 1
      %v1512 = vsel %vm1477, %v1509, %v1511
      %v1513 = vrot.slane %v360, 1
      %v1514 = vsel %vm1477, %v1511, %v1513
      %v1515 = vrot.slane %v361, 1
      %v1516 = vsel %vm1477, %v1513, %v1515
      %v1517 = vrot.slane %v362, 1
      %v1518 = vsel %vm1477, %v1515, %v1517
      %v1519 = vrot.slane %v363, 1
      %v1520 = vsel %vm1477, %v1517, %v1519
      %v1521 = vrot.slane %v364, 1
      %v1522 = vsel %vm1477, %v1519, %v1521
      %v1523 = vrot.slane %v365, 1
      %v1524 = vsel %vm1477, %v1521, %v1523
      %v1525 = vrot.slane %v366, 1
      %v1526 = vsel %vm1477, %v1523, %v1525
      %v1527 = vrot.slane %v367, 1
      %v1528 = vsel %vm1477, %v1525, %v1527
      %v1529 = vrot.slane %v368, 1
      %v1530 = vsel %vm1477, %v1527, %v1529
      %v1531 = vrot.slane %v369, 1
      %v1532 = vsel %vm1477, %v1529, %v1531
      %v1533 = vrot.slane %v370, 1
      %v1534 = vsel %vm1477, %v1531, %v1533
      %v1535 = vrot.slane %v371, 1
      %v1536 = vsel %vm1477, %v1533, %v1535
      %v1537 = vrot.slane %v372, 1
      %v1538 = vsel %vm1477, %v1535, %v1537
      %v1539 = vrot.slane %v373, 1
      %v1540 = vsel %vm1477, %v1537, %v1539
      %v1541 = vrot.slane %v374, 1
      %v1542 = vsel %vm1477, %v1539, %v1541
      %v1543 = vrot.slane %v375, 1
      %v1544 = vsel %vm1477, %v1541, %v1543
      %v1545 = vrot.slane %v376, 1
      %v1546 = vsel %vm1477, %v1543, %v1545
      %v1547 = vrot.slane %v377, 1
      %v1548 = vsel %vm1477, %v1545, %v1547
      %v1549 = vrot.slane %v378, 1
      %v1550 = vsel %vm1477, %v1547, %v1549
      %v1588 = vmul.f32 %v301, %v1480
      %v1589 = vmul.f32 %v302, %v1482
      %v1590 = vmul.f32 %v303, %v1484
      %v1591 = vmul.f32 %v304, %v1486
      %v1592 = vmul.f32 %v305, %v1488
      %v1593 = vmul.f32 %v306, %v1490
      %v1594 = vmul.f32 %v307, %v1492
      %v1595 = vmul.f32 %v308, %v1494
      %v1596 = vmul.f32 %v309, %v1496
      %v1597 = vmul.f32 %v310, %v1498
      %v1598 = vmul.f32 %v311, %v1500
      %v1599 = vmul.f32 %v312, %v1502
      %v1600 = vmul.f32 %v313, %v1504
      %v1601 = vmul.f32 %v314, %v1506
      %v1602 = vmul.f32 %v315, %v1508
      %v1603 = vmul.f32 %v316, %v1510
      %v1604 = vmul.f32 %v317, %v1512
      %v1605 = vmul.f32 %v318, %v1514
      %v1606 = vmul.f32 %v319, %v1516
      %v1607 = vmul.f32 %v320, %v1518
      %v1608 = vmul.f32 %v321, %v1520
      %v1609 = vmul.f32 %v322, %v1522
      %v1610 = vmul.f32 %v323, %v1524
      %v1611 = vmul.f32 %v324, %v1526
      %v1612 = vmul.f32 %v325, %v1528
      %v1613 = vmul.f32 %v326, %v1530
      %v1614 = vmul.f32 %v327, %v1532
      %v1615 = vmul.f32 %v328, %v1534
      %v1616 = vmul.f32 %v329, %v1536
      %v1617 = vmul.f32 %v330, %v1538
      %v1618 = vmul.f32 %v331, %v1540
      %v1619 = vmul.f32 %v332, %v1542
      %v1620 = vmul.f32 %v333, %v1544
      %v1621 = vmul.f32 %v334, %v1546
      %v1622 = vmul.f32 %v335, %v1548
      %v1623 = vmul.f32 %v336, %v1550
      %v1624 = vmul.f32 %v337, %v1549
      %v1625 = vrot.slane %v303, 1
      %v1626 = vrot.slane %v304, 1
      %v1627 = vsel %vm1477, %v1625, %v1626
      %v1628 = vrot.slane %v305, 1
      %v1629 = vsel %vm1477, %v1626, %v1628
      %v1630 = vrot.slane %v306, 1
      %v1631 = vsel %vm1477, %v1628, %v1630
      %v1632 = vrot.slane %v307, 1
      %v1633 = vsel %vm1477, %v1630, %v1632
      %v1634 = vrot.slane %v308, 1
      %v1635 = vsel %vm1477, %v1632, %v1634
      %v1636 = vrot.slane %v309, 1
      %v1637 = vsel %vm1477, %v1634, %v1636
      %v1638 = vrot.slane %v310, 1
      %v1639 = vsel %vm1477, %v1636, %v1638
      %v1640 = vrot.slane %v311, 1
      %v1641 = vsel %vm1477, %v1638, %v1640
      %v1642 = vrot.slane %v312, 1
      %v1643 = vsel %vm1477, %v1640, %v1642
      %v1644 = vrot.slane %v313, 1
      %v1645 = vsel %vm1477, %v1642, %v1644
      %v1646 = vrot.slane %v314, 1
      %v1647 = vsel %vm1477, %v1644, %v1646
      %v1648 = vrot.slane %v315, 1
      %v1649 = vsel %vm1477, %v1646, %v1648
      %v1650 = vrot.slane %v316, 1
      %v1651 = vsel %vm1477, %v1648, %v1650
      %v1652 = vrot.slane %v317, 1
      %v1653 = vsel %vm1477, %v1650, %v1652
      %v1654 = vrot.slane %v318, 1
      %v1655 = vsel %vm1477, %v1652, %v1654
      %v1656 = vrot.slane %v319, 1
      %v1657 = vsel %vm1477, %v1654, %v1656
      %v1658 = vrot.slane %v320, 1
      %v1659 = vsel %vm1477, %v1656, %v1658
      %v1660 = vrot.slane %v321, 1
      %v1661 = vsel %vm1477, %v1658, %v1660
      %v1662 = vrot.slane %v322, 1
      %v1663 = vsel %vm1477, %v1660, %v1662
      %v1664 = vrot.slane %v323, 1
      %v1665 = vsel %vm1477, %v1662, %v1664
      %v1666 = vrot.slane %v324, 1
      %v1667 = vsel %vm1477, %v1664, %v1666
      %v1668 = vrot.slane %v325, 1
      %v1669 = vsel %vm1477, %v1666, %v1668
      %v1670 = vrot.slane %v326, 1
      %v1671 = vsel %vm1477, %v1668, %v1670
      %v1672 = vrot.slane %v327, 1
      %v1673 = vsel %vm1477, %v1670, %v1672
      %v1674 = vrot.slane %v328, 1
      %v1675 = vsel %vm1477, %v1672, %v1674
      %v1676 = vrot.slane %v329, 1
      %v1677 = vsel %vm1477, %v1674, %v1676
      %v1678 = vrot.slane %v330, 1
      %v1679 = vsel %vm1477, %v1676, %v1678
      %v1680 = vrot.slane %v331, 1
      %v1681 = vsel %vm1477, %v1678, %v1680
      %v1682 = vrot.slane %v332, 1
      %v1683 = vsel %vm1477, %v1680, %v1682
      %v1684 = vrot.slane %v333, 1
      %v1685 = vsel %vm1477, %v1682, %v1684
      %v1686 = vrot.slane %v334, 1
      %v1687 = vsel %vm1477, %v1684, %v1686
      %v1688 = vrot.slane %v335, 1
      %v1689 = vsel %vm1477, %v1686, %v1688
      %v1690 = vrot.slane %v336, 1
      %v1691 = vsel %vm1477, %v1688, %v1690
      %v1692 = vrot.slane %v337, 1
      %v1693 = vsel %vm1477, %v1690, %v1692
      %v1694 = vrot.slane %v338, 1
      %v1695 = vsel %vm1477, %v1692, %v1694
      %v1696 = vrot.slane %v339, 1
      %v1697 = vsel %vm1477, %v1694, %v1696
      %v1735 = vadd.f32 %v1588, %v1627
      %v1736 = vadd.f32 %v1589, %v1629
      %v1737 = vadd.f32 %v1590, %v1631
      %v1738 = vadd.f32 %v1591, %v1633
      %v1739 = vadd.f32 %v1592, %v1635
      %v1740 = vadd.f32 %v1593, %v1637
      %v1741 = vadd.f32 %v1594, %v1639
      %v1742 = vadd.f32 %v1595, %v1641
      %v1743 = vadd.f32 %v1596, %v1643
      %v1744 = vadd.f32 %v1597, %v1645
      %v1745 = vadd.f32 %v1598, %v1647
      %v1746 = vadd.f32 %v1599, %v1649
      %v1747 = vadd.f32 %v1600, %v1651
      %v1748 = vadd.f32 %v1601, %v1653
      %v1749 = vadd.f32 %v1602, %v1655
      %v1750 = vadd.f32 %v1603, %v1657
      %v1751 = vadd.f32 %v1604, %v1659
      %v1752 = vadd.f32 %v1605, %v1661
      %v1753 = vadd.f32 %v1606, %v1663
      %v1754 = vadd.f32 %v1607, %v1665
      %v1755 = vadd.f32 %v1608, %v1667
      %v1756 = vadd.f32 %v1609, %v1669
      %v1757 = vadd.f32 %v1610, %v1671
      %v1758 = vadd.f32 %v1611, %v1673
      %v1759 = vadd.f32 %v1612, %v1675
      %v1760 = vadd.f32 %v1613, %v1677
      %v1761 = vadd.f32 %v1614, %v1679
      %v1762 = vadd.f32 %v1615, %v1681
      %v1763 = vadd.f32 %v1616, %v1683
      %v1764 = vadd.f32 %v1617, %v1685
      %v1765 = vadd.f32 %v1618, %v1687
      %v1766 = vadd.f32 %v1619, %v1689
      %v1767 = vadd.f32 %v1620, %v1691
      %v1768 = vadd.f32 %v1621, %v1693
      %v1769 = vadd.f32 %v1622, %v1695
      %v1770 = vadd.f32 %v1623, %v1697
      %v1771 = vadd.f32 %v1624, %v1696
      %1773 = vset.pattern.permute.xlu0 0
      %1774 = vperm.xlu0 %1773, %v1735
      %v1775 = vpop.permute.xlu0 %1774
      %1778 = vset.pattern.permute.xlu0 0
      %1779 = vperm.xlu0 %1778, %v1736
      %v1780 = vpop.permute.xlu0 %1779
      %1783 = vset.pattern.permute.xlu0 0
      %1784 = vperm.xlu0 %1783, %v1737
      %v1785 = vpop.permute.xlu0 %1784
      %1788 = vset.pattern.permute.xlu0 0
      %1789 = vperm.xlu0 %1788, %v1738
      %v1790 = vpop.permute.xlu0 %1789
      %1793 = vset.pattern.permute.xlu0 0
      %1794 = vperm.xlu0 %1793, %v1739
      %v1795 = vpop.permute.xlu0 %1794
      %1798 = vset.pattern.permute.xlu0 0
      %1799 = vperm.xlu0 %1798, %v1740
      %v1800 = vpop.permute.xlu0 %1799
      %1803 = vset.pattern.permute.xlu0 0
      %1804 = vperm.xlu0 %1803, %v1741
      %v1805 = vpop.permute.xlu0 %1804
      %1808 = vset.pattern.permute.xlu0 0
      %1809 = vperm.xlu0 %1808, %v1742
      %v1810 = vpop.permute.xlu0 %1809
      %1813 = vset.pattern.permute.xlu0 0
      %1814 = vperm.xlu0 %1813, %v1743
      %v1815 = vpop.permute.xlu0 %1814
      %1818 = vset.pattern.permute.xlu0 0
      %1819 = vperm.xlu0 %1818, %v1744
      %v1820 = vpop.permute.xlu0 %1819
      %1823 = vset.pattern.permute.xlu0 0
      %1824 = vperm.xlu0 %1823, %v1745
      %v1825 = vpop.permute.xlu0 %1824
      %1828 = vset.pattern.permute.xlu0 0
      %1829 = vperm.xlu0 %1828, %v1746
      %v1830 = vpop.permute.xlu0 %1829
      %1833 = vset.pattern.permute.xlu0 0
      %1834 = vperm.xlu0 %1833, %v1747
      %v1835 = vpop.permute.xlu0 %1834
      %1838 = vset.pattern.permute.xlu0 0
      %1839 = vperm.xlu0 %1838, %v1748
      %v1840 = vpop.permute.xlu0 %1839
      %1843 = vset.pattern.permute.xlu0 0
      %1844 = vperm.xlu0 %1843, %v1749
      %v1845 = vpop.permute.xlu0 %1844
      %1848 = vset.pattern.permute.xlu0 0
      %1849 = vperm.xlu0 %1848, %v1750
      %v1850 = vpop.permute.xlu0 %1849
      %1853 = vset.pattern.permute.xlu0 0
      %1854 = vperm.xlu0 %1853, %v1751
      %v1855 = vpop.permute.xlu0 %1854
      %1858 = vset.pattern.permute.xlu0 0
      %1859 = vperm.xlu0 %1858, %v1752
      %v1860 = vpop.permute.xlu0 %1859
      %1863 = vset.pattern.permute.xlu0 0
      %1864 = vperm.xlu0 %1863, %v1753
      %v1865 = vpop.permute.xlu0 %1864
      %1868 = vset.pattern.permute.xlu0 0
      %1869 = vperm.xlu0 %1868, %v1754
      %v1870 = vpop.permute.xlu0 %1869
      %1873 = vset.pattern.permute.xlu0 0
      %1874 = vperm.xlu0 %1873, %v1755
      %v1875 = vpop.permute.xlu0 %1874
      %1878 = vset.pattern.permute.xlu0 0
      %1879 = vperm.xlu0 %1878, %v1756
      %v1880 = vpop.permute.xlu0 %1879
      %1883 = vset.pattern.permute.xlu0 0
      %1884 = vperm.xlu0 %1883, %v1757
      %v1885 = vpop.permute.xlu0 %1884
      %1888 = vset.pattern.permute.xlu0 0
      %1889 = vperm.xlu0 %1888, %v1758
      %v1890 = vpop.permute.xlu0 %1889
      %1893 = vset.pattern.permute.xlu0 0
      %1894 = vperm.xlu0 %1893, %v1759
      %v1895 = vpop.permute.xlu0 %1894
      %1898 = vset.pattern.permute.xlu0 0
      %1899 = vperm.xlu0 %1898, %v1760
      %v1900 = vpop.permute.xlu0 %1899
      %1903 = vset.pattern.permute.xlu0 0
      %1904 = vperm.xlu0 %1903, %v1761
      %v1905 = vpop.permute.xlu0 %1904
      %1908 = vset.pattern.permute.xlu0 0
      %1909 = vperm.xlu0 %1908, %v1762
      %v1910 = vpop.permute.xlu0 %1909
      %1913 = vset.pattern.permute.xlu0 0
      %1914 = vperm.xlu0 %1913, %v1763
      %v1915 = vpop.permute.xlu0 %1914
      %1918 = vset.pattern.permute.xlu0 0
      %1919 = vperm.xlu0 %1918, %v1764
      %v1920 = vpop.permute.xlu0 %1919
      %1923 = vset.pattern.permute.xlu0 0
      %1924 = vperm.xlu0 %1923, %v1765
      %v1925 = vpop.permute.xlu0 %1924
      %1928 = vset.pattern.permute.xlu0 0
      %1929 = vperm.xlu0 %1928, %v1766
      %v1930 = vpop.permute.xlu0 %1929
      %1933 = vset.pattern.permute.xlu0 0
      %1934 = vperm.xlu0 %1933, %v1767
      %v1935 = vpop.permute.xlu0 %1934
      %1938 = vset.pattern.permute.xlu0 0
      %1939 = vperm.xlu0 %1938, %v1768
      %v1940 = vpop.permute.xlu0 %1939
      %1943 = vset.pattern.permute.xlu0 0
      %1944 = vperm.xlu0 %1943, %v1769
      %v1945 = vpop.permute.xlu0 %1944
      %1948 = vset.pattern.permute.xlu0 0
      %1949 = vperm.xlu0 %1948, %v1770
      %v1950 = vpop.permute.xlu0 %1949
      %1953 = vset.pattern.permute.xlu0 0
      %1954 = vperm.xlu0 %1953, %v1771
      %v1955 = vpop.permute.xlu0 %1954
      %v1957 = vmul.f32 %v260, %v1775
      %v1958 = vmul.f32 %v261, %v1780
      %v1959 = vmul.f32 %v262, %v1785
      %v1960 = vmul.f32 %v263, %v1790
      %v1961 = vmul.f32 %v264, %v1795
      %v1962 = vmul.f32 %v265, %v1800
      %v1963 = vmul.f32 %v266, %v1805
      %v1964 = vmul.f32 %v267, %v1810
      %v1965 = vmul.f32 %v268, %v1815
      %v1966 = vmul.f32 %v269, %v1820
      %v1967 = vmul.f32 %v270, %v1825
      %v1968 = vmul.f32 %v271, %v1830
      %v1969 = vmul.f32 %v272, %v1835
      %v1970 = vmul.f32 %v273, %v1840
      %v1971 = vmul.f32 %v274, %v1845
      %v1972 = vmul.f32 %v275, %v1850
      %v1973 = vmul.f32 %v276, %v1855
      %v1974 = vmul.f32 %v277, %v1860
      %v1975 = vmul.f32 %v278, %v1865
      %v1976 = vmul.f32 %v279, %v1870
      %v1977 = vmul.f32 %v280, %v1875
      %v1978 = vmul.f32 %v281, %v1880
      %v1979 = vmul.f32 %v282, %v1885
      %v1980 = vmul.f32 %v283, %v1890
      %v1981 = vmul.f32 %v284, %v1895
      %v1982 = vmul.f32 %v285, %v1900
      %v1983 = vmul.f32 %v286, %v1905
      %v1984 = vmul.f32 %v287, %v1910
      %v1985 = vmul.f32 %v288, %v1915
      %v1986 = vmul.f32 %v289, %v1920
      %v1987 = vmul.f32 %v290, %v1925
      %v1988 = vmul.f32 %v291, %v1930
      %v1989 = vmul.f32 %v292, %v1935
      %v1990 = vmul.f32 %v293, %v1940
      %v1991 = vmul.f32 %v294, %v1945
      %v1992 = vmul.f32 %v295, %v1950
      %v1993 = vmul.f32 %v296, %v1955
      %v1994 = vmul.f32 %v303, %v1480
      %v1995 = vmul.f32 %v304, %v1482
      %v1996 = vmul.f32 %v305, %v1484
      %v1997 = vmul.f32 %v306, %v1486
      %v1998 = vmul.f32 %v307, %v1488
      %v1999 = vmul.f32 %v308, %v1490
      %v2000 = vmul.f32 %v309, %v1492
      %v2001 = vmul.f32 %v310, %v1494
      %v2002 = vmul.f32 %v311, %v1496
      %v2003 = vmul.f32 %v312, %v1498
      %v2004 = vmul.f32 %v313, %v1500
      %v2005 = vmul.f32 %v314, %v1502
      %v2006 = vmul.f32 %v315, %v1504
      %v2007 = vmul.f32 %v316, %v1506
      %v2008 = vmul.f32 %v317, %v1508
      %v2009 = vmul.f32 %v318, %v1510
      %v2010 = vmul.f32 %v319, %v1512
      %v2011 = vmul.f32 %v320, %v1514
      %v2012 = vmul.f32 %v321, %v1516
      %v2013 = vmul.f32 %v322, %v1518
      %v2014 = vmul.f32 %v323, %v1520
      %v2015 = vmul.f32 %v324, %v1522
      %v2016 = vmul.f32 %v325, %v1524
      %v2017 = vmul.f32 %v326, %v1526
      %v2018 = vmul.f32 %v327, %v1528
      %v2019 = vmul.f32 %v328, %v1530
      %v2020 = vmul.f32 %v329, %v1532
      %v2021 = vmul.f32 %v330, %v1534
      %v2022 = vmul.f32 %v331, %v1536
      %v2023 = vmul.f32 %v332, %v1538
      %v2024 = vmul.f32 %v333, %v1540
      %v2025 = vmul.f32 %v334, %v1542
      %v2026 = vmul.f32 %v335, %v1544
      %v2027 = vmul.f32 %v336, %v1546
      %v2028 = vmul.f32 %v337, %v1548
      %v2029 = vmul.f32 %v338, %v1550
      %v2030 = vmul.f32 %v339, %v1549
      %v2031 = vadd.f32 %v1994, %v1627
      %v2032 = vadd.f32 %v1995, %v1629
      %v2033 = vadd.f32 %v1996, %v1631
      %v2034 = vadd.f32 %v1997, %v1633
      %v2035 = vadd.f32 %v1998, %v1635
      %v2036 = vadd.f32 %v1999, %v1637
      %v2037 = vadd.f32 %v2000, %v1639
      %v2038 = vadd.f32 %v2001, %v1641
      %v2039 = vadd.f32 %v2002, %v1643
      %v2040 = vadd.f32 %v2003, %v1645
      %v2041 = vadd.f32 %v2004, %v1647
      %v2042 = vadd.f32 %v2005, %v1649
      %v2043 = vadd.f32 %v2006, %v1651
      %v2044 = vadd.f32 %v2007, %v1653
      %v2045 = vadd.f32 %v2008, %v1655
      %v2046 = vadd.f32 %v2009, %v1657
      %v2047 = vadd.f32 %v2010, %v1659
      %v2048 = vadd.f32 %v2011, %v1661
      %v2049 = vadd.f32 %v2012, %v1663
      %v2050 = vadd.f32 %v2013, %v1665
      %v2051 = vadd.f32 %v2014, %v1667
      %v2052 = vadd.f32 %v2015, %v1669
      %v2053 = vadd.f32 %v2016, %v1671
      %v2054 = vadd.f32 %v2017, %v1673
      %v2055 = vadd.f32 %v2018, %v1675
      %v2056 = vadd.f32 %v2019, %v1677
      %v2057 = vadd.f32 %v2020, %v1679
      %v2058 = vadd.f32 %v2021, %v1681
      %v2059 = vadd.f32 %v2022, %v1683
      %v2060 = vadd.f32 %v2023, %v1685
      %v2061 = vadd.f32 %v2024, %v1687
      %v2062 = vadd.f32 %v2025, %v1689
      %v2063 = vadd.f32 %v2026, %v1691
      %v2064 = vadd.f32 %v2027, %v1693
      %v2065 = vadd.f32 %v2028, %v1695
      %v2066 = vadd.f32 %v2029, %v1697
      %v2067 = vadd.f32 %v2030, %v1696
      %2069 = vset.pattern.permute.xlu0 0
      %2070 = vperm.xlu0 %2069, %v2031
      %v2071 = vpop.permute.xlu0 %2070
      %2074 = vset.pattern.permute.xlu0 0
      %2075 = vperm.xlu0 %2074, %v2032
      %v2076 = vpop.permute.xlu0 %2075
      %2079 = vset.pattern.permute.xlu0 0
      %2080 = vperm.xlu0 %2079, %v2033
      %v2081 = vpop.permute.xlu0 %2080
      %2084 = vset.pattern.permute.xlu0 0
      %2085 = vperm.xlu0 %2084, %v2034
      %v2086 = vpop.permute.xlu0 %2085
      %2089 = vset.pattern.permute.xlu0 0
      %2090 = vperm.xlu0 %2089, %v2035
      %v2091 = vpop.permute.xlu0 %2090
      %2094 = vset.pattern.permute.xlu0 0
      %2095 = vperm.xlu0 %2094, %v2036
      %v2096 = vpop.permute.xlu0 %2095
      %2099 = vset.pattern.permute.xlu0 0
      %2100 = vperm.xlu0 %2099, %v2037
      %v2101 = vpop.permute.xlu0 %2100
      %2104 = vset.pattern.permute.xlu0 0
      %2105 = vperm.xlu0 %2104, %v2038
      %v2106 = vpop.permute.xlu0 %2105
      %2109 = vset.pattern.permute.xlu0 0
      %2110 = vperm.xlu0 %2109, %v2039
      %v2111 = vpop.permute.xlu0 %2110
      %2114 = vset.pattern.permute.xlu0 0
      %2115 = vperm.xlu0 %2114, %v2040
      %v2116 = vpop.permute.xlu0 %2115
      %2119 = vset.pattern.permute.xlu0 0
      %2120 = vperm.xlu0 %2119, %v2041
      %v2121 = vpop.permute.xlu0 %2120
      %2124 = vset.pattern.permute.xlu0 0
      %2125 = vperm.xlu0 %2124, %v2042
      %v2126 = vpop.permute.xlu0 %2125
      %2129 = vset.pattern.permute.xlu0 0
      %2130 = vperm.xlu0 %2129, %v2043
      %v2131 = vpop.permute.xlu0 %2130
      %2134 = vset.pattern.permute.xlu0 0
      %2135 = vperm.xlu0 %2134, %v2044
      %v2136 = vpop.permute.xlu0 %2135
      %2139 = vset.pattern.permute.xlu0 0
      %2140 = vperm.xlu0 %2139, %v2045
      %v2141 = vpop.permute.xlu0 %2140
      %2144 = vset.pattern.permute.xlu0 0
      %2145 = vperm.xlu0 %2144, %v2046
      %v2146 = vpop.permute.xlu0 %2145
      %2149 = vset.pattern.permute.xlu0 0
      %2150 = vperm.xlu0 %2149, %v2047
      %v2151 = vpop.permute.xlu0 %2150
      %2154 = vset.pattern.permute.xlu0 0
      %2155 = vperm.xlu0 %2154, %v2048
      %v2156 = vpop.permute.xlu0 %2155
      %2159 = vset.pattern.permute.xlu0 0
      %2160 = vperm.xlu0 %2159, %v2049
      %v2161 = vpop.permute.xlu0 %2160
      %2164 = vset.pattern.permute.xlu0 0
      %2165 = vperm.xlu0 %2164, %v2050
      %v2166 = vpop.permute.xlu0 %2165
      %2169 = vset.pattern.permute.xlu0 0
      %2170 = vperm.xlu0 %2169, %v2051
      %v2171 = vpop.permute.xlu0 %2170
      %2174 = vset.pattern.permute.xlu0 0
      %2175 = vperm.xlu0 %2174, %v2052
      %v2176 = vpop.permute.xlu0 %2175
      %2179 = vset.pattern.permute.xlu0 0
      %2180 = vperm.xlu0 %2179, %v2053
      %v2181 = vpop.permute.xlu0 %2180
      %2184 = vset.pattern.permute.xlu0 0
      %2185 = vperm.xlu0 %2184, %v2054
      %v2186 = vpop.permute.xlu0 %2185
      %2189 = vset.pattern.permute.xlu0 0
      %2190 = vperm.xlu0 %2189, %v2055
      %v2191 = vpop.permute.xlu0 %2190
      %2194 = vset.pattern.permute.xlu0 0
      %2195 = vperm.xlu0 %2194, %v2056
      %v2196 = vpop.permute.xlu0 %2195
      %2199 = vset.pattern.permute.xlu0 0
      %2200 = vperm.xlu0 %2199, %v2057
      %v2201 = vpop.permute.xlu0 %2200
      %2204 = vset.pattern.permute.xlu0 0
      %2205 = vperm.xlu0 %2204, %v2058
      %v2206 = vpop.permute.xlu0 %2205
      %2209 = vset.pattern.permute.xlu0 0
      %2210 = vperm.xlu0 %2209, %v2059
      %v2211 = vpop.permute.xlu0 %2210
      %2214 = vset.pattern.permute.xlu0 0
      %2215 = vperm.xlu0 %2214, %v2060
      %v2216 = vpop.permute.xlu0 %2215
      %2219 = vset.pattern.permute.xlu0 0
      %2220 = vperm.xlu0 %2219, %v2061
      %v2221 = vpop.permute.xlu0 %2220
      %2224 = vset.pattern.permute.xlu0 0
      %2225 = vperm.xlu0 %2224, %v2062
      %v2226 = vpop.permute.xlu0 %2225
      %2229 = vset.pattern.permute.xlu0 0
      %2230 = vperm.xlu0 %2229, %v2063
      %v2231 = vpop.permute.xlu0 %2230
      %2234 = vset.pattern.permute.xlu0 0
      %2235 = vperm.xlu0 %2234, %v2064
      %v2236 = vpop.permute.xlu0 %2235
      %2239 = vset.pattern.permute.xlu0 0
      %2240 = vperm.xlu0 %2239, %v2065
      %v2241 = vpop.permute.xlu0 %2240
      %2244 = vset.pattern.permute.xlu0 0
      %2245 = vperm.xlu0 %2244, %v2066
      %v2246 = vpop.permute.xlu0 %2245
      %2249 = vset.pattern.permute.xlu0 0
      %2250 = vperm.xlu0 %2249, %v2067
      %v2251 = vpop.permute.xlu0 %2250
      %v2253 = vmul.f32 %v262, %v2071
      %v2254 = vmul.f32 %v263, %v2076
      %v2255 = vmul.f32 %v264, %v2081
      %v2256 = vmul.f32 %v265, %v2086
      %v2257 = vmul.f32 %v266, %v2091
      %v2258 = vmul.f32 %v267, %v2096
      %v2259 = vmul.f32 %v268, %v2101
      %v2260 = vmul.f32 %v269, %v2106
      %v2261 = vmul.f32 %v270, %v2111
      %v2262 = vmul.f32 %v271, %v2116
      %v2263 = vmul.f32 %v272, %v2121
      %v2264 = vmul.f32 %v273, %v2126
      %v2265 = vmul.f32 %v274, %v2131
      %v2266 = vmul.f32 %v275, %v2136
      %v2267 = vmul.f32 %v276, %v2141
      %v2268 = vmul.f32 %v277, %v2146
      %v2269 = vmul.f32 %v278, %v2151
      %v2270 = vmul.f32 %v279, %v2156
      %v2271 = vmul.f32 %v280, %v2161
      %v2272 = vmul.f32 %v281, %v2166
      %v2273 = vmul.f32 %v282, %v2171
      %v2274 = vmul.f32 %v283, %v2176
      %v2275 = vmul.f32 %v284, %v2181
      %v2276 = vmul.f32 %v285, %v2186
      %v2277 = vmul.f32 %v286, %v2191
      %v2278 = vmul.f32 %v287, %v2196
      %v2279 = vmul.f32 %v288, %v2201
      %v2280 = vmul.f32 %v289, %v2206
      %v2281 = vmul.f32 %v290, %v2211
      %v2282 = vmul.f32 %v291, %v2216
      %v2283 = vmul.f32 %v292, %v2221
      %v2284 = vmul.f32 %v293, %v2226
      %v2285 = vmul.f32 %v294, %v2231
      %v2286 = vmul.f32 %v295, %v2236
      %v2287 = vmul.f32 %v296, %v2241
      %v2288 = vmul.f32 %v297, %v2246
      %v2289 = vmul.f32 %v298, %v2251
      %v2290 = vmul.f32 %v303, %v342
      %v2291 = vmul.f32 %v304, %v343
      %v2292 = vmul.f32 %v305, %v344
      %v2293 = vmul.f32 %v306, %v345
      %v2294 = vmul.f32 %v307, %v346
      %v2295 = vmul.f32 %v308, %v347
      %v2296 = vmul.f32 %v309, %v348
      %v2297 = vmul.f32 %v310, %v349
      %v2298 = vmul.f32 %v311, %v350
      %v2299 = vmul.f32 %v312, %v351
      %v2300 = vmul.f32 %v313, %v352
      %v2301 = vmul.f32 %v314, %v353
      %v2302 = vmul.f32 %v315, %v354
      %v2303 = vmul.f32 %v316, %v355
      %v2304 = vmul.f32 %v317, %v356
      %v2305 = vmul.f32 %v318, %v357
      %v2306 = vmul.f32 %v319, %v358
      %v2307 = vmul.f32 %v320, %v359
      %v2308 = vmul.f32 %v321, %v360
      %v2309 = vmul.f32 %v322, %v361
      %v2310 = vmul.f32 %v323, %v362
      %v2311 = vmul.f32 %v324, %v363
      %v2312 = vmul.f32 %v325, %v364
      %v2313 = vmul.f32 %v326, %v365
      %v2314 = vmul.f32 %v327, %v366
      %v2315 = vmul.f32 %v328, %v367
      %v2316 = vmul.f32 %v329, %v368
      %v2317 = vmul.f32 %v330, %v369
      %v2318 = vmul.f32 %v331, %v370
      %v2319 = vmul.f32 %v332, %v371
      %v2320 = vmul.f32 %v333, %v372
      %v2321 = vmul.f32 %v334, %v373
      %v2322 = vmul.f32 %v335, %v374
      %v2323 = vmul.f32 %v336, %v375
      %v2324 = vmul.f32 %v337, %v376
      %v2325 = vmul.f32 %v338, %v377
      %v2326 = vmul.f32 %v339, %v378
      %v2327 = vadd.f32 %v2290, %v303
      %v2328 = vadd.f32 %v2291, %v304
      %v2329 = vadd.f32 %v2292, %v305
      %v2330 = vadd.f32 %v2293, %v306
      %v2331 = vadd.f32 %v2294, %v307
      %v2332 = vadd.f32 %v2295, %v308
      %v2333 = vadd.f32 %v2296, %v309
      %v2334 = vadd.f32 %v2297, %v310
      %v2335 = vadd.f32 %v2298, %v311
      %v2336 = vadd.f32 %v2299, %v312
      %v2337 = vadd.f32 %v2300, %v313
      %v2338 = vadd.f32 %v2301, %v314
      %v2339 = vadd.f32 %v2302, %v315
      %v2340 = vadd.f32 %v2303, %v316
      %v2341 = vadd.f32 %v2304, %v317
      %v2342 = vadd.f32 %v2305, %v318
      %v2343 = vadd.f32 %v2306, %v319
      %v2344 = vadd.f32 %v2307, %v320
      %v2345 = vadd.f32 %v2308, %v321
      %v2346 = vadd.f32 %v2309, %v322
      %v2347 = vadd.f32 %v2310, %v323
      %v2348 = vadd.f32 %v2311, %v324
      %v2349 = vadd.f32 %v2312, %v325
      %v2350 = vadd.f32 %v2313, %v326
      %v2351 = vadd.f32 %v2314, %v327
      %v2352 = vadd.f32 %v2315, %v328
      %v2353 = vadd.f32 %v2316, %v329
      %v2354 = vadd.f32 %v2317, %v330
      %v2355 = vadd.f32 %v2318, %v331
      %v2356 = vadd.f32 %v2319, %v332
      %v2357 = vadd.f32 %v2320, %v333
      %v2358 = vadd.f32 %v2321, %v334
      %v2359 = vadd.f32 %v2322, %v335
      %v2360 = vadd.f32 %v2323, %v336
      %v2361 = vadd.f32 %v2324, %v337
      %v2362 = vadd.f32 %v2325, %v338
      %v2363 = vadd.f32 %v2326, %v339
      %2365 = vset.pattern.permute.xlu0 0
      %2366 = vperm.xlu0 %2365, %v2327
      %v2367 = vpop.permute.xlu0 %2366
      %2370 = vset.pattern.permute.xlu0 0
      %2371 = vperm.xlu0 %2370, %v2328
      %v2372 = vpop.permute.xlu0 %2371
      %2375 = vset.pattern.permute.xlu0 0
      %2376 = vperm.xlu0 %2375, %v2329
      %v2377 = vpop.permute.xlu0 %2376
      %2380 = vset.pattern.permute.xlu0 0
      %2381 = vperm.xlu0 %2380, %v2330
      %v2382 = vpop.permute.xlu0 %2381
      %2385 = vset.pattern.permute.xlu0 0
      %2386 = vperm.xlu0 %2385, %v2331
      %v2387 = vpop.permute.xlu0 %2386
      %2390 = vset.pattern.permute.xlu0 0
      %2391 = vperm.xlu0 %2390, %v2332
      %v2392 = vpop.permute.xlu0 %2391
      %2395 = vset.pattern.permute.xlu0 0
      %2396 = vperm.xlu0 %2395, %v2333
      %v2397 = vpop.permute.xlu0 %2396
      %2400 = vset.pattern.permute.xlu0 0
      %2401 = vperm.xlu0 %2400, %v2334
      %v2402 = vpop.permute.xlu0 %2401
      %2405 = vset.pattern.permute.xlu0 0
      %2406 = vperm.xlu0 %2405, %v2335
      %v2407 = vpop.permute.xlu0 %2406
      %2410 = vset.pattern.permute.xlu0 0
      %2411 = vperm.xlu0 %2410, %v2336
      %v2412 = vpop.permute.xlu0 %2411
      %2415 = vset.pattern.permute.xlu0 0
      %2416 = vperm.xlu0 %2415, %v2337
      %v2417 = vpop.permute.xlu0 %2416
      %2420 = vset.pattern.permute.xlu0 0
      %2421 = vperm.xlu0 %2420, %v2338
      %v2422 = vpop.permute.xlu0 %2421
      %2425 = vset.pattern.permute.xlu0 0
      %2426 = vperm.xlu0 %2425, %v2339
      %v2427 = vpop.permute.xlu0 %2426
      %2430 = vset.pattern.permute.xlu0 0
      %2431 = vperm.xlu0 %2430, %v2340
      %v2432 = vpop.permute.xlu0 %2431
      %2435 = vset.pattern.permute.xlu0 0
      %2436 = vperm.xlu0 %2435, %v2341
      %v2437 = vpop.permute.xlu0 %2436
      %2440 = vset.pattern.permute.xlu0 0
      %2441 = vperm.xlu0 %2440, %v2342
      %v2442 = vpop.permute.xlu0 %2441
      %2445 = vset.pattern.permute.xlu0 0
      %2446 = vperm.xlu0 %2445, %v2343
      %v2447 = vpop.permute.xlu0 %2446
      %2450 = vset.pattern.permute.xlu0 0
      %2451 = vperm.xlu0 %2450, %v2344
      %v2452 = vpop.permute.xlu0 %2451
      %2455 = vset.pattern.permute.xlu0 0
      %2456 = vperm.xlu0 %2455, %v2345
      %v2457 = vpop.permute.xlu0 %2456
      %2460 = vset.pattern.permute.xlu0 0
      %2461 = vperm.xlu0 %2460, %v2346
      %v2462 = vpop.permute.xlu0 %2461
      %2465 = vset.pattern.permute.xlu0 0
      %2466 = vperm.xlu0 %2465, %v2347
      %v2467 = vpop.permute.xlu0 %2466
      %2470 = vset.pattern.permute.xlu0 0
      %2471 = vperm.xlu0 %2470, %v2348
      %v2472 = vpop.permute.xlu0 %2471
      %2475 = vset.pattern.permute.xlu0 0
      %2476 = vperm.xlu0 %2475, %v2349
      %v2477 = vpop.permute.xlu0 %2476
      %2480 = vset.pattern.permute.xlu0 0
      %2481 = vperm.xlu0 %2480, %v2350
      %v2482 = vpop.permute.xlu0 %2481
      %2485 = vset.pattern.permute.xlu0 0
      %2486 = vperm.xlu0 %2485, %v2351
      %v2487 = vpop.permute.xlu0 %2486
      %2490 = vset.pattern.permute.xlu0 0
      %2491 = vperm.xlu0 %2490, %v2352
      %v2492 = vpop.permute.xlu0 %2491
      %2495 = vset.pattern.permute.xlu0 0
      %2496 = vperm.xlu0 %2495, %v2353
      %v2497 = vpop.permute.xlu0 %2496
      %2500 = vset.pattern.permute.xlu0 0
      %2501 = vperm.xlu0 %2500, %v2354
      %v2502 = vpop.permute.xlu0 %2501
      %2505 = vset.pattern.permute.xlu0 0
      %2506 = vperm.xlu0 %2505, %v2355
      %v2507 = vpop.permute.xlu0 %2506
      %2510 = vset.pattern.permute.xlu0 0
      %2511 = vperm.xlu0 %2510, %v2356
      %v2512 = vpop.permute.xlu0 %2511
      %2515 = vset.pattern.permute.xlu0 0
      %2516 = vperm.xlu0 %2515, %v2357
      %v2517 = vpop.permute.xlu0 %2516
      %2520 = vset.pattern.permute.xlu0 0
      %2521 = vperm.xlu0 %2520, %v2358
      %v2522 = vpop.permute.xlu0 %2521
      %2525 = vset.pattern.permute.xlu0 0
      %2526 = vperm.xlu0 %2525, %v2359
      %v2527 = vpop.permute.xlu0 %2526
      %2530 = vset.pattern.permute.xlu0 0
      %2531 = vperm.xlu0 %2530, %v2360
      %v2532 = vpop.permute.xlu0 %2531
      %2535 = vset.pattern.permute.xlu0 0
      %2536 = vperm.xlu0 %2535, %v2361
      %v2537 = vpop.permute.xlu0 %2536
      %2540 = vset.pattern.permute.xlu0 0
      %2541 = vperm.xlu0 %2540, %v2362
      %v2542 = vpop.permute.xlu0 %2541
      %2545 = vset.pattern.permute.xlu0 0
      %2546 = vperm.xlu0 %2545, %v2363
      %v2547 = vpop.permute.xlu0 %2546
      %v2549 = vmul.f32 %v262, %v2367
      %v2550 = vmul.f32 %v263, %v2372
      %v2551 = vmul.f32 %v264, %v2377
      %v2552 = vmul.f32 %v265, %v2382
      %v2553 = vmul.f32 %v266, %v2387
      %v2554 = vmul.f32 %v267, %v2392
      %v2555 = vmul.f32 %v268, %v2397
      %v2556 = vmul.f32 %v269, %v2402
      %v2557 = vmul.f32 %v270, %v2407
      %v2558 = vmul.f32 %v271, %v2412
      %v2559 = vmul.f32 %v272, %v2417
      %v2560 = vmul.f32 %v273, %v2422
      %v2561 = vmul.f32 %v274, %v2427
      %v2562 = vmul.f32 %v275, %v2432
      %v2563 = vmul.f32 %v276, %v2437
      %v2564 = vmul.f32 %v277, %v2442
      %v2565 = vmul.f32 %v278, %v2447
      %v2566 = vmul.f32 %v279, %v2452
      %v2567 = vmul.f32 %v280, %v2457
      %v2568 = vmul.f32 %v281, %v2462
      %v2569 = vmul.f32 %v282, %v2467
      %v2570 = vmul.f32 %v283, %v2472
      %v2571 = vmul.f32 %v284, %v2477
      %v2572 = vmul.f32 %v285, %v2482
      %v2573 = vmul.f32 %v286, %v2487
      %v2574 = vmul.f32 %v287, %v2492
      %v2575 = vmul.f32 %v288, %v2497
      %v2576 = vmul.f32 %v289, %v2502
      %v2577 = vmul.f32 %v290, %v2507
      %v2578 = vmul.f32 %v291, %v2512
      %v2579 = vmul.f32 %v292, %v2517
      %v2580 = vmul.f32 %v293, %v2522
      %v2581 = vmul.f32 %v294, %v2527
      %v2582 = vmul.f32 %v295, %v2532
      %v2583 = vmul.f32 %v296, %v2537
      %v2584 = vmul.f32 %v297, %v2542
      %v2585 = vmul.f32 %v298, %v2547
      %vm2586 = vcmask 1040384
      %v2587 = vrot.slane %v342, 7
      %v2588 = vrot.slane %v343, 7
      %v2589 = vsel %vm2586, %v2587, %v2588
      %v2590 = vrot.slane %v344, 7
      %v2591 = vsel %vm2586, %v2588, %v2590
      %v2592 = vrot.slane %v345, 7
      %v2593 = vsel %vm2586, %v2590, %v2592
      %v2594 = vrot.slane %v346, 7
      %v2595 = vsel %vm2586, %v2592, %v2594
      %v2596 = vrot.slane %v347, 7
      %v2597 = vsel %vm2586, %v2594, %v2596
      %v2598 = vrot.slane %v348, 7
      %v2599 = vsel %vm2586, %v2596, %v2598
      %v2600 = vrot.slane %v349, 7
      %v2601 = vsel %vm2586, %v2598, %v2600
      %v2602 = vrot.slane %v350, 7
      %v2603 = vsel %vm2586, %v2600, %v2602
      %v2604 = vrot.slane %v351, 7
      %v2605 = vsel %vm2586, %v2602, %v2604
      %v2606 = vrot.slane %v352, 7
      %v2607 = vsel %vm2586, %v2604, %v2606
      %v2608 = vrot.slane %v353, 7
      %v2609 = vsel %vm2586, %v2606, %v2608
      %v2610 = vrot.slane %v354, 7
      %v2611 = vsel %vm2586, %v2608, %v2610
      %v2612 = vrot.slane %v355, 7
      %v2613 = vsel %vm2586, %v2610, %v2612
      %v2614 = vrot.slane %v356, 7
      %v2615 = vsel %vm2586, %v2612, %v2614
      %v2616 = vrot.slane %v357, 7
      %v2617 = vsel %vm2586, %v2614, %v2616
      %v2618 = vrot.slane %v358, 7
      %v2619 = vsel %vm2586, %v2616, %v2618
      %v2620 = vrot.slane %v359, 7
      %v2621 = vsel %vm2586, %v2618, %v2620
      %v2622 = vrot.slane %v360, 7
      %v2623 = vsel %vm2586, %v2620, %v2622
      %v2624 = vrot.slane %v361, 7
      %v2625 = vsel %vm2586, %v2622, %v2624
      %v2626 = vrot.slane %v362, 7
      %v2627 = vsel %vm2586, %v2624, %v2626
      %v2628 = vrot.slane %v363, 7
      %v2629 = vsel %vm2586, %v2626, %v2628
      %v2630 = vrot.slane %v364, 7
      %v2631 = vsel %vm2586, %v2628, %v2630
      %v2632 = vrot.slane %v365, 7
      %v2633 = vsel %vm2586, %v2630, %v2632
      %v2634 = vrot.slane %v366, 7
      %v2635 = vsel %vm2586, %v2632, %v2634
      %v2636 = vrot.slane %v367, 7
      %v2637 = vsel %vm2586, %v2634, %v2636
      %v2638 = vrot.slane %v368, 7
      %v2639 = vsel %vm2586, %v2636, %v2638
      %v2640 = vrot.slane %v369, 7
      %v2641 = vsel %vm2586, %v2638, %v2640
      %v2642 = vrot.slane %v370, 7
      %v2643 = vsel %vm2586, %v2640, %v2642
      %v2644 = vrot.slane %v371, 7
      %v2645 = vsel %vm2586, %v2642, %v2644
      %v2646 = vrot.slane %v372, 7
      %v2647 = vsel %vm2586, %v2644, %v2646
      %v2648 = vrot.slane %v373, 7
      %v2649 = vsel %vm2586, %v2646, %v2648
      %v2650 = vrot.slane %v374, 7
      %v2651 = vsel %vm2586, %v2648, %v2650
      %v2652 = vrot.slane %v375, 7
      %v2653 = vsel %vm2586, %v2650, %v2652
      %v2654 = vrot.slane %v376, 7
      %v2655 = vsel %vm2586, %v2652, %v2654
      %v2656 = vrot.slane %v377, 7
      %v2657 = vsel %vm2586, %v2654, %v2656
      %v2658 = vrot.slane %v378, 7
      %v2659 = vsel %vm2586, %v2656, %v2658
      %v2697 = vmul.f32 %v303, %v2587
      %v2698 = vmul.f32 %v304, %v2589
      %v2699 = vmul.f32 %v305, %v2591
      %v2700 = vmul.f32 %v306, %v2593
      %v2701 = vmul.f32 %v307, %v2595
      %v2702 = vmul.f32 %v308, %v2597
      %v2703 = vmul.f32 %v309, %v2599
      %v2704 = vmul.f32 %v310, %v2601
      %v2705 = vmul.f32 %v311, %v2603
      %v2706 = vmul.f32 %v312, %v2605
      %v2707 = vmul.f32 %v313, %v2607
      %v2708 = vmul.f32 %v314, %v2609
      %v2709 = vmul.f32 %v315, %v2611
      %v2710 = vmul.f32 %v316, %v2613
      %v2711 = vmul.f32 %v317, %v2615
      %v2712 = vmul.f32 %v318, %v2617
      %v2713 = vmul.f32 %v319, %v2619
      %v2714 = vmul.f32 %v320, %v2621
      %v2715 = vmul.f32 %v321, %v2623
      %v2716 = vmul.f32 %v322, %v2625
      %v2717 = vmul.f32 %v323, %v2627
      %v2718 = vmul.f32 %v324, %v2629
      %v2719 = vmul.f32 %v325, %v2631
      %v2720 = vmul.f32 %v326, %v2633
      %v2721 = vmul.f32 %v327, %v2635
      %v2722 = vmul.f32 %v328, %v2637
      %v2723 = vmul.f32 %v329, %v2639
      %v2724 = vmul.f32 %v330, %v2641
      %v2725 = vmul.f32 %v331, %v2643
      %v2726 = vmul.f32 %v332, %v2645
      %v2727 = vmul.f32 %v333, %v2647
      %v2728 = vmul.f32 %v334, %v2649
      %v2729 = vmul.f32 %v335, %v2651
      %v2730 = vmul.f32 %v336, %v2653
      %v2731 = vmul.f32 %v337, %v2655
      %v2732 = vmul.f32 %v338, %v2657
      %v2733 = vmul.f32 %v339, %v2659
      %v2734 = vrot.slane %v303, 7
      %v2735 = vrot.slane %v304, 7
      %v2736 = vsel %vm2586, %v2734, %v2735
      %v2737 = vrot.slane %v305, 7
      %v2738 = vsel %vm2586, %v2735, %v2737
      %v2739 = vrot.slane %v306, 7
      %v2740 = vsel %vm2586, %v2737, %v2739
      %v2741 = vrot.slane %v307, 7
      %v2742 = vsel %vm2586, %v2739, %v2741
      %v2743 = vrot.slane %v308, 7
      %v2744 = vsel %vm2586, %v2741, %v2743
      %v2745 = vrot.slane %v309, 7
      %v2746 = vsel %vm2586, %v2743, %v2745
      %v2747 = vrot.slane %v310, 7
      %v2748 = vsel %vm2586, %v2745, %v2747
      %v2749 = vrot.slane %v311, 7
      %v2750 = vsel %vm2586, %v2747, %v2749
      %v2751 = vrot.slane %v312, 7
      %v2752 = vsel %vm2586, %v2749, %v2751
      %v2753 = vrot.slane %v313, 7
      %v2754 = vsel %vm2586, %v2751, %v2753
      %v2755 = vrot.slane %v314, 7
      %v2756 = vsel %vm2586, %v2753, %v2755
      %v2757 = vrot.slane %v315, 7
      %v2758 = vsel %vm2586, %v2755, %v2757
      %v2759 = vrot.slane %v316, 7
      %v2760 = vsel %vm2586, %v2757, %v2759
      %v2761 = vrot.slane %v317, 7
      %v2762 = vsel %vm2586, %v2759, %v2761
      %v2763 = vrot.slane %v318, 7
      %v2764 = vsel %vm2586, %v2761, %v2763
      %v2765 = vrot.slane %v319, 7
      %v2766 = vsel %vm2586, %v2763, %v2765
      %v2767 = vrot.slane %v320, 7
      %v2768 = vsel %vm2586, %v2765, %v2767
      %v2769 = vrot.slane %v321, 7
      %v2770 = vsel %vm2586, %v2767, %v2769
      %v2771 = vrot.slane %v322, 7
      %v2772 = vsel %vm2586, %v2769, %v2771
      %v2773 = vrot.slane %v323, 7
      %v2774 = vsel %vm2586, %v2771, %v2773
      %v2775 = vrot.slane %v324, 7
      %v2776 = vsel %vm2586, %v2773, %v2775
      %v2777 = vrot.slane %v325, 7
      %v2778 = vsel %vm2586, %v2775, %v2777
      %v2779 = vrot.slane %v326, 7
      %v2780 = vsel %vm2586, %v2777, %v2779
      %v2781 = vrot.slane %v327, 7
      %v2782 = vsel %vm2586, %v2779, %v2781
      %v2783 = vrot.slane %v328, 7
      %v2784 = vsel %vm2586, %v2781, %v2783
      %v2785 = vrot.slane %v329, 7
      %v2786 = vsel %vm2586, %v2783, %v2785
      %v2787 = vrot.slane %v330, 7
      %v2788 = vsel %vm2586, %v2785, %v2787
      %v2789 = vrot.slane %v331, 7
      %v2790 = vsel %vm2586, %v2787, %v2789
      %v2791 = vrot.slane %v332, 7
      %v2792 = vsel %vm2586, %v2789, %v2791
      %v2793 = vrot.slane %v333, 7
      %v2794 = vsel %vm2586, %v2791, %v2793
      %v2795 = vrot.slane %v334, 7
      %v2796 = vsel %vm2586, %v2793, %v2795
      %v2797 = vrot.slane %v335, 7
      %v2798 = vsel %vm2586, %v2795, %v2797
      %v2799 = vrot.slane %v336, 7
      %v2800 = vsel %vm2586, %v2797, %v2799
      %v2801 = vrot.slane %v337, 7
      %v2802 = vsel %vm2586, %v2799, %v2801
      %v2803 = vrot.slane %v338, 7
      %v2804 = vsel %vm2586, %v2801, %v2803
      %v2805 = vrot.slane %v339, 7
      %v2806 = vsel %vm2586, %v2803, %v2805
      %v2844 = vadd.f32 %v2697, %v2734
      %v2845 = vadd.f32 %v2698, %v2736
      %v2846 = vadd.f32 %v2699, %v2738
      %v2847 = vadd.f32 %v2700, %v2740
      %v2848 = vadd.f32 %v2701, %v2742
      %v2849 = vadd.f32 %v2702, %v2744
      %v2850 = vadd.f32 %v2703, %v2746
      %v2851 = vadd.f32 %v2704, %v2748
      %v2852 = vadd.f32 %v2705, %v2750
      %v2853 = vadd.f32 %v2706, %v2752
      %v2854 = vadd.f32 %v2707, %v2754
      %v2855 = vadd.f32 %v2708, %v2756
      %v2856 = vadd.f32 %v2709, %v2758
      %v2857 = vadd.f32 %v2710, %v2760
      %v2858 = vadd.f32 %v2711, %v2762
      %v2859 = vadd.f32 %v2712, %v2764
      %v2860 = vadd.f32 %v2713, %v2766
      %v2861 = vadd.f32 %v2714, %v2768
      %v2862 = vadd.f32 %v2715, %v2770
      %v2863 = vadd.f32 %v2716, %v2772
      %v2864 = vadd.f32 %v2717, %v2774
      %v2865 = vadd.f32 %v2718, %v2776
      %v2866 = vadd.f32 %v2719, %v2778
      %v2867 = vadd.f32 %v2720, %v2780
      %v2868 = vadd.f32 %v2721, %v2782
      %v2869 = vadd.f32 %v2722, %v2784
      %v2870 = vadd.f32 %v2723, %v2786
      %v2871 = vadd.f32 %v2724, %v2788
      %v2872 = vadd.f32 %v2725, %v2790
      %v2873 = vadd.f32 %v2726, %v2792
      %v2874 = vadd.f32 %v2727, %v2794
      %v2875 = vadd.f32 %v2728, %v2796
      %v2876 = vadd.f32 %v2729, %v2798
      %v2877 = vadd.f32 %v2730, %v2800
      %v2878 = vadd.f32 %v2731, %v2802
      %v2879 = vadd.f32 %v2732, %v2804
      %v2880 = vadd.f32 %v2733, %v2806
      %2882 = vset.pattern.permute.xlu0 0
      %2883 = vperm.xlu0 %2882, %v2844
      %v2884 = vpop.permute.xlu0 %2883
      %2887 = vset.pattern.permute.xlu0 0
      %2888 = vperm.xlu0 %2887, %v2845
      %v2889 = vpop.permute.xlu0 %2888
      %2892 = vset.pattern.permute.xlu0 0
      %2893 = vperm.xlu0 %2892, %v2846
      %v2894 = vpop.permute.xlu0 %2893
      %2897 = vset.pattern.permute.xlu0 0
      %2898 = vperm.xlu0 %2897, %v2847
      %v2899 = vpop.permute.xlu0 %2898
      %2902 = vset.pattern.permute.xlu0 0
      %2903 = vperm.xlu0 %2902, %v2848
      %v2904 = vpop.permute.xlu0 %2903
      %2907 = vset.pattern.permute.xlu0 0
      %2908 = vperm.xlu0 %2907, %v2849
      %v2909 = vpop.permute.xlu0 %2908
      %2912 = vset.pattern.permute.xlu0 0
      %2913 = vperm.xlu0 %2912, %v2850
      %v2914 = vpop.permute.xlu0 %2913
      %2917 = vset.pattern.permute.xlu0 0
      %2918 = vperm.xlu0 %2917, %v2851
      %v2919 = vpop.permute.xlu0 %2918
      %2922 = vset.pattern.permute.xlu0 0
      %2923 = vperm.xlu0 %2922, %v2852
      %v2924 = vpop.permute.xlu0 %2923
      %2927 = vset.pattern.permute.xlu0 0
      %2928 = vperm.xlu0 %2927, %v2853
      %v2929 = vpop.permute.xlu0 %2928
      %2932 = vset.pattern.permute.xlu0 0
      %2933 = vperm.xlu0 %2932, %v2854
      %v2934 = vpop.permute.xlu0 %2933
      %2937 = vset.pattern.permute.xlu0 0
      %2938 = vperm.xlu0 %2937, %v2855
      %v2939 = vpop.permute.xlu0 %2938
      %2942 = vset.pattern.permute.xlu0 0
      %2943 = vperm.xlu0 %2942, %v2856
      %v2944 = vpop.permute.xlu0 %2943
      %2947 = vset.pattern.permute.xlu0 0
      %2948 = vperm.xlu0 %2947, %v2857
      %v2949 = vpop.permute.xlu0 %2948
      %2952 = vset.pattern.permute.xlu0 0
      %2953 = vperm.xlu0 %2952, %v2858
      %v2954 = vpop.permute.xlu0 %2953
      %2957 = vset.pattern.permute.xlu0 0
      %2958 = vperm.xlu0 %2957, %v2859
      %v2959 = vpop.permute.xlu0 %2958
      %2962 = vset.pattern.permute.xlu0 0
      %2963 = vperm.xlu0 %2962, %v2860
      %v2964 = vpop.permute.xlu0 %2963
      %2967 = vset.pattern.permute.xlu0 0
      %2968 = vperm.xlu0 %2967, %v2861
      %v2969 = vpop.permute.xlu0 %2968
      %2972 = vset.pattern.permute.xlu0 0
      %2973 = vperm.xlu0 %2972, %v2862
      %v2974 = vpop.permute.xlu0 %2973
      %2977 = vset.pattern.permute.xlu0 0
      %2978 = vperm.xlu0 %2977, %v2863
      %v2979 = vpop.permute.xlu0 %2978
      %2982 = vset.pattern.permute.xlu0 0
      %2983 = vperm.xlu0 %2982, %v2864
      %v2984 = vpop.permute.xlu0 %2983
      %2987 = vset.pattern.permute.xlu0 0
      %2988 = vperm.xlu0 %2987, %v2865
      %v2989 = vpop.permute.xlu0 %2988
      %2992 = vset.pattern.permute.xlu0 0
      %2993 = vperm.xlu0 %2992, %v2866
      %v2994 = vpop.permute.xlu0 %2993
      %2997 = vset.pattern.permute.xlu0 0
      %2998 = vperm.xlu0 %2997, %v2867
      %v2999 = vpop.permute.xlu0 %2998
      %3002 = vset.pattern.permute.xlu0 0
      %3003 = vperm.xlu0 %3002, %v2868
      %v3004 = vpop.permute.xlu0 %3003
      %3007 = vset.pattern.permute.xlu0 0
      %3008 = vperm.xlu0 %3007, %v2869
      %v3009 = vpop.permute.xlu0 %3008
      %3012 = vset.pattern.permute.xlu0 0
      %3013 = vperm.xlu0 %3012, %v2870
      %v3014 = vpop.permute.xlu0 %3013
      %3017 = vset.pattern.permute.xlu0 0
      %3018 = vperm.xlu0 %3017, %v2871
      %v3019 = vpop.permute.xlu0 %3018
      %3022 = vset.pattern.permute.xlu0 0
      %3023 = vperm.xlu0 %3022, %v2872
      %v3024 = vpop.permute.xlu0 %3023
      %3027 = vset.pattern.permute.xlu0 0
      %3028 = vperm.xlu0 %3027, %v2873
      %v3029 = vpop.permute.xlu0 %3028
      %3032 = vset.pattern.permute.xlu0 0
      %3033 = vperm.xlu0 %3032, %v2874
      %v3034 = vpop.permute.xlu0 %3033
      %3037 = vset.pattern.permute.xlu0 0
      %3038 = vperm.xlu0 %3037, %v2875
      %v3039 = vpop.permute.xlu0 %3038
      %3042 = vset.pattern.permute.xlu0 0
      %3043 = vperm.xlu0 %3042, %v2876
      %v3044 = vpop.permute.xlu0 %3043
      %3047 = vset.pattern.permute.xlu0 0
      %3048 = vperm.xlu0 %3047, %v2877
      %v3049 = vpop.permute.xlu0 %3048
      %3052 = vset.pattern.permute.xlu0 0
      %3053 = vperm.xlu0 %3052, %v2878
      %v3054 = vpop.permute.xlu0 %3053
      %3057 = vset.pattern.permute.xlu0 0
      %3058 = vperm.xlu0 %3057, %v2879
      %v3059 = vpop.permute.xlu0 %3058
      %3062 = vset.pattern.permute.xlu0 0
      %3063 = vperm.xlu0 %3062, %v2880
      %v3064 = vpop.permute.xlu0 %3063
      %v3066 = vmul.f32 %v262, %v2884
      %v3067 = vmul.f32 %v263, %v2889
      %v3068 = vmul.f32 %v264, %v2894
      %v3069 = vmul.f32 %v265, %v2899
      %v3070 = vmul.f32 %v266, %v2904
      %v3071 = vmul.f32 %v267, %v2909
      %v3072 = vmul.f32 %v268, %v2914
      %v3073 = vmul.f32 %v269, %v2919
      %v3074 = vmul.f32 %v270, %v2924
      %v3075 = vmul.f32 %v271, %v2929
      %v3076 = vmul.f32 %v272, %v2934
      %v3077 = vmul.f32 %v273, %v2939
      %v3078 = vmul.f32 %v274, %v2944
      %v3079 = vmul.f32 %v275, %v2949
      %v3080 = vmul.f32 %v276, %v2954
      %v3081 = vmul.f32 %v277, %v2959
      %v3082 = vmul.f32 %v278, %v2964
      %v3083 = vmul.f32 %v279, %v2969
      %v3084 = vmul.f32 %v280, %v2974
      %v3085 = vmul.f32 %v281, %v2979
      %v3086 = vmul.f32 %v282, %v2984
      %v3087 = vmul.f32 %v283, %v2989
      %v3088 = vmul.f32 %v284, %v2994
      %v3089 = vmul.f32 %v285, %v2999
      %v3090 = vmul.f32 %v286, %v3004
      %v3091 = vmul.f32 %v287, %v3009
      %v3092 = vmul.f32 %v288, %v3014
      %v3093 = vmul.f32 %v289, %v3019
      %v3094 = vmul.f32 %v290, %v3024
      %v3095 = vmul.f32 %v291, %v3029
      %v3096 = vmul.f32 %v292, %v3034
      %v3097 = vmul.f32 %v293, %v3039
      %v3098 = vmul.f32 %v294, %v3044
      %v3099 = vmul.f32 %v295, %v3049
      %v3100 = vmul.f32 %v296, %v3054
      %v3101 = vmul.f32 %v297, %v3059
      %v3102 = vmul.f32 %v298, %v3064
      %v3103 = vmul.f32 %v305, %v2587
      %v3104 = vmul.f32 %v306, %v2589
      %v3105 = vmul.f32 %v307, %v2591
      %v3106 = vmul.f32 %v308, %v2593
      %v3107 = vmul.f32 %v309, %v2595
      %v3108 = vmul.f32 %v310, %v2597
      %v3109 = vmul.f32 %v311, %v2599
      %v3110 = vmul.f32 %v312, %v2601
      %v3111 = vmul.f32 %v313, %v2603
      %v3112 = vmul.f32 %v314, %v2605
      %v3113 = vmul.f32 %v315, %v2607
      %v3114 = vmul.f32 %v316, %v2609
      %v3115 = vmul.f32 %v317, %v2611
      %v3116 = vmul.f32 %v318, %v2613
      %v3117 = vmul.f32 %v319, %v2615
      %v3118 = vmul.f32 %v320, %v2617
      %v3119 = vmul.f32 %v321, %v2619
      %v3120 = vmul.f32 %v322, %v2621
      %v3121 = vmul.f32 %v323, %v2623
      %v3122 = vmul.f32 %v324, %v2625
      %v3123 = vmul.f32 %v325, %v2627
      %v3124 = vmul.f32 %v326, %v2629
      %v3125 = vmul.f32 %v327, %v2631
      %v3126 = vmul.f32 %v328, %v2633
      %v3127 = vmul.f32 %v329, %v2635
      %v3128 = vmul.f32 %v330, %v2637
      %v3129 = vmul.f32 %v331, %v2639
      %v3130 = vmul.f32 %v332, %v2641
      %v3131 = vmul.f32 %v333, %v2643
      %v3132 = vmul.f32 %v334, %v2645
      %v3133 = vmul.f32 %v335, %v2647
      %v3134 = vmul.f32 %v336, %v2649
      %v3135 = vmul.f32 %v337, %v2651
      %v3136 = vmul.f32 %v338, %v2653
      %v3137 = vmul.f32 %v339, %v2655
      %v3138 = vmul.f32 %v340, %v2657
      %v3139 = vmul.f32 %v341, %v2659
      %v3140 = vadd.f32 %v3103, %v2734
      %v3141 = vadd.f32 %v3104, %v2736
      %v3142 = vadd.f32 %v3105, %v2738
      %v3143 = vadd.f32 %v3106, %v2740
      %v3144 = vadd.f32 %v3107, %v2742
      %v3145 = vadd.f32 %v3108, %v2744
      %v3146 = vadd.f32 %v3109, %v2746
      %v3147 = vadd.f32 %v3110, %v2748
      %v3148 = vadd.f32 %v3111, %v2750
      %v3149 = vadd.f32 %v3112, %v2752
      %v3150 = vadd.f32 %v3113, %v2754
      %v3151 = vadd.f32 %v3114, %v2756
      %v3152 = vadd.f32 %v3115, %v2758
      %v3153 = vadd.f32 %v3116, %v2760
      %v3154 = vadd.f32 %v3117, %v2762
      %v3155 = vadd.f32 %v3118, %v2764
      %v3156 = vadd.f32 %v3119, %v2766
      %v3157 = vadd.f32 %v3120, %v2768
      %v3158 = vadd.f32 %v3121, %v2770
      %v3159 = vadd.f32 %v3122, %v2772
      %v3160 = vadd.f32 %v3123, %v2774
      %v3161 = vadd.f32 %v3124, %v2776
      %v3162 = vadd.f32 %v3125, %v2778
      %v3163 = vadd.f32 %v3126, %v2780
      %v3164 = vadd.f32 %v3127, %v2782
      %v3165 = vadd.f32 %v3128, %v2784
      %v3166 = vadd.f32 %v3129, %v2786
      %v3167 = vadd.f32 %v3130, %v2788
      %v3168 = vadd.f32 %v3131, %v2790
      %v3169 = vadd.f32 %v3132, %v2792
      %v3170 = vadd.f32 %v3133, %v2794
      %v3171 = vadd.f32 %v3134, %v2796
      %v3172 = vadd.f32 %v3135, %v2798
      %v3173 = vadd.f32 %v3136, %v2800
      %v3174 = vadd.f32 %v3137, %v2802
      %v3175 = vadd.f32 %v3138, %v2804
      %v3176 = vadd.f32 %v3139, %v2806
      %3178 = vset.pattern.permute.xlu0 0
      %3179 = vperm.xlu0 %3178, %v3140
      %v3180 = vpop.permute.xlu0 %3179
      %3183 = vset.pattern.permute.xlu0 0
      %3184 = vperm.xlu0 %3183, %v3141
      %v3185 = vpop.permute.xlu0 %3184
      %3188 = vset.pattern.permute.xlu0 0
      %3189 = vperm.xlu0 %3188, %v3142
      %v3190 = vpop.permute.xlu0 %3189
      %3193 = vset.pattern.permute.xlu0 0
      %3194 = vperm.xlu0 %3193, %v3143
      %v3195 = vpop.permute.xlu0 %3194
      %3198 = vset.pattern.permute.xlu0 0
      %3199 = vperm.xlu0 %3198, %v3144
      %v3200 = vpop.permute.xlu0 %3199
      %3203 = vset.pattern.permute.xlu0 0
      %3204 = vperm.xlu0 %3203, %v3145
      %v3205 = vpop.permute.xlu0 %3204
      %3208 = vset.pattern.permute.xlu0 0
      %3209 = vperm.xlu0 %3208, %v3146
      %v3210 = vpop.permute.xlu0 %3209
      %3213 = vset.pattern.permute.xlu0 0
      %3214 = vperm.xlu0 %3213, %v3147
      %v3215 = vpop.permute.xlu0 %3214
      %3218 = vset.pattern.permute.xlu0 0
      %3219 = vperm.xlu0 %3218, %v3148
      %v3220 = vpop.permute.xlu0 %3219
      %3223 = vset.pattern.permute.xlu0 0
      %3224 = vperm.xlu0 %3223, %v3149
      %v3225 = vpop.permute.xlu0 %3224
      %3228 = vset.pattern.permute.xlu0 0
      %3229 = vperm.xlu0 %3228, %v3150
      %v3230 = vpop.permute.xlu0 %3229
      %3233 = vset.pattern.permute.xlu0 0
      %3234 = vperm.xlu0 %3233, %v3151
      %v3235 = vpop.permute.xlu0 %3234
      %3238 = vset.pattern.permute.xlu0 0
      %3239 = vperm.xlu0 %3238, %v3152
      %v3240 = vpop.permute.xlu0 %3239
      %3243 = vset.pattern.permute.xlu0 0
      %3244 = vperm.xlu0 %3243, %v3153
      %v3245 = vpop.permute.xlu0 %3244
      %3248 = vset.pattern.permute.xlu0 0
      %3249 = vperm.xlu0 %3248, %v3154
      %v3250 = vpop.permute.xlu0 %3249
      %3253 = vset.pattern.permute.xlu0 0
      %3254 = vperm.xlu0 %3253, %v3155
      %v3255 = vpop.permute.xlu0 %3254
      %3258 = vset.pattern.permute.xlu0 0
      %3259 = vperm.xlu0 %3258, %v3156
      %v3260 = vpop.permute.xlu0 %3259
      %3263 = vset.pattern.permute.xlu0 0
      %3264 = vperm.xlu0 %3263, %v3157
      %v3265 = vpop.permute.xlu0 %3264
      %3268 = vset.pattern.permute.xlu0 0
      %3269 = vperm.xlu0 %3268, %v3158
      %v3270 = vpop.permute.xlu0 %3269
      %3273 = vset.pattern.permute.xlu0 0
      %3274 = vperm.xlu0 %3273, %v3159
      %v3275 = vpop.permute.xlu0 %3274
      %3278 = vset.pattern.permute.xlu0 0
      %3279 = vperm.xlu0 %3278, %v3160
      %v3280 = vpop.permute.xlu0 %3279
      %3283 = vset.pattern.permute.xlu0 0
      %3284 = vperm.xlu0 %3283, %v3161
      %v3285 = vpop.permute.xlu0 %3284
      %3288 = vset.pattern.permute.xlu0 0
      %3289 = vperm.xlu0 %3288, %v3162
      %v3290 = vpop.permute.xlu0 %3289
      %3293 = vset.pattern.permute.xlu0 0
      %3294 = vperm.xlu0 %3293, %v3163
      %v3295 = vpop.permute.xlu0 %3294
      %3298 = vset.pattern.permute.xlu0 0
      %3299 = vperm.xlu0 %3298, %v3164
      %v3300 = vpop.permute.xlu0 %3299
      %3303 = vset.pattern.permute.xlu0 0
      %3304 = vperm.xlu0 %3303, %v3165
      %v3305 = vpop.permute.xlu0 %3304
      %3308 = vset.pattern.permute.xlu0 0
      %3309 = vperm.xlu0 %3308, %v3166
      %v3310 = vpop.permute.xlu0 %3309
      %3313 = vset.pattern.permute.xlu0 0
      %3314 = vperm.xlu0 %3313, %v3167
      %v3315 = vpop.permute.xlu0 %3314
      %3318 = vset.pattern.permute.xlu0 0
      %3319 = vperm.xlu0 %3318, %v3168
      %v3320 = vpop.permute.xlu0 %3319
      %3323 = vset.pattern.permute.xlu0 0
      %3324 = vperm.xlu0 %3323, %v3169
      %v3325 = vpop.permute.xlu0 %3324
      %3328 = vset.pattern.permute.xlu0 0
      %3329 = vperm.xlu0 %3328, %v3170
      %v3330 = vpop.permute.xlu0 %3329
      %3333 = vset.pattern.permute.xlu0 0
      %3334 = vperm.xlu0 %3333, %v3171
      %v3335 = vpop.permute.xlu0 %3334
      %3338 = vset.pattern.permute.xlu0 0
      %3339 = vperm.xlu0 %3338, %v3172
      %v3340 = vpop.permute.xlu0 %3339
      %3343 = vset.pattern.permute.xlu0 0
      %3344 = vperm.xlu0 %3343, %v3173
      %v3345 = vpop.permute.xlu0 %3344
      %3348 = vset.pattern.permute.xlu0 0
      %3349 = vperm.xlu0 %3348, %v3174
      %v3350 = vpop.permute.xlu0 %3349
      %3353 = vset.pattern.permute.xlu0 0
      %3354 = vperm.xlu0 %3353, %v3175
      %v3355 = vpop.permute.xlu0 %3354
      %3358 = vset.pattern.permute.xlu0 0
      %3359 = vperm.xlu0 %3358, %v3176
      %v3360 = vpop.permute.xlu0 %3359
      %v3362 = vmul.f32 %v264, %v3180
      %v3363 = vmul.f32 %v265, %v3185
      %v3364 = vmul.f32 %v266, %v3190
      %v3365 = vmul.f32 %v267, %v3195
      %v3366 = vmul.f32 %v268, %v3200
      %v3367 = vmul.f32 %v269, %v3205
      %v3368 = vmul.f32 %v270, %v3210
      %v3369 = vmul.f32 %v271, %v3215
      %v3370 = vmul.f32 %v272, %v3220
      %v3371 = vmul.f32 %v273, %v3225
      %v3372 = vmul.f32 %v274, %v3230
      %v3373 = vmul.f32 %v275, %v3235
      %v3374 = vmul.f32 %v276, %v3240
      %v3375 = vmul.f32 %v277, %v3245
      %v3376 = vmul.f32 %v278, %v3250
      %v3377 = vmul.f32 %v279, %v3255
      %v3378 = vmul.f32 %v280, %v3260
      %v3379 = vmul.f32 %v281, %v3265
      %v3380 = vmul.f32 %v282, %v3270
      %v3381 = vmul.f32 %v283, %v3275
      %v3382 = vmul.f32 %v284, %v3280
      %v3383 = vmul.f32 %v285, %v3285
      %v3384 = vmul.f32 %v286, %v3290
      %v3385 = vmul.f32 %v287, %v3295
      %v3386 = vmul.f32 %v288, %v3300
      %v3387 = vmul.f32 %v289, %v3305
      %v3388 = vmul.f32 %v290, %v3310
      %v3389 = vmul.f32 %v291, %v3315
      %v3390 = vmul.f32 %v292, %v3320
      %v3391 = vmul.f32 %v293, %v3325
      %v3392 = vmul.f32 %v294, %v3330
      %v3393 = vmul.f32 %v295, %v3335
      %v3394 = vmul.f32 %v296, %v3340
      %v3395 = vmul.f32 %v297, %v3345
      %v3396 = vmul.f32 %v298, %v3350
      %v3397 = vmul.f32 %v299, %v3355
      %v3398 = vmul.f32 %v300, %v3360
      %vm3399 = vcmask 1041408
      %v3400 = vrot.slane %v342, 6
      %v3401 = vrot.slane %v343, 6
      %v3402 = vsel %vm3399, %v3400, %v3401
      %v3403 = vrot.slane %v344, 6
      %v3404 = vsel %vm3399, %v3401, %v3403
      %v3405 = vrot.slane %v345, 6
      %v3406 = vsel %vm3399, %v3403, %v3405
      %v3407 = vrot.slane %v346, 6
      %v3408 = vsel %vm3399, %v3405, %v3407
      %v3409 = vrot.slane %v347, 6
      %v3410 = vsel %vm3399, %v3407, %v3409
      %v3411 = vrot.slane %v348, 6
      %v3412 = vsel %vm3399, %v3409, %v3411
      %v3413 = vrot.slane %v349, 6
      %v3414 = vsel %vm3399, %v3411, %v3413
      %v3415 = vrot.slane %v350, 6
      %v3416 = vsel %vm3399, %v3413, %v3415
      %v3417 = vrot.slane %v351, 6
      %v3418 = vsel %vm3399, %v3415, %v3417
      %v3419 = vrot.slane %v352, 6
      %v3420 = vsel %vm3399, %v3417, %v3419
      %v3421 = vrot.slane %v353, 6
      %v3422 = vsel %vm3399, %v3419, %v3421
      %v3423 = vrot.slane %v354, 6
      %v3424 = vsel %vm3399, %v3421, %v3423
      %v3425 = vrot.slane %v355, 6
      %v3426 = vsel %vm3399, %v3423, %v3425
      %v3427 = vrot.slane %v356, 6
      %v3428 = vsel %vm3399, %v3425, %v3427
      %v3429 = vrot.slane %v357, 6
      %v3430 = vsel %vm3399, %v3427, %v3429
      %v3431 = vrot.slane %v358, 6
      %v3432 = vsel %vm3399, %v3429, %v3431
      %v3433 = vrot.slane %v359, 6
      %v3434 = vsel %vm3399, %v3431, %v3433
      %v3435 = vrot.slane %v360, 6
      %v3436 = vsel %vm3399, %v3433, %v3435
      %v3437 = vrot.slane %v361, 6
      %v3438 = vsel %vm3399, %v3435, %v3437
      %v3439 = vrot.slane %v362, 6
      %v3440 = vsel %vm3399, %v3437, %v3439
      %v3441 = vrot.slane %v363, 6
      %v3442 = vsel %vm3399, %v3439, %v3441
      %v3443 = vrot.slane %v364, 6
      %v3444 = vsel %vm3399, %v3441, %v3443
      %v3445 = vrot.slane %v365, 6
      %v3446 = vsel %vm3399, %v3443, %v3445
      %v3447 = vrot.slane %v366, 6
      %v3448 = vsel %vm3399, %v3445, %v3447
      %v3449 = vrot.slane %v367, 6
      %v3450 = vsel %vm3399, %v3447, %v3449
      %v3451 = vrot.slane %v368, 6
      %v3452 = vsel %vm3399, %v3449, %v3451
      %v3453 = vrot.slane %v369, 6
      %v3454 = vsel %vm3399, %v3451, %v3453
      %v3455 = vrot.slane %v370, 6
      %v3456 = vsel %vm3399, %v3453, %v3455
      %v3457 = vrot.slane %v371, 6
      %v3458 = vsel %vm3399, %v3455, %v3457
      %v3459 = vrot.slane %v372, 6
      %v3460 = vsel %vm3399, %v3457, %v3459
      %v3461 = vrot.slane %v373, 6
      %v3462 = vsel %vm3399, %v3459, %v3461
      %v3463 = vrot.slane %v374, 6
      %v3464 = vsel %vm3399, %v3461, %v3463
      %v3465 = vrot.slane %v375, 6
      %v3466 = vsel %vm3399, %v3463, %v3465
      %v3467 = vrot.slane %v376, 6
      %v3468 = vsel %vm3399, %v3465, %v3467
      %v3469 = vrot.slane %v377, 6
      %v3470 = vsel %vm3399, %v3467, %v3469
      %v3471 = vrot.slane %v378, 6
      %v3472 = vsel %vm3399, %v3469, %v3471
      %v3510 = vmul.f32 %v305, %v3400
      %v3511 = vmul.f32 %v306, %v3402
      %v3512 = vmul.f32 %v307, %v3404
      %v3513 = vmul.f32 %v308, %v3406
      %v3514 = vmul.f32 %v309, %v3408
      %v3515 = vmul.f32 %v310, %v3410
      %v3516 = vmul.f32 %v311, %v3412
      %v3517 = vmul.f32 %v312, %v3414
      %v3518 = vmul.f32 %v313, %v3416
      %v3519 = vmul.f32 %v314, %v3418
      %v3520 = vmul.f32 %v315, %v3420
      %v3521 = vmul.f32 %v316, %v3422
      %v3522 = vmul.f32 %v317, %v3424
      %v3523 = vmul.f32 %v318, %v3426
      %v3524 = vmul.f32 %v319, %v3428
      %v3525 = vmul.f32 %v320, %v3430
      %v3526 = vmul.f32 %v321, %v3432
      %v3527 = vmul.f32 %v322, %v3434
      %v3528 = vmul.f32 %v323, %v3436
      %v3529 = vmul.f32 %v324, %v3438
      %v3530 = vmul.f32 %v325, %v3440
      %v3531 = vmul.f32 %v326, %v3442
      %v3532 = vmul.f32 %v327, %v3444
      %v3533 = vmul.f32 %v328, %v3446
      %v3534 = vmul.f32 %v329, %v3448
      %v3535 = vmul.f32 %v330, %v3450
      %v3536 = vmul.f32 %v331, %v3452
      %v3537 = vmul.f32 %v332, %v3454
      %v3538 = vmul.f32 %v333, %v3456
      %v3539 = vmul.f32 %v334, %v3458
      %v3540 = vmul.f32 %v335, %v3460
      %v3541 = vmul.f32 %v336, %v3462
      %v3542 = vmul.f32 %v337, %v3464
      %v3543 = vmul.f32 %v338, %v3466
      %v3544 = vmul.f32 %v339, %v3468
      %v3545 = vmul.f32 %v340, %v3470
      %v3546 = vmul.f32 %v341, %v3472
      %v3547 = vrot.slane %v303, 6
      %v3548 = vrot.slane %v304, 6
      %v3549 = vsel %vm3399, %v3547, %v3548
      %v3550 = vrot.slane %v305, 6
      %v3551 = vsel %vm3399, %v3548, %v3550
      %v3552 = vrot.slane %v306, 6
      %v3553 = vsel %vm3399, %v3550, %v3552
      %v3554 = vrot.slane %v307, 6
      %v3555 = vsel %vm3399, %v3552, %v3554
      %v3556 = vrot.slane %v308, 6
      %v3557 = vsel %vm3399, %v3554, %v3556
      %v3558 = vrot.slane %v309, 6
      %v3559 = vsel %vm3399, %v3556, %v3558
      %v3560 = vrot.slane %v310, 6
      %v3561 = vsel %vm3399, %v3558, %v3560
      %v3562 = vrot.slane %v311, 6
      %v3563 = vsel %vm3399, %v3560, %v3562
      %v3564 = vrot.slane %v312, 6
      %v3565 = vsel %vm3399, %v3562, %v3564
      %v3566 = vrot.slane %v313, 6
      %v3567 = vsel %vm3399, %v3564, %v3566
      %v3568 = vrot.slane %v314, 6
      %v3569 = vsel %vm3399, %v3566, %v3568
      %v3570 = vrot.slane %v315, 6
      %v3571 = vsel %vm3399, %v3568, %v3570
      %v3572 = vrot.slane %v316, 6
      %v3573 = vsel %vm3399, %v3570, %v3572
      %v3574 = vrot.slane %v317, 6
      %v3575 = vsel %vm3399, %v3572, %v3574
      %v3576 = vrot.slane %v318, 6
      %v3577 = vsel %vm3399, %v3574, %v3576
      %v3578 = vrot.slane %v319, 6
      %v3579 = vsel %vm3399, %v3576, %v3578
      %v3580 = vrot.slane %v320, 6
      %v3581 = vsel %vm3399, %v3578, %v3580
      %v3582 = vrot.slane %v321, 6
      %v3583 = vsel %vm3399, %v3580, %v3582
      %v3584 = vrot.slane %v322, 6
      %v3585 = vsel %vm3399, %v3582, %v3584
      %v3586 = vrot.slane %v323, 6
      %v3587 = vsel %vm3399, %v3584, %v3586
      %v3588 = vrot.slane %v324, 6
      %v3589 = vsel %vm3399, %v3586, %v3588
      %v3590 = vrot.slane %v325, 6
      %v3591 = vsel %vm3399, %v3588, %v3590
      %v3592 = vrot.slane %v326, 6
      %v3593 = vsel %vm3399, %v3590, %v3592
      %v3594 = vrot.slane %v327, 6
      %v3595 = vsel %vm3399, %v3592, %v3594
      %v3596 = vrot.slane %v328, 6
      %v3597 = vsel %vm3399, %v3594, %v3596
      %v3598 = vrot.slane %v329, 6
      %v3599 = vsel %vm3399, %v3596, %v3598
      %v3600 = vrot.slane %v330, 6
      %v3601 = vsel %vm3399, %v3598, %v3600
      %v3602 = vrot.slane %v331, 6
      %v3603 = vsel %vm3399, %v3600, %v3602
      %v3604 = vrot.slane %v332, 6
      %v3605 = vsel %vm3399, %v3602, %v3604
      %v3606 = vrot.slane %v333, 6
      %v3607 = vsel %vm3399, %v3604, %v3606
      %v3608 = vrot.slane %v334, 6
      %v3609 = vsel %vm3399, %v3606, %v3608
      %v3610 = vrot.slane %v335, 6
      %v3611 = vsel %vm3399, %v3608, %v3610
      %v3612 = vrot.slane %v336, 6
      %v3613 = vsel %vm3399, %v3610, %v3612
      %v3614 = vrot.slane %v337, 6
      %v3615 = vsel %vm3399, %v3612, %v3614
      %v3616 = vrot.slane %v338, 6
      %v3617 = vsel %vm3399, %v3614, %v3616
      %v3618 = vrot.slane %v339, 6
      %v3619 = vsel %vm3399, %v3616, %v3618
      %v3657 = vadd.f32 %v3510, %v3547
      %v3658 = vadd.f32 %v3511, %v3549
      %v3659 = vadd.f32 %v3512, %v3551
      %v3660 = vadd.f32 %v3513, %v3553
      %v3661 = vadd.f32 %v3514, %v3555
      %v3662 = vadd.f32 %v3515, %v3557
      %v3663 = vadd.f32 %v3516, %v3559
      %v3664 = vadd.f32 %v3517, %v3561
      %v3665 = vadd.f32 %v3518, %v3563
      %v3666 = vadd.f32 %v3519, %v3565
      %v3667 = vadd.f32 %v3520, %v3567
      %v3668 = vadd.f32 %v3521, %v3569
      %v3669 = vadd.f32 %v3522, %v3571
      %v3670 = vadd.f32 %v3523, %v3573
      %v3671 = vadd.f32 %v3524, %v3575
      %v3672 = vadd.f32 %v3525, %v3577
      %v3673 = vadd.f32 %v3526, %v3579
      %v3674 = vadd.f32 %v3527, %v3581
      %v3675 = vadd.f32 %v3528, %v3583
      %v3676 = vadd.f32 %v3529, %v3585
      %v3677 = vadd.f32 %v3530, %v3587
      %v3678 = vadd.f32 %v3531, %v3589
      %v3679 = vadd.f32 %v3532, %v3591
      %v3680 = vadd.f32 %v3533, %v3593
      %v3681 = vadd.f32 %v3534, %v3595
      %v3682 = vadd.f32 %v3535, %v3597
      %v3683 = vadd.f32 %v3536, %v3599
      %v3684 = vadd.f32 %v3537, %v3601
      %v3685 = vadd.f32 %v3538, %v3603
      %v3686 = vadd.f32 %v3539, %v3605
      %v3687 = vadd.f32 %v3540, %v3607
      %v3688 = vadd.f32 %v3541, %v3609
      %v3689 = vadd.f32 %v3542, %v3611
      %v3690 = vadd.f32 %v3543, %v3613
      %v3691 = vadd.f32 %v3544, %v3615
      %v3692 = vadd.f32 %v3545, %v3617
      %v3693 = vadd.f32 %v3546, %v3619
      %3695 = vset.pattern.permute.xlu0 0
      %3696 = vperm.xlu0 %3695, %v3657
      %v3697 = vpop.permute.xlu0 %3696
      %3700 = vset.pattern.permute.xlu0 0
      %3701 = vperm.xlu0 %3700, %v3658
      %v3702 = vpop.permute.xlu0 %3701
      %3705 = vset.pattern.permute.xlu0 0
      %3706 = vperm.xlu0 %3705, %v3659
      %v3707 = vpop.permute.xlu0 %3706
      %3710 = vset.pattern.permute.xlu0 0
      %3711 = vperm.xlu0 %3710, %v3660
      %v3712 = vpop.permute.xlu0 %3711
      %3715 = vset.pattern.permute.xlu0 0
      %3716 = vperm.xlu0 %3715, %v3661
      %v3717 = vpop.permute.xlu0 %3716
      %3720 = vset.pattern.permute.xlu0 0
      %3721 = vperm.xlu0 %3720, %v3662
      %v3722 = vpop.permute.xlu0 %3721
      %3725 = vset.pattern.permute.xlu0 0
      %3726 = vperm.xlu0 %3725, %v3663
      %v3727 = vpop.permute.xlu0 %3726
      %3730 = vset.pattern.permute.xlu0 0
      %3731 = vperm.xlu0 %3730, %v3664
      %v3732 = vpop.permute.xlu0 %3731
      %3735 = vset.pattern.permute.xlu0 0
      %3736 = vperm.xlu0 %3735, %v3665
      %v3737 = vpop.permute.xlu0 %3736
      %3740 = vset.pattern.permute.xlu0 0
      %3741 = vperm.xlu0 %3740, %v3666
      %v3742 = vpop.permute.xlu0 %3741
      %3745 = vset.pattern.permute.xlu0 0
      %3746 = vperm.xlu0 %3745, %v3667
      %v3747 = vpop.permute.xlu0 %3746
      %3750 = vset.pattern.permute.xlu0 0
      %3751 = vperm.xlu0 %3750, %v3668
      %v3752 = vpop.permute.xlu0 %3751
      %3755 = vset.pattern.permute.xlu0 0
      %3756 = vperm.xlu0 %3755, %v3669
      %v3757 = vpop.permute.xlu0 %3756
      %3760 = vset.pattern.permute.xlu0 0
      %3761 = vperm.xlu0 %3760, %v3670
      %v3762 = vpop.permute.xlu0 %3761
      %3765 = vset.pattern.permute.xlu0 0
      %3766 = vperm.xlu0 %3765, %v3671
      %v3767 = vpop.permute.xlu0 %3766
      %3770 = vset.pattern.permute.xlu0 0
      %3771 = vperm.xlu0 %3770, %v3672
      %v3772 = vpop.permute.xlu0 %3771
      %3775 = vset.pattern.permute.xlu0 0
      %3776 = vperm.xlu0 %3775, %v3673
      %v3777 = vpop.permute.xlu0 %3776
      %3780 = vset.pattern.permute.xlu0 0
      %3781 = vperm.xlu0 %3780, %v3674
      %v3782 = vpop.permute.xlu0 %3781
      %3785 = vset.pattern.permute.xlu0 0
      %3786 = vperm.xlu0 %3785, %v3675
      %v3787 = vpop.permute.xlu0 %3786
      %3790 = vset.pattern.permute.xlu0 0
      %3791 = vperm.xlu0 %3790, %v3676
      %v3792 = vpop.permute.xlu0 %3791
      %3795 = vset.pattern.permute.xlu0 0
      %3796 = vperm.xlu0 %3795, %v3677
      %v3797 = vpop.permute.xlu0 %3796
      %3800 = vset.pattern.permute.xlu0 0
      %3801 = vperm.xlu0 %3800, %v3678
      %v3802 = vpop.permute.xlu0 %3801
      %3805 = vset.pattern.permute.xlu0 0
      %3806 = vperm.xlu0 %3805, %v3679
      %v3807 = vpop.permute.xlu0 %3806
      %3810 = vset.pattern.permute.xlu0 0
      %3811 = vperm.xlu0 %3810, %v3680
      %v3812 = vpop.permute.xlu0 %3811
      %3815 = vset.pattern.permute.xlu0 0
      %3816 = vperm.xlu0 %3815, %v3681
      %v3817 = vpop.permute.xlu0 %3816
      %3820 = vset.pattern.permute.xlu0 0
      %3821 = vperm.xlu0 %3820, %v3682
      %v3822 = vpop.permute.xlu0 %3821
      %3825 = vset.pattern.permute.xlu0 0
      %3826 = vperm.xlu0 %3825, %v3683
      %v3827 = vpop.permute.xlu0 %3826
      %3830 = vset.pattern.permute.xlu0 0
      %3831 = vperm.xlu0 %3830, %v3684
      %v3832 = vpop.permute.xlu0 %3831
      %3835 = vset.pattern.permute.xlu0 0
      %3836 = vperm.xlu0 %3835, %v3685
      %v3837 = vpop.permute.xlu0 %3836
      %3840 = vset.pattern.permute.xlu0 0
      %3841 = vperm.xlu0 %3840, %v3686
      %v3842 = vpop.permute.xlu0 %3841
      %3845 = vset.pattern.permute.xlu0 0
      %3846 = vperm.xlu0 %3845, %v3687
      %v3847 = vpop.permute.xlu0 %3846
      %3850 = vset.pattern.permute.xlu0 0
      %3851 = vperm.xlu0 %3850, %v3688
      %v3852 = vpop.permute.xlu0 %3851
      %3855 = vset.pattern.permute.xlu0 0
      %3856 = vperm.xlu0 %3855, %v3689
      %v3857 = vpop.permute.xlu0 %3856
      %3860 = vset.pattern.permute.xlu0 0
      %3861 = vperm.xlu0 %3860, %v3690
      %v3862 = vpop.permute.xlu0 %3861
      %3865 = vset.pattern.permute.xlu0 0
      %3866 = vperm.xlu0 %3865, %v3691
      %v3867 = vpop.permute.xlu0 %3866
      %3870 = vset.pattern.permute.xlu0 0
      %3871 = vperm.xlu0 %3870, %v3692
      %v3872 = vpop.permute.xlu0 %3871
      %3875 = vset.pattern.permute.xlu0 0
      %3876 = vperm.xlu0 %3875, %v3693
      %v3877 = vpop.permute.xlu0 %3876
      %v3879 = vmul.f32 %v264, %v3697
      %v3880 = vmul.f32 %v265, %v3702
      %v3881 = vmul.f32 %v266, %v3707
      %v3882 = vmul.f32 %v267, %v3712
      %v3883 = vmul.f32 %v268, %v3717
      %v3884 = vmul.f32 %v269, %v3722
      %v3885 = vmul.f32 %v270, %v3727
      %v3886 = vmul.f32 %v271, %v3732
      %v3887 = vmul.f32 %v272, %v3737
      %v3888 = vmul.f32 %v273, %v3742
      %v3889 = vmul.f32 %v274, %v3747
      %v3890 = vmul.f32 %v275, %v3752
      %v3891 = vmul.f32 %v276, %v3757
      %v3892 = vmul.f32 %v277, %v3762
      %v3893 = vmul.f32 %v278, %v3767
      %v3894 = vmul.f32 %v279, %v3772
      %v3895 = vmul.f32 %v280, %v3777
      %v3896 = vmul.f32 %v281, %v3782
      %v3897 = vmul.f32 %v282, %v3787
      %v3898 = vmul.f32 %v283, %v3792
      %v3899 = vmul.f32 %v284, %v3797
      %v3900 = vmul.f32 %v285, %v3802
      %v3901 = vmul.f32 %v286, %v3807
      %v3902 = vmul.f32 %v287, %v3812
      %v3903 = vmul.f32 %v288, %v3817
      %v3904 = vmul.f32 %v289, %v3822
      %v3905 = vmul.f32 %v290, %v3827
      %v3906 = vmul.f32 %v291, %v3832
      %v3907 = vmul.f32 %v292, %v3837
      %v3908 = vmul.f32 %v293, %v3842
      %v3909 = vmul.f32 %v294, %v3847
      %v3910 = vmul.f32 %v295, %v3852
      %v3911 = vmul.f32 %v296, %v3857
      %v3912 = vmul.f32 %v297, %v3862
      %v3913 = vmul.f32 %v298, %v3867
      %v3914 = vmul.f32 %v299, %v3872
      %v3915 = vmul.f32 %v300, %v3877
      %vm3916 = vcmask 1042432
      %v3917 = vrot.slane %v342, 5
      %v3918 = vrot.slane %v343, 5
      %v3919 = vsel %vm3916, %v3917, %v3918
      %v3920 = vrot.slane %v344, 5
      %v3921 = vsel %vm3916, %v3918, %v3920
      %v3922 = vrot.slane %v345, 5
      %v3923 = vsel %vm3916, %v3920, %v3922
      %v3924 = vrot.slane %v346, 5
      %v3925 = vsel %vm3916, %v3922, %v3924
      %v3926 = vrot.slane %v347, 5
      %v3927 = vsel %vm3916, %v3924, %v3926
      %v3928 = vrot.slane %v348, 5
      %v3929 = vsel %vm3916, %v3926, %v3928
      %v3930 = vrot.slane %v349, 5
      %v3931 = vsel %vm3916, %v3928, %v3930
      %v3932 = vrot.slane %v350, 5
      %v3933 = vsel %vm3916, %v3930, %v3932
      %v3934 = vrot.slane %v351, 5
      %v3935 = vsel %vm3916, %v3932, %v3934
      %v3936 = vrot.slane %v352, 5
      %v3937 = vsel %vm3916, %v3934, %v3936
      %v3938 = vrot.slane %v353, 5
      %v3939 = vsel %vm3916, %v3936, %v3938
      %v3940 = vrot.slane %v354, 5
      %v3941 = vsel %vm3916, %v3938, %v3940
      %v3942 = vrot.slane %v355, 5
      %v3943 = vsel %vm3916, %v3940, %v3942
      %v3944 = vrot.slane %v356, 5
      %v3945 = vsel %vm3916, %v3942, %v3944
      %v3946 = vrot.slane %v357, 5
      %v3947 = vsel %vm3916, %v3944, %v3946
      %v3948 = vrot.slane %v358, 5
      %v3949 = vsel %vm3916, %v3946, %v3948
      %v3950 = vrot.slane %v359, 5
      %v3951 = vsel %vm3916, %v3948, %v3950
      %v3952 = vrot.slane %v360, 5
      %v3953 = vsel %vm3916, %v3950, %v3952
      %v3954 = vrot.slane %v361, 5
      %v3955 = vsel %vm3916, %v3952, %v3954
      %v3956 = vrot.slane %v362, 5
      %v3957 = vsel %vm3916, %v3954, %v3956
      %v3958 = vrot.slane %v363, 5
      %v3959 = vsel %vm3916, %v3956, %v3958
      %v3960 = vrot.slane %v364, 5
      %v3961 = vsel %vm3916, %v3958, %v3960
      %v3962 = vrot.slane %v365, 5
      %v3963 = vsel %vm3916, %v3960, %v3962
      %v3964 = vrot.slane %v366, 5
      %v3965 = vsel %vm3916, %v3962, %v3964
      %v3966 = vrot.slane %v367, 5
      %v3967 = vsel %vm3916, %v3964, %v3966
      %v3968 = vrot.slane %v368, 5
      %v3969 = vsel %vm3916, %v3966, %v3968
      %v3970 = vrot.slane %v369, 5
      %v3971 = vsel %vm3916, %v3968, %v3970
      %v3972 = vrot.slane %v370, 5
      %v3973 = vsel %vm3916, %v3970, %v3972
      %v3974 = vrot.slane %v371, 5
      %v3975 = vsel %vm3916, %v3972, %v3974
      %v3976 = vrot.slane %v372, 5
      %v3977 = vsel %vm3916, %v3974, %v3976
      %v3978 = vrot.slane %v373, 5
      %v3979 = vsel %vm3916, %v3976, %v3978
      %v3980 = vrot.slane %v374, 5
      %v3981 = vsel %vm3916, %v3978, %v3980
      %v3982 = vrot.slane %v375, 5
      %v3983 = vsel %vm3916, %v3980, %v3982
      %v3984 = vrot.slane %v376, 5
      %v3985 = vsel %vm3916, %v3982, %v3984
      %v3986 = vrot.slane %v377, 5
      %v3987 = vsel %vm3916, %v3984, %v3986
      %v3988 = vrot.slane %v378, 5
      %v3989 = vsel %vm3916, %v3986, %v3988
      %v4027 = vmul.f32 %v305, %v3917
      %v4028 = vmul.f32 %v306, %v3919
      %v4029 = vmul.f32 %v307, %v3921
      %v4030 = vmul.f32 %v308, %v3923
      %v4031 = vmul.f32 %v309, %v3925
      %v4032 = vmul.f32 %v310, %v3927
      %v4033 = vmul.f32 %v311, %v3929
      %v4034 = vmul.f32 %v312, %v3931
      %v4035 = vmul.f32 %v313, %v3933
      %v4036 = vmul.f32 %v314, %v3935
      %v4037 = vmul.f32 %v315, %v3937
      %v4038 = vmul.f32 %v316, %v3939
      %v4039 = vmul.f32 %v317, %v3941
      %v4040 = vmul.f32 %v318, %v3943
      %v4041 = vmul.f32 %v319, %v3945
      %v4042 = vmul.f32 %v320, %v3947
      %v4043 = vmul.f32 %v321, %v3949
      %v4044 = vmul.f32 %v322, %v3951
      %v4045 = vmul.f32 %v323, %v3953
      %v4046 = vmul.f32 %v324, %v3955
      %v4047 = vmul.f32 %v325, %v3957
      %v4048 = vmul.f32 %v326, %v3959
      %v4049 = vmul.f32 %v327, %v3961
      %v4050 = vmul.f32 %v328, %v3963
      %v4051 = vmul.f32 %v329, %v3965
      %v4052 = vmul.f32 %v330, %v3967
      %v4053 = vmul.f32 %v331, %v3969
      %v4054 = vmul.f32 %v332, %v3971
      %v4055 = vmul.f32 %v333, %v3973
      %v4056 = vmul.f32 %v334, %v3975
      %v4057 = vmul.f32 %v335, %v3977
      %v4058 = vmul.f32 %v336, %v3979
      %v4059 = vmul.f32 %v337, %v3981
      %v4060 = vmul.f32 %v338, %v3983
      %v4061 = vmul.f32 %v339, %v3985
      %v4062 = vmul.f32 %v340, %v3987
      %v4063 = vmul.f32 %v341, %v3989
      %v4064 = vrot.slane %v303, 5
      %v4065 = vrot.slane %v304, 5
      %v4066 = vsel %vm3916, %v4064, %v4065
      %v4067 = vrot.slane %v305, 5
      %v4068 = vsel %vm3916, %v4065, %v4067
      %v4069 = vrot.slane %v306, 5
      %v4070 = vsel %vm3916, %v4067, %v4069
      %v4071 = vrot.slane %v307, 5
      %v4072 = vsel %vm3916, %v4069, %v4071
      %v4073 = vrot.slane %v308, 5
      %v4074 = vsel %vm3916, %v4071, %v4073
      %v4075 = vrot.slane %v309, 5
      %v4076 = vsel %vm3916, %v4073, %v4075
      %v4077 = vrot.slane %v310, 5
      %v4078 = vsel %vm3916, %v4075, %v4077
      %v4079 = vrot.slane %v311, 5
      %v4080 = vsel %vm3916, %v4077, %v4079
      %v4081 = vrot.slane %v312, 5
      %v4082 = vsel %vm3916, %v4079, %v4081
      %v4083 = vrot.slane %v313, 5
      %v4084 = vsel %vm3916, %v4081, %v4083
      %v4085 = vrot.slane %v314, 5
      %v4086 = vsel %vm3916, %v4083, %v4085
      %v4087 = vrot.slane %v315, 5
      %v4088 = vsel %vm3916, %v4085, %v4087
      %v4089 = vrot.slane %v316, 5
      %v4090 = vsel %vm3916, %v4087, %v4089
      %v4091 = vrot.slane %v317, 5
      %v4092 = vsel %vm3916, %v4089, %v4091
      %v4093 = vrot.slane %v318, 5
      %v4094 = vsel %vm3916, %v4091, %v4093
      %v4095 = vrot.slane %v319, 5
      %v4096 = vsel %vm3916, %v4093, %v4095
      %v4097 = vrot.slane %v320, 5
      %v4098 = vsel %vm3916, %v4095, %v4097
      %v4099 = vrot.slane %v321, 5
      %v4100 = vsel %vm3916, %v4097, %v4099
      %v4101 = vrot.slane %v322, 5
      %v4102 = vsel %vm3916, %v4099, %v4101
      %v4103 = vrot.slane %v323, 5
      %v4104 = vsel %vm3916, %v4101, %v4103
      %v4105 = vrot.slane %v324, 5
      %v4106 = vsel %vm3916, %v4103, %v4105
      %v4107 = vrot.slane %v325, 5
      %v4108 = vsel %vm3916, %v4105, %v4107
      %v4109 = vrot.slane %v326, 5
      %v4110 = vsel %vm3916, %v4107, %v4109
      %v4111 = vrot.slane %v327, 5
      %v4112 = vsel %vm3916, %v4109, %v4111
      %v4113 = vrot.slane %v328, 5
      %v4114 = vsel %vm3916, %v4111, %v4113
      %v4115 = vrot.slane %v329, 5
      %v4116 = vsel %vm3916, %v4113, %v4115
      %v4117 = vrot.slane %v330, 5
      %v4118 = vsel %vm3916, %v4115, %v4117
      %v4119 = vrot.slane %v331, 5
      %v4120 = vsel %vm3916, %v4117, %v4119
      %v4121 = vrot.slane %v332, 5
      %v4122 = vsel %vm3916, %v4119, %v4121
      %v4123 = vrot.slane %v333, 5
      %v4124 = vsel %vm3916, %v4121, %v4123
      %v4125 = vrot.slane %v334, 5
      %v4126 = vsel %vm3916, %v4123, %v4125
      %v4127 = vrot.slane %v335, 5
      %v4128 = vsel %vm3916, %v4125, %v4127
      %v4129 = vrot.slane %v336, 5
      %v4130 = vsel %vm3916, %v4127, %v4129
      %v4131 = vrot.slane %v337, 5
      %v4132 = vsel %vm3916, %v4129, %v4131
      %v4133 = vrot.slane %v338, 5
      %v4134 = vsel %vm3916, %v4131, %v4133
      %v4135 = vrot.slane %v339, 5
      %v4136 = vsel %vm3916, %v4133, %v4135
      %v4174 = vadd.f32 %v4027, %v4064
      %v4175 = vadd.f32 %v4028, %v4066
      %v4176 = vadd.f32 %v4029, %v4068
      %v4177 = vadd.f32 %v4030, %v4070
      %v4178 = vadd.f32 %v4031, %v4072
      %v4179 = vadd.f32 %v4032, %v4074
      %v4180 = vadd.f32 %v4033, %v4076
      %v4181 = vadd.f32 %v4034, %v4078
      %v4182 = vadd.f32 %v4035, %v4080
      %v4183 = vadd.f32 %v4036, %v4082
      %v4184 = vadd.f32 %v4037, %v4084
      %v4185 = vadd.f32 %v4038, %v4086
      %v4186 = vadd.f32 %v4039, %v4088
      %v4187 = vadd.f32 %v4040, %v4090
      %v4188 = vadd.f32 %v4041, %v4092
      %v4189 = vadd.f32 %v4042, %v4094
      %v4190 = vadd.f32 %v4043, %v4096
      %v4191 = vadd.f32 %v4044, %v4098
      %v4192 = vadd.f32 %v4045, %v4100
      %v4193 = vadd.f32 %v4046, %v4102
      %v4194 = vadd.f32 %v4047, %v4104
      %v4195 = vadd.f32 %v4048, %v4106
      %v4196 = vadd.f32 %v4049, %v4108
      %v4197 = vadd.f32 %v4050, %v4110
      %v4198 = vadd.f32 %v4051, %v4112
      %v4199 = vadd.f32 %v4052, %v4114
      %v4200 = vadd.f32 %v4053, %v4116
      %v4201 = vadd.f32 %v4054, %v4118
      %v4202 = vadd.f32 %v4055, %v4120
      %v4203 = vadd.f32 %v4056, %v4122
      %v4204 = vadd.f32 %v4057, %v4124
      %v4205 = vadd.f32 %v4058, %v4126
      %v4206 = vadd.f32 %v4059, %v4128
      %v4207 = vadd.f32 %v4060, %v4130
      %v4208 = vadd.f32 %v4061, %v4132
      %v4209 = vadd.f32 %v4062, %v4134
      %v4210 = vadd.f32 %v4063, %v4136
      %4212 = vset.pattern.permute.xlu0 0
      %4213 = vperm.xlu0 %4212, %v4174
      %v4214 = vpop.permute.xlu0 %4213
      %4217 = vset.pattern.permute.xlu0 0
      %4218 = vperm.xlu0 %4217, %v4175
      %v4219 = vpop.permute.xlu0 %4218
      %4222 = vset.pattern.permute.xlu0 0
      %4223 = vperm.xlu0 %4222, %v4176
      %v4224 = vpop.permute.xlu0 %4223
      %4227 = vset.pattern.permute.xlu0 0
      %4228 = vperm.xlu0 %4227, %v4177
      %v4229 = vpop.permute.xlu0 %4228
      %4232 = vset.pattern.permute.xlu0 0
      %4233 = vperm.xlu0 %4232, %v4178
      %v4234 = vpop.permute.xlu0 %4233
      %4237 = vset.pattern.permute.xlu0 0
      %4238 = vperm.xlu0 %4237, %v4179
      %v4239 = vpop.permute.xlu0 %4238
      %4242 = vset.pattern.permute.xlu0 0
      %4243 = vperm.xlu0 %4242, %v4180
      %v4244 = vpop.permute.xlu0 %4243
      %4247 = vset.pattern.permute.xlu0 0
      %4248 = vperm.xlu0 %4247, %v4181
      %v4249 = vpop.permute.xlu0 %4248
      %4252 = vset.pattern.permute.xlu0 0
      %4253 = vperm.xlu0 %4252, %v4182
      %v4254 = vpop.permute.xlu0 %4253
      %4257 = vset.pattern.permute.xlu0 0
      %4258 = vperm.xlu0 %4257, %v4183
      %v4259 = vpop.permute.xlu0 %4258
      %4262 = vset.pattern.permute.xlu0 0
      %4263 = vperm.xlu0 %4262, %v4184
      %v4264 = vpop.permute.xlu0 %4263
      %4267 = vset.pattern.permute.xlu0 0
      %4268 = vperm.xlu0 %4267, %v4185
      %v4269 = vpop.permute.xlu0 %4268
      %4272 = vset.pattern.permute.xlu0 0
      %4273 = vperm.xlu0 %4272, %v4186
      %v4274 = vpop.permute.xlu0 %4273
      %4277 = vset.pattern.permute.xlu0 0
      %4278 = vperm.xlu0 %4277, %v4187
      %v4279 = vpop.permute.xlu0 %4278
      %4282 = vset.pattern.permute.xlu0 0
      %4283 = vperm.xlu0 %4282, %v4188
      %v4284 = vpop.permute.xlu0 %4283
      %4287 = vset.pattern.permute.xlu0 0
      %4288 = vperm.xlu0 %4287, %v4189
      %v4289 = vpop.permute.xlu0 %4288
      %4292 = vset.pattern.permute.xlu0 0
      %4293 = vperm.xlu0 %4292, %v4190
      %v4294 = vpop.permute.xlu0 %4293
      %4297 = vset.pattern.permute.xlu0 0
      %4298 = vperm.xlu0 %4297, %v4191
      %v4299 = vpop.permute.xlu0 %4298
      %4302 = vset.pattern.permute.xlu0 0
      %4303 = vperm.xlu0 %4302, %v4192
      %v4304 = vpop.permute.xlu0 %4303
      %4307 = vset.pattern.permute.xlu0 0
      %4308 = vperm.xlu0 %4307, %v4193
      %v4309 = vpop.permute.xlu0 %4308
      %4312 = vset.pattern.permute.xlu0 0
      %4313 = vperm.xlu0 %4312, %v4194
      %v4314 = vpop.permute.xlu0 %4313
      %4317 = vset.pattern.permute.xlu0 0
      %4318 = vperm.xlu0 %4317, %v4195
      %v4319 = vpop.permute.xlu0 %4318
      %4322 = vset.pattern.permute.xlu0 0
      %4323 = vperm.xlu0 %4322, %v4196
      %v4324 = vpop.permute.xlu0 %4323
      %4327 = vset.pattern.permute.xlu0 0
      %4328 = vperm.xlu0 %4327, %v4197
      %v4329 = vpop.permute.xlu0 %4328
      %4332 = vset.pattern.permute.xlu0 0
      %4333 = vperm.xlu0 %4332, %v4198
      %v4334 = vpop.permute.xlu0 %4333
      %4337 = vset.pattern.permute.xlu0 0
      %4338 = vperm.xlu0 %4337, %v4199
      %v4339 = vpop.permute.xlu0 %4338
      %4342 = vset.pattern.permute.xlu0 0
      %4343 = vperm.xlu0 %4342, %v4200
      %v4344 = vpop.permute.xlu0 %4343
      %4347 = vset.pattern.permute.xlu0 0
      %4348 = vperm.xlu0 %4347, %v4201
      %v4349 = vpop.permute.xlu0 %4348
      %4352 = vset.pattern.permute.xlu0 0
      %4353 = vperm.xlu0 %4352, %v4202
      %v4354 = vpop.permute.xlu0 %4353
      %4357 = vset.pattern.permute.xlu0 0
      %4358 = vperm.xlu0 %4357, %v4203
      %v4359 = vpop.permute.xlu0 %4358
      %4362 = vset.pattern.permute.xlu0 0
      %4363 = vperm.xlu0 %4362, %v4204
      %v4364 = vpop.permute.xlu0 %4363
      %4367 = vset.pattern.permute.xlu0 0
      %4368 = vperm.xlu0 %4367, %v4205
      %v4369 = vpop.permute.xlu0 %4368
      %4372 = vset.pattern.permute.xlu0 0
      %4373 = vperm.xlu0 %4372, %v4206
      %v4374 = vpop.permute.xlu0 %4373
      %4377 = vset.pattern.permute.xlu0 0
      %4378 = vperm.xlu0 %4377, %v4207
      %v4379 = vpop.permute.xlu0 %4378
      %4382 = vset.pattern.permute.xlu0 0
      %4383 = vperm.xlu0 %4382, %v4208
      %v4384 = vpop.permute.xlu0 %4383
      %4387 = vset.pattern.permute.xlu0 0
      %4388 = vperm.xlu0 %4387, %v4209
      %v4389 = vpop.permute.xlu0 %4388
      %4392 = vset.pattern.permute.xlu0 0
      %4393 = vperm.xlu0 %4392, %v4210
      %v4394 = vpop.permute.xlu0 %4393
      %v4396 = vmul.f32 %v264, %v4214
      %v4397 = vmul.f32 %v265, %v4219
      %v4398 = vmul.f32 %v266, %v4224
      %v4399 = vmul.f32 %v267, %v4229
      %v4400 = vmul.f32 %v268, %v4234
      %v4401 = vmul.f32 %v269, %v4239
      %v4402 = vmul.f32 %v270, %v4244
      %v4403 = vmul.f32 %v271, %v4249
      %v4404 = vmul.f32 %v272, %v4254
      %v4405 = vmul.f32 %v273, %v4259
      %v4406 = vmul.f32 %v274, %v4264
      %v4407 = vmul.f32 %v275, %v4269
      %v4408 = vmul.f32 %v276, %v4274
      %v4409 = vmul.f32 %v277, %v4279
      %v4410 = vmul.f32 %v278, %v4284
      %v4411 = vmul.f32 %v279, %v4289
      %v4412 = vmul.f32 %v280, %v4294
      %v4413 = vmul.f32 %v281, %v4299
      %v4414 = vmul.f32 %v282, %v4304
      %v4415 = vmul.f32 %v283, %v4309
      %v4416 = vmul.f32 %v284, %v4314
      %v4417 = vmul.f32 %v285, %v4319
      %v4418 = vmul.f32 %v286, %v4324
      %v4419 = vmul.f32 %v287, %v4329
      %v4420 = vmul.f32 %v288, %v4334
      %v4421 = vmul.f32 %v289, %v4339
      %v4422 = vmul.f32 %v290, %v4344
      %v4423 = vmul.f32 %v291, %v4349
      %v4424 = vmul.f32 %v292, %v4354
      %v4425 = vmul.f32 %v293, %v4359
      %v4426 = vmul.f32 %v294, %v4364
      %v4427 = vmul.f32 %v295, %v4369
      %v4428 = vmul.f32 %v296, %v4374
      %v4429 = vmul.f32 %v297, %v4379
      %v4430 = vmul.f32 %v298, %v4384
      %v4431 = vmul.f32 %v299, %v4389
      %v4432 = vmul.f32 %v300, %v4394
      %v4470 = vrot.slane %v260, 1
      %v4471 = vrot.slane %v261, 1
      %v4472 = vsel %vm1477, %v4470, %v4471
      %v4473 = vrot.slane %v262, 1
      %v4474 = vsel %vm1477, %v4471, %v4473
      %v4475 = vrot.slane %v263, 1
      %v4476 = vsel %vm1477, %v4473, %v4475
      %v4477 = vrot.slane %v264, 1
      %v4478 = vsel %vm1477, %v4475, %v4477
      %v4479 = vrot.slane %v265, 1
      %v4480 = vsel %vm1477, %v4477, %v4479
      %v4481 = vrot.slane %v266, 1
      %v4482 = vsel %vm1477, %v4479, %v4481
      %v4483 = vrot.slane %v267, 1
      %v4484 = vsel %vm1477, %v4481, %v4483
      %v4485 = vrot.slane %v268, 1
      %v4486 = vsel %vm1477, %v4483, %v4485
      %v4487 = vrot.slane %v269, 1
      %v4488 = vsel %vm1477, %v4485, %v4487
      %v4489 = vrot.slane %v270, 1
      %v4490 = vsel %vm1477, %v4487, %v4489
      %v4491 = vrot.slane %v271, 1
      %v4492 = vsel %vm1477, %v4489, %v4491
      %v4493 = vrot.slane %v272, 1
      %v4494 = vsel %vm1477, %v4491, %v4493
      %v4495 = vrot.slane %v273, 1
      %v4496 = vsel %vm1477, %v4493, %v4495
      %v4497 = vrot.slane %v274, 1
      %v4498 = vsel %vm1477, %v4495, %v4497
      %v4499 = vrot.slane %v275, 1
      %v4500 = vsel %vm1477, %v4497, %v4499
      %v4501 = vrot.slane %v276, 1
      %v4502 = vsel %vm1477, %v4499, %v4501
      %v4503 = vrot.slane %v277, 1
      %v4504 = vsel %vm1477, %v4501, %v4503
      %v4505 = vrot.slane %v278, 1
      %v4506 = vsel %vm1477, %v4503, %v4505
      %v4507 = vrot.slane %v279, 1
      %v4508 = vsel %vm1477, %v4505, %v4507
      %v4509 = vrot.slane %v280, 1
      %v4510 = vsel %vm1477, %v4507, %v4509
      %v4511 = vrot.slane %v281, 1
      %v4512 = vsel %vm1477, %v4509, %v4511
      %v4513 = vrot.slane %v282, 1
      %v4514 = vsel %vm1477, %v4511, %v4513
      %v4515 = vrot.slane %v283, 1
      %v4516 = vsel %vm1477, %v4513, %v4515
      %v4517 = vrot.slane %v284, 1
      %v4518 = vsel %vm1477, %v4515, %v4517
      %v4519 = vrot.slane %v285, 1
      %v4520 = vsel %vm1477, %v4517, %v4519
      %v4521 = vrot.slane %v286, 1
      %v4522 = vsel %vm1477, %v4519, %v4521
      %v4523 = vrot.slane %v287, 1
      %v4524 = vsel %vm1477, %v4521, %v4523
      %v4525 = vrot.slane %v288, 1
      %v4526 = vsel %vm1477, %v4523, %v4525
      %v4527 = vrot.slane %v289, 1
      %v4528 = vsel %vm1477, %v4525, %v4527
      %v4529 = vrot.slane %v290, 1
      %v4530 = vsel %vm1477, %v4527, %v4529
      %v4531 = vrot.slane %v291, 1
      %v4532 = vsel %vm1477, %v4529, %v4531
      %v4533 = vrot.slane %v292, 1
      %v4534 = vsel %vm1477, %v4531, %v4533
      %v4535 = vrot.slane %v293, 1
      %v4536 = vsel %vm1477, %v4533, %v4535
      %v4537 = vrot.slane %v294, 1
      %v4538 = vsel %vm1477, %v4535, %v4537
      %v4539 = vrot.slane %v295, 1
      %v4540 = vsel %vm1477, %v4537, %v4539
      %v4541 = vrot.slane %v296, 1
      %v4542 = vsel %vm1477, %v4539, %v4541
      %4543 = vrot.lane.b32.xlu0 %v4472, 4
      %v4544 = vpop.permute.xlu0 %4543
      %4545 = vrot.lane.b32.xlu0 %v4474, 4
      %v4546 = vpop.permute.xlu0 %4545
      %4547 = vrot.lane.b32.xlu0 %v4476, 4
      %v4548 = vpop.permute.xlu0 %4547
      %4549 = vrot.lane.b32.xlu0 %v4478, 4
      %v4550 = vpop.permute.xlu0 %4549
      %4551 = vrot.lane.b32.xlu0 %v4480, 4
      %v4552 = vpop.permute.xlu0 %4551
      %4553 = vrot.lane.b32.xlu0 %v4482, 4
      %v4554 = vpop.permute.xlu0 %4553
      %4555 = vrot.lane.b32.xlu0 %v4484, 4
      %v4556 = vpop.permute.xlu0 %4555
      %4557 = vrot.lane.b32.xlu0 %v4486, 4
      %v4558 = vpop.permute.xlu0 %4557
      %4559 = vrot.lane.b32.xlu0 %v4488, 4
      %v4560 = vpop.permute.xlu0 %4559
      %4561 = vrot.lane.b32.xlu0 %v4490, 4
      %v4562 = vpop.permute.xlu0 %4561
      %4563 = vrot.lane.b32.xlu0 %v4492, 4
      %v4564 = vpop.permute.xlu0 %4563
      %4565 = vrot.lane.b32.xlu0 %v4494, 4
      %v4566 = vpop.permute.xlu0 %4565
      %4567 = vrot.lane.b32.xlu0 %v4496, 4
      %v4568 = vpop.permute.xlu0 %4567
      %4569 = vrot.lane.b32.xlu0 %v4498, 4
      %v4570 = vpop.permute.xlu0 %4569
      %4571 = vrot.lane.b32.xlu0 %v4500, 4
      %v4572 = vpop.permute.xlu0 %4571
      %4573 = vrot.lane.b32.xlu0 %v4502, 4
      %v4574 = vpop.permute.xlu0 %4573
      %4575 = vrot.lane.b32.xlu0 %v4504, 4
      %v4576 = vpop.permute.xlu0 %4575
      %4577 = vrot.lane.b32.xlu0 %v4506, 4
      %v4578 = vpop.permute.xlu0 %4577
      %4579 = vrot.lane.b32.xlu0 %v4508, 4
      %v4580 = vpop.permute.xlu0 %4579
      %4581 = vrot.lane.b32.xlu0 %v4510, 4
      %v4582 = vpop.permute.xlu0 %4581
      %4583 = vrot.lane.b32.xlu0 %v4512, 4
      %v4584 = vpop.permute.xlu0 %4583
      %4585 = vrot.lane.b32.xlu0 %v4514, 4
      %v4586 = vpop.permute.xlu0 %4585
      %4587 = vrot.lane.b32.xlu0 %v4516, 4
      %v4588 = vpop.permute.xlu0 %4587
      %4589 = vrot.lane.b32.xlu0 %v4518, 4
      %v4590 = vpop.permute.xlu0 %4589
      %4591 = vrot.lane.b32.xlu0 %v4520, 4
      %v4592 = vpop.permute.xlu0 %4591
      %4593 = vrot.lane.b32.xlu0 %v4522, 4
      %v4594 = vpop.permute.xlu0 %4593
      %4595 = vrot.lane.b32.xlu0 %v4524, 4
      %v4596 = vpop.permute.xlu0 %4595
      %4597 = vrot.lane.b32.xlu0 %v4526, 4
      %v4598 = vpop.permute.xlu0 %4597
      %4599 = vrot.lane.b32.xlu0 %v4528, 4
      %v4600 = vpop.permute.xlu0 %4599
      %4601 = vrot.lane.b32.xlu0 %v4530, 4
      %v4602 = vpop.permute.xlu0 %4601
      %4603 = vrot.lane.b32.xlu0 %v4532, 4
      %v4604 = vpop.permute.xlu0 %4603
      %4605 = vrot.lane.b32.xlu0 %v4534, 4
      %v4606 = vpop.permute.xlu0 %4605
      %4607 = vrot.lane.b32.xlu0 %v4536, 4
      %v4608 = vpop.permute.xlu0 %4607
      %4609 = vrot.lane.b32.xlu0 %v4538, 4
      %v4610 = vpop.permute.xlu0 %4609
      %4611 = vrot.lane.b32.xlu0 %v4540, 4
      %v4612 = vpop.permute.xlu0 %4611
      %4613 = vrot.lane.b32.xlu0 %v4542, 4
      %v4614 = vpop.permute.xlu0 %4613
      %v4651 = vrot.slane %v260, 2
      %v4652 = vrot.slane %v261, 2
      %v4653 = vsel %vm960, %v4651, %v4652
      %v4654 = vrot.slane %v262, 2
      %v4655 = vsel %vm960, %v4652, %v4654
      %v4656 = vrot.slane %v263, 2
      %v4657 = vsel %vm960, %v4654, %v4656
      %v4658 = vrot.slane %v264, 2
      %v4659 = vsel %vm960, %v4656, %v4658
      %v4660 = vrot.slane %v265, 2
      %v4661 = vsel %vm960, %v4658, %v4660
      %v4662 = vrot.slane %v266, 2
      %v4663 = vsel %vm960, %v4660, %v4662
      %v4664 = vrot.slane %v267, 2
      %v4665 = vsel %vm960, %v4662, %v4664
      %v4666 = vrot.slane %v268, 2
      %v4667 = vsel %vm960, %v4664, %v4666
      %v4668 = vrot.slane %v269, 2
      %v4669 = vsel %vm960, %v4666, %v4668
      %v4670 = vrot.slane %v270, 2
      %v4671 = vsel %vm960, %v4668, %v4670
      %v4672 = vrot.slane %v271, 2
      %v4673 = vsel %vm960, %v4670, %v4672
      %v4674 = vrot.slane %v272, 2
      %v4675 = vsel %vm960, %v4672, %v4674
      %v4676 = vrot.slane %v273, 2
      %v4677 = vsel %vm960, %v4674, %v4676
      %v4678 = vrot.slane %v274, 2
      %v4679 = vsel %vm960, %v4676, %v4678
      %v4680 = vrot.slane %v275, 2
      %v4681 = vsel %vm960, %v4678, %v4680
      %v4682 = vrot.slane %v276, 2
      %v4683 = vsel %vm960, %v4680, %v4682
      %v4684 = vrot.slane %v277, 2
      %v4685 = vsel %vm960, %v4682, %v4684
      %v4686 = vrot.slane %v278, 2
      %v4687 = vsel %vm960, %v4684, %v4686
      %v4688 = vrot.slane %v279, 2
      %v4689 = vsel %vm960, %v4686, %v4688
      %v4690 = vrot.slane %v280, 2
      %v4691 = vsel %vm960, %v4688, %v4690
      %v4692 = vrot.slane %v281, 2
      %v4693 = vsel %vm960, %v4690, %v4692
      %v4694 = vrot.slane %v282, 2
      %v4695 = vsel %vm960, %v4692, %v4694
      %v4696 = vrot.slane %v283, 2
      %v4697 = vsel %vm960, %v4694, %v4696
      %v4698 = vrot.slane %v284, 2
      %v4699 = vsel %vm960, %v4696, %v4698
      %v4700 = vrot.slane %v285, 2
      %v4701 = vsel %vm960, %v4698, %v4700
      %v4702 = vrot.slane %v286, 2
      %v4703 = vsel %vm960, %v4700, %v4702
      %v4704 = vrot.slane %v287, 2
      %v4705 = vsel %vm960, %v4702, %v4704
      %v4706 = vrot.slane %v288, 2
      %v4707 = vsel %vm960, %v4704, %v4706
      %v4708 = vrot.slane %v289, 2
      %v4709 = vsel %vm960, %v4706, %v4708
      %v4710 = vrot.slane %v290, 2
      %v4711 = vsel %vm960, %v4708, %v4710
      %v4712 = vrot.slane %v291, 2
      %v4713 = vsel %vm960, %v4710, %v4712
      %v4714 = vrot.slane %v292, 2
      %v4715 = vsel %vm960, %v4712, %v4714
      %v4716 = vrot.slane %v293, 2
      %v4717 = vsel %vm960, %v4714, %v4716
      %v4718 = vrot.slane %v294, 2
      %v4719 = vsel %vm960, %v4716, %v4718
      %v4720 = vrot.slane %v295, 2
      %v4721 = vsel %vm960, %v4718, %v4720
      %v4722 = vrot.slane %v296, 2
      %v4723 = vsel %vm960, %v4720, %v4722
      %4724 = vrot.lane.b32.xlu0 %v4653, 8
      %v4725 = vpop.permute.xlu0 %4724
      %4726 = vrot.lane.b32.xlu0 %v4655, 8
      %v4727 = vpop.permute.xlu0 %4726
      %4728 = vrot.lane.b32.xlu0 %v4657, 8
      %v4729 = vpop.permute.xlu0 %4728
      %4730 = vrot.lane.b32.xlu0 %v4659, 8
      %v4731 = vpop.permute.xlu0 %4730
      %4732 = vrot.lane.b32.xlu0 %v4661, 8
      %v4733 = vpop.permute.xlu0 %4732
      %4734 = vrot.lane.b32.xlu0 %v4663, 8
      %v4735 = vpop.permute.xlu0 %4734
      %4736 = vrot.lane.b32.xlu0 %v4665, 8
      %v4737 = vpop.permute.xlu0 %4736
      %4738 = vrot.lane.b32.xlu0 %v4667, 8
      %v4739 = vpop.permute.xlu0 %4738
      %4740 = vrot.lane.b32.xlu0 %v4669, 8
      %v4741 = vpop.permute.xlu0 %4740
      %4742 = vrot.lane.b32.xlu0 %v4671, 8
      %v4743 = vpop.permute.xlu0 %4742
      %4744 = vrot.lane.b32.xlu0 %v4673, 8
      %v4745 = vpop.permute.xlu0 %4744
      %4746 = vrot.lane.b32.xlu0 %v4675, 8
      %v4747 = vpop.permute.xlu0 %4746
      %4748 = vrot.lane.b32.xlu0 %v4677, 8
      %v4749 = vpop.permute.xlu0 %4748
      %4750 = vrot.lane.b32.xlu0 %v4679, 8
      %v4751 = vpop.permute.xlu0 %4750
      %4752 = vrot.lane.b32.xlu0 %v4681, 8
      %v4753 = vpop.permute.xlu0 %4752
      %4754 = vrot.lane.b32.xlu0 %v4683, 8
      %v4755 = vpop.permute.xlu0 %4754
      %4756 = vrot.lane.b32.xlu0 %v4685, 8
      %v4757 = vpop.permute.xlu0 %4756
      %4758 = vrot.lane.b32.xlu0 %v4687, 8
      %v4759 = vpop.permute.xlu0 %4758
      %4760 = vrot.lane.b32.xlu0 %v4689, 8
      %v4761 = vpop.permute.xlu0 %4760
      %4762 = vrot.lane.b32.xlu0 %v4691, 8
      %v4763 = vpop.permute.xlu0 %4762
      %4764 = vrot.lane.b32.xlu0 %v4693, 8
      %v4765 = vpop.permute.xlu0 %4764
      %4766 = vrot.lane.b32.xlu0 %v4695, 8
      %v4767 = vpop.permute.xlu0 %4766
      %4768 = vrot.lane.b32.xlu0 %v4697, 8
      %v4769 = vpop.permute.xlu0 %4768
      %4770 = vrot.lane.b32.xlu0 %v4699, 8
      %v4771 = vpop.permute.xlu0 %4770
      %4772 = vrot.lane.b32.xlu0 %v4701, 8
      %v4773 = vpop.permute.xlu0 %4772
      %4774 = vrot.lane.b32.xlu0 %v4703, 8
      %v4775 = vpop.permute.xlu0 %4774
      %4776 = vrot.lane.b32.xlu0 %v4705, 8
      %v4777 = vpop.permute.xlu0 %4776
      %4778 = vrot.lane.b32.xlu0 %v4707, 8
      %v4779 = vpop.permute.xlu0 %4778
      %4780 = vrot.lane.b32.xlu0 %v4709, 8
      %v4781 = vpop.permute.xlu0 %4780
      %4782 = vrot.lane.b32.xlu0 %v4711, 8
      %v4783 = vpop.permute.xlu0 %4782
      %4784 = vrot.lane.b32.xlu0 %v4713, 8
      %v4785 = vpop.permute.xlu0 %4784
      %4786 = vrot.lane.b32.xlu0 %v4715, 8
      %v4787 = vpop.permute.xlu0 %4786
      %4788 = vrot.lane.b32.xlu0 %v4717, 8
      %v4789 = vpop.permute.xlu0 %4788
      %4790 = vrot.lane.b32.xlu0 %v4719, 8
      %v4791 = vpop.permute.xlu0 %4790
      %4792 = vrot.lane.b32.xlu0 %v4721, 8
      %v4793 = vpop.permute.xlu0 %4792
      %4794 = vrot.lane.b32.xlu0 %v4723, 8
      %v4795 = vpop.permute.xlu0 %4794
      %v4834 = vrot.slane %v297, 2
      %v4835 = vsel %vm960, %v4722, %v4834
      %v4836 = vrot.slane %v298, 2
      %v4837 = vsel %vm960, %v4834, %v4836
      %4838 = vrot.lane.b32.xlu0 %v4657, 12
      %v4839 = vpop.permute.xlu0 %4838
      %4840 = vrot.lane.b32.xlu0 %v4659, 12
      %v4841 = vpop.permute.xlu0 %4840
      %4842 = vrot.lane.b32.xlu0 %v4661, 12
      %v4843 = vpop.permute.xlu0 %4842
      %4844 = vrot.lane.b32.xlu0 %v4663, 12
      %v4845 = vpop.permute.xlu0 %4844
      %4846 = vrot.lane.b32.xlu0 %v4665, 12
      %v4847 = vpop.permute.xlu0 %4846
      %4848 = vrot.lane.b32.xlu0 %v4667, 12
      %v4849 = vpop.permute.xlu0 %4848
      %4850 = vrot.lane.b32.xlu0 %v4669, 12
      %v4851 = vpop.permute.xlu0 %4850
      %4852 = vrot.lane.b32.xlu0 %v4671, 12
      %v4853 = vpop.permute.xlu0 %4852
      %4854 = vrot.lane.b32.xlu0 %v4673, 12
      %v4855 = vpop.permute.xlu0 %4854
      %4856 = vrot.lane.b32.xlu0 %v4675, 12
      %v4857 = vpop.permute.xlu0 %4856
      %4858 = vrot.lane.b32.xlu0 %v4677, 12
      %v4859 = vpop.permute.xlu0 %4858
      %4860 = vrot.lane.b32.xlu0 %v4679, 12
      %v4861 = vpop.permute.xlu0 %4860
      %4862 = vrot.lane.b32.xlu0 %v4681, 12
      %v4863 = vpop.permute.xlu0 %4862
      %4864 = vrot.lane.b32.xlu0 %v4683, 12
      %v4865 = vpop.permute.xlu0 %4864
      %4866 = vrot.lane.b32.xlu0 %v4685, 12
      %v4867 = vpop.permute.xlu0 %4866
      %4868 = vrot.lane.b32.xlu0 %v4687, 12
      %v4869 = vpop.permute.xlu0 %4868
      %4870 = vrot.lane.b32.xlu0 %v4689, 12
      %v4871 = vpop.permute.xlu0 %4870
      %4872 = vrot.lane.b32.xlu0 %v4691, 12
      %v4873 = vpop.permute.xlu0 %4872
      %4874 = vrot.lane.b32.xlu0 %v4693, 12
      %v4875 = vpop.permute.xlu0 %4874
      %4876 = vrot.lane.b32.xlu0 %v4695, 12
      %v4877 = vpop.permute.xlu0 %4876
      %4878 = vrot.lane.b32.xlu0 %v4697, 12
      %v4879 = vpop.permute.xlu0 %4878
      %4880 = vrot.lane.b32.xlu0 %v4699, 12
      %v4881 = vpop.permute.xlu0 %4880
      %4882 = vrot.lane.b32.xlu0 %v4701, 12
      %v4883 = vpop.permute.xlu0 %4882
      %4884 = vrot.lane.b32.xlu0 %v4703, 12
      %v4885 = vpop.permute.xlu0 %4884
      %4886 = vrot.lane.b32.xlu0 %v4705, 12
      %v4887 = vpop.permute.xlu0 %4886
      %4888 = vrot.lane.b32.xlu0 %v4707, 12
      %v4889 = vpop.permute.xlu0 %4888
      %4890 = vrot.lane.b32.xlu0 %v4709, 12
      %v4891 = vpop.permute.xlu0 %4890
      %4892 = vrot.lane.b32.xlu0 %v4711, 12
      %v4893 = vpop.permute.xlu0 %4892
      %4894 = vrot.lane.b32.xlu0 %v4713, 12
      %v4895 = vpop.permute.xlu0 %4894
      %4896 = vrot.lane.b32.xlu0 %v4715, 12
      %v4897 = vpop.permute.xlu0 %4896
      %4898 = vrot.lane.b32.xlu0 %v4717, 12
      %v4899 = vpop.permute.xlu0 %4898
      %4900 = vrot.lane.b32.xlu0 %v4719, 12
      %v4901 = vpop.permute.xlu0 %4900
      %4902 = vrot.lane.b32.xlu0 %v4721, 12
      %v4903 = vpop.permute.xlu0 %4902
      %4904 = vrot.lane.b32.xlu0 %v4723, 12
      %v4905 = vpop.permute.xlu0 %4904
      %4906 = vrot.lane.b32.xlu0 %v4835, 12
      %v4907 = vpop.permute.xlu0 %4906
      %4908 = vrot.lane.b32.xlu0 %v4837, 12
      %v4909 = vpop.permute.xlu0 %4908
      %v4946 = vrot.slane %v262, 3
      %v4947 = vrot.slane %v263, 3
      %v4948 = vsel %vm416, %v4946, %v4947
      %v4949 = vrot.slane %v264, 3
      %v4950 = vsel %vm416, %v4947, %v4949
      %v4951 = vrot.slane %v265, 3
      %v4952 = vsel %vm416, %v4949, %v4951
      %v4953 = vrot.slane %v266, 3
      %v4954 = vsel %vm416, %v4951, %v4953
      %v4955 = vrot.slane %v267, 3
      %v4956 = vsel %vm416, %v4953, %v4955
      %v4957 = vrot.slane %v268, 3
      %v4958 = vsel %vm416, %v4955, %v4957
      %v4959 = vrot.slane %v269, 3
      %v4960 = vsel %vm416, %v4957, %v4959
      %v4961 = vrot.slane %v270, 3
      %v4962 = vsel %vm416, %v4959, %v4961
      %v4963 = vrot.slane %v271, 3
      %v4964 = vsel %vm416, %v4961, %v4963
      %v4965 = vrot.slane %v272, 3
      %v4966 = vsel %vm416, %v4963, %v4965
      %v4967 = vrot.slane %v273, 3
      %v4968 = vsel %vm416, %v4965, %v4967
      %v4969 = vrot.slane %v274, 3
      %v4970 = vsel %vm416, %v4967, %v4969
      %v4971 = vrot.slane %v275, 3
      %v4972 = vsel %vm416, %v4969, %v4971
      %v4973 = vrot.slane %v276, 3
      %v4974 = vsel %vm416, %v4971, %v4973
      %v4975 = vrot.slane %v277, 3
      %v4976 = vsel %vm416, %v4973, %v4975
      %v4977 = vrot.slane %v278, 3
      %v4978 = vsel %vm416, %v4975, %v4977
      %v4979 = vrot.slane %v279, 3
      %v4980 = vsel %vm416, %v4977, %v4979
      %v4981 = vrot.slane %v280, 3
      %v4982 = vsel %vm416, %v4979, %v4981
      %v4983 = vrot.slane %v281, 3
      %v4984 = vsel %vm416, %v4981, %v4983
      %v4985 = vrot.slane %v282, 3
      %v4986 = vsel %vm416, %v4983, %v4985
      %v4987 = vrot.slane %v283, 3
      %v4988 = vsel %vm416, %v4985, %v4987
      %v4989 = vrot.slane %v284, 3
      %v4990 = vsel %vm416, %v4987, %v4989
      %v4991 = vrot.slane %v285, 3
      %v4992 = vsel %vm416, %v4989, %v4991
      %v4993 = vrot.slane %v286, 3
      %v4994 = vsel %vm416, %v4991, %v4993
      %v4995 = vrot.slane %v287, 3
      %v4996 = vsel %vm416, %v4993, %v4995
      %v4997 = vrot.slane %v288, 3
      %v4998 = vsel %vm416, %v4995, %v4997
      %v4999 = vrot.slane %v289, 3
      %v5000 = vsel %vm416, %v4997, %v4999
      %v5001 = vrot.slane %v290, 3
      %v5002 = vsel %vm416, %v4999, %v5001
      %v5003 = vrot.slane %v291, 3
      %v5004 = vsel %vm416, %v5001, %v5003
      %v5005 = vrot.slane %v292, 3
      %v5006 = vsel %vm416, %v5003, %v5005
      %v5007 = vrot.slane %v293, 3
      %v5008 = vsel %vm416, %v5005, %v5007
      %v5009 = vrot.slane %v294, 3
      %v5010 = vsel %vm416, %v5007, %v5009
      %v5011 = vrot.slane %v295, 3
      %v5012 = vsel %vm416, %v5009, %v5011
      %v5013 = vrot.slane %v296, 3
      %v5014 = vsel %vm416, %v5011, %v5013
      %v5015 = vrot.slane %v297, 3
      %v5016 = vsel %vm416, %v5013, %v5015
      %v5017 = vrot.slane %v298, 3
      %v5018 = vsel %vm416, %v5015, %v5017
      %5019 = vrot.lane.b32.xlu0 %v4948, 16
      %v5020 = vpop.permute.xlu0 %5019
      %5021 = vrot.lane.b32.xlu0 %v4950, 16
      %v5022 = vpop.permute.xlu0 %5021
      %5023 = vrot.lane.b32.xlu0 %v4952, 16
      %v5024 = vpop.permute.xlu0 %5023
      %5025 = vrot.lane.b32.xlu0 %v4954, 16
      %v5026 = vpop.permute.xlu0 %5025
      %5027 = vrot.lane.b32.xlu0 %v4956, 16
      %v5028 = vpop.permute.xlu0 %5027
      %5029 = vrot.lane.b32.xlu0 %v4958, 16
      %v5030 = vpop.permute.xlu0 %5029
      %5031 = vrot.lane.b32.xlu0 %v4960, 16
      %v5032 = vpop.permute.xlu0 %5031
      %5033 = vrot.lane.b32.xlu0 %v4962, 16
      %v5034 = vpop.permute.xlu0 %5033
      %5035 = vrot.lane.b32.xlu0 %v4964, 16
      %v5036 = vpop.permute.xlu0 %5035
      %5037 = vrot.lane.b32.xlu0 %v4966, 16
      %v5038 = vpop.permute.xlu0 %5037
      %5039 = vrot.lane.b32.xlu0 %v4968, 16
      %v5040 = vpop.permute.xlu0 %5039
      %5041 = vrot.lane.b32.xlu0 %v4970, 16
      %v5042 = vpop.permute.xlu0 %5041
      %5043 = vrot.lane.b32.xlu0 %v4972, 16
      %v5044 = vpop.permute.xlu0 %5043
      %5045 = vrot.lane.b32.xlu0 %v4974, 16
      %v5046 = vpop.permute.xlu0 %5045
      %5047 = vrot.lane.b32.xlu0 %v4976, 16
      %v5048 = vpop.permute.xlu0 %5047
      %5049 = vrot.lane.b32.xlu0 %v4978, 16
      %v5050 = vpop.permute.xlu0 %5049
      %5051 = vrot.lane.b32.xlu0 %v4980, 16
      %v5052 = vpop.permute.xlu0 %5051
      %5053 = vrot.lane.b32.xlu0 %v4982, 16
      %v5054 = vpop.permute.xlu0 %5053
      %5055 = vrot.lane.b32.xlu0 %v4984, 16
      %v5056 = vpop.permute.xlu0 %5055
      %5057 = vrot.lane.b32.xlu0 %v4986, 16
      %v5058 = vpop.permute.xlu0 %5057
      %5059 = vrot.lane.b32.xlu0 %v4988, 16
      %v5060 = vpop.permute.xlu0 %5059
      %5061 = vrot.lane.b32.xlu0 %v4990, 16
      %v5062 = vpop.permute.xlu0 %5061
      %5063 = vrot.lane.b32.xlu0 %v4992, 16
      %v5064 = vpop.permute.xlu0 %5063
      %5065 = vrot.lane.b32.xlu0 %v4994, 16
      %v5066 = vpop.permute.xlu0 %5065
      %5067 = vrot.lane.b32.xlu0 %v4996, 16
      %v5068 = vpop.permute.xlu0 %5067
      %5069 = vrot.lane.b32.xlu0 %v4998, 16
      %v5070 = vpop.permute.xlu0 %5069
      %5071 = vrot.lane.b32.xlu0 %v5000, 16
      %v5072 = vpop.permute.xlu0 %5071
      %5073 = vrot.lane.b32.xlu0 %v5002, 16
      %v5074 = vpop.permute.xlu0 %5073
      %5075 = vrot.lane.b32.xlu0 %v5004, 16
      %v5076 = vpop.permute.xlu0 %5075
      %5077 = vrot.lane.b32.xlu0 %v5006, 16
      %v5078 = vpop.permute.xlu0 %5077
      %5079 = vrot.lane.b32.xlu0 %v5008, 16
      %v5080 = vpop.permute.xlu0 %5079
      %5081 = vrot.lane.b32.xlu0 %v5010, 16
      %v5082 = vpop.permute.xlu0 %5081
      %5083 = vrot.lane.b32.xlu0 %v5012, 16
      %v5084 = vpop.permute.xlu0 %5083
      %5085 = vrot.lane.b32.xlu0 %v5014, 16
      %v5086 = vpop.permute.xlu0 %5085
      %5087 = vrot.lane.b32.xlu0 %v5016, 16
      %v5088 = vpop.permute.xlu0 %5087
      %5089 = vrot.lane.b32.xlu0 %v5018, 16
      %v5090 = vpop.permute.xlu0 %5089
      %vm5127 = vcmask 1043456
      %v5128 = vrot.slane %v262, 4
      %v5129 = vrot.slane %v263, 4
      %v5130 = vsel %vm5127, %v5128, %v5129
      %v5131 = vrot.slane %v264, 4
      %v5132 = vsel %vm5127, %v5129, %v5131
      %v5133 = vrot.slane %v265, 4
      %v5134 = vsel %vm5127, %v5131, %v5133
      %v5135 = vrot.slane %v266, 4
      %v5136 = vsel %vm5127, %v5133, %v5135
      %v5137 = vrot.slane %v267, 4
      %v5138 = vsel %vm5127, %v5135, %v5137
      %v5139 = vrot.slane %v268, 4
      %v5140 = vsel %vm5127, %v5137, %v5139
      %v5141 = vrot.slane %v269, 4
      %v5142 = vsel %vm5127, %v5139, %v5141
      %v5143 = vrot.slane %v270, 4
      %v5144 = vsel %vm5127, %v5141, %v5143
      %v5145 = vrot.slane %v271, 4
      %v5146 = vsel %vm5127, %v5143, %v5145
      %v5147 = vrot.slane %v272, 4
      %v5148 = vsel %vm5127, %v5145, %v5147
      %v5149 = vrot.slane %v273, 4
      %v5150 = vsel %vm5127, %v5147, %v5149
      %v5151 = vrot.slane %v274, 4
      %v5152 = vsel %vm5127, %v5149, %v5151
      %v5153 = vrot.slane %v275, 4
      %v5154 = vsel %vm5127, %v5151, %v5153
      %v5155 = vrot.slane %v276, 4
      %v5156 = vsel %vm5127, %v5153, %v5155
      %v5157 = vrot.slane %v277, 4
      %v5158 = vsel %vm5127, %v5155, %v5157
      %v5159 = vrot.slane %v278, 4
      %v5160 = vsel %vm5127, %v5157, %v5159
      %v5161 = vrot.slane %v279, 4
      %v5162 = vsel %vm5127, %v5159, %v5161
      %v5163 = vrot.slane %v280, 4
      %v5164 = vsel %vm5127, %v5161, %v5163
      %v5165 = vrot.slane %v281, 4
      %v5166 = vsel %vm5127, %v5163, %v5165
      %v5167 = vrot.slane %v282, 4
      %v5168 = vsel %vm5127, %v5165, %v5167
      %v5169 = vrot.slane %v283, 4
      %v5170 = vsel %vm5127, %v5167, %v5169
      %v5171 = vrot.slane %v284, 4
      %v5172 = vsel %vm5127, %v5169, %v5171
      %v5173 = vrot.slane %v285, 4
      %v5174 = vsel %vm5127, %v5171, %v5173
      %v5175 = vrot.slane %v286, 4
      %v5176 = vsel %vm5127, %v5173, %v5175
      %v5177 = vrot.slane %v287, 4
      %v5178 = vsel %vm5127, %v5175, %v5177
      %v5179 = vrot.slane %v288, 4
      %v5180 = vsel %vm5127, %v5177, %v5179
      %v5181 = vrot.slane %v289, 4
      %v5182 = vsel %vm5127, %v5179, %v5181
      %v5183 = vrot.slane %v290, 4
      %v5184 = vsel %vm5127, %v5181, %v5183
      %v5185 = vrot.slane %v291, 4
      %v5186 = vsel %vm5127, %v5183, %v5185
      %v5187 = vrot.slane %v292, 4
      %v5188 = vsel %vm5127, %v5185, %v5187
      %v5189 = vrot.slane %v293, 4
      %v5190 = vsel %vm5127, %v5187, %v5189
      %v5191 = vrot.slane %v294, 4
      %v5192 = vsel %vm5127, %v5189, %v5191
      %v5193 = vrot.slane %v295, 4
      %v5194 = vsel %vm5127, %v5191, %v5193
      %v5195 = vrot.slane %v296, 4
      %v5196 = vsel %vm5127, %v5193, %v5195
      %v5197 = vrot.slane %v297, 4
      %v5198 = vsel %vm5127, %v5195, %v5197
      %v5199 = vrot.slane %v298, 4
      %v5200 = vsel %vm5127, %v5197, %v5199
      %5201 = vrot.lane.b32.xlu0 %v5130, 20
      %v5202 = vpop.permute.xlu0 %5201
      %5203 = vrot.lane.b32.xlu0 %v5132, 20
      %v5204 = vpop.permute.xlu0 %5203
      %5205 = vrot.lane.b32.xlu0 %v5134, 20
      %v5206 = vpop.permute.xlu0 %5205
      %5207 = vrot.lane.b32.xlu0 %v5136, 20
      %v5208 = vpop.permute.xlu0 %5207
      %5209 = vrot.lane.b32.xlu0 %v5138, 20
      %v5210 = vpop.permute.xlu0 %5209
      %5211 = vrot.lane.b32.xlu0 %v5140, 20
      %v5212 = vpop.permute.xlu0 %5211
      %5213 = vrot.lane.b32.xlu0 %v5142, 20
      %v5214 = vpop.permute.xlu0 %5213
      %5215 = vrot.lane.b32.xlu0 %v5144, 20
      %v5216 = vpop.permute.xlu0 %5215
      %5217 = vrot.lane.b32.xlu0 %v5146, 20
      %v5218 = vpop.permute.xlu0 %5217
      %5219 = vrot.lane.b32.xlu0 %v5148, 20
      %v5220 = vpop.permute.xlu0 %5219
      %5221 = vrot.lane.b32.xlu0 %v5150, 20
      %v5222 = vpop.permute.xlu0 %5221
      %5223 = vrot.lane.b32.xlu0 %v5152, 20
      %v5224 = vpop.permute.xlu0 %5223
      %5225 = vrot.lane.b32.xlu0 %v5154, 20
      %v5226 = vpop.permute.xlu0 %5225
      %5227 = vrot.lane.b32.xlu0 %v5156, 20
      %v5228 = vpop.permute.xlu0 %5227
      %5229 = vrot.lane.b32.xlu0 %v5158, 20
      %v5230 = vpop.permute.xlu0 %5229
      %5231 = vrot.lane.b32.xlu0 %v5160, 20
      %v5232 = vpop.permute.xlu0 %5231
      %5233 = vrot.lane.b32.xlu0 %v5162, 20
      %v5234 = vpop.permute.xlu0 %5233
      %5235 = vrot.lane.b32.xlu0 %v5164, 20
      %v5236 = vpop.permute.xlu0 %5235
      %5237 = vrot.lane.b32.xlu0 %v5166, 20
      %v5238 = vpop.permute.xlu0 %5237
      %5239 = vrot.lane.b32.xlu0 %v5168, 20
      %v5240 = vpop.permute.xlu0 %5239
      %5241 = vrot.lane.b32.xlu0 %v5170, 20
      %v5242 = vpop.permute.xlu0 %5241
      %5243 = vrot.lane.b32.xlu0 %v5172, 20
      %v5244 = vpop.permute.xlu0 %5243
      %5245 = vrot.lane.b32.xlu0 %v5174, 20
      %v5246 = vpop.permute.xlu0 %5245
      %5247 = vrot.lane.b32.xlu0 %v5176, 20
      %v5248 = vpop.permute.xlu0 %5247
      %5249 = vrot.lane.b32.xlu0 %v5178, 20
      %v5250 = vpop.permute.xlu0 %5249
      %5251 = vrot.lane.b32.xlu0 %v5180, 20
      %v5252 = vpop.permute.xlu0 %5251
      %5253 = vrot.lane.b32.xlu0 %v5182, 20
      %v5254 = vpop.permute.xlu0 %5253
      %5255 = vrot.lane.b32.xlu0 %v5184, 20
      %v5256 = vpop.permute.xlu0 %5255
      %5257 = vrot.lane.b32.xlu0 %v5186, 20
      %v5258 = vpop.permute.xlu0 %5257
      %5259 = vrot.lane.b32.xlu0 %v5188, 20
      %v5260 = vpop.permute.xlu0 %5259
      %5261 = vrot.lane.b32.xlu0 %v5190, 20
      %v5262 = vpop.permute.xlu0 %5261
      %5263 = vrot.lane.b32.xlu0 %v5192, 20
      %v5264 = vpop.permute.xlu0 %5263
      %5265 = vrot.lane.b32.xlu0 %v5194, 20
      %v5266 = vpop.permute.xlu0 %5265
      %5267 = vrot.lane.b32.xlu0 %v5196, 20
      %v5268 = vpop.permute.xlu0 %5267
      %5269 = vrot.lane.b32.xlu0 %v5198, 20
      %v5270 = vpop.permute.xlu0 %5269
      %5271 = vrot.lane.b32.xlu0 %v5200, 20
      %v5272 = vpop.permute.xlu0 %5271
      %v5311 = vrot.slane %v299, 4
      %v5312 = vsel %vm5127, %v5199, %v5311
      %v5313 = vrot.slane %v300, 4
      %v5314 = vsel %vm5127, %v5311, %v5313
      %5315 = vrot.lane.b32.xlu0 %v5134, 24
      %v5316 = vpop.permute.xlu0 %5315
      %5317 = vrot.lane.b32.xlu0 %v5136, 24
      %v5318 = vpop.permute.xlu0 %5317
      %5319 = vrot.lane.b32.xlu0 %v5138, 24
      %v5320 = vpop.permute.xlu0 %5319
      %5321 = vrot.lane.b32.xlu0 %v5140, 24
      %v5322 = vpop.permute.xlu0 %5321
      %5323 = vrot.lane.b32.xlu0 %v5142, 24
      %v5324 = vpop.permute.xlu0 %5323
      %5325 = vrot.lane.b32.xlu0 %v5144, 24
      %v5326 = vpop.permute.xlu0 %5325
      %5327 = vrot.lane.b32.xlu0 %v5146, 24
      %v5328 = vpop.permute.xlu0 %5327
      %5329 = vrot.lane.b32.xlu0 %v5148, 24
      %v5330 = vpop.permute.xlu0 %5329
      %5331 = vrot.lane.b32.xlu0 %v5150, 24
      %v5332 = vpop.permute.xlu0 %5331
      %5333 = vrot.lane.b32.xlu0 %v5152, 24
      %v5334 = vpop.permute.xlu0 %5333
      %5335 = vrot.lane.b32.xlu0 %v5154, 24
      %v5336 = vpop.permute.xlu0 %5335
      %5337 = vrot.lane.b32.xlu0 %v5156, 24
      %v5338 = vpop.permute.xlu0 %5337
      %5339 = vrot.lane.b32.xlu0 %v5158, 24
      %v5340 = vpop.permute.xlu0 %5339
      %5341 = vrot.lane.b32.xlu0 %v5160, 24
      %v5342 = vpop.permute.xlu0 %5341
      %5343 = vrot.lane.b32.xlu0 %v5162, 24
      %v5344 = vpop.permute.xlu0 %5343
      %5345 = vrot.lane.b32.xlu0 %v5164, 24
      %v5346 = vpop.permute.xlu0 %5345
      %5347 = vrot.lane.b32.xlu0 %v5166, 24
      %v5348 = vpop.permute.xlu0 %5347
      %5349 = vrot.lane.b32.xlu0 %v5168, 24
      %v5350 = vpop.permute.xlu0 %5349
      %5351 = vrot.lane.b32.xlu0 %v5170, 24
      %v5352 = vpop.permute.xlu0 %5351
      %5353 = vrot.lane.b32.xlu0 %v5172, 24
      %v5354 = vpop.permute.xlu0 %5353
      %5355 = vrot.lane.b32.xlu0 %v5174, 24
      %v5356 = vpop.permute.xlu0 %5355
      %5357 = vrot.lane.b32.xlu0 %v5176, 24
      %v5358 = vpop.permute.xlu0 %5357
      %5359 = vrot.lane.b32.xlu0 %v5178, 24
      %v5360 = vpop.permute.xlu0 %5359
      %5361 = vrot.lane.b32.xlu0 %v5180, 24
      %v5362 = vpop.permute.xlu0 %5361
      %5363 = vrot.lane.b32.xlu0 %v5182, 24
      %v5364 = vpop.permute.xlu0 %5363
      %5365 = vrot.lane.b32.xlu0 %v5184, 24
      %v5366 = vpop.permute.xlu0 %5365
      %5367 = vrot.lane.b32.xlu0 %v5186, 24
      %v5368 = vpop.permute.xlu0 %5367
      %5369 = vrot.lane.b32.xlu0 %v5188, 24
      %v5370 = vpop.permute.xlu0 %5369
      %5371 = vrot.lane.b32.xlu0 %v5190, 24
      %v5372 = vpop.permute.xlu0 %5371
      %5373 = vrot.lane.b32.xlu0 %v5192, 24
      %v5374 = vpop.permute.xlu0 %5373
      %5375 = vrot.lane.b32.xlu0 %v5194, 24
      %v5376 = vpop.permute.xlu0 %5375
      %5377 = vrot.lane.b32.xlu0 %v5196, 24
      %v5378 = vpop.permute.xlu0 %5377
      %5379 = vrot.lane.b32.xlu0 %v5198, 24
      %v5380 = vpop.permute.xlu0 %5379
      %5381 = vrot.lane.b32.xlu0 %v5200, 24
      %v5382 = vpop.permute.xlu0 %5381
      %5383 = vrot.lane.b32.xlu0 %v5312, 24
      %v5384 = vpop.permute.xlu0 %5383
      %5385 = vrot.lane.b32.xlu0 %v5314, 24
      %v5386 = vpop.permute.xlu0 %5385
      %v5423 = vrot.slane %v264, 5
      %v5424 = vrot.slane %v265, 5
      %v5425 = vsel %vm3916, %v5423, %v5424
      %v5426 = vrot.slane %v266, 5
      %v5427 = vsel %vm3916, %v5424, %v5426
      %v5428 = vrot.slane %v267, 5
      %v5429 = vsel %vm3916, %v5426, %v5428
      %v5430 = vrot.slane %v268, 5
      %v5431 = vsel %vm3916, %v5428, %v5430
      %v5432 = vrot.slane %v269, 5
      %v5433 = vsel %vm3916, %v5430, %v5432
      %v5434 = vrot.slane %v270, 5
      %v5435 = vsel %vm3916, %v5432, %v5434
      %v5436 = vrot.slane %v271, 5
      %v5437 = vsel %vm3916, %v5434, %v5436
      %v5438 = vrot.slane %v272, 5
      %v5439 = vsel %vm3916, %v5436, %v5438
      %v5440 = vrot.slane %v273, 5
      %v5441 = vsel %vm3916, %v5438, %v5440
      %v5442 = vrot.slane %v274, 5
      %v5443 = vsel %vm3916, %v5440, %v5442
      %v5444 = vrot.slane %v275, 5
      %v5445 = vsel %vm3916, %v5442, %v5444
      %v5446 = vrot.slane %v276, 5
      %v5447 = vsel %vm3916, %v5444, %v5446
      %v5448 = vrot.slane %v277, 5
      %v5449 = vsel %vm3916, %v5446, %v5448
      %v5450 = vrot.slane %v278, 5
      %v5451 = vsel %vm3916, %v5448, %v5450
      %v5452 = vrot.slane %v279, 5
      %v5453 = vsel %vm3916, %v5450, %v5452
      %v5454 = vrot.slane %v280, 5
      %v5455 = vsel %vm3916, %v5452, %v5454
      %v5456 = vrot.slane %v281, 5
      %v5457 = vsel %vm3916, %v5454, %v5456
      %v5458 = vrot.slane %v282, 5
      %v5459 = vsel %vm3916, %v5456, %v5458
      %v5460 = vrot.slane %v283, 5
      %v5461 = vsel %vm3916, %v5458, %v5460
      %v5462 = vrot.slane %v284, 5
      %v5463 = vsel %vm3916, %v5460, %v5462
      %v5464 = vrot.slane %v285, 5
      %v5465 = vsel %vm3916, %v5462, %v5464
      %v5466 = vrot.slane %v286, 5
      %v5467 = vsel %vm3916, %v5464, %v5466
      %v5468 = vrot.slane %v287, 5
      %v5469 = vsel %vm3916, %v5466, %v5468
      %v5470 = vrot.slane %v288, 5
      %v5471 = vsel %vm3916, %v5468, %v5470
      %v5472 = vrot.slane %v289, 5
      %v5473 = vsel %vm3916, %v5470, %v5472
      %v5474 = vrot.slane %v290, 5
      %v5475 = vsel %vm3916, %v5472, %v5474
      %v5476 = vrot.slane %v291, 5
      %v5477 = vsel %vm3916, %v5474, %v5476
      %v5478 = vrot.slane %v292, 5
      %v5479 = vsel %vm3916, %v5476, %v5478
      %v5480 = vrot.slane %v293, 5
      %v5481 = vsel %vm3916, %v5478, %v5480
      %v5482 = vrot.slane %v294, 5
      %v5483 = vsel %vm3916, %v5480, %v5482
      %v5484 = vrot.slane %v295, 5
      %v5485 = vsel %vm3916, %v5482, %v5484
      %v5486 = vrot.slane %v296, 5
      %v5487 = vsel %vm3916, %v5484, %v5486
      %v5488 = vrot.slane %v297, 5
      %v5489 = vsel %vm3916, %v5486, %v5488
      %v5490 = vrot.slane %v298, 5
      %v5491 = vsel %vm3916, %v5488, %v5490
      %v5492 = vrot.slane %v299, 5
      %v5493 = vsel %vm3916, %v5490, %v5492
      %v5494 = vrot.slane %v300, 5
      %v5495 = vsel %vm3916, %v5492, %v5494
      %5496 = vrot.lane.b32.xlu0 %v5425, 28
      %v5497 = vpop.permute.xlu0 %5496
      %5498 = vrot.lane.b32.xlu0 %v5427, 28
      %v5499 = vpop.permute.xlu0 %5498
      %5500 = vrot.lane.b32.xlu0 %v5429, 28
      %v5501 = vpop.permute.xlu0 %5500
      %5502 = vrot.lane.b32.xlu0 %v5431, 28
      %v5503 = vpop.permute.xlu0 %5502
      %5504 = vrot.lane.b32.xlu0 %v5433, 28
      %v5505 = vpop.permute.xlu0 %5504
      %5506 = vrot.lane.b32.xlu0 %v5435, 28
      %v5507 = vpop.permute.xlu0 %5506
      %5508 = vrot.lane.b32.xlu0 %v5437, 28
      %v5509 = vpop.permute.xlu0 %5508
      %5510 = vrot.lane.b32.xlu0 %v5439, 28
      %v5511 = vpop.permute.xlu0 %5510
      %5512 = vrot.lane.b32.xlu0 %v5441, 28
      %v5513 = vpop.permute.xlu0 %5512
      %5514 = vrot.lane.b32.xlu0 %v5443, 28
      %v5515 = vpop.permute.xlu0 %5514
      %5516 = vrot.lane.b32.xlu0 %v5445, 28
      %v5517 = vpop.permute.xlu0 %5516
      %5518 = vrot.lane.b32.xlu0 %v5447, 28
      %v5519 = vpop.permute.xlu0 %5518
      %5520 = vrot.lane.b32.xlu0 %v5449, 28
      %v5521 = vpop.permute.xlu0 %5520
      %5522 = vrot.lane.b32.xlu0 %v5451, 28
      %v5523 = vpop.permute.xlu0 %5522
      %5524 = vrot.lane.b32.xlu0 %v5453, 28
      %v5525 = vpop.permute.xlu0 %5524
      %5526 = vrot.lane.b32.xlu0 %v5455, 28
      %v5527 = vpop.permute.xlu0 %5526
      %5528 = vrot.lane.b32.xlu0 %v5457, 28
      %v5529 = vpop.permute.xlu0 %5528
      %5530 = vrot.lane.b32.xlu0 %v5459, 28
      %v5531 = vpop.permute.xlu0 %5530
      %5532 = vrot.lane.b32.xlu0 %v5461, 28
      %v5533 = vpop.permute.xlu0 %5532
      %5534 = vrot.lane.b32.xlu0 %v5463, 28
      %v5535 = vpop.permute.xlu0 %5534
      %5536 = vrot.lane.b32.xlu0 %v5465, 28
      %v5537 = vpop.permute.xlu0 %5536
      %5538 = vrot.lane.b32.xlu0 %v5467, 28
      %v5539 = vpop.permute.xlu0 %5538
      %5540 = vrot.lane.b32.xlu0 %v5469, 28
      %v5541 = vpop.permute.xlu0 %5540
      %5542 = vrot.lane.b32.xlu0 %v5471, 28
      %v5543 = vpop.permute.xlu0 %5542
      %5544 = vrot.lane.b32.xlu0 %v5473, 28
      %v5545 = vpop.permute.xlu0 %5544
      %5546 = vrot.lane.b32.xlu0 %v5475, 28
      %v5547 = vpop.permute.xlu0 %5546
      %5548 = vrot.lane.b32.xlu0 %v5477, 28
      %v5549 = vpop.permute.xlu0 %5548
      %5550 = vrot.lane.b32.xlu0 %v5479, 28
      %v5551 = vpop.permute.xlu0 %5550
      %5552 = vrot.lane.b32.xlu0 %v5481, 28
      %v5553 = vpop.permute.xlu0 %5552
      %5554 = vrot.lane.b32.xlu0 %v5483, 28
      %v5555 = vpop.permute.xlu0 %5554
      %5556 = vrot.lane.b32.xlu0 %v5485, 28
      %v5557 = vpop.permute.xlu0 %5556
      %5558 = vrot.lane.b32.xlu0 %v5487, 28
      %v5559 = vpop.permute.xlu0 %5558
      %5560 = vrot.lane.b32.xlu0 %v5489, 28
      %v5561 = vpop.permute.xlu0 %5560
      %5562 = vrot.lane.b32.xlu0 %v5491, 28
      %v5563 = vpop.permute.xlu0 %5562
      %5564 = vrot.lane.b32.xlu0 %v5493, 28
      %v5565 = vpop.permute.xlu0 %5564
      %5566 = vrot.lane.b32.xlu0 %v5495, 28
      %v5567 = vpop.permute.xlu0 %5566
      %v5604 = vrot.slane %v264, 6
      %v5605 = vrot.slane %v265, 6
      %v5606 = vsel %vm3399, %v5604, %v5605
      %v5607 = vrot.slane %v266, 6
      %v5608 = vsel %vm3399, %v5605, %v5607
      %v5609 = vrot.slane %v267, 6
      %v5610 = vsel %vm3399, %v5607, %v5609
      %v5611 = vrot.slane %v268, 6
      %v5612 = vsel %vm3399, %v5609, %v5611
      %v5613 = vrot.slane %v269, 6
      %v5614 = vsel %vm3399, %v5611, %v5613
      %v5615 = vrot.slane %v270, 6
      %v5616 = vsel %vm3399, %v5613, %v5615
      %v5617 = vrot.slane %v271, 6
      %v5618 = vsel %vm3399, %v5615, %v5617
      %v5619 = vrot.slane %v272, 6
      %v5620 = vsel %vm3399, %v5617, %v5619
      %v5621 = vrot.slane %v273, 6
      %v5622 = vsel %vm3399, %v5619, %v5621
      %v5623 = vrot.slane %v274, 6
      %v5624 = vsel %vm3399, %v5621, %v5623
      %v5625 = vrot.slane %v275, 6
      %v5626 = vsel %vm3399, %v5623, %v5625
      %v5627 = vrot.slane %v276, 6
      %v5628 = vsel %vm3399, %v5625, %v5627
      %v5629 = vrot.slane %v277, 6
      %v5630 = vsel %vm3399, %v5627, %v5629
      %v5631 = vrot.slane %v278, 6
      %v5632 = vsel %vm3399, %v5629, %v5631
      %v5633 = vrot.slane %v279, 6
      %v5634 = vsel %vm3399, %v5631, %v5633
      %v5635 = vrot.slane %v280, 6
      %v5636 = vsel %vm3399, %v5633, %v5635
      %v5637 = vrot.slane %v281, 6
      %v5638 = vsel %vm3399, %v5635, %v5637
      %v5639 = vrot.slane %v282, 6
      %v5640 = vsel %vm3399, %v5637, %v5639
      %v5641 = vrot.slane %v283, 6
      %v5642 = vsel %vm3399, %v5639, %v5641
      %v5643 = vrot.slane %v284, 6
      %v5644 = vsel %vm3399, %v5641, %v5643
      %v5645 = vrot.slane %v285, 6
      %v5646 = vsel %vm3399, %v5643, %v5645
      %v5647 = vrot.slane %v286, 6
      %v5648 = vsel %vm3399, %v5645, %v5647
      %v5649 = vrot.slane %v287, 6
      %v5650 = vsel %vm3399, %v5647, %v5649
      %v5651 = vrot.slane %v288, 6
      %v5652 = vsel %vm3399, %v5649, %v5651
      %v5653 = vrot.slane %v289, 6
      %v5654 = vsel %vm3399, %v5651, %v5653
      %v5655 = vrot.slane %v290, 6
      %v5656 = vsel %vm3399, %v5653, %v5655
      %v5657 = vrot.slane %v291, 6
      %v5658 = vsel %vm3399, %v5655, %v5657
      %v5659 = vrot.slane %v292, 6
      %v5660 = vsel %vm3399, %v5657, %v5659
      %v5661 = vrot.slane %v293, 6
      %v5662 = vsel %vm3399, %v5659, %v5661
      %v5663 = vrot.slane %v294, 6
      %v5664 = vsel %vm3399, %v5661, %v5663
      %v5665 = vrot.slane %v295, 6
      %v5666 = vsel %vm3399, %v5663, %v5665
      %v5667 = vrot.slane %v296, 6
      %v5668 = vsel %vm3399, %v5665, %v5667
      %v5669 = vrot.slane %v297, 6
      %v5670 = vsel %vm3399, %v5667, %v5669
      %v5671 = vrot.slane %v298, 6
      %v5672 = vsel %vm3399, %v5669, %v5671
      %v5673 = vrot.slane %v299, 6
      %v5674 = vsel %vm3399, %v5671, %v5673
      %v5675 = vrot.slane %v300, 6
      %v5676 = vsel %vm3399, %v5673, %v5675
      %5677 = vrot.lane.b32.xlu0 %v5606, 32
      %v5678 = vpop.permute.xlu0 %5677
      %5679 = vrot.lane.b32.xlu0 %v5608, 32
      %v5680 = vpop.permute.xlu0 %5679
      %5681 = vrot.lane.b32.xlu0 %v5610, 32
      %v5682 = vpop.permute.xlu0 %5681
      %5683 = vrot.lane.b32.xlu0 %v5612, 32
      %v5684 = vpop.permute.xlu0 %5683
      %5685 = vrot.lane.b32.xlu0 %v5614, 32
      %v5686 = vpop.permute.xlu0 %5685
      %5687 = vrot.lane.b32.xlu0 %v5616, 32
      %v5688 = vpop.permute.xlu0 %5687
      %5689 = vrot.lane.b32.xlu0 %v5618, 32
      %v5690 = vpop.permute.xlu0 %5689
      %5691 = vrot.lane.b32.xlu0 %v5620, 32
      %v5692 = vpop.permute.xlu0 %5691
      %5693 = vrot.lane.b32.xlu0 %v5622, 32
      %v5694 = vpop.permute.xlu0 %5693
      %5695 = vrot.lane.b32.xlu0 %v5624, 32
      %v5696 = vpop.permute.xlu0 %5695
      %5697 = vrot.lane.b32.xlu0 %v5626, 32
      %v5698 = vpop.permute.xlu0 %5697
      %5699 = vrot.lane.b32.xlu0 %v5628, 32
      %v5700 = vpop.permute.xlu0 %5699
      %5701 = vrot.lane.b32.xlu0 %v5630, 32
      %v5702 = vpop.permute.xlu0 %5701
      %5703 = vrot.lane.b32.xlu0 %v5632, 32
      %v5704 = vpop.permute.xlu0 %5703
      %5705 = vrot.lane.b32.xlu0 %v5634, 32
      %v5706 = vpop.permute.xlu0 %5705
      %5707 = vrot.lane.b32.xlu0 %v5636, 32
      %v5708 = vpop.permute.xlu0 %5707
      %5709 = vrot.lane.b32.xlu0 %v5638, 32
      %v5710 = vpop.permute.xlu0 %5709
      %5711 = vrot.lane.b32.xlu0 %v5640, 32
      %v5712 = vpop.permute.xlu0 %5711
      %5713 = vrot.lane.b32.xlu0 %v5642, 32
      %v5714 = vpop.permute.xlu0 %5713
      %5715 = vrot.lane.b32.xlu0 %v5644, 32
      %v5716 = vpop.permute.xlu0 %5715
      %5717 = vrot.lane.b32.xlu0 %v5646, 32
      %v5718 = vpop.permute.xlu0 %5717
      %5719 = vrot.lane.b32.xlu0 %v5648, 32
      %v5720 = vpop.permute.xlu0 %5719
      %5721 = vrot.lane.b32.xlu0 %v5650, 32
      %v5722 = vpop.permute.xlu0 %5721
      %5723 = vrot.lane.b32.xlu0 %v5652, 32
      %v5724 = vpop.permute.xlu0 %5723
      %5725 = vrot.lane.b32.xlu0 %v5654, 32
      %v5726 = vpop.permute.xlu0 %5725
      %5727 = vrot.lane.b32.xlu0 %v5656, 32
      %v5728 = vpop.permute.xlu0 %5727
      %5729 = vrot.lane.b32.xlu0 %v5658, 32
      %v5730 = vpop.permute.xlu0 %5729
      %5731 = vrot.lane.b32.xlu0 %v5660, 32
      %v5732 = vpop.permute.xlu0 %5731
      %5733 = vrot.lane.b32.xlu0 %v5662, 32
      %v5734 = vpop.permute.xlu0 %5733
      %5735 = vrot.lane.b32.xlu0 %v5664, 32
      %v5736 = vpop.permute.xlu0 %5735
      %5737 = vrot.lane.b32.xlu0 %v5666, 32
      %v5738 = vpop.permute.xlu0 %5737
      %5739 = vrot.lane.b32.xlu0 %v5668, 32
      %v5740 = vpop.permute.xlu0 %5739
      %5741 = vrot.lane.b32.xlu0 %v5670, 32
      %v5742 = vpop.permute.xlu0 %5741
      %5743 = vrot.lane.b32.xlu0 %v5672, 32
      %v5744 = vpop.permute.xlu0 %5743
      %5745 = vrot.lane.b32.xlu0 %v5674, 32
      %v5746 = vpop.permute.xlu0 %5745
      %5747 = vrot.lane.b32.xlu0 %v5676, 32
      %v5748 = vpop.permute.xlu0 %5747
      %5821 = vrot.lane.b32.xlu0 %v924, 36
      %v5822 = vpop.permute.xlu0 %5821
      %5823 = vrot.lane.b32.xlu0 %v925, 36
      %v5824 = vpop.permute.xlu0 %5823
      %5825 = vrot.lane.b32.xlu0 %v926, 36
      %v5826 = vpop.permute.xlu0 %5825
      %5827 = vrot.lane.b32.xlu0 %v927, 36
      %v5828 = vpop.permute.xlu0 %5827
      %5829 = vrot.lane.b32.xlu0 %v928, 36
      %v5830 = vpop.permute.xlu0 %5829
      %5831 = vrot.lane.b32.xlu0 %v929, 36
      %v5832 = vpop.permute.xlu0 %5831
      %5833 = vrot.lane.b32.xlu0 %v930, 36
      %v5834 = vpop.permute.xlu0 %5833
      %5835 = vrot.lane.b32.xlu0 %v931, 36
      %v5836 = vpop.permute.xlu0 %5835
      %5837 = vrot.lane.b32.xlu0 %v932, 36
      %v5838 = vpop.permute.xlu0 %5837
      %5839 = vrot.lane.b32.xlu0 %v933, 36
      %v5840 = vpop.permute.xlu0 %5839
      %5841 = vrot.lane.b32.xlu0 %v934, 36
      %v5842 = vpop.permute.xlu0 %5841
      %5843 = vrot.lane.b32.xlu0 %v935, 36
      %v5844 = vpop.permute.xlu0 %5843
      %5845 = vrot.lane.b32.xlu0 %v936, 36
      %v5846 = vpop.permute.xlu0 %5845
      %5847 = vrot.lane.b32.xlu0 %v937, 36
      %v5848 = vpop.permute.xlu0 %5847
      %5849 = vrot.lane.b32.xlu0 %v938, 36
      %v5850 = vpop.permute.xlu0 %5849
      %5851 = vrot.lane.b32.xlu0 %v939, 36
      %v5852 = vpop.permute.xlu0 %5851
      %5853 = vrot.lane.b32.xlu0 %v940, 36
      %v5854 = vpop.permute.xlu0 %5853
      %5855 = vrot.lane.b32.xlu0 %v941, 36
      %v5856 = vpop.permute.xlu0 %5855
      %5857 = vrot.lane.b32.xlu0 %v942, 36
      %v5858 = vpop.permute.xlu0 %5857
      %5859 = vrot.lane.b32.xlu0 %v943, 36
      %v5860 = vpop.permute.xlu0 %5859
      %5861 = vrot.lane.b32.xlu0 %v944, 36
      %v5862 = vpop.permute.xlu0 %5861
      %5863 = vrot.lane.b32.xlu0 %v945, 36
      %v5864 = vpop.permute.xlu0 %5863
      %5865 = vrot.lane.b32.xlu0 %v946, 36
      %v5866 = vpop.permute.xlu0 %5865
      %5867 = vrot.lane.b32.xlu0 %v947, 36
      %v5868 = vpop.permute.xlu0 %5867
      %5869 = vrot.lane.b32.xlu0 %v948, 36
      %v5870 = vpop.permute.xlu0 %5869
      %5871 = vrot.lane.b32.xlu0 %v949, 36
      %v5872 = vpop.permute.xlu0 %5871
      %5873 = vrot.lane.b32.xlu0 %v950, 36
      %v5874 = vpop.permute.xlu0 %5873
      %5875 = vrot.lane.b32.xlu0 %v951, 36
      %v5876 = vpop.permute.xlu0 %5875
      %5877 = vrot.lane.b32.xlu0 %v952, 36
      %v5878 = vpop.permute.xlu0 %5877
      %5879 = vrot.lane.b32.xlu0 %v953, 36
      %v5880 = vpop.permute.xlu0 %5879
      %5881 = vrot.lane.b32.xlu0 %v954, 36
      %v5882 = vpop.permute.xlu0 %5881
      %5883 = vrot.lane.b32.xlu0 %v955, 36
      %v5884 = vpop.permute.xlu0 %5883
      %5885 = vrot.lane.b32.xlu0 %v956, 36
      %v5886 = vpop.permute.xlu0 %5885
      %5887 = vrot.lane.b32.xlu0 %v957, 36
      %v5888 = vpop.permute.xlu0 %5887
      %5889 = vrot.lane.b32.xlu0 %v958, 36
      %v5890 = vpop.permute.xlu0 %5889
      %5891 = vrot.lane.b32.xlu0 %v959, 36
      %v5892 = vpop.permute.xlu0 %5891
      %v5966 = vrot.slane %v1440, 1
      %v5967 = vrot.slane %v1441, 1
      %v5968 = vsel %vm1477, %v5966, %v5967
      %v5969 = vrot.slane %v1442, 1
      %v5970 = vsel %vm1477, %v5967, %v5969
      %v5971 = vrot.slane %v1443, 1
      %v5972 = vsel %vm1477, %v5969, %v5971
      %v5973 = vrot.slane %v1444, 1
      %v5974 = vsel %vm1477, %v5971, %v5973
      %v5975 = vrot.slane %v1445, 1
      %v5976 = vsel %vm1477, %v5973, %v5975
      %v5977 = vrot.slane %v1446, 1
      %v5978 = vsel %vm1477, %v5975, %v5977
      %v5979 = vrot.slane %v1447, 1
      %v5980 = vsel %vm1477, %v5977, %v5979
      %v5981 = vrot.slane %v1448, 1
      %v5982 = vsel %vm1477, %v5979, %v5981
      %v5983 = vrot.slane %v1449, 1
      %v5984 = vsel %vm1477, %v5981, %v5983
      %v5985 = vrot.slane %v1450, 1
      %v5986 = vsel %vm1477, %v5983, %v5985
      %v5987 = vrot.slane %v1451, 1
      %v5988 = vsel %vm1477, %v5985, %v5987
      %v5989 = vrot.slane %v1452, 1
      %v5990 = vsel %vm1477, %v5987, %v5989
      %v5991 = vrot.slane %v1453, 1
      %v5992 = vsel %vm1477, %v5989, %v5991
      %v5993 = vrot.slane %v1454, 1
      %v5994 = vsel %vm1477, %v5991, %v5993
      %v5995 = vrot.slane %v1455, 1
      %v5996 = vsel %vm1477, %v5993, %v5995
      %v5997 = vrot.slane %v1456, 1
      %v5998 = vsel %vm1477, %v5995, %v5997
      %v5999 = vrot.slane %v1457, 1
      %v6000 = vsel %vm1477, %v5997, %v5999
      %v6001 = vrot.slane %v1458, 1
      %v6002 = vsel %vm1477, %v5999, %v6001
      %v6003 = vrot.slane %v1459, 1
      %v6004 = vsel %vm1477, %v6001, %v6003
      %v6005 = vrot.slane %v1460, 1
      %v6006 = vsel %vm1477, %v6003, %v6005
      %v6007 = vrot.slane %v1461, 1
      %v6008 = vsel %vm1477, %v6005, %v6007
      %v6009 = vrot.slane %v1462, 1
      %v6010 = vsel %vm1477, %v6007, %v6009
      %v6011 = vrot.slane %v1463, 1
      %v6012 = vsel %vm1477, %v6009, %v6011
      %v6013 = vrot.slane %v1464, 1
      %v6014 = vsel %vm1477, %v6011, %v6013
      %v6015 = vrot.slane %v1465, 1
      %v6016 = vsel %vm1477, %v6013, %v6015
      %v6017 = vrot.slane %v1466, 1
      %v6018 = vsel %vm1477, %v6015, %v6017
      %v6019 = vrot.slane %v1467, 1
      %v6020 = vsel %vm1477, %v6017, %v6019
      %v6021 = vrot.slane %v1468, 1
      %v6022 = vsel %vm1477, %v6019, %v6021
      %v6023 = vrot.slane %v1469, 1
      %v6024 = vsel %vm1477, %v6021, %v6023
      %v6025 = vrot.slane %v1470, 1
      %v6026 = vsel %vm1477, %v6023, %v6025
      %v6027 = vrot.slane %v1471, 1
      %v6028 = vsel %vm1477, %v6025, %v6027
      %v6029 = vrot.slane %v1472, 1
      %v6030 = vsel %vm1477, %v6027, %v6029
      %v6031 = vrot.slane %v1473, 1
      %v6032 = vsel %vm1477, %v6029, %v6031
      %v6033 = vrot.slane %v1474, 1
      %v6034 = vsel %vm1477, %v6031, %v6033
      %v6035 = vrot.slane %v1475, 1
      %v6036 = vsel %vm1477, %v6033, %v6035
      %v6037 = vrot.slane %v1476, 1
      %v6038 = vsel %vm1477, %v6035, %v6037
      %6039 = vrot.lane.b32.xlu0 %v5968, 40
      %v6040 = vpop.permute.xlu0 %6039
      %6041 = vrot.lane.b32.xlu0 %v5970, 40
      %v6042 = vpop.permute.xlu0 %6041
      %6043 = vrot.lane.b32.xlu0 %v5972, 40
      %v6044 = vpop.permute.xlu0 %6043
      %6045 = vrot.lane.b32.xlu0 %v5974, 40
      %v6046 = vpop.permute.xlu0 %6045
      %6047 = vrot.lane.b32.xlu0 %v5976, 40
      %v6048 = vpop.permute.xlu0 %6047
      %6049 = vrot.lane.b32.xlu0 %v5978, 40
      %v6050 = vpop.permute.xlu0 %6049
      %6051 = vrot.lane.b32.xlu0 %v5980, 40
      %v6052 = vpop.permute.xlu0 %6051
      %6053 = vrot.lane.b32.xlu0 %v5982, 40
      %v6054 = vpop.permute.xlu0 %6053
      %6055 = vrot.lane.b32.xlu0 %v5984, 40
      %v6056 = vpop.permute.xlu0 %6055
      %6057 = vrot.lane.b32.xlu0 %v5986, 40
      %v6058 = vpop.permute.xlu0 %6057
      %6059 = vrot.lane.b32.xlu0 %v5988, 40
      %v6060 = vpop.permute.xlu0 %6059
      %6061 = vrot.lane.b32.xlu0 %v5990, 40
      %v6062 = vpop.permute.xlu0 %6061
      %6063 = vrot.lane.b32.xlu0 %v5992, 40
      %v6064 = vpop.permute.xlu0 %6063
      %6065 = vrot.lane.b32.xlu0 %v5994, 40
      %v6066 = vpop.permute.xlu0 %6065
      %6067 = vrot.lane.b32.xlu0 %v5996, 40
      %v6068 = vpop.permute.xlu0 %6067
      %6069 = vrot.lane.b32.xlu0 %v5998, 40
      %v6070 = vpop.permute.xlu0 %6069
      %6071 = vrot.lane.b32.xlu0 %v6000, 40
      %v6072 = vpop.permute.xlu0 %6071
      %6073 = vrot.lane.b32.xlu0 %v6002, 40
      %v6074 = vpop.permute.xlu0 %6073
      %6075 = vrot.lane.b32.xlu0 %v6004, 40
      %v6076 = vpop.permute.xlu0 %6075
      %6077 = vrot.lane.b32.xlu0 %v6006, 40
      %v6078 = vpop.permute.xlu0 %6077
      %6079 = vrot.lane.b32.xlu0 %v6008, 40
      %v6080 = vpop.permute.xlu0 %6079
      %6081 = vrot.lane.b32.xlu0 %v6010, 40
      %v6082 = vpop.permute.xlu0 %6081
      %6083 = vrot.lane.b32.xlu0 %v6012, 40
      %v6084 = vpop.permute.xlu0 %6083
      %6085 = vrot.lane.b32.xlu0 %v6014, 40
      %v6086 = vpop.permute.xlu0 %6085
      %6087 = vrot.lane.b32.xlu0 %v6016, 40
      %v6088 = vpop.permute.xlu0 %6087
      %6089 = vrot.lane.b32.xlu0 %v6018, 40
      %v6090 = vpop.permute.xlu0 %6089
      %6091 = vrot.lane.b32.xlu0 %v6020, 40
      %v6092 = vpop.permute.xlu0 %6091
      %6093 = vrot.lane.b32.xlu0 %v6022, 40
      %v6094 = vpop.permute.xlu0 %6093
      %6095 = vrot.lane.b32.xlu0 %v6024, 40
      %v6096 = vpop.permute.xlu0 %6095
      %6097 = vrot.lane.b32.xlu0 %v6026, 40
      %v6098 = vpop.permute.xlu0 %6097
      %6099 = vrot.lane.b32.xlu0 %v6028, 40
      %v6100 = vpop.permute.xlu0 %6099
      %6101 = vrot.lane.b32.xlu0 %v6030, 40
      %v6102 = vpop.permute.xlu0 %6101
      %6103 = vrot.lane.b32.xlu0 %v6032, 40
      %v6104 = vpop.permute.xlu0 %6103
      %6105 = vrot.lane.b32.xlu0 %v6034, 40
      %v6106 = vpop.permute.xlu0 %6105
      %6107 = vrot.lane.b32.xlu0 %v6036, 40
      %v6108 = vpop.permute.xlu0 %6107
      %6109 = vrot.lane.b32.xlu0 %v6038, 40
      %v6110 = vpop.permute.xlu0 %6109
      %v6184 = vrot.slane %v1957, 2
      %v6185 = vrot.slane %v1958, 2
      %v6186 = vsel %vm960, %v6184, %v6185
      %v6187 = vrot.slane %v1959, 2
      %v6188 = vsel %vm960, %v6185, %v6187
      %v6189 = vrot.slane %v1960, 2
      %v6190 = vsel %vm960, %v6187, %v6189
      %v6191 = vrot.slane %v1961, 2
      %v6192 = vsel %vm960, %v6189, %v6191
      %v6193 = vrot.slane %v1962, 2
      %v6194 = vsel %vm960, %v6191, %v6193
      %v6195 = vrot.slane %v1963, 2
      %v6196 = vsel %vm960, %v6193, %v6195
      %v6197 = vrot.slane %v1964, 2
      %v6198 = vsel %vm960, %v6195, %v6197
      %v6199 = vrot.slane %v1965, 2
      %v6200 = vsel %vm960, %v6197, %v6199
      %v6201 = vrot.slane %v1966, 2
      %v6202 = vsel %vm960, %v6199, %v6201
      %v6203 = vrot.slane %v1967, 2
      %v6204 = vsel %vm960, %v6201, %v6203
      %v6205 = vrot.slane %v1968, 2
      %v6206 = vsel %vm960, %v6203, %v6205
      %v6207 = vrot.slane %v1969, 2
      %v6208 = vsel %vm960, %v6205, %v6207
      %v6209 = vrot.slane %v1970, 2
      %v6210 = vsel %vm960, %v6207, %v6209
      %v6211 = vrot.slane %v1971, 2
      %v6212 = vsel %vm960, %v6209, %v6211
      %v6213 = vrot.slane %v1972, 2
      %v6214 = vsel %vm960, %v6211, %v6213
      %v6215 = vrot.slane %v1973, 2
      %v6216 = vsel %vm960, %v6213, %v6215
      %v6217 = vrot.slane %v1974, 2
      %v6218 = vsel %vm960, %v6215, %v6217
      %v6219 = vrot.slane %v1975, 2
      %v6220 = vsel %vm960, %v6217, %v6219
      %v6221 = vrot.slane %v1976, 2
      %v6222 = vsel %vm960, %v6219, %v6221
      %v6223 = vrot.slane %v1977, 2
      %v6224 = vsel %vm960, %v6221, %v6223
      %v6225 = vrot.slane %v1978, 2
      %v6226 = vsel %vm960, %v6223, %v6225
      %v6227 = vrot.slane %v1979, 2
      %v6228 = vsel %vm960, %v6225, %v6227
      %v6229 = vrot.slane %v1980, 2
      %v6230 = vsel %vm960, %v6227, %v6229
      %v6231 = vrot.slane %v1981, 2
      %v6232 = vsel %vm960, %v6229, %v6231
      %v6233 = vrot.slane %v1982, 2
      %v6234 = vsel %vm960, %v6231, %v6233
      %v6235 = vrot.slane %v1983, 2
      %v6236 = vsel %vm960, %v6233, %v6235
      %v6237 = vrot.slane %v1984, 2
      %v6238 = vsel %vm960, %v6235, %v6237
      %v6239 = vrot.slane %v1985, 2
      %v6240 = vsel %vm960, %v6237, %v6239
      %v6241 = vrot.slane %v1986, 2
      %v6242 = vsel %vm960, %v6239, %v6241
      %v6243 = vrot.slane %v1987, 2
      %v6244 = vsel %vm960, %v6241, %v6243
      %v6245 = vrot.slane %v1988, 2
      %v6246 = vsel %vm960, %v6243, %v6245
      %v6247 = vrot.slane %v1989, 2
      %v6248 = vsel %vm960, %v6245, %v6247
      %v6249 = vrot.slane %v1990, 2
      %v6250 = vsel %vm960, %v6247, %v6249
      %v6251 = vrot.slane %v1991, 2
      %v6252 = vsel %vm960, %v6249, %v6251
      %v6253 = vrot.slane %v1992, 2
      %v6254 = vsel %vm960, %v6251, %v6253
      %v6255 = vrot.slane %v1993, 2
      %v6256 = vsel %vm960, %v6253, %v6255
      %6257 = vrot.lane.b32.xlu0 %v6186, 44
      %v6258 = vpop.permute.xlu0 %6257
      %6259 = vrot.lane.b32.xlu0 %v6188, 44
      %v6260 = vpop.permute.xlu0 %6259
      %6261 = vrot.lane.b32.xlu0 %v6190, 44
      %v6262 = vpop.permute.xlu0 %6261
      %6263 = vrot.lane.b32.xlu0 %v6192, 44
      %v6264 = vpop.permute.xlu0 %6263
      %6265 = vrot.lane.b32.xlu0 %v6194, 44
      %v6266 = vpop.permute.xlu0 %6265
      %6267 = vrot.lane.b32.xlu0 %v6196, 44
      %v6268 = vpop.permute.xlu0 %6267
      %6269 = vrot.lane.b32.xlu0 %v6198, 44
      %v6270 = vpop.permute.xlu0 %6269
      %6271 = vrot.lane.b32.xlu0 %v6200, 44
      %v6272 = vpop.permute.xlu0 %6271
      %6273 = vrot.lane.b32.xlu0 %v6202, 44
      %v6274 = vpop.permute.xlu0 %6273
      %6275 = vrot.lane.b32.xlu0 %v6204, 44
      %v6276 = vpop.permute.xlu0 %6275
      %6277 = vrot.lane.b32.xlu0 %v6206, 44
      %v6278 = vpop.permute.xlu0 %6277
      %6279 = vrot.lane.b32.xlu0 %v6208, 44
      %v6280 = vpop.permute.xlu0 %6279
      %6281 = vrot.lane.b32.xlu0 %v6210, 44
      %v6282 = vpop.permute.xlu0 %6281
      %6283 = vrot.lane.b32.xlu0 %v6212, 44
      %v6284 = vpop.permute.xlu0 %6283
      %6285 = vrot.lane.b32.xlu0 %v6214, 44
      %v6286 = vpop.permute.xlu0 %6285
      %6287 = vrot.lane.b32.xlu0 %v6216, 44
      %v6288 = vpop.permute.xlu0 %6287
      %6289 = vrot.lane.b32.xlu0 %v6218, 44
      %v6290 = vpop.permute.xlu0 %6289
      %6291 = vrot.lane.b32.xlu0 %v6220, 44
      %v6292 = vpop.permute.xlu0 %6291
      %6293 = vrot.lane.b32.xlu0 %v6222, 44
      %v6294 = vpop.permute.xlu0 %6293
      %6295 = vrot.lane.b32.xlu0 %v6224, 44
      %v6296 = vpop.permute.xlu0 %6295
      %6297 = vrot.lane.b32.xlu0 %v6226, 44
      %v6298 = vpop.permute.xlu0 %6297
      %6299 = vrot.lane.b32.xlu0 %v6228, 44
      %v6300 = vpop.permute.xlu0 %6299
      %6301 = vrot.lane.b32.xlu0 %v6230, 44
      %v6302 = vpop.permute.xlu0 %6301
      %6303 = vrot.lane.b32.xlu0 %v6232, 44
      %v6304 = vpop.permute.xlu0 %6303
      %6305 = vrot.lane.b32.xlu0 %v6234, 44
      %v6306 = vpop.permute.xlu0 %6305
      %6307 = vrot.lane.b32.xlu0 %v6236, 44
      %v6308 = vpop.permute.xlu0 %6307
      %6309 = vrot.lane.b32.xlu0 %v6238, 44
      %v6310 = vpop.permute.xlu0 %6309
      %6311 = vrot.lane.b32.xlu0 %v6240, 44
      %v6312 = vpop.permute.xlu0 %6311
      %6313 = vrot.lane.b32.xlu0 %v6242, 44
      %v6314 = vpop.permute.xlu0 %6313
      %6315 = vrot.lane.b32.xlu0 %v6244, 44
      %v6316 = vpop.permute.xlu0 %6315
      %6317 = vrot.lane.b32.xlu0 %v6246, 44
      %v6318 = vpop.permute.xlu0 %6317
      %6319 = vrot.lane.b32.xlu0 %v6248, 44
      %v6320 = vpop.permute.xlu0 %6319
      %6321 = vrot.lane.b32.xlu0 %v6250, 44
      %v6322 = vpop.permute.xlu0 %6321
      %6323 = vrot.lane.b32.xlu0 %v6252, 44
      %v6324 = vpop.permute.xlu0 %6323
      %6325 = vrot.lane.b32.xlu0 %v6254, 44
      %v6326 = vpop.permute.xlu0 %6325
      %6327 = vrot.lane.b32.xlu0 %v6256, 44
      %v6328 = vpop.permute.xlu0 %6327
      %v6402 = vrot.slane %v2253, 2
      %v6403 = vrot.slane %v2254, 2
      %v6404 = vsel %vm960, %v6402, %v6403
      %v6405 = vrot.slane %v2255, 2
      %v6406 = vsel %vm960, %v6403, %v6405
      %v6407 = vrot.slane %v2256, 2
      %v6408 = vsel %vm960, %v6405, %v6407
      %v6409 = vrot.slane %v2257, 2
      %v6410 = vsel %vm960, %v6407, %v6409
      %v6411 = vrot.slane %v2258, 2
      %v6412 = vsel %vm960, %v6409, %v6411
      %v6413 = vrot.slane %v2259, 2
      %v6414 = vsel %vm960, %v6411, %v6413
      %v6415 = vrot.slane %v2260, 2
      %v6416 = vsel %vm960, %v6413, %v6415
      %v6417 = vrot.slane %v2261, 2
      %v6418 = vsel %vm960, %v6415, %v6417
      %v6419 = vrot.slane %v2262, 2
      %v6420 = vsel %vm960, %v6417, %v6419
      %v6421 = vrot.slane %v2263, 2
      %v6422 = vsel %vm960, %v6419, %v6421
      %v6423 = vrot.slane %v2264, 2
      %v6424 = vsel %vm960, %v6421, %v6423
      %v6425 = vrot.slane %v2265, 2
      %v6426 = vsel %vm960, %v6423, %v6425
      %v6427 = vrot.slane %v2266, 2
      %v6428 = vsel %vm960, %v6425, %v6427
      %v6429 = vrot.slane %v2267, 2
      %v6430 = vsel %vm960, %v6427, %v6429
      %v6431 = vrot.slane %v2268, 2
      %v6432 = vsel %vm960, %v6429, %v6431
      %v6433 = vrot.slane %v2269, 2
      %v6434 = vsel %vm960, %v6431, %v6433
      %v6435 = vrot.slane %v2270, 2
      %v6436 = vsel %vm960, %v6433, %v6435
      %v6437 = vrot.slane %v2271, 2
      %v6438 = vsel %vm960, %v6435, %v6437
      %v6439 = vrot.slane %v2272, 2
      %v6440 = vsel %vm960, %v6437, %v6439
      %v6441 = vrot.slane %v2273, 2
      %v6442 = vsel %vm960, %v6439, %v6441
      %v6443 = vrot.slane %v2274, 2
      %v6444 = vsel %vm960, %v6441, %v6443
      %v6445 = vrot.slane %v2275, 2
      %v6446 = vsel %vm960, %v6443, %v6445
      %v6447 = vrot.slane %v2276, 2
      %v6448 = vsel %vm960, %v6445, %v6447
      %v6449 = vrot.slane %v2277, 2
      %v6450 = vsel %vm960, %v6447, %v6449
      %v6451 = vrot.slane %v2278, 2
      %v6452 = vsel %vm960, %v6449, %v6451
      %v6453 = vrot.slane %v2279, 2
      %v6454 = vsel %vm960, %v6451, %v6453
      %v6455 = vrot.slane %v2280, 2
      %v6456 = vsel %vm960, %v6453, %v6455
      %v6457 = vrot.slane %v2281, 2
      %v6458 = vsel %vm960, %v6455, %v6457
      %v6459 = vrot.slane %v2282, 2
      %v6460 = vsel %vm960, %v6457, %v6459
      %v6461 = vrot.slane %v2283, 2
      %v6462 = vsel %vm960, %v6459, %v6461
      %v6463 = vrot.slane %v2284, 2
      %v6464 = vsel %vm960, %v6461, %v6463
      %v6465 = vrot.slane %v2285, 2
      %v6466 = vsel %vm960, %v6463, %v6465
      %v6467 = vrot.slane %v2286, 2
      %v6468 = vsel %vm960, %v6465, %v6467
      %v6469 = vrot.slane %v2287, 2
      %v6470 = vsel %vm960, %v6467, %v6469
      %v6471 = vrot.slane %v2288, 2
      %v6472 = vsel %vm960, %v6469, %v6471
      %v6473 = vrot.slane %v2289, 2
      %v6474 = vsel %vm960, %v6471, %v6473
      %6475 = vrot.lane.b32.xlu0 %v6404, 48
      %v6476 = vpop.permute.xlu0 %6475
      %6477 = vrot.lane.b32.xlu0 %v6406, 48
      %v6478 = vpop.permute.xlu0 %6477
      %6479 = vrot.lane.b32.xlu0 %v6408, 48
      %v6480 = vpop.permute.xlu0 %6479
      %6481 = vrot.lane.b32.xlu0 %v6410, 48
      %v6482 = vpop.permute.xlu0 %6481
      %6483 = vrot.lane.b32.xlu0 %v6412, 48
      %v6484 = vpop.permute.xlu0 %6483
      %6485 = vrot.lane.b32.xlu0 %v6414, 48
      %v6486 = vpop.permute.xlu0 %6485
      %6487 = vrot.lane.b32.xlu0 %v6416, 48
      %v6488 = vpop.permute.xlu0 %6487
      %6489 = vrot.lane.b32.xlu0 %v6418, 48
      %v6490 = vpop.permute.xlu0 %6489
      %6491 = vrot.lane.b32.xlu0 %v6420, 48
      %v6492 = vpop.permute.xlu0 %6491
      %6493 = vrot.lane.b32.xlu0 %v6422, 48
      %v6494 = vpop.permute.xlu0 %6493
      %6495 = vrot.lane.b32.xlu0 %v6424, 48
      %v6496 = vpop.permute.xlu0 %6495
      %6497 = vrot.lane.b32.xlu0 %v6426, 48
      %v6498 = vpop.permute.xlu0 %6497
      %6499 = vrot.lane.b32.xlu0 %v6428, 48
      %v6500 = vpop.permute.xlu0 %6499
      %6501 = vrot.lane.b32.xlu0 %v6430, 48
      %v6502 = vpop.permute.xlu0 %6501
      %6503 = vrot.lane.b32.xlu0 %v6432, 48
      %v6504 = vpop.permute.xlu0 %6503
      %6505 = vrot.lane.b32.xlu0 %v6434, 48
      %v6506 = vpop.permute.xlu0 %6505
      %6507 = vrot.lane.b32.xlu0 %v6436, 48
      %v6508 = vpop.permute.xlu0 %6507
      %6509 = vrot.lane.b32.xlu0 %v6438, 48
      %v6510 = vpop.permute.xlu0 %6509
      %6511 = vrot.lane.b32.xlu0 %v6440, 48
      %v6512 = vpop.permute.xlu0 %6511
      %6513 = vrot.lane.b32.xlu0 %v6442, 48
      %v6514 = vpop.permute.xlu0 %6513
      %6515 = vrot.lane.b32.xlu0 %v6444, 48
      %v6516 = vpop.permute.xlu0 %6515
      %6517 = vrot.lane.b32.xlu0 %v6446, 48
      %v6518 = vpop.permute.xlu0 %6517
      %6519 = vrot.lane.b32.xlu0 %v6448, 48
      %v6520 = vpop.permute.xlu0 %6519
      %6521 = vrot.lane.b32.xlu0 %v6450, 48
      %v6522 = vpop.permute.xlu0 %6521
      %6523 = vrot.lane.b32.xlu0 %v6452, 48
      %v6524 = vpop.permute.xlu0 %6523
      %6525 = vrot.lane.b32.xlu0 %v6454, 48
      %v6526 = vpop.permute.xlu0 %6525
      %6527 = vrot.lane.b32.xlu0 %v6456, 48
      %v6528 = vpop.permute.xlu0 %6527
      %6529 = vrot.lane.b32.xlu0 %v6458, 48
      %v6530 = vpop.permute.xlu0 %6529
      %6531 = vrot.lane.b32.xlu0 %v6460, 48
      %v6532 = vpop.permute.xlu0 %6531
      %6533 = vrot.lane.b32.xlu0 %v6462, 48
      %v6534 = vpop.permute.xlu0 %6533
      %6535 = vrot.lane.b32.xlu0 %v6464, 48
      %v6536 = vpop.permute.xlu0 %6535
      %6537 = vrot.lane.b32.xlu0 %v6466, 48
      %v6538 = vpop.permute.xlu0 %6537
      %6539 = vrot.lane.b32.xlu0 %v6468, 48
      %v6540 = vpop.permute.xlu0 %6539
      %6541 = vrot.lane.b32.xlu0 %v6470, 48
      %v6542 = vpop.permute.xlu0 %6541
      %6543 = vrot.lane.b32.xlu0 %v6472, 48
      %v6544 = vpop.permute.xlu0 %6543
      %6545 = vrot.lane.b32.xlu0 %v6474, 48
      %v6546 = vpop.permute.xlu0 %6545
      %v6620 = vrot.slane %v2549, 3
      %v6621 = vrot.slane %v2550, 3
      %v6622 = vsel %vm416, %v6620, %v6621
      %v6623 = vrot.slane %v2551, 3
      %v6624 = vsel %vm416, %v6621, %v6623
      %v6625 = vrot.slane %v2552, 3
      %v6626 = vsel %vm416, %v6623, %v6625
      %v6627 = vrot.slane %v2553, 3
      %v6628 = vsel %vm416, %v6625, %v6627
      %v6629 = vrot.slane %v2554, 3
      %v6630 = vsel %vm416, %v6627, %v6629
      %v6631 = vrot.slane %v2555, 3
      %v6632 = vsel %vm416, %v6629, %v6631
      %v6633 = vrot.slane %v2556, 3
      %v6634 = vsel %vm416, %v6631, %v6633
      %v6635 = vrot.slane %v2557, 3
      %v6636 = vsel %vm416, %v6633, %v6635
      %v6637 = vrot.slane %v2558, 3
      %v6638 = vsel %vm416, %v6635, %v6637
      %v6639 = vrot.slane %v2559, 3
      %v6640 = vsel %vm416, %v6637, %v6639
      %v6641 = vrot.slane %v2560, 3
      %v6642 = vsel %vm416, %v6639, %v6641
      %v6643 = vrot.slane %v2561, 3
      %v6644 = vsel %vm416, %v6641, %v6643
      %v6645 = vrot.slane %v2562, 3
      %v6646 = vsel %vm416, %v6643, %v6645
      %v6647 = vrot.slane %v2563, 3
      %v6648 = vsel %vm416, %v6645, %v6647
      %v6649 = vrot.slane %v2564, 3
      %v6650 = vsel %vm416, %v6647, %v6649
      %v6651 = vrot.slane %v2565, 3
      %v6652 = vsel %vm416, %v6649, %v6651
      %v6653 = vrot.slane %v2566, 3
      %v6654 = vsel %vm416, %v6651, %v6653
      %v6655 = vrot.slane %v2567, 3
      %v6656 = vsel %vm416, %v6653, %v6655
      %v6657 = vrot.slane %v2568, 3
      %v6658 = vsel %vm416, %v6655, %v6657
      %v6659 = vrot.slane %v2569, 3
      %v6660 = vsel %vm416, %v6657, %v6659
      %v6661 = vrot.slane %v2570, 3
      %v6662 = vsel %vm416, %v6659, %v6661
      %v6663 = vrot.slane %v2571, 3
      %v6664 = vsel %vm416, %v6661, %v6663
      %v6665 = vrot.slane %v2572, 3
      %v6666 = vsel %vm416, %v6663, %v6665
      %v6667 = vrot.slane %v2573, 3
      %v6668 = vsel %vm416, %v6665, %v6667
      %v6669 = vrot.slane %v2574, 3
      %v6670 = vsel %vm416, %v6667, %v6669
      %v6671 = vrot.slane %v2575, 3
      %v6672 = vsel %vm416, %v6669, %v6671
      %v6673 = vrot.slane %v2576, 3
      %v6674 = vsel %vm416, %v6671, %v6673
      %v6675 = vrot.slane %v2577, 3
      %v6676 = vsel %vm416, %v6673, %v6675
      %v6677 = vrot.slane %v2578, 3
      %v6678 = vsel %vm416, %v6675, %v6677
      %v6679 = vrot.slane %v2579, 3
      %v6680 = vsel %vm416, %v6677, %v6679
      %v6681 = vrot.slane %v2580, 3
      %v6682 = vsel %vm416, %v6679, %v6681
      %v6683 = vrot.slane %v2581, 3
      %v6684 = vsel %vm416, %v6681, %v6683
      %v6685 = vrot.slane %v2582, 3
      %v6686 = vsel %vm416, %v6683, %v6685
      %v6687 = vrot.slane %v2583, 3
      %v6688 = vsel %vm416, %v6685, %v6687
      %v6689 = vrot.slane %v2584, 3
      %v6690 = vsel %vm416, %v6687, %v6689
      %v6691 = vrot.slane %v2585, 3
      %v6692 = vsel %vm416, %v6689, %v6691
      %6693 = vrot.lane.b32.xlu0 %v6622, 52
      %v6694 = vpop.permute.xlu0 %6693
      %6695 = vrot.lane.b32.xlu0 %v6624, 52
      %v6696 = vpop.permute.xlu0 %6695
      %6697 = vrot.lane.b32.xlu0 %v6626, 52
      %v6698 = vpop.permute.xlu0 %6697
      %6699 = vrot.lane.b32.xlu0 %v6628, 52
      %v6700 = vpop.permute.xlu0 %6699
      %6701 = vrot.lane.b32.xlu0 %v6630, 52
      %v6702 = vpop.permute.xlu0 %6701
      %6703 = vrot.lane.b32.xlu0 %v6632, 52
      %v6704 = vpop.permute.xlu0 %6703
      %6705 = vrot.lane.b32.xlu0 %v6634, 52
      %v6706 = vpop.permute.xlu0 %6705
      %6707 = vrot.lane.b32.xlu0 %v6636, 52
      %v6708 = vpop.permute.xlu0 %6707
      %6709 = vrot.lane.b32.xlu0 %v6638, 52
      %v6710 = vpop.permute.xlu0 %6709
      %6711 = vrot.lane.b32.xlu0 %v6640, 52
      %v6712 = vpop.permute.xlu0 %6711
      %6713 = vrot.lane.b32.xlu0 %v6642, 52
      %v6714 = vpop.permute.xlu0 %6713
      %6715 = vrot.lane.b32.xlu0 %v6644, 52
      %v6716 = vpop.permute.xlu0 %6715
      %6717 = vrot.lane.b32.xlu0 %v6646, 52
      %v6718 = vpop.permute.xlu0 %6717
      %6719 = vrot.lane.b32.xlu0 %v6648, 52
      %v6720 = vpop.permute.xlu0 %6719
      %6721 = vrot.lane.b32.xlu0 %v6650, 52
      %v6722 = vpop.permute.xlu0 %6721
      %6723 = vrot.lane.b32.xlu0 %v6652, 52
      %v6724 = vpop.permute.xlu0 %6723
      %6725 = vrot.lane.b32.xlu0 %v6654, 52
      %v6726 = vpop.permute.xlu0 %6725
      %6727 = vrot.lane.b32.xlu0 %v6656, 52
      %v6728 = vpop.permute.xlu0 %6727
      %6729 = vrot.lane.b32.xlu0 %v6658, 52
      %v6730 = vpop.permute.xlu0 %6729
      %6731 = vrot.lane.b32.xlu0 %v6660, 52
      %v6732 = vpop.permute.xlu0 %6731
      %6733 = vrot.lane.b32.xlu0 %v6662, 52
      %v6734 = vpop.permute.xlu0 %6733
      %6735 = vrot.lane.b32.xlu0 %v6664, 52
      %v6736 = vpop.permute.xlu0 %6735
      %6737 = vrot.lane.b32.xlu0 %v6666, 52
      %v6738 = vpop.permute.xlu0 %6737
      %6739 = vrot.lane.b32.xlu0 %v6668, 52
      %v6740 = vpop.permute.xlu0 %6739
      %6741 = vrot.lane.b32.xlu0 %v6670, 52
      %v6742 = vpop.permute.xlu0 %6741
      %6743 = vrot.lane.b32.xlu0 %v6672, 52
      %v6744 = vpop.permute.xlu0 %6743
      %6745 = vrot.lane.b32.xlu0 %v6674, 52
      %v6746 = vpop.permute.xlu0 %6745
      %6747 = vrot.lane.b32.xlu0 %v6676, 52
      %v6748 = vpop.permute.xlu0 %6747
      %6749 = vrot.lane.b32.xlu0 %v6678, 52
      %v6750 = vpop.permute.xlu0 %6749
      %6751 = vrot.lane.b32.xlu0 %v6680, 52
      %v6752 = vpop.permute.xlu0 %6751
      %6753 = vrot.lane.b32.xlu0 %v6682, 52
      %v6754 = vpop.permute.xlu0 %6753
      %6755 = vrot.lane.b32.xlu0 %v6684, 52
      %v6756 = vpop.permute.xlu0 %6755
      %6757 = vrot.lane.b32.xlu0 %v6686, 52
      %v6758 = vpop.permute.xlu0 %6757
      %6759 = vrot.lane.b32.xlu0 %v6688, 52
      %v6760 = vpop.permute.xlu0 %6759
      %6761 = vrot.lane.b32.xlu0 %v6690, 52
      %v6762 = vpop.permute.xlu0 %6761
      %6763 = vrot.lane.b32.xlu0 %v6692, 52
      %v6764 = vpop.permute.xlu0 %6763
      %v6838 = vrot.slane %v3066, 4
      %v6839 = vrot.slane %v3067, 4
      %v6840 = vsel %vm5127, %v6838, %v6839
      %v6841 = vrot.slane %v3068, 4
      %v6842 = vsel %vm5127, %v6839, %v6841
      %v6843 = vrot.slane %v3069, 4
      %v6844 = vsel %vm5127, %v6841, %v6843
      %v6845 = vrot.slane %v3070, 4
      %v6846 = vsel %vm5127, %v6843, %v6845
      %v6847 = vrot.slane %v3071, 4
      %v6848 = vsel %vm5127, %v6845, %v6847
      %v6849 = vrot.slane %v3072, 4
      %v6850 = vsel %vm5127, %v6847, %v6849
      %v6851 = vrot.slane %v3073, 4
      %v6852 = vsel %vm5127, %v6849, %v6851
      %v6853 = vrot.slane %v3074, 4
      %v6854 = vsel %vm5127, %v6851, %v6853
      %v6855 = vrot.slane %v3075, 4
      %v6856 = vsel %vm5127, %v6853, %v6855
      %v6857 = vrot.slane %v3076, 4
      %v6858 = vsel %vm5127, %v6855, %v6857
      %v6859 = vrot.slane %v3077, 4
      %v6860 = vsel %vm5127, %v6857, %v6859
      %v6861 = vrot.slane %v3078, 4
      %v6862 = vsel %vm5127, %v6859, %v6861
      %v6863 = vrot.slane %v3079, 4
      %v6864 = vsel %vm5127, %v6861, %v6863
      %v6865 = vrot.slane %v3080, 4
      %v6866 = vsel %vm5127, %v6863, %v6865
      %v6867 = vrot.slane %v3081, 4
      %v6868 = vsel %vm5127, %v6865, %v6867
      %v6869 = vrot.slane %v3082, 4
      %v6870 = vsel %vm5127, %v6867, %v6869
      %v6871 = vrot.slane %v3083, 4
      %v6872 = vsel %vm5127, %v6869, %v6871
      %v6873 = vrot.slane %v3084, 4
      %v6874 = vsel %vm5127, %v6871, %v6873
      %v6875 = vrot.slane %v3085, 4
      %v6876 = vsel %vm5127, %v6873, %v6875
      %v6877 = vrot.slane %v3086, 4
      %v6878 = vsel %vm5127, %v6875, %v6877
      %v6879 = vrot.slane %v3087, 4
      %v6880 = vsel %vm5127, %v6877, %v6879
      %v6881 = vrot.slane %v3088, 4
      %v6882 = vsel %vm5127, %v6879, %v6881
      %v6883 = vrot.slane %v3089, 4
      %v6884 = vsel %vm5127, %v6881, %v6883
      %v6885 = vrot.slane %v3090, 4
      %v6886 = vsel %vm5127, %v6883, %v6885
      %v6887 = vrot.slane %v3091, 4
      %v6888 = vsel %vm5127, %v6885, %v6887
      %v6889 = vrot.slane %v3092, 4
      %v6890 = vsel %vm5127, %v6887, %v6889
      %v6891 = vrot.slane %v3093, 4
      %v6892 = vsel %vm5127, %v6889, %v6891
      %v6893 = vrot.slane %v3094, 4
      %v6894 = vsel %vm5127, %v6891, %v6893
      %v6895 = vrot.slane %v3095, 4
      %v6896 = vsel %vm5127, %v6893, %v6895
      %v6897 = vrot.slane %v3096, 4
      %v6898 = vsel %vm5127, %v6895, %v6897
      %v6899 = vrot.slane %v3097, 4
      %v6900 = vsel %vm5127, %v6897, %v6899
      %v6901 = vrot.slane %v3098, 4
      %v6902 = vsel %vm5127, %v6899, %v6901
      %v6903 = vrot.slane %v3099, 4
      %v6904 = vsel %vm5127, %v6901, %v6903
      %v6905 = vrot.slane %v3100, 4
      %v6906 = vsel %vm5127, %v6903, %v6905
      %v6907 = vrot.slane %v3101, 4
      %v6908 = vsel %vm5127, %v6905, %v6907
      %v6909 = vrot.slane %v3102, 4
      %v6910 = vsel %vm5127, %v6907, %v6909
      %6911 = vrot.lane.b32.xlu0 %v6840, 56
      %v6912 = vpop.permute.xlu0 %6911
      %6913 = vrot.lane.b32.xlu0 %v6842, 56
      %v6914 = vpop.permute.xlu0 %6913
      %6915 = vrot.lane.b32.xlu0 %v6844, 56
      %v6916 = vpop.permute.xlu0 %6915
      %6917 = vrot.lane.b32.xlu0 %v6846, 56
      %v6918 = vpop.permute.xlu0 %6917
      %6919 = vrot.lane.b32.xlu0 %v6848, 56
      %v6920 = vpop.permute.xlu0 %6919
      %6921 = vrot.lane.b32.xlu0 %v6850, 56
      %v6922 = vpop.permute.xlu0 %6921
      %6923 = vrot.lane.b32.xlu0 %v6852, 56
      %v6924 = vpop.permute.xlu0 %6923
      %6925 = vrot.lane.b32.xlu0 %v6854, 56
      %v6926 = vpop.permute.xlu0 %6925
      %6927 = vrot.lane.b32.xlu0 %v6856, 56
      %v6928 = vpop.permute.xlu0 %6927
      %6929 = vrot.lane.b32.xlu0 %v6858, 56
      %v6930 = vpop.permute.xlu0 %6929
      %6931 = vrot.lane.b32.xlu0 %v6860, 56
      %v6932 = vpop.permute.xlu0 %6931
      %6933 = vrot.lane.b32.xlu0 %v6862, 56
      %v6934 = vpop.permute.xlu0 %6933
      %6935 = vrot.lane.b32.xlu0 %v6864, 56
      %v6936 = vpop.permute.xlu0 %6935
      %6937 = vrot.lane.b32.xlu0 %v6866, 56
      %v6938 = vpop.permute.xlu0 %6937
      %6939 = vrot.lane.b32.xlu0 %v6868, 56
      %v6940 = vpop.permute.xlu0 %6939
      %6941 = vrot.lane.b32.xlu0 %v6870, 56
      %v6942 = vpop.permute.xlu0 %6941
      %6943 = vrot.lane.b32.xlu0 %v6872, 56
      %v6944 = vpop.permute.xlu0 %6943
      %6945 = vrot.lane.b32.xlu0 %v6874, 56
      %v6946 = vpop.permute.xlu0 %6945
      %6947 = vrot.lane.b32.xlu0 %v6876, 56
      %v6948 = vpop.permute.xlu0 %6947
      %6949 = vrot.lane.b32.xlu0 %v6878, 56
      %v6950 = vpop.permute.xlu0 %6949
      %6951 = vrot.lane.b32.xlu0 %v6880, 56
      %v6952 = vpop.permute.xlu0 %6951
      %6953 = vrot.lane.b32.xlu0 %v6882, 56
      %v6954 = vpop.permute.xlu0 %6953
      %6955 = vrot.lane.b32.xlu0 %v6884, 56
      %v6956 = vpop.permute.xlu0 %6955
      %6957 = vrot.lane.b32.xlu0 %v6886, 56
      %v6958 = vpop.permute.xlu0 %6957
      %6959 = vrot.lane.b32.xlu0 %v6888, 56
      %v6960 = vpop.permute.xlu0 %6959
      %6961 = vrot.lane.b32.xlu0 %v6890, 56
      %v6962 = vpop.permute.xlu0 %6961
      %6963 = vrot.lane.b32.xlu0 %v6892, 56
      %v6964 = vpop.permute.xlu0 %6963
      %6965 = vrot.lane.b32.xlu0 %v6894, 56
      %v6966 = vpop.permute.xlu0 %6965
      %6967 = vrot.lane.b32.xlu0 %v6896, 56
      %v6968 = vpop.permute.xlu0 %6967
      %6969 = vrot.lane.b32.xlu0 %v6898, 56
      %v6970 = vpop.permute.xlu0 %6969
      %6971 = vrot.lane.b32.xlu0 %v6900, 56
      %v6972 = vpop.permute.xlu0 %6971
      %6973 = vrot.lane.b32.xlu0 %v6902, 56
      %v6974 = vpop.permute.xlu0 %6973
      %6975 = vrot.lane.b32.xlu0 %v6904, 56
      %v6976 = vpop.permute.xlu0 %6975
      %6977 = vrot.lane.b32.xlu0 %v6906, 56
      %v6978 = vpop.permute.xlu0 %6977
      %6979 = vrot.lane.b32.xlu0 %v6908, 56
      %v6980 = vpop.permute.xlu0 %6979
      %6981 = vrot.lane.b32.xlu0 %v6910, 56
      %v6982 = vpop.permute.xlu0 %6981
      %v7056 = vrot.slane %v3362, 4
      %v7057 = vrot.slane %v3363, 4
      %v7058 = vsel %vm5127, %v7056, %v7057
      %v7059 = vrot.slane %v3364, 4
      %v7060 = vsel %vm5127, %v7057, %v7059
      %v7061 = vrot.slane %v3365, 4
      %v7062 = vsel %vm5127, %v7059, %v7061
      %v7063 = vrot.slane %v3366, 4
      %v7064 = vsel %vm5127, %v7061, %v7063
      %v7065 = vrot.slane %v3367, 4
      %v7066 = vsel %vm5127, %v7063, %v7065
      %v7067 = vrot.slane %v3368, 4
      %v7068 = vsel %vm5127, %v7065, %v7067
      %v7069 = vrot.slane %v3369, 4
      %v7070 = vsel %vm5127, %v7067, %v7069
      %v7071 = vrot.slane %v3370, 4
      %v7072 = vsel %vm5127, %v7069, %v7071
      %v7073 = vrot.slane %v3371, 4
      %v7074 = vsel %vm5127, %v7071, %v7073
      %v7075 = vrot.slane %v3372, 4
      %v7076 = vsel %vm5127, %v7073, %v7075
      %v7077 = vrot.slane %v3373, 4
      %v7078 = vsel %vm5127, %v7075, %v7077
      %v7079 = vrot.slane %v3374, 4
      %v7080 = vsel %vm5127, %v7077, %v7079
      %v7081 = vrot.slane %v3375, 4
      %v7082 = vsel %vm5127, %v7079, %v7081
      %v7083 = vrot.slane %v3376, 4
      %v7084 = vsel %vm5127, %v7081, %v7083
      %v7085 = vrot.slane %v3377, 4
      %v7086 = vsel %vm5127, %v7083, %v7085
      %v7087 = vrot.slane %v3378, 4
      %v7088 = vsel %vm5127, %v7085, %v7087
      %v7089 = vrot.slane %v3379, 4
      %v7090 = vsel %vm5127, %v7087, %v7089
      %v7091 = vrot.slane %v3380, 4
      %v7092 = vsel %vm5127, %v7089, %v7091
      %v7093 = vrot.slane %v3381, 4
      %v7094 = vsel %vm5127, %v7091, %v7093
      %v7095 = vrot.slane %v3382, 4
      %v7096 = vsel %vm5127, %v7093, %v7095
      %v7097 = vrot.slane %v3383, 4
      %v7098 = vsel %vm5127, %v7095, %v7097
      %v7099 = vrot.slane %v3384, 4
      %v7100 = vsel %vm5127, %v7097, %v7099
      %v7101 = vrot.slane %v3385, 4
      %v7102 = vsel %vm5127, %v7099, %v7101
      %v7103 = vrot.slane %v3386, 4
      %v7104 = vsel %vm5127, %v7101, %v7103
      %v7105 = vrot.slane %v3387, 4
      %v7106 = vsel %vm5127, %v7103, %v7105
      %v7107 = vrot.slane %v3388, 4
      %v7108 = vsel %vm5127, %v7105, %v7107
      %v7109 = vrot.slane %v3389, 4
      %v7110 = vsel %vm5127, %v7107, %v7109
      %v7111 = vrot.slane %v3390, 4
      %v7112 = vsel %vm5127, %v7109, %v7111
      %v7113 = vrot.slane %v3391, 4
      %v7114 = vsel %vm5127, %v7111, %v7113
      %v7115 = vrot.slane %v3392, 4
      %v7116 = vsel %vm5127, %v7113, %v7115
      %v7117 = vrot.slane %v3393, 4
      %v7118 = vsel %vm5127, %v7115, %v7117
      %v7119 = vrot.slane %v3394, 4
      %v7120 = vsel %vm5127, %v7117, %v7119
      %v7121 = vrot.slane %v3395, 4
      %v7122 = vsel %vm5127, %v7119, %v7121
      %v7123 = vrot.slane %v3396, 4
      %v7124 = vsel %vm5127, %v7121, %v7123
      %v7125 = vrot.slane %v3397, 4
      %v7126 = vsel %vm5127, %v7123, %v7125
      %v7127 = vrot.slane %v3398, 4
      %v7128 = vsel %vm5127, %v7125, %v7127
      %7129 = vrot.lane.b32.xlu0 %v7058, 60
      %v7130 = vpop.permute.xlu0 %7129
      %7131 = vrot.lane.b32.xlu0 %v7060, 60
      %v7132 = vpop.permute.xlu0 %7131
      %7133 = vrot.lane.b32.xlu0 %v7062, 60
      %v7134 = vpop.permute.xlu0 %7133
      %7135 = vrot.lane.b32.xlu0 %v7064, 60
      %v7136 = vpop.permute.xlu0 %7135
      %7137 = vrot.lane.b32.xlu0 %v7066, 60
      %v7138 = vpop.permute.xlu0 %7137
      %7139 = vrot.lane.b32.xlu0 %v7068, 60
      %v7140 = vpop.permute.xlu0 %7139
      %7141 = vrot.lane.b32.xlu0 %v7070, 60
      %v7142 = vpop.permute.xlu0 %7141
      %7143 = vrot.lane.b32.xlu0 %v7072, 60
      %v7144 = vpop.permute.xlu0 %7143
      %7145 = vrot.lane.b32.xlu0 %v7074, 60
      %v7146 = vpop.permute.xlu0 %7145
      %7147 = vrot.lane.b32.xlu0 %v7076, 60
      %v7148 = vpop.permute.xlu0 %7147
      %7149 = vrot.lane.b32.xlu0 %v7078, 60
      %v7150 = vpop.permute.xlu0 %7149
      %7151 = vrot.lane.b32.xlu0 %v7080, 60
      %v7152 = vpop.permute.xlu0 %7151
      %7153 = vrot.lane.b32.xlu0 %v7082, 60
      %v7154 = vpop.permute.xlu0 %7153
      %7155 = vrot.lane.b32.xlu0 %v7084, 60
      %v7156 = vpop.permute.xlu0 %7155
      %7157 = vrot.lane.b32.xlu0 %v7086, 60
      %v7158 = vpop.permute.xlu0 %7157
      %7159 = vrot.lane.b32.xlu0 %v7088, 60
      %v7160 = vpop.permute.xlu0 %7159
      %7161 = vrot.lane.b32.xlu0 %v7090, 60
      %v7162 = vpop.permute.xlu0 %7161
      %7163 = vrot.lane.b32.xlu0 %v7092, 60
      %v7164 = vpop.permute.xlu0 %7163
      %7165 = vrot.lane.b32.xlu0 %v7094, 60
      %v7166 = vpop.permute.xlu0 %7165
      %7167 = vrot.lane.b32.xlu0 %v7096, 60
      %v7168 = vpop.permute.xlu0 %7167
      %7169 = vrot.lane.b32.xlu0 %v7098, 60
      %v7170 = vpop.permute.xlu0 %7169
      %7171 = vrot.lane.b32.xlu0 %v7100, 60
      %v7172 = vpop.permute.xlu0 %7171
      %7173 = vrot.lane.b32.xlu0 %v7102, 60
      %v7174 = vpop.permute.xlu0 %7173
      %7175 = vrot.lane.b32.xlu0 %v7104, 60
      %v7176 = vpop.permute.xlu0 %7175
      %7177 = vrot.lane.b32.xlu0 %v7106, 60
      %v7178 = vpop.permute.xlu0 %7177
      %7179 = vrot.lane.b32.xlu0 %v7108, 60
      %v7180 = vpop.permute.xlu0 %7179
      %7181 = vrot.lane.b32.xlu0 %v7110, 60
      %v7182 = vpop.permute.xlu0 %7181
      %7183 = vrot.lane.b32.xlu0 %v7112, 60
      %v7184 = vpop.permute.xlu0 %7183
      %7185 = vrot.lane.b32.xlu0 %v7114, 60
      %v7186 = vpop.permute.xlu0 %7185
      %7187 = vrot.lane.b32.xlu0 %v7116, 60
      %v7188 = vpop.permute.xlu0 %7187
      %7189 = vrot.lane.b32.xlu0 %v7118, 60
      %v7190 = vpop.permute.xlu0 %7189
      %7191 = vrot.lane.b32.xlu0 %v7120, 60
      %v7192 = vpop.permute.xlu0 %7191
      %7193 = vrot.lane.b32.xlu0 %v7122, 60
      %v7194 = vpop.permute.xlu0 %7193
      %7195 = vrot.lane.b32.xlu0 %v7124, 60
      %v7196 = vpop.permute.xlu0 %7195
      %7197 = vrot.lane.b32.xlu0 %v7126, 60
      %v7198 = vpop.permute.xlu0 %7197
      %7199 = vrot.lane.b32.xlu0 %v7128, 60
      %v7200 = vpop.permute.xlu0 %7199
      %vm7237 = vcmask 31744
      %v7238 = vsel %vm7237, %v260, %v4544
      %v7239 = vsel %vm7237, %v261, %v4546
      %v7240 = vsel %vm7237, %v262, %v4548
      %v7241 = vsel %vm7237, %v263, %v4550
      %v7242 = vsel %vm7237, %v264, %v4552
      %v7243 = vsel %vm7237, %v265, %v4554
      %v7244 = vsel %vm7237, %v266, %v4556
      %v7245 = vsel %vm7237, %v267, %v4558
      %v7246 = vsel %vm7237, %v268, %v4560
      %v7247 = vsel %vm7237, %v269, %v4562
      %v7248 = vsel %vm7237, %v270, %v4564
      %v7249 = vsel %vm7237, %v271, %v4566
      %v7250 = vsel %vm7237, %v272, %v4568
      %v7251 = vsel %vm7237, %v273, %v4570
      %v7252 = vsel %vm7237, %v274, %v4572
      %v7253 = vsel %vm7237, %v275, %v4574
      %v7254 = vsel %vm7237, %v276, %v4576
      %v7255 = vsel %vm7237, %v277, %v4578
      %v7256 = vsel %vm7237, %v278, %v4580
      %v7257 = vsel %vm7237, %v279, %v4582
      %v7258 = vsel %vm7237, %v280, %v4584
      %v7259 = vsel %vm7237, %v281, %v4586
      %v7260 = vsel %vm7237, %v282, %v4588
      %v7261 = vsel %vm7237, %v283, %v4590
      %v7262 = vsel %vm7237, %v284, %v4592
      %v7263 = vsel %vm7237, %v285, %v4594
      %v7264 = vsel %vm7237, %v286, %v4596
      %v7265 = vsel %vm7237, %v287, %v4598
      %v7266 = vsel %vm7237, %v288, %v4600
      %v7267 = vsel %vm7237, %v289, %v4602
      %v7268 = vsel %vm7237, %v290, %v4604
      %v7269 = vsel %vm7237, %v291, %v4606
      %v7270 = vsel %vm7237, %v292, %v4608
      %v7271 = vsel %vm7237, %v293, %v4610
      %v7272 = vsel %vm7237, %v294, %v4612
      %v7273 = vsel %vm7237, %v295, %v4614
      %vm7274 = vcmask 64512
      %v7275 = vsel %vm7274, %v7238, %v4725
      %v7276 = vsel %vm7274, %v7239, %v4727
      %v7277 = vsel %vm7274, %v7240, %v4729
      %v7278 = vsel %vm7274, %v7241, %v4731
      %v7279 = vsel %vm7274, %v7242, %v4733
      %v7280 = vsel %vm7274, %v7243, %v4735
      %v7281 = vsel %vm7274, %v7244, %v4737
      %v7282 = vsel %vm7274, %v7245, %v4739
      %v7283 = vsel %vm7274, %v7246, %v4741
      %v7284 = vsel %vm7274, %v7247, %v4743
      %v7285 = vsel %vm7274, %v7248, %v4745
      %v7286 = vsel %vm7274, %v7249, %v4747
      %v7287 = vsel %vm7274, %v7250, %v4749
      %v7288 = vsel %vm7274, %v7251, %v4751
      %v7289 = vsel %vm7274, %v7252, %v4753
      %v7290 = vsel %vm7274, %v7253, %v4755
      %v7291 = vsel %vm7274, %v7254, %v4757
      %v7292 = vsel %vm7274, %v7255, %v4759
      %v7293 = vsel %vm7274, %v7256, %v4761
      %v7294 = vsel %vm7274, %v7257, %v4763
      %v7295 = vsel %vm7274, %v7258, %v4765
      %v7296 = vsel %vm7274, %v7259, %v4767
      %v7297 = vsel %vm7274, %v7260, %v4769
      %v7298 = vsel %vm7274, %v7261, %v4771
      %v7299 = vsel %vm7274, %v7262, %v4773
      %v7300 = vsel %vm7274, %v7263, %v4775
      %v7301 = vsel %vm7274, %v7264, %v4777
      %v7302 = vsel %vm7274, %v7265, %v4779
      %v7303 = vsel %vm7274, %v7266, %v4781
      %v7304 = vsel %vm7274, %v7267, %v4783
      %v7305 = vsel %vm7274, %v7268, %v4785
      %v7306 = vsel %vm7274, %v7269, %v4787
      %v7307 = vsel %vm7274, %v7270, %v4789
      %v7308 = vsel %vm7274, %v7271, %v4791
      %v7309 = vsel %vm7274, %v7272, %v4793
      %v7310 = vsel %vm7274, %v7273, %v4795
      %vm7311 = vcmask 97280
      %v7312 = vsel %vm7311, %v7275, %v4839
      %v7313 = vsel %vm7311, %v7276, %v4841
      %v7314 = vsel %vm7311, %v7277, %v4843
      %v7315 = vsel %vm7311, %v7278, %v4845
      %v7316 = vsel %vm7311, %v7279, %v4847
      %v7317 = vsel %vm7311, %v7280, %v4849
      %v7318 = vsel %vm7311, %v7281, %v4851
      %v7319 = vsel %vm7311, %v7282, %v4853
      %v7320 = vsel %vm7311, %v7283, %v4855
      %v7321 = vsel %vm7311, %v7284, %v4857
      %v7322 = vsel %vm7311, %v7285, %v4859
      %v7323 = vsel %vm7311, %v7286, %v4861
      %v7324 = vsel %vm7311, %v7287, %v4863
      %v7325 = vsel %vm7311, %v7288, %v4865
      %v7326 = vsel %vm7311, %v7289, %v4867
      %v7327 = vsel %vm7311, %v7290, %v4869
      %v7328 = vsel %vm7311, %v7291, %v4871
      %v7329 = vsel %vm7311, %v7292, %v4873
      %v7330 = vsel %vm7311, %v7293, %v4875
      %v7331 = vsel %vm7311, %v7294, %v4877
      %v7332 = vsel %vm7311, %v7295, %v4879
      %v7333 = vsel %vm7311, %v7296, %v4881
      %v7334 = vsel %vm7311, %v7297, %v4883
      %v7335 = vsel %vm7311, %v7298, %v4885
      %v7336 = vsel %vm7311, %v7299, %v4887
      %v7337 = vsel %vm7311, %v7300, %v4889
      %v7338 = vsel %vm7311, %v7301, %v4891
      %v7339 = vsel %vm7311, %v7302, %v4893
      %v7340 = vsel %vm7311, %v7303, %v4895
      %v7341 = vsel %vm7311, %v7304, %v4897
      %v7342 = vsel %vm7311, %v7305, %v4899
      %v7343 = vsel %vm7311, %v7306, %v4901
      %v7344 = vsel %vm7311, %v7307, %v4903
      %v7345 = vsel %vm7311, %v7308, %v4905
      %v7346 = vsel %vm7311, %v7309, %v4907
      %v7347 = vsel %vm7311, %v7310, %v4909
      %vm7348 = vcmask 130048
      %v7349 = vsel %vm7348, %v7312, %v5020
      %v7350 = vsel %vm7348, %v7313, %v5022
      %v7351 = vsel %vm7348, %v7314, %v5024
      %v7352 = vsel %vm7348, %v7315, %v5026
      %v7353 = vsel %vm7348, %v7316, %v5028
      %v7354 = vsel %vm7348, %v7317, %v5030
      %v7355 = vsel %vm7348, %v7318, %v5032
      %v7356 = vsel %vm7348, %v7319, %v5034
      %v7357 = vsel %vm7348, %v7320, %v5036
      %v7358 = vsel %vm7348, %v7321, %v5038
      %v7359 = vsel %vm7348, %v7322, %v5040
      %v7360 = vsel %vm7348, %v7323, %v5042
      %v7361 = vsel %vm7348, %v7324, %v5044
      %v7362 = vsel %vm7348, %v7325, %v5046
      %v7363 = vsel %vm7348, %v7326, %v5048
      %v7364 = vsel %vm7348, %v7327, %v5050
      %v7365 = vsel %vm7348, %v7328, %v5052
      %v7366 = vsel %vm7348, %v7329, %v5054
      %v7367 = vsel %vm7348, %v7330, %v5056
      %v7368 = vsel %vm7348, %v7331, %v5058
      %v7369 = vsel %vm7348, %v7332, %v5060
      %v7370 = vsel %vm7348, %v7333, %v5062
      %v7371 = vsel %vm7348, %v7334, %v5064
      %v7372 = vsel %vm7348, %v7335, %v5066
      %v7373 = vsel %vm7348, %v7336, %v5068
      %v7374 = vsel %vm7348, %v7337, %v5070
      %v7375 = vsel %vm7348, %v7338, %v5072
      %v7376 = vsel %vm7348, %v7339, %v5074
      %v7377 = vsel %vm7348, %v7340, %v5076
      %v7378 = vsel %vm7348, %v7341, %v5078
      %v7379 = vsel %vm7348, %v7342, %v5080
      %v7380 = vsel %vm7348, %v7343, %v5082
      %v7381 = vsel %vm7348, %v7344, %v5084
      %v7382 = vsel %vm7348, %v7345, %v5086
      %v7383 = vsel %vm7348, %v7346, %v5088
      %v7384 = vsel %vm7348, %v7347, %v5090
      %vm7385 = vcmask 162816
      %v7386 = vsel %vm7385, %v7349, %v5202
      %v7387 = vsel %vm7385, %v7350, %v5204
      %v7388 = vsel %vm7385, %v7351, %v5206
      %v7389 = vsel %vm7385, %v7352, %v5208
      %v7390 = vsel %vm7385, %v7353, %v5210
      %v7391 = vsel %vm7385, %v7354, %v5212
      %v7392 = vsel %vm7385, %v7355, %v5214
      %v7393 = vsel %vm7385, %v7356, %v5216
      %v7394 = vsel %vm7385, %v7357, %v5218
      %v7395 = vsel %vm7385, %v7358, %v5220
      %v7396 = vsel %vm7385, %v7359, %v5222
      %v7397 = vsel %vm7385, %v7360, %v5224
      %v7398 = vsel %vm7385, %v7361, %v5226
      %v7399 = vsel %vm7385, %v7362, %v5228
      %v7400 = vsel %vm7385, %v7363, %v5230
      %v7401 = vsel %vm7385, %v7364, %v5232
      %v7402 = vsel %vm7385, %v7365, %v5234
      %v7403 = vsel %vm7385, %v7366, %v5236
      %v7404 = vsel %vm7385, %v7367, %v5238
      %v7405 = vsel %vm7385, %v7368, %v5240
      %v7406 = vsel %vm7385, %v7369, %v5242
      %v7407 = vsel %vm7385, %v7370, %v5244
      %v7408 = vsel %vm7385, %v7371, %v5246
      %v7409 = vsel %vm7385, %v7372, %v5248
      %v7410 = vsel %vm7385, %v7373, %v5250
      %v7411 = vsel %vm7385, %v7374, %v5252
      %v7412 = vsel %vm7385, %v7375, %v5254
      %v7413 = vsel %vm7385, %v7376, %v5256
      %v7414 = vsel %vm7385, %v7377, %v5258
      %v7415 = vsel %vm7385, %v7378, %v5260
      %v7416 = vsel %vm7385, %v7379, %v5262
      %v7417 = vsel %vm7385, %v7380, %v5264
      %v7418 = vsel %vm7385, %v7381, %v5266
      %v7419 = vsel %vm7385, %v7382, %v5268
      %v7420 = vsel %vm7385, %v7383, %v5270
      %v7421 = vsel %vm7385, %v7384, %v5272
      %vm7422 = vcmask 195584
      %v7423 = vsel %vm7422, %v7386, %v5316
      %v7424 = vsel %vm7422, %v7387, %v5318
      %v7425 = vsel %vm7422, %v7388, %v5320
      %v7426 = vsel %vm7422, %v7389, %v5322
      %v7427 = vsel %vm7422, %v7390, %v5324
      %v7428 = vsel %vm7422, %v7391, %v5326
      %v7429 = vsel %vm7422, %v7392, %v5328
      %v7430 = vsel %vm7422, %v7393, %v5330
      %v7431 = vsel %vm7422, %v7394, %v5332
      %v7432 = vsel %vm7422, %v7395, %v5334
      %v7433 = vsel %vm7422, %v7396, %v5336
      %v7434 = vsel %vm7422, %v7397, %v5338
      %v7435 = vsel %vm7422, %v7398, %v5340
      %v7436 = vsel %vm7422, %v7399, %v5342
      %v7437 = vsel %vm7422, %v7400, %v5344
      %v7438 = vsel %vm7422, %v7401, %v5346
      %v7439 = vsel %vm7422, %v7402, %v5348
      %v7440 = vsel %vm7422, %v7403, %v5350
      %v7441 = vsel %vm7422, %v7404, %v5352
      %v7442 = vsel %vm7422, %v7405, %v5354
      %v7443 = vsel %vm7422, %v7406, %v5356
      %v7444 = vsel %vm7422, %v7407, %v5358
      %v7445 = vsel %vm7422, %v7408, %v5360
      %v7446 = vsel %vm7422, %v7409, %v5362
      %v7447 = vsel %vm7422, %v7410, %v5364
      %v7448 = vsel %vm7422, %v7411, %v5366
      %v7449 = vsel %vm7422, %v7412, %v5368
      %v7450 = vsel %vm7422, %v7413, %v5370
      %v7451 = vsel %vm7422, %v7414, %v5372
      %v7452 = vsel %vm7422, %v7415, %v5374
      %v7453 = vsel %vm7422, %v7416, %v5376
      %v7454 = vsel %vm7422, %v7417, %v5378
      %v7455 = vsel %vm7422, %v7418, %v5380
      %v7456 = vsel %vm7422, %v7419, %v5382
      %v7457 = vsel %vm7422, %v7420, %v5384
      %v7458 = vsel %vm7422, %v7421, %v5386
      %vm7459 = vcmask 228352
      %v7460 = vsel %vm7459, %v7423, %v5497
      %v7461 = vsel %vm7459, %v7424, %v5499
      %v7462 = vsel %vm7459, %v7425, %v5501
      %v7463 = vsel %vm7459, %v7426, %v5503
      %v7464 = vsel %vm7459, %v7427, %v5505
      %v7465 = vsel %vm7459, %v7428, %v5507
      %v7466 = vsel %vm7459, %v7429, %v5509
      %v7467 = vsel %vm7459, %v7430, %v5511
      %v7468 = vsel %vm7459, %v7431, %v5513
      %v7469 = vsel %vm7459, %v7432, %v5515
      %v7470 = vsel %vm7459, %v7433, %v5517
      %v7471 = vsel %vm7459, %v7434, %v5519
      %v7472 = vsel %vm7459, %v7435, %v5521
      %v7473 = vsel %vm7459, %v7436, %v5523
      %v7474 = vsel %vm7459, %v7437, %v5525
      %v7475 = vsel %vm7459, %v7438, %v5527
      %v7476 = vsel %vm7459, %v7439, %v5529
      %v7477 = vsel %vm7459, %v7440, %v5531
      %v7478 = vsel %vm7459, %v7441, %v5533
      %v7479 = vsel %vm7459, %v7442, %v5535
      %v7480 = vsel %vm7459, %v7443, %v5537
      %v7481 = vsel %vm7459, %v7444, %v5539
      %v7482 = vsel %vm7459, %v7445, %v5541
      %v7483 = vsel %vm7459, %v7446, %v5543
      %v7484 = vsel %vm7459, %v7447, %v5545
      %v7485 = vsel %vm7459, %v7448, %v5547
      %v7486 = vsel %vm7459, %v7449, %v5549
      %v7487 = vsel %vm7459, %v7450, %v5551
      %v7488 = vsel %vm7459, %v7451, %v5553
      %v7489 = vsel %vm7459, %v7452, %v5555
      %v7490 = vsel %vm7459, %v7453, %v5557
      %v7491 = vsel %vm7459, %v7454, %v5559
      %v7492 = vsel %vm7459, %v7455, %v5561
      %v7493 = vsel %vm7459, %v7456, %v5563
      %v7494 = vsel %vm7459, %v7457, %v5565
      %v7495 = vsel %vm7459, %v7458, %v5567
      %vm7496 = vcmask 261120
      %v7497 = vsel %vm7496, %v7460, %v5678
      %v7498 = vsel %vm7496, %v7461, %v5680
      %v7499 = vsel %vm7496, %v7462, %v5682
      %v7500 = vsel %vm7496, %v7463, %v5684
      %v7501 = vsel %vm7496, %v7464, %v5686
      %v7502 = vsel %vm7496, %v7465, %v5688
      %v7503 = vsel %vm7496, %v7466, %v5690
      %v7504 = vsel %vm7496, %v7467, %v5692
      %v7505 = vsel %vm7496, %v7468, %v5694
      %v7506 = vsel %vm7496, %v7469, %v5696
      %v7507 = vsel %vm7496, %v7470, %v5698
      %v7508 = vsel %vm7496, %v7471, %v5700
      %v7509 = vsel %vm7496, %v7472, %v5702
      %v7510 = vsel %vm7496, %v7473, %v5704
      %v7511 = vsel %vm7496, %v7474, %v5706
      %v7512 = vsel %vm7496, %v7475, %v5708
      %v7513 = vsel %vm7496, %v7476, %v5710
      %v7514 = vsel %vm7496, %v7477, %v5712
      %v7515 = vsel %vm7496, %v7478, %v5714
      %v7516 = vsel %vm7496, %v7479, %v5716
      %v7517 = vsel %vm7496, %v7480, %v5718
      %v7518 = vsel %vm7496, %v7481, %v5720
      %v7519 = vsel %vm7496, %v7482, %v5722
      %v7520 = vsel %vm7496, %v7483, %v5724
      %v7521 = vsel %vm7496, %v7484, %v5726
      %v7522 = vsel %vm7496, %v7485, %v5728
      %v7523 = vsel %vm7496, %v7486, %v5730
      %v7524 = vsel %vm7496, %v7487, %v5732
      %v7525 = vsel %vm7496, %v7488, %v5734
      %v7526 = vsel %vm7496, %v7489, %v5736
      %v7527 = vsel %vm7496, %v7490, %v5738
      %v7528 = vsel %vm7496, %v7491, %v5740
      %v7529 = vsel %vm7496, %v7492, %v5742
      %v7530 = vsel %vm7496, %v7493, %v5744
      %v7531 = vsel %vm7496, %v7494, %v5746
      %v7532 = vsel %vm7496, %v7495, %v5748
      %vm7533 = vcmask 293888
      %v7534 = vsel %vm7533, %v7497, %v5822
      %v7535 = vsel %vm7533, %v7498, %v5824
      %v7536 = vsel %vm7533, %v7499, %v5826
      %v7537 = vsel %vm7533, %v7500, %v5828
      %v7538 = vsel %vm7533, %v7501, %v5830
      %v7539 = vsel %vm7533, %v7502, %v5832
      %v7540 = vsel %vm7533, %v7503, %v5834
      %v7541 = vsel %vm7533, %v7504, %v5836
      %v7542 = vsel %vm7533, %v7505, %v5838
      %v7543 = vsel %vm7533, %v7506, %v5840
      %v7544 = vsel %vm7533, %v7507, %v5842
      %v7545 = vsel %vm7533, %v7508, %v5844
      %v7546 = vsel %vm7533, %v7509, %v5846
      %v7547 = vsel %vm7533, %v7510, %v5848
      %v7548 = vsel %vm7533, %v7511, %v5850
      %v7549 = vsel %vm7533, %v7512, %v5852
      %v7550 = vsel %vm7533, %v7513, %v5854
      %v7551 = vsel %vm7533, %v7514, %v5856
      %v7552 = vsel %vm7533, %v7515, %v5858
      %v7553 = vsel %vm7533, %v7516, %v5860
      %v7554 = vsel %vm7533, %v7517, %v5862
      %v7555 = vsel %vm7533, %v7518, %v5864
      %v7556 = vsel %vm7533, %v7519, %v5866
      %v7557 = vsel %vm7533, %v7520, %v5868
      %v7558 = vsel %vm7533, %v7521, %v5870
      %v7559 = vsel %vm7533, %v7522, %v5872
      %v7560 = vsel %vm7533, %v7523, %v5874
      %v7561 = vsel %vm7533, %v7524, %v5876
      %v7562 = vsel %vm7533, %v7525, %v5878
      %v7563 = vsel %vm7533, %v7526, %v5880
      %v7564 = vsel %vm7533, %v7527, %v5882
      %v7565 = vsel %vm7533, %v7528, %v5884
      %v7566 = vsel %vm7533, %v7529, %v5886
      %v7567 = vsel %vm7533, %v7530, %v5888
      %v7568 = vsel %vm7533, %v7531, %v5890
      %v7569 = vsel %vm7533, %v7532, %v5892
      %vm7570 = vcmask 326656
      %v7571 = vsel %vm7570, %v7534, %v6040
      %v7572 = vsel %vm7570, %v7535, %v6042
      %v7573 = vsel %vm7570, %v7536, %v6044
      %v7574 = vsel %vm7570, %v7537, %v6046
      %v7575 = vsel %vm7570, %v7538, %v6048
      %v7576 = vsel %vm7570, %v7539, %v6050
      %v7577 = vsel %vm7570, %v7540, %v6052
      %v7578 = vsel %vm7570, %v7541, %v6054
      %v7579 = vsel %vm7570, %v7542, %v6056
      %v7580 = vsel %vm7570, %v7543, %v6058
      %v7581 = vsel %vm7570, %v7544, %v6060
      %v7582 = vsel %vm7570, %v7545, %v6062
      %v7583 = vsel %vm7570, %v7546, %v6064
      %v7584 = vsel %vm7570, %v7547, %v6066
      %v7585 = vsel %vm7570, %v7548, %v6068
      %v7586 = vsel %vm7570, %v7549, %v6070
      %v7587 = vsel %vm7570, %v7550, %v6072
      %v7588 = vsel %vm7570, %v7551, %v6074
      %v7589 = vsel %vm7570, %v7552, %v6076
      %v7590 = vsel %vm7570, %v7553, %v6078
      %v7591 = vsel %vm7570, %v7554, %v6080
      %v7592 = vsel %vm7570, %v7555, %v6082
      %v7593 = vsel %vm7570, %v7556, %v6084
      %v7594 = vsel %vm7570, %v7557, %v6086
      %v7595 = vsel %vm7570, %v7558, %v6088
      %v7596 = vsel %vm7570, %v7559, %v6090
      %v7597 = vsel %vm7570, %v7560, %v6092
      %v7598 = vsel %vm7570, %v7561, %v6094
      %v7599 = vsel %vm7570, %v7562, %v6096
      %v7600 = vsel %vm7570, %v7563, %v6098
      %v7601 = vsel %vm7570, %v7564, %v6100
      %v7602 = vsel %vm7570, %v7565, %v6102
      %v7603 = vsel %vm7570, %v7566, %v6104
      %v7604 = vsel %vm7570, %v7567, %v6106
      %v7605 = vsel %vm7570, %v7568, %v6108
      %v7606 = vsel %vm7570, %v7569, %v6110
      %vm7607 = vcmask 359424
      %v7608 = vsel %vm7607, %v7571, %v6258
      %v7609 = vsel %vm7607, %v7572, %v6260
      %v7610 = vsel %vm7607, %v7573, %v6262
      %v7611 = vsel %vm7607, %v7574, %v6264
      %v7612 = vsel %vm7607, %v7575, %v6266
      %v7613 = vsel %vm7607, %v7576, %v6268
      %v7614 = vsel %vm7607, %v7577, %v6270
      %v7615 = vsel %vm7607, %v7578, %v6272
      %v7616 = vsel %vm7607, %v7579, %v6274
      %v7617 = vsel %vm7607, %v7580, %v6276
      %v7618 = vsel %vm7607, %v7581, %v6278
      %v7619 = vsel %vm7607, %v7582, %v6280
      %v7620 = vsel %vm7607, %v7583, %v6282
      %v7621 = vsel %vm7607, %v7584, %v6284
      %v7622 = vsel %vm7607, %v7585, %v6286
      %v7623 = vsel %vm7607, %v7586, %v6288
      %v7624 = vsel %vm7607, %v7587, %v6290
      %v7625 = vsel %vm7607, %v7588, %v6292
      %v7626 = vsel %vm7607, %v7589, %v6294
      %v7627 = vsel %vm7607, %v7590, %v6296
      %v7628 = vsel %vm7607, %v7591, %v6298
      %v7629 = vsel %vm7607, %v7592, %v6300
      %v7630 = vsel %vm7607, %v7593, %v6302
      %v7631 = vsel %vm7607, %v7594, %v6304
      %v7632 = vsel %vm7607, %v7595, %v6306
      %v7633 = vsel %vm7607, %v7596, %v6308
      %v7634 = vsel %vm7607, %v7597, %v6310
      %v7635 = vsel %vm7607, %v7598, %v6312
      %v7636 = vsel %vm7607, %v7599, %v6314
      %v7637 = vsel %vm7607, %v7600, %v6316
      %v7638 = vsel %vm7607, %v7601, %v6318
      %v7639 = vsel %vm7607, %v7602, %v6320
      %v7640 = vsel %vm7607, %v7603, %v6322
      %v7641 = vsel %vm7607, %v7604, %v6324
      %v7642 = vsel %vm7607, %v7605, %v6326
      %v7643 = vsel %vm7607, %v7606, %v6328
      %vm7644 = vcmask 392192
      %v7645 = vsel %vm7644, %v7608, %v6476
      %v7646 = vsel %vm7644, %v7609, %v6478
      %v7647 = vsel %vm7644, %v7610, %v6480
      %v7648 = vsel %vm7644, %v7611, %v6482
      %v7649 = vsel %vm7644, %v7612, %v6484
      %v7650 = vsel %vm7644, %v7613, %v6486
      %v7651 = vsel %vm7644, %v7614, %v6488
      %v7652 = vsel %vm7644, %v7615, %v6490
      %v7653 = vsel %vm7644, %v7616, %v6492
      %v7654 = vsel %vm7644, %v7617, %v6494
      %v7655 = vsel %vm7644, %v7618, %v6496
      %v7656 = vsel %vm7644, %v7619, %v6498
      %v7657 = vsel %vm7644, %v7620, %v6500
      %v7658 = vsel %vm7644, %v7621, %v6502
      %v7659 = vsel %vm7644, %v7622, %v6504
      %v7660 = vsel %vm7644, %v7623, %v6506
      %v7661 = vsel %vm7644, %v7624, %v6508
      %v7662 = vsel %vm7644, %v7625, %v6510
      %v7663 = vsel %vm7644, %v7626, %v6512
      %v7664 = vsel %vm7644, %v7627, %v6514
      %v7665 = vsel %vm7644, %v7628, %v6516
      %v7666 = vsel %vm7644, %v7629, %v6518
      %v7667 = vsel %vm7644, %v7630, %v6520
      %v7668 = vsel %vm7644, %v7631, %v6522
      %v7669 = vsel %vm7644, %v7632, %v6524
      %v7670 = vsel %vm7644, %v7633, %v6526
      %v7671 = vsel %vm7644, %v7634, %v6528
      %v7672 = vsel %vm7644, %v7635, %v6530
      %v7673 = vsel %vm7644, %v7636, %v6532
      %v7674 = vsel %vm7644, %v7637, %v6534
      %v7675 = vsel %vm7644, %v7638, %v6536
      %v7676 = vsel %vm7644, %v7639, %v6538
      %v7677 = vsel %vm7644, %v7640, %v6540
      %v7678 = vsel %vm7644, %v7641, %v6542
      %v7679 = vsel %vm7644, %v7642, %v6544
      %v7680 = vsel %vm7644, %v7643, %v6546
      %vm7681 = vcmask 424960
      %v7682 = vsel %vm7681, %v7645, %v6694
      %v7683 = vsel %vm7681, %v7646, %v6696
      %v7684 = vsel %vm7681, %v7647, %v6698
      %v7685 = vsel %vm7681, %v7648, %v6700
      %v7686 = vsel %vm7681, %v7649, %v6702
      %v7687 = vsel %vm7681, %v7650, %v6704
      %v7688 = vsel %vm7681, %v7651, %v6706
      %v7689 = vsel %vm7681, %v7652, %v6708
      %v7690 = vsel %vm7681, %v7653, %v6710
      %v7691 = vsel %vm7681, %v7654, %v6712
      %v7692 = vsel %vm7681, %v7655, %v6714
      %v7693 = vsel %vm7681, %v7656, %v6716
      %v7694 = vsel %vm7681, %v7657, %v6718
      %v7695 = vsel %vm7681, %v7658, %v6720
      %v7696 = vsel %vm7681, %v7659, %v6722
      %v7697 = vsel %vm7681, %v7660, %v6724
      %v7698 = vsel %vm7681, %v7661, %v6726
      %v7699 = vsel %vm7681, %v7662, %v6728
      %v7700 = vsel %vm7681, %v7663, %v6730
      %v7701 = vsel %vm7681, %v7664, %v6732
      %v7702 = vsel %vm7681, %v7665, %v6734
      %v7703 = vsel %vm7681, %v7666, %v6736
      %v7704 = vsel %vm7681, %v7667, %v6738
      %v7705 = vsel %vm7681, %v7668, %v6740
      %v7706 = vsel %vm7681, %v7669, %v6742
      %v7707 = vsel %vm7681, %v7670, %v6744
      %v7708 = vsel %vm7681, %v7671, %v6746
      %v7709 = vsel %vm7681, %v7672, %v6748
      %v7710 = vsel %vm7681, %v7673, %v6750
      %v7711 = vsel %vm7681, %v7674, %v6752
      %v7712 = vsel %vm7681, %v7675, %v6754
      %v7713 = vsel %vm7681, %v7676, %v6756
      %v7714 = vsel %vm7681, %v7677, %v6758
      %v7715 = vsel %vm7681, %v7678, %v6760
      %v7716 = vsel %vm7681, %v7679, %v6762
      %v7717 = vsel %vm7681, %v7680, %v6764
      %vm7718 = vcmask 457728
      %v7719 = vsel %vm7718, %v7682, %v6912
      %v7720 = vsel %vm7718, %v7683, %v6914
      %v7721 = vsel %vm7718, %v7684, %v6916
      %v7722 = vsel %vm7718, %v7685, %v6918
      %v7723 = vsel %vm7718, %v7686, %v6920
      %v7724 = vsel %vm7718, %v7687, %v6922
      %v7725 = vsel %vm7718, %v7688, %v6924
      %v7726 = vsel %vm7718, %v7689, %v6926
      %v7727 = vsel %vm7718, %v7690, %v6928
      %v7728 = vsel %vm7718, %v7691, %v6930
      %v7729 = vsel %vm7718, %v7692, %v6932
      %v7730 = vsel %vm7718, %v7693, %v6934
      %v7731 = vsel %vm7718, %v7694, %v6936
      %v7732 = vsel %vm7718, %v7695, %v6938
      %v7733 = vsel %vm7718, %v7696, %v6940
      %v7734 = vsel %vm7718, %v7697, %v6942
      %v7735 = vsel %vm7718, %v7698, %v6944
      %v7736 = vsel %vm7718, %v7699, %v6946
      %v7737 = vsel %vm7718, %v7700, %v6948
      %v7738 = vsel %vm7718, %v7701, %v6950
      %v7739 = vsel %vm7718, %v7702, %v6952
      %v7740 = vsel %vm7718, %v7703, %v6954
      %v7741 = vsel %vm7718, %v7704, %v6956
      %v7742 = vsel %vm7718, %v7705, %v6958
      %v7743 = vsel %vm7718, %v7706, %v6960
      %v7744 = vsel %vm7718, %v7707, %v6962
      %v7745 = vsel %vm7718, %v7708, %v6964
      %v7746 = vsel %vm7718, %v7709, %v6966
      %v7747 = vsel %vm7718, %v7710, %v6968
      %v7748 = vsel %vm7718, %v7711, %v6970
      %v7749 = vsel %vm7718, %v7712, %v6972
      %v7750 = vsel %vm7718, %v7713, %v6974
      %v7751 = vsel %vm7718, %v7714, %v6976
      %v7752 = vsel %vm7718, %v7715, %v6978
      %v7753 = vsel %vm7718, %v7716, %v6980
      %v7754 = vsel %vm7718, %v7717, %v6982
      %vm7755 = vcmask 490496
      %v7756 = vsel %vm7755, %v7719, %v7130
      %v7757 = vsel %vm7755, %v7720, %v7132
      %v7758 = vsel %vm7755, %v7721, %v7134
      %v7759 = vsel %vm7755, %v7722, %v7136
      %v7760 = vsel %vm7755, %v7723, %v7138
      %v7761 = vsel %vm7755, %v7724, %v7140
      %v7762 = vsel %vm7755, %v7725, %v7142
      %v7763 = vsel %vm7755, %v7726, %v7144
      %v7764 = vsel %vm7755, %v7727, %v7146
      %v7765 = vsel %vm7755, %v7728, %v7148
      %v7766 = vsel %vm7755, %v7729, %v7150
      %v7767 = vsel %vm7755, %v7730, %v7152
      %v7768 = vsel %vm7755, %v7731, %v7154
      %v7769 = vsel %vm7755, %v7732, %v7156
      %v7770 = vsel %vm7755, %v7733, %v7158
      %v7771 = vsel %vm7755, %v7734, %v7160
      %v7772 = vsel %vm7755, %v7735, %v7162
      %v7773 = vsel %vm7755, %v7736, %v7164
      %v7774 = vsel %vm7755, %v7737, %v7166
      %v7775 = vsel %vm7755, %v7738, %v7168
      %v7776 = vsel %vm7755, %v7739, %v7170
      %v7777 = vsel %vm7755, %v7740, %v7172
      %v7778 = vsel %vm7755, %v7741, %v7174
      %v7779 = vsel %vm7755, %v7742, %v7176
      %v7780 = vsel %vm7755, %v7743, %v7178
      %v7781 = vsel %vm7755, %v7744, %v7180
      %v7782 = vsel %vm7755, %v7745, %v7182
      %v7783 = vsel %vm7755, %v7746, %v7184
      %v7784 = vsel %vm7755, %v7747, %v7186
      %v7785 = vsel %vm7755, %v7748, %v7188
      %v7786 = vsel %vm7755, %v7749, %v7190
      %v7787 = vsel %vm7755, %v7750, %v7192
      %v7788 = vsel %vm7755, %v7751, %v7194
      %v7789 = vsel %vm7755, %v7752, %v7196
      %v7790 = vsel %vm7755, %v7753, %v7198
      %v7791 = vsel %vm7755, %v7754, %v7200
      %v7829 = vrot.slane %v4396, 1
      %v7830 = vrot.slane %v4397, 1
      %v7831 = vsel %vm1477, %v7829, %v7830
      %v7832 = vrot.slane %v4398, 1
      %v7833 = vsel %vm1477, %v7830, %v7832
      %v7834 = vrot.slane %v4399, 1
      %v7835 = vsel %vm1477, %v7832, %v7834
      %v7836 = vrot.slane %v4400, 1
      %v7837 = vsel %vm1477, %v7834, %v7836
      %v7838 = vrot.slane %v4401, 1
      %v7839 = vsel %vm1477, %v7836, %v7838
      %v7840 = vrot.slane %v4402, 1
      %v7841 = vsel %vm1477, %v7838, %v7840
      %v7842 = vrot.slane %v4403, 1
      %v7843 = vsel %vm1477, %v7840, %v7842
      %v7844 = vrot.slane %v4404, 1
      %v7845 = vsel %vm1477, %v7842, %v7844
      %v7846 = vrot.slane %v4405, 1
      %v7847 = vsel %vm1477, %v7844, %v7846
      %v7848 = vrot.slane %v4406, 1
      %v7849 = vsel %vm1477, %v7846, %v7848
      %v7850 = vrot.slane %v4407, 1
      %v7851 = vsel %vm1477, %v7848, %v7850
      %v7852 = vrot.slane %v4408, 1
      %v7853 = vsel %vm1477, %v7850, %v7852
      %v7854 = vrot.slane %v4409, 1
      %v7855 = vsel %vm1477, %v7852, %v7854
      %v7856 = vrot.slane %v4410, 1
      %v7857 = vsel %vm1477, %v7854, %v7856
      %v7858 = vrot.slane %v4411, 1
      %v7859 = vsel %vm1477, %v7856, %v7858
      %v7860 = vrot.slane %v4412, 1
      %v7861 = vsel %vm1477, %v7858, %v7860
      %v7862 = vrot.slane %v4413, 1
      %v7863 = vsel %vm1477, %v7860, %v7862
      %v7864 = vrot.slane %v4414, 1
      %v7865 = vsel %vm1477, %v7862, %v7864
      %v7866 = vrot.slane %v4415, 1
      %v7867 = vsel %vm1477, %v7864, %v7866
      %v7868 = vrot.slane %v4416, 1
      %v7869 = vsel %vm1477, %v7866, %v7868
      %v7870 = vrot.slane %v4417, 1
      %v7871 = vsel %vm1477, %v7868, %v7870
      %v7872 = vrot.slane %v4418, 1
      %v7873 = vsel %vm1477, %v7870, %v7872
      %v7874 = vrot.slane %v4419, 1
      %v7875 = vsel %vm1477, %v7872, %v7874
      %v7876 = vrot.slane %v4420, 1
      %v7877 = vsel %vm1477, %v7874, %v7876
      %v7878 = vrot.slane %v4421, 1
      %v7879 = vsel %vm1477, %v7876, %v7878
      %v7880 = vrot.slane %v4422, 1
      %v7881 = vsel %vm1477, %v7878, %v7880
      %v7882 = vrot.slane %v4423, 1
      %v7883 = vsel %vm1477, %v7880, %v7882
      %v7884 = vrot.slane %v4424, 1
      %v7885 = vsel %vm1477, %v7882, %v7884
      %v7886 = vrot.slane %v4425, 1
      %v7887 = vsel %vm1477, %v7884, %v7886
      %v7888 = vrot.slane %v4426, 1
      %v7889 = vsel %vm1477, %v7886, %v7888
      %v7890 = vrot.slane %v4427, 1
      %v7891 = vsel %vm1477, %v7888, %v7890
      %v7892 = vrot.slane %v4428, 1
      %v7893 = vsel %vm1477, %v7890, %v7892
      %v7894 = vrot.slane %v4429, 1
      %v7895 = vsel %vm1477, %v7892, %v7894
      %v7896 = vrot.slane %v4430, 1
      %v7897 = vsel %vm1477, %v7894, %v7896
      %v7898 = vrot.slane %v4431, 1
      %v7899 = vsel %vm1477, %v7896, %v7898
      %v7900 = vrot.slane %v4432, 1
      %v7901 = vsel %vm1477, %v7898, %v7900
      %7902 = vrot.lane.b32.xlu0 %v7831, 4
      %v7903 = vpop.permute.xlu0 %7902
      %7904 = vrot.lane.b32.xlu0 %v7833, 4
      %v7905 = vpop.permute.xlu0 %7904
      %7906 = vrot.lane.b32.xlu0 %v7835, 4
      %v7907 = vpop.permute.xlu0 %7906
      %7908 = vrot.lane.b32.xlu0 %v7837, 4
      %v7909 = vpop.permute.xlu0 %7908
      %7910 = vrot.lane.b32.xlu0 %v7839, 4
      %v7911 = vpop.permute.xlu0 %7910
      %7912 = vrot.lane.b32.xlu0 %v7841, 4
      %v7913 = vpop.permute.xlu0 %7912
      %7914 = vrot.lane.b32.xlu0 %v7843, 4
      %v7915 = vpop.permute.xlu0 %7914
      %7916 = vrot.lane.b32.xlu0 %v7845, 4
      %v7917 = vpop.permute.xlu0 %7916
      %7918 = vrot.lane.b32.xlu0 %v7847, 4
      %v7919 = vpop.permute.xlu0 %7918
      %7920 = vrot.lane.b32.xlu0 %v7849, 4
      %v7921 = vpop.permute.xlu0 %7920
      %7922 = vrot.lane.b32.xlu0 %v7851, 4
      %v7923 = vpop.permute.xlu0 %7922
      %7924 = vrot.lane.b32.xlu0 %v7853, 4
      %v7925 = vpop.permute.xlu0 %7924
      %7926 = vrot.lane.b32.xlu0 %v7855, 4
      %v7927 = vpop.permute.xlu0 %7926
      %7928 = vrot.lane.b32.xlu0 %v7857, 4
      %v7929 = vpop.permute.xlu0 %7928
      %7930 = vrot.lane.b32.xlu0 %v7859, 4
      %v7931 = vpop.permute.xlu0 %7930
      %7932 = vrot.lane.b32.xlu0 %v7861, 4
      %v7933 = vpop.permute.xlu0 %7932
      %7934 = vrot.lane.b32.xlu0 %v7863, 4
      %v7935 = vpop.permute.xlu0 %7934
      %7936 = vrot.lane.b32.xlu0 %v7865, 4
      %v7937 = vpop.permute.xlu0 %7936
      %7938 = vrot.lane.b32.xlu0 %v7867, 4
      %v7939 = vpop.permute.xlu0 %7938
      %7940 = vrot.lane.b32.xlu0 %v7869, 4
      %v7941 = vpop.permute.xlu0 %7940
      %7942 = vrot.lane.b32.xlu0 %v7871, 4
      %v7943 = vpop.permute.xlu0 %7942
      %7944 = vrot.lane.b32.xlu0 %v7873, 4
      %v7945 = vpop.permute.xlu0 %7944
      %7946 = vrot.lane.b32.xlu0 %v7875, 4
      %v7947 = vpop.permute.xlu0 %7946
      %7948 = vrot.lane.b32.xlu0 %v7877, 4
      %v7949 = vpop.permute.xlu0 %7948
      %7950 = vrot.lane.b32.xlu0 %v7879, 4
      %v7951 = vpop.permute.xlu0 %7950
      %7952 = vrot.lane.b32.xlu0 %v7881, 4
      %v7953 = vpop.permute.xlu0 %7952
      %7954 = vrot.lane.b32.xlu0 %v7883, 4
      %v7955 = vpop.permute.xlu0 %7954
      %7956 = vrot.lane.b32.xlu0 %v7885, 4
      %v7957 = vpop.permute.xlu0 %7956
      %7958 = vrot.lane.b32.xlu0 %v7887, 4
      %v7959 = vpop.permute.xlu0 %7958
      %7960 = vrot.lane.b32.xlu0 %v7889, 4
      %v7961 = vpop.permute.xlu0 %7960
      %7962 = vrot.lane.b32.xlu0 %v7891, 4
      %v7963 = vpop.permute.xlu0 %7962
      %7964 = vrot.lane.b32.xlu0 %v7893, 4
      %v7965 = vpop.permute.xlu0 %7964
      %7966 = vrot.lane.b32.xlu0 %v7895, 4
      %v7967 = vpop.permute.xlu0 %7966
      %7968 = vrot.lane.b32.xlu0 %v7897, 4
      %v7969 = vpop.permute.xlu0 %7968
      %7970 = vrot.lane.b32.xlu0 %v7899, 4
      %v7971 = vpop.permute.xlu0 %7970
      %7972 = vrot.lane.b32.xlu0 %v7901, 4
      %v7973 = vpop.permute.xlu0 %7972
      %7974 = vrot.lane.b32.xlu0 %v7900, 4
      %v7975 = vpop.permute.xlu0 %7974
      %v8013 = vsel %vm7237, %v3879, %v7903
      %v8014 = vsel %vm7237, %v3880, %v7905
      %v8015 = vsel %vm7237, %v3881, %v7907
      %v8016 = vsel %vm7237, %v3882, %v7909
      %v8017 = vsel %vm7237, %v3883, %v7911
      %v8018 = vsel %vm7237, %v3884, %v7913
      %v8019 = vsel %vm7237, %v3885, %v7915
      %v8020 = vsel %vm7237, %v3886, %v7917
      %v8021 = vsel %vm7237, %v3887, %v7919
      %v8022 = vsel %vm7237, %v3888, %v7921
      %v8023 = vsel %vm7237, %v3889, %v7923
      %v8024 = vsel %vm7237, %v3890, %v7925
      %v8025 = vsel %vm7237, %v3891, %v7927
      %v8026 = vsel %vm7237, %v3892, %v7929
      %v8027 = vsel %vm7237, %v3893, %v7931
      %v8028 = vsel %vm7237, %v3894, %v7933
      %v8029 = vsel %vm7237, %v3895, %v7935
      %v8030 = vsel %vm7237, %v3896, %v7937
      %v8031 = vsel %vm7237, %v3897, %v7939
      %v8032 = vsel %vm7237, %v3898, %v7941
      %v8033 = vsel %vm7237, %v3899, %v7943
      %v8034 = vsel %vm7237, %v3900, %v7945
      %v8035 = vsel %vm7237, %v3901, %v7947
      %v8036 = vsel %vm7237, %v3902, %v7949
      %v8037 = vsel %vm7237, %v3903, %v7951
      %v8038 = vsel %vm7237, %v3904, %v7953
      %v8039 = vsel %vm7237, %v3905, %v7955
      %v8040 = vsel %vm7237, %v3906, %v7957
      %v8041 = vsel %vm7237, %v3907, %v7959
      %v8042 = vsel %vm7237, %v3908, %v7961
      %v8043 = vsel %vm7237, %v3909, %v7963
      %v8044 = vsel %vm7237, %v3910, %v7965
      %v8045 = vsel %vm7237, %v3911, %v7967
      %v8046 = vsel %vm7237, %v3912, %v7969
      %v8047 = vsel %vm7237, %v3913, %v7971
      %v8048 = vsel %vm7237, %v3914, %v7973
      %v8049 = vsel %vm7237, %v3915, %v7975
      %v8050 = vsel %vm7274, %v8013, 0.0
      %v8051 = vsel %vm7274, %v8014, 0.0
      %v8052 = vsel %vm7274, %v8015, 0.0
      %v8053 = vsel %vm7274, %v8016, 0.0
      %v8054 = vsel %vm7274, %v8017, 0.0
      %v8055 = vsel %vm7274, %v8018, 0.0
      %v8056 = vsel %vm7274, %v8019, 0.0
      %v8057 = vsel %vm7274, %v8020, 0.0
      %v8058 = vsel %vm7274, %v8021, 0.0
      %v8059 = vsel %vm7274, %v8022, 0.0
      %v8060 = vsel %vm7274, %v8023, 0.0
      %v8061 = vsel %vm7274, %v8024, 0.0
      %v8062 = vsel %vm7274, %v8025, 0.0
      %v8063 = vsel %vm7274, %v8026, 0.0
      %v8064 = vsel %vm7274, %v8027, 0.0
      %v8065 = vsel %vm7274, %v8028, 0.0
      %v8066 = vsel %vm7274, %v8029, 0.0
      %v8067 = vsel %vm7274, %v8030, 0.0
      %v8068 = vsel %vm7274, %v8031, 0.0
      %v8069 = vsel %vm7274, %v8032, 0.0
      %v8070 = vsel %vm7274, %v8033, 0.0
      %v8071 = vsel %vm7274, %v8034, 0.0
      %v8072 = vsel %vm7274, %v8035, 0.0
      %v8073 = vsel %vm7274, %v8036, 0.0
      %v8074 = vsel %vm7274, %v8037, 0.0
      %v8075 = vsel %vm7274, %v8038, 0.0
      %v8076 = vsel %vm7274, %v8039, 0.0
      %v8077 = vsel %vm7274, %v8040, 0.0
      %v8078 = vsel %vm7274, %v8041, 0.0
      %v8079 = vsel %vm7274, %v8042, 0.0
      %v8080 = vsel %vm7274, %v8043, 0.0
      %v8081 = vsel %vm7274, %v8044, 0.0
      %v8082 = vsel %vm7274, %v8045, 0.0
      %v8083 = vsel %vm7274, %v8046, 0.0
      %v8084 = vsel %vm7274, %v8047, 0.0
      %v8085 = vsel %vm7274, %v8048, 0.0
      %v8086 = vsel %vm7274, %v8049, 0.0
      %v8124 = vrot.slane %v8050, 5
      %v8125 = vrot.slane %v8051, 5
      %v8126 = vsel %vm3916, %v8124, %v8125
      %v8127 = vrot.slane %v8052, 5
      %v8128 = vsel %vm3916, %v8125, %v8127
      %v8129 = vrot.slane %v8053, 5
      %v8130 = vsel %vm3916, %v8127, %v8129
      %v8131 = vrot.slane %v8054, 5
      %v8132 = vsel %vm3916, %v8129, %v8131
      %v8133 = vrot.slane %v8055, 5
      %v8134 = vsel %vm3916, %v8131, %v8133
      %v8135 = vrot.slane %v8056, 5
      %v8136 = vsel %vm3916, %v8133, %v8135
      %v8137 = vrot.slane %v8057, 5
      %v8138 = vsel %vm3916, %v8135, %v8137
      %v8139 = vrot.slane %v8058, 5
      %v8140 = vsel %vm3916, %v8137, %v8139
      %v8141 = vrot.slane %v8059, 5
      %v8142 = vsel %vm3916, %v8139, %v8141
      %v8143 = vrot.slane %v8060, 5
      %v8144 = vsel %vm3916, %v8141, %v8143
      %v8145 = vrot.slane %v8061, 5
      %v8146 = vsel %vm3916, %v8143, %v8145
      %v8147 = vrot.slane %v8062, 5
      %v8148 = vsel %vm3916, %v8145, %v8147
      %v8149 = vrot.slane %v8063, 5
      %v8150 = vsel %vm3916, %v8147, %v8149
      %v8151 = vrot.slane %v8064, 5
      %v8152 = vsel %vm3916, %v8149, %v8151
      %v8153 = vrot.slane %v8065, 5
      %v8154 = vsel %vm3916, %v8151, %v8153
      %v8155 = vrot.slane %v8066, 5
      %v8156 = vsel %vm3916, %v8153, %v8155
      %v8157 = vrot.slane %v8067, 5
      %v8158 = vsel %vm3916, %v8155, %v8157
      %v8159 = vrot.slane %v8068, 5
      %v8160 = vsel %vm3916, %v8157, %v8159
      %v8161 = vrot.slane %v8069, 5
      %v8162 = vsel %vm3916, %v8159, %v8161
      %v8163 = vrot.slane %v8070, 5
      %v8164 = vsel %vm3916, %v8161, %v8163
      %v8165 = vrot.slane %v8071, 5
      %v8166 = vsel %vm3916, %v8163, %v8165
      %v8167 = vrot.slane %v8072, 5
      %v8168 = vsel %vm3916, %v8165, %v8167
      %v8169 = vrot.slane %v8073, 5
      %v8170 = vsel %vm3916, %v8167, %v8169
      %v8171 = vrot.slane %v8074, 5
      %v8172 = vsel %vm3916, %v8169, %v8171
      %v8173 = vrot.slane %v8075, 5
      %v8174 = vsel %vm3916, %v8171, %v8173
      %v8175 = vrot.slane %v8076, 5
      %v8176 = vsel %vm3916, %v8173, %v8175
      %v8177 = vrot.slane %v8077, 5
      %v8178 = vsel %vm3916, %v8175, %v8177
      %v8179 = vrot.slane %v8078, 5
      %v8180 = vsel %vm3916, %v8177, %v8179
      %v8181 = vrot.slane %v8079, 5
      %v8182 = vsel %vm3916, %v8179, %v8181
      %v8183 = vrot.slane %v8080, 5
      %v8184 = vsel %vm3916, %v8181, %v8183
      %v8185 = vrot.slane %v8081, 5
      %v8186 = vsel %vm3916, %v8183, %v8185
      %v8187 = vrot.slane %v8082, 5
      %v8188 = vsel %vm3916, %v8185, %v8187
      %v8189 = vrot.slane %v8083, 5
      %v8190 = vsel %vm3916, %v8187, %v8189
      %v8191 = vrot.slane %v8084, 5
      %v8192 = vsel %vm3916, %v8189, %v8191
      %v8193 = vrot.slane %v8085, 5
      %v8194 = vsel %vm3916, %v8191, %v8193
      %v8195 = vrot.slane %v8086, 5
      %v8196 = vsel %vm3916, %v8193, %v8195
      %8197 = vrot.lane.b32.xlu0 %v8126, 64
      %v8198 = vpop.permute.xlu0 %8197
      %8199 = vrot.lane.b32.xlu0 %v8128, 64
      %v8200 = vpop.permute.xlu0 %8199
      %8201 = vrot.lane.b32.xlu0 %v8130, 64
      %v8202 = vpop.permute.xlu0 %8201
      %8203 = vrot.lane.b32.xlu0 %v8132, 64
      %v8204 = vpop.permute.xlu0 %8203
      %8205 = vrot.lane.b32.xlu0 %v8134, 64
      %v8206 = vpop.permute.xlu0 %8205
      %8207 = vrot.lane.b32.xlu0 %v8136, 64
      %v8208 = vpop.permute.xlu0 %8207
      %8209 = vrot.lane.b32.xlu0 %v8138, 64
      %v8210 = vpop.permute.xlu0 %8209
      %8211 = vrot.lane.b32.xlu0 %v8140, 64
      %v8212 = vpop.permute.xlu0 %8211
      %8213 = vrot.lane.b32.xlu0 %v8142, 64
      %v8214 = vpop.permute.xlu0 %8213
      %8215 = vrot.lane.b32.xlu0 %v8144, 64
      %v8216 = vpop.permute.xlu0 %8215
      %8217 = vrot.lane.b32.xlu0 %v8146, 64
      %v8218 = vpop.permute.xlu0 %8217
      %8219 = vrot.lane.b32.xlu0 %v8148, 64
      %v8220 = vpop.permute.xlu0 %8219
      %8221 = vrot.lane.b32.xlu0 %v8150, 64
      %v8222 = vpop.permute.xlu0 %8221
      %8223 = vrot.lane.b32.xlu0 %v8152, 64
      %v8224 = vpop.permute.xlu0 %8223
      %8225 = vrot.lane.b32.xlu0 %v8154, 64
      %v8226 = vpop.permute.xlu0 %8225
      %8227 = vrot.lane.b32.xlu0 %v8156, 64
      %v8228 = vpop.permute.xlu0 %8227
      %8229 = vrot.lane.b32.xlu0 %v8158, 64
      %v8230 = vpop.permute.xlu0 %8229
      %8231 = vrot.lane.b32.xlu0 %v8160, 64
      %v8232 = vpop.permute.xlu0 %8231
      %8233 = vrot.lane.b32.xlu0 %v8162, 64
      %v8234 = vpop.permute.xlu0 %8233
      %8235 = vrot.lane.b32.xlu0 %v8164, 64
      %v8236 = vpop.permute.xlu0 %8235
      %8237 = vrot.lane.b32.xlu0 %v8166, 64
      %v8238 = vpop.permute.xlu0 %8237
      %8239 = vrot.lane.b32.xlu0 %v8168, 64
      %v8240 = vpop.permute.xlu0 %8239
      %8241 = vrot.lane.b32.xlu0 %v8170, 64
      %v8242 = vpop.permute.xlu0 %8241
      %8243 = vrot.lane.b32.xlu0 %v8172, 64
      %v8244 = vpop.permute.xlu0 %8243
      %8245 = vrot.lane.b32.xlu0 %v8174, 64
      %v8246 = vpop.permute.xlu0 %8245
      %8247 = vrot.lane.b32.xlu0 %v8176, 64
      %v8248 = vpop.permute.xlu0 %8247
      %8249 = vrot.lane.b32.xlu0 %v8178, 64
      %v8250 = vpop.permute.xlu0 %8249
      %8251 = vrot.lane.b32.xlu0 %v8180, 64
      %v8252 = vpop.permute.xlu0 %8251
      %8253 = vrot.lane.b32.xlu0 %v8182, 64
      %v8254 = vpop.permute.xlu0 %8253
      %8255 = vrot.lane.b32.xlu0 %v8184, 64
      %v8256 = vpop.permute.xlu0 %8255
      %8257 = vrot.lane.b32.xlu0 %v8186, 64
      %v8258 = vpop.permute.xlu0 %8257
      %8259 = vrot.lane.b32.xlu0 %v8188, 64
      %v8260 = vpop.permute.xlu0 %8259
      %8261 = vrot.lane.b32.xlu0 %v8190, 64
      %v8262 = vpop.permute.xlu0 %8261
      %8263 = vrot.lane.b32.xlu0 %v8192, 64
      %v8264 = vpop.permute.xlu0 %8263
      %8265 = vrot.lane.b32.xlu0 %v8194, 64
      %v8266 = vpop.permute.xlu0 %8265
      %8267 = vrot.lane.b32.xlu0 %v8196, 64
      %v8268 = vpop.permute.xlu0 %8267
      %vm8305 = vcmask 523264
      %v8306 = vsel %vm8305, %v7756, %v8198
      %v8307 = vsel %vm8305, %v7757, %v8200
      %v8308 = vsel %vm8305, %v7758, %v8202
      %v8309 = vsel %vm8305, %v7759, %v8204
      %v8310 = vsel %vm8305, %v7760, %v8206
      %v8311 = vsel %vm8305, %v7761, %v8208
      %v8312 = vsel %vm8305, %v7762, %v8210
      %v8313 = vsel %vm8305, %v7763, %v8212
      %v8314 = vsel %vm8305, %v7764, %v8214
      %v8315 = vsel %vm8305, %v7765, %v8216
      %v8316 = vsel %vm8305, %v7766, %v8218
      %v8317 = vsel %vm8305, %v7767, %v8220
      %v8318 = vsel %vm8305, %v7768, %v8222
      %v8319 = vsel %vm8305, %v7769, %v8224
      %v8320 = vsel %vm8305, %v7770, %v8226
      %v8321 = vsel %vm8305, %v7771, %v8228
      %v8322 = vsel %vm8305, %v7772, %v8230
      %v8323 = vsel %vm8305, %v7773, %v8232
      %v8324 = vsel %vm8305, %v7774, %v8234
      %v8325 = vsel %vm8305, %v7775, %v8236
      %v8326 = vsel %vm8305, %v7776, %v8238
      %v8327 = vsel %vm8305, %v7777, %v8240
      %v8328 = vsel %vm8305, %v7778, %v8242
      %v8329 = vsel %vm8305, %v7779, %v8244
      %v8330 = vsel %vm8305, %v7780, %v8246
      %v8331 = vsel %vm8305, %v7781, %v8248
      %v8332 = vsel %vm8305, %v7782, %v8250
      %v8333 = vsel %vm8305, %v7783, %v8252
      %v8334 = vsel %vm8305, %v7784, %v8254
      %v8335 = vsel %vm8305, %v7785, %v8256
      %v8336 = vsel %vm8305, %v7786, %v8258
      %v8337 = vsel %vm8305, %v7787, %v8260
      %v8338 = vsel %vm8305, %v7788, %v8262
      %v8339 = vsel %vm8305, %v7789, %v8264
      %v8340 = vsel %vm8305, %v7790, %v8266
      %v8341 = vsel %vm8305, %v7791, %v8268
      %v8342 = vpack.c.bf16 %v8307, %v8306
      %v8343 = vpack.c.bf16 %v8309, %v8308
      %v8344 = vpack.c.bf16 %v8311, %v8310
      %v8345 = vpack.c.bf16 %v8313, %v8312
      %v8346 = vpack.c.bf16 %v8315, %v8314
      %v8347 = vpack.c.bf16 %v8317, %v8316
      %v8348 = vpack.c.bf16 %v8319, %v8318
      %v8349 = vpack.c.bf16 %v8321, %v8320
      %v8350 = vpack.c.bf16 %v8323, %v8322
      %v8351 = vpack.c.bf16 %v8325, %v8324
      %v8352 = vpack.c.bf16 %v8327, %v8326
      %v8353 = vpack.c.bf16 %v8329, %v8328
      %v8354 = vpack.c.bf16 %v8331, %v8330
      %v8355 = vpack.c.bf16 %v8333, %v8332
      %v8356 = vpack.c.bf16 %v8335, %v8334
      %v8357 = vpack.c.bf16 %v8337, %v8336
      %v8358 = vpack.c.bf16 %v8339, %v8338
      %v8359 = vpack.c.bf16 %v8341, %v8340
      %v8360 = vld [vmem:[%s2] sm:$0xff]
      %v8361 = vld [vmem:[%s2 + $0x8] sm:$0xff]
      %v8362 = vld [vmem:[%s2 + $0x10] sm:$0xff]
      %v8363 = vld [vmem:[%s2 + $0x18] sm:$0xff]
      %v8364 = vld [vmem:[%s2 + $0x20] sm:$0xff]
      %v8365 = vld [vmem:[%s2 + $0x28] sm:$0xff]
      %v8366 = vld [vmem:[%s2 + $0x30] sm:$0xff]
      %v8367 = vld [vmem:[%s2 + $0x38] sm:$0xff]
      %v8368 = vld [vmem:[%s2 + $0x40] sm:$0xff]
      %v8369 = vld [vmem:[%s2 + $0x48] sm:$0xff]
      %v8370 = vld [vmem:[%s2 + $0x50] sm:$0xff]
      %v8371 = vld [vmem:[%s2 + $0x58] sm:$0xff]
      %v8372 = vld [vmem:[%s2 + $0x60] sm:$0xff]
      %v8373 = vld [vmem:[%s2 + $0x68] sm:$0xff]
      %v8374 = vld [vmem:[%s2 + $0x70] sm:$0xff]
      %v8375 = vld [vmem:[%s2 + $0x78] sm:$0xff]
      %v8376 = vld [vmem:[%s3] sm:$0x3]
      %v8378 = vlaneseq
      %v8379 = vshrl.u32 %v8378, 7
      %v8380 = vsub.s32 0, %v8379
      %v8381 = vrot.slane %v8376, %v8380
      %v8382 = vlaneseq
      %v8383 = vshrl.u32 %v8382, 7
      %v8384 = vsub.s32 1, %v8383
      %v8385 = vrot.slane %v8376, %v8384
      %v8404 = vunpack.c.l.b16 %v8360
      %v8405 = vunpack.c.h.b16 %v8360
      %v8406 = vunpack.c.l.b16 %v8361
      %v8407 = vunpack.c.h.b16 %v8361
      %v8408 = vunpack.c.l.b16 %v8362
      %v8409 = vunpack.c.h.b16 %v8362
      %v8410 = vunpack.c.l.b16 %v8363
      %v8411 = vunpack.c.h.b16 %v8363
      %v8412 = vunpack.c.l.b16 %v8364
      %v8413 = vunpack.c.h.b16 %v8364
      %v8414 = vunpack.c.l.b16 %v8365
      %v8415 = vunpack.c.h.b16 %v8365
      %v8416 = vunpack.c.l.b16 %v8366
      %v8417 = vunpack.c.h.b16 %v8366
      %v8418 = vunpack.c.l.b16 %v8367
      %v8419 = vunpack.c.h.b16 %v8367
      %v8420 = vunpack.c.l.b16 %v8368
      %v8421 = vunpack.c.h.b16 %v8368
      %v8422 = vunpack.c.l.b16 %v8369
      %v8423 = vunpack.c.h.b16 %v8369
      %v8424 = vunpack.c.l.b16 %v8370
      %v8425 = vunpack.c.h.b16 %v8370
      %v8426 = vunpack.c.l.b16 %v8371
      %v8427 = vunpack.c.h.b16 %v8371
      %v8428 = vunpack.c.l.b16 %v8372
      %v8429 = vunpack.c.h.b16 %v8372
      %v8430 = vunpack.c.l.b16 %v8373
      %v8431 = vunpack.c.h.b16 %v8373
      %v8432 = vunpack.c.l.b16 %v8374
      %v8433 = vunpack.c.h.b16 %v8374
      %v8434 = vunpack.c.l.b16 %v8375
      %v8435 = vunpack.c.h.b16 %v8375
      %v8436 = vpack.c.b16 %v8406, %v8404
      %v8437 = vpack.c.b16 %v8407, %v8405
      %v8438 = vpack.c.b16 %v8410, %v8408
      %v8439 = vpack.c.b16 %v8411, %v8409
      %v8440 = vpack.c.b16 %v8414, %v8412
      %v8441 = vpack.c.b16 %v8415, %v8413
      %v8442 = vpack.c.b16 %v8418, %v8416
      %v8443 = vpack.c.b16 %v8419, %v8417
      %v8444 = vpack.c.b16 %v8422, %v8420
      %v8445 = vpack.c.b16 %v8423, %v8421
      %v8446 = vpack.c.b16 %v8426, %v8424
      %v8447 = vpack.c.b16 %v8427, %v8425
      %v8448 = vpack.c.b16 %v8430, %v8428
      %v8449 = vpack.c.b16 %v8431, %v8429
      %v8450 = vpack.c.b16 %v8434, %v8432
      %v8451 = vpack.c.b16 %v8435, %v8433
      %8468 = vmatprep.subr.bf16.mxu0 %v8451
      %8469 = vmatpush1.bf16.msra.mxu0 %v8450
      %8470 = vmatprep.subr.bf16.mxu0 %v8449
      %8471 = vmatpush1.bf16.msra.mxu0 %v8448
      %8472 = vmatprep.subr.bf16.mxu0 %v8447
      %8473 = vmatpush1.bf16.msra.mxu0 %v8446
      %8474 = vmatprep.subr.bf16.mxu0 %v8445
      %8475 = vmatpush1.bf16.msra.mxu0 %v8444
      %8476 = vmatprep.subr.bf16.mxu0 %v8443
      %8477 = vmatpush1.bf16.msra.mxu0 %v8442
      %8478 = vmatprep.subr.bf16.mxu0 %v8441
      %8479 = vmatpush1.bf16.msra.mxu0 %v8440
      %8480 = vmatprep.subr.bf16.mxu0 %v8439
      %8481 = vmatpush1.bf16.msra.mxu0 %v8438
      %8482 = vmatprep.subr.bf16.mxu0 %v8437
      %8483 = vmatpush1.bf16.msra.mxu0 %v8436
      %8484 = vmatprep.subr.bf16.mxu0 0
      %8485 = vmatpush2.bf16.msra.mxu0 0
      %8486 = vmatprep.subr.bf16.mxu0 0
      %8487 = vmatpush2.bf16.msra.mxu0 0
      %8488 = vmatprep.subr.bf16.mxu0 0
      %8489 = vmatpush2.bf16.msra.mxu0 0
      %8490 = vmatprep.subr.bf16.mxu0 0
      %8491 = vmatpush2.bf16.msra.mxu0 0
      %8492 = vmatprep.subr.bf16.mxu0 0
      %8493 = vmatpush2.bf16.msra.mxu0 0
      %8494 = vmatprep.subr.bf16.mxu0 0
      %8495 = vmatpush2.bf16.msra.mxu0 0
      %8496 = vmatprep.subr.bf16.mxu0 0
      %8497 = vmatpush2.bf16.msra.mxu0 0
      %8498 = vmatprep.subr.bf16.mxu0 0
      %8499 = vmatpush2.bf16.msra.mxu0 0
      %8500 = vmatprep.mubr.bf16.mxu0 0
      %8501 = vmatmul.mubr.bf16.gmra.mxu0 %v8342
      %v8502 = vpop.f32.mrf.mxu0
      %v8503 = vadd.f32 %v8381, %v8502
      %v8504 = vpop.f32.mrf.mxu0
      %v8505 = vadd.f32 %v8385, %v8504
      %v8506 = vpop.f32.mrf.mxu0
      %v8507 = vadd.f32 %v8381, %v8506
      %v8508 = vpop.f32.mrf.mxu0
      %v8509 = vadd.f32 %v8385, %v8508
      %8510 = vmatprep.mubr.bf16.mxu0 0
      %8511 = vmatmul.mubr.bf16.gmra.mxu0 %v8343
      %v8512 = vpop.f32.mrf.mxu0
      %v8513 = vadd.f32 %v8381, %v8512
      %v8514 = vpop.f32.mrf.mxu0
      %v8515 = vadd.f32 %v8385, %v8514
      %v8516 = vpop.f32.mrf.mxu0
      %v8517 = vadd.f32 %v8381, %v8516
      %v8518 = vpop.f32.mrf.mxu0
      %v8519 = vadd.f32 %v8385, %v8518
      %8520 = vmatprep.mubr.bf16.mxu0 0
      %8521 = vmatmul.mubr.bf16.gmra.mxu0 %v8344
      %v8522 = vpop.f32.mrf.mxu0
      %v8523 = vadd.f32 %v8381, %v8522
      %v8524 = vpop.f32.mrf.mxu0
      %v8525 = vadd.f32 %v8385, %v8524
      %v8526 = vpop.f32.mrf.mxu0
      %v8527 = vadd.f32 %v8381, %v8526
      %v8528 = vpop.f32.mrf.mxu0
      %v8529 = vadd.f32 %v8385, %v8528
      %8530 = vmatprep.mubr.bf16.mxu0 0
      %8531 = vmatmul.mubr.bf16.gmra.mxu0 %v8345
      %v8532 = vpop.f32.mrf.mxu0
      %v8533 = vadd.f32 %v8381, %v8532
      %v8534 = vpop.f32.mrf.mxu0
      %v8535 = vadd.f32 %v8385, %v8534
      %v8536 = vpop.f32.mrf.mxu0
      %v8537 = vadd.f32 %v8381, %v8536
      %v8538 = vpop.f32.mrf.mxu0
      %v8539 = vadd.f32 %v8385, %v8538
      %8540 = vmatprep.mubr.bf16.mxu0 0
      %8541 = vmatmul.mubr.bf16.gmra.mxu0 %v8346
      %v8542 = vpop.f32.mrf.mxu0
      %v8543 = vadd.f32 %v8381, %v8542
      %v8544 = vpop.f32.mrf.mxu0
      %v8545 = vadd.f32 %v8385, %v8544
      %v8546 = vpop.f32.mrf.mxu0
      %v8547 = vadd.f32 %v8381, %v8546
      %v8548 = vpop.f32.mrf.mxu0
      %v8549 = vadd.f32 %v8385, %v8548
      %8550 = vmatprep.mubr.bf16.mxu0 0
      %8551 = vmatmul.mubr.bf16.gmra.mxu0 %v8347
      %v8552 = vpop.f32.mrf.mxu0
      %v8553 = vadd.f32 %v8381, %v8552
      %v8554 = vpop.f32.mrf.mxu0
      %v8555 = vadd.f32 %v8385, %v8554
      %v8556 = vpop.f32.mrf.mxu0
      %v8557 = vadd.f32 %v8381, %v8556
      %v8558 = vpop.f32.mrf.mxu0
      %v8559 = vadd.f32 %v8385, %v8558
      %8560 = vmatprep.mubr.bf16.mxu0 0
      %8561 = vmatmul.mubr.bf16.gmra.mxu0 %v8348
      %v8562 = vpop.f32.mrf.mxu0
      %v8563 = vadd.f32 %v8381, %v8562
      %v8564 = vpop.f32.mrf.mxu0
      %v8565 = vadd.f32 %v8385, %v8564
      %v8566 = vpop.f32.mrf.mxu0
      %v8567 = vadd.f32 %v8381, %v8566
      %v8568 = vpop.f32.mrf.mxu0
      %v8569 = vadd.f32 %v8385, %v8568
      %8570 = vmatprep.mubr.bf16.mxu0 0
      %8571 = vmatmul.mubr.bf16.gmra.mxu0 %v8349
      %v8572 = vpop.f32.mrf.mxu0
      %v8573 = vadd.f32 %v8381, %v8572
      %v8574 = vpop.f32.mrf.mxu0
      %v8575 = vadd.f32 %v8385, %v8574
      %v8576 = vpop.f32.mrf.mxu0
      %v8577 = vadd.f32 %v8381, %v8576
      %v8578 = vpop.f32.mrf.mxu0
      %v8579 = vadd.f32 %v8385, %v8578
      %8580 = vmatprep.mubr.bf16.mxu0 0
      %8581 = vmatmul.mubr.bf16.gmra.mxu0 %v8350
      %v8582 = vpop.f32.mrf.mxu0
      %v8583 = vadd.f32 %v8381, %v8582
      %v8584 = vpop.f32.mrf.mxu0
      %v8585 = vadd.f32 %v8385, %v8584
      %v8586 = vpop.f32.mrf.mxu0
      %v8587 = vadd.f32 %v8381, %v8586
      %v8588 = vpop.f32.mrf.mxu0
      %v8589 = vadd.f32 %v8385, %v8588
      %8590 = vmatprep.mubr.bf16.mxu0 0
      %8591 = vmatmul.mubr.bf16.gmra.mxu0 %v8351
      %v8592 = vpop.f32.mrf.mxu0
      %v8593 = vadd.f32 %v8381, %v8592
      %v8594 = vpop.f32.mrf.mxu0
      %v8595 = vadd.f32 %v8385, %v8594
      %v8596 = vpop.f32.mrf.mxu0
      %v8597 = vadd.f32 %v8381, %v8596
      %v8598 = vpop.f32.mrf.mxu0
      %v8599 = vadd.f32 %v8385, %v8598
      %8600 = vmatprep.mubr.bf16.mxu0 0
      %8601 = vmatmul.mubr.bf16.gmra.mxu0 %v8352
      %v8602 = vpop.f32.mrf.mxu0
      %v8603 = vadd.f32 %v8381, %v8602
      %v8604 = vpop.f32.mrf.mxu0
      %v8605 = vadd.f32 %v8385, %v8604
      %v8606 = vpop.f32.mrf.mxu0
      %v8607 = vadd.f32 %v8381, %v8606
      %v8608 = vpop.f32.mrf.mxu0
      %v8609 = vadd.f32 %v8385, %v8608
      %8610 = vmatprep.mubr.bf16.mxu0 0
      %8611 = vmatmul.mubr.bf16.gmra.mxu0 %v8353
      %v8612 = vpop.f32.mrf.mxu0
      %v8613 = vadd.f32 %v8381, %v8612
      %v8614 = vpop.f32.mrf.mxu0
      %v8615 = vadd.f32 %v8385, %v8614
      %v8616 = vpop.f32.mrf.mxu0
      %v8617 = vadd.f32 %v8381, %v8616
      %v8618 = vpop.f32.mrf.mxu0
      %v8619 = vadd.f32 %v8385, %v8618
      %8620 = vmatprep.mubr.bf16.mxu0 0
      %8621 = vmatmul.mubr.bf16.gmra.mxu0 %v8354
      %v8622 = vpop.f32.mrf.mxu0
      %v8623 = vadd.f32 %v8381, %v8622
      %v8624 = vpop.f32.mrf.mxu0
      %v8625 = vadd.f32 %v8385, %v8624
      %v8626 = vpop.f32.mrf.mxu0
      %v8627 = vadd.f32 %v8381, %v8626
      %v8628 = vpop.f32.mrf.mxu0
      %v8629 = vadd.f32 %v8385, %v8628
      %8630 = vmatprep.mubr.bf16.mxu0 0
      %8631 = vmatmul.mubr.bf16.gmra.mxu0 %v8355
      %v8632 = vpop.f32.mrf.mxu0
      %v8633 = vadd.f32 %v8381, %v8632
      %v8634 = vpop.f32.mrf.mxu0
      %v8635 = vadd.f32 %v8385, %v8634
      %v8636 = vpop.f32.mrf.mxu0
      %v8637 = vadd.f32 %v8381, %v8636
      %v8638 = vpop.f32.mrf.mxu0
      %v8639 = vadd.f32 %v8385, %v8638
      %8640 = vmatprep.mubr.bf16.mxu0 0
      %8641 = vmatmul.mubr.bf16.gmra.mxu0 %v8356
      %v8642 = vpop.f32.mrf.mxu0
      %v8643 = vadd.f32 %v8381, %v8642
      %v8644 = vpop.f32.mrf.mxu0
      %v8645 = vadd.f32 %v8385, %v8644
      %v8646 = vpop.f32.mrf.mxu0
      %v8647 = vadd.f32 %v8381, %v8646
      %v8648 = vpop.f32.mrf.mxu0
      %v8649 = vadd.f32 %v8385, %v8648
      %8650 = vmatprep.mubr.bf16.mxu0 0
      %8651 = vmatmul.mubr.bf16.gmra.mxu0 %v8357
      %v8652 = vpop.f32.mrf.mxu0
      %v8653 = vadd.f32 %v8381, %v8652
      %v8654 = vpop.f32.mrf.mxu0
      %v8655 = vadd.f32 %v8385, %v8654
      %v8656 = vpop.f32.mrf.mxu0
      %v8657 = vadd.f32 %v8381, %v8656
      %v8658 = vpop.f32.mrf.mxu0
      %v8659 = vadd.f32 %v8385, %v8658
      %8660 = vmatprep.mubr.bf16.mxu0 0
      %8661 = vmatmul.mubr.bf16.gmra.mxu0 %v8358
      %v8662 = vpop.f32.mrf.mxu0
      %v8663 = vadd.f32 %v8381, %v8662
      %v8664 = vpop.f32.mrf.mxu0
      %v8665 = vadd.f32 %v8385, %v8664
      %v8666 = vpop.f32.mrf.mxu0
      %v8667 = vadd.f32 %v8381, %v8666
      %v8668 = vpop.f32.mrf.mxu0
      %v8669 = vadd.f32 %v8385, %v8668
      %8670 = vmatprep.mubr.bf16.mxu0 0
      %8671 = vmatmul.mubr.bf16.gmra.mxu0 %v8359
      %v8672 = vpop.f32.mrf.mxu0
      %v8673 = vadd.f32 %v8381, %v8672
      %v8674 = vpop.f32.mrf.mxu0
      %v8675 = vadd.f32 %v8385, %v8674
      %v8676 = vpop.f32.mrf.mxu0
      %v8677 = vadd.f32 %v8381, %v8676
      %v8678 = vpop.f32.mrf.mxu0
      %v8679 = vadd.f32 %v8385, %v8678
      %8680 = vdwg.mxu0
      %v8681 = vxor.u32 %v8505, 2147483648
      %v8682 = vxor.u32 %v8509, 2147483648
      %v8683 = vxor.u32 %v8515, 2147483648
      %v8684 = vxor.u32 %v8519, 2147483648
      %v8685 = vxor.u32 %v8525, 2147483648
      %v8686 = vxor.u32 %v8529, 2147483648
      %v8687 = vxor.u32 %v8535, 2147483648
      %v8688 = vxor.u32 %v8539, 2147483648
      %v8689 = vxor.u32 %v8545, 2147483648
      %v8690 = vxor.u32 %v8549, 2147483648
      %v8691 = vxor.u32 %v8555, 2147483648
      %v8692 = vxor.u32 %v8559, 2147483648
      %v8693 = vxor.u32 %v8565, 2147483648
      %v8694 = vxor.u32 %v8569, 2147483648
      %v8695 = vxor.u32 %v8575, 2147483648
      %v8696 = vxor.u32 %v8579, 2147483648
      %v8697 = vxor.u32 %v8585, 2147483648
      %v8698 = vxor.u32 %v8589, 2147483648
      %v8699 = vxor.u32 %v8595, 2147483648
      %v8700 = vxor.u32 %v8599, 2147483648
      %v8701 = vxor.u32 %v8605, 2147483648
      %v8702 = vxor.u32 %v8609, 2147483648
      %v8703 = vxor.u32 %v8615, 2147483648
      %v8704 = vxor.u32 %v8619, 2147483648
      %v8705 = vxor.u32 %v8625, 2147483648
      %v8706 = vxor.u32 %v8629, 2147483648
      %v8707 = vxor.u32 %v8635, 2147483648
      %v8708 = vxor.u32 %v8639, 2147483648
      %v8709 = vxor.u32 %v8645, 2147483648
      %v8710 = vxor.u32 %v8649, 2147483648
      %v8711 = vxor.u32 %v8655, 2147483648
      %v8712 = vxor.u32 %v8659, 2147483648
      %v8713 = vxor.u32 %v8665, 2147483648
      %v8714 = vxor.u32 %v8669, 2147483648
      %v8715 = vxor.u32 %v8675, 2147483648
      %v8716 = vxor.u32 %v8679, 2147483648
      %v8717 = vmul.f32 %v8681, 1.442695
      %v8718 = vpow.pop %v8717
      %v8719 = vmul.f32 %v8682, 1.442695
      %v8720 = vpow.pop %v8719
      %v8721 = vmul.f32 %v8683, 1.442695
      %v8722 = vpow.pop %v8721
      %v8723 = vmul.f32 %v8684, 1.442695
      %v8724 = vpow.pop %v8723
      %v8725 = vmul.f32 %v8685, 1.442695
      %v8726 = vpow.pop %v8725
      %v8727 = vmul.f32 %v8686, 1.442695
      %v8728 = vpow.pop %v8727
      %v8729 = vmul.f32 %v8687, 1.442695
      %v8730 = vpow.pop %v8729
      %v8731 = vmul.f32 %v8688, 1.442695
      %v8732 = vpow.pop %v8731
      %v8733 = vmul.f32 %v8689, 1.442695
      %v8734 = vpow.pop %v8733
      %v8735 = vmul.f32 %v8690, 1.442695
      %v8736 = vpow.pop %v8735
      %v8737 = vmul.f32 %v8691, 1.442695
      %v8738 = vpow.pop %v8737
      %v8739 = vmul.f32 %v8692, 1.442695
      %v8740 = vpow.pop %v8739
      %v8741 = vmul.f32 %v8693, 1.442695
      %v8742 = vpow.pop %v8741
      %v8743 = vmul.f32 %v8694, 1.442695
      %v8744 = vpow.pop %v8743
      %v8745 = vmul.f32 %v8695, 1.442695
      %v8746 = vpow.pop %v8745
      %v8747 = vmul.f32 %v8696, 1.442695
      %v8748 = vpow.pop %v8747
      %v8749 = vmul.f32 %v8697, 1.442695
      %v8750 = vpow.pop %v8749
      %v8751 = vmul.f32 %v8698, 1.442695
      %v8752 = vpow.pop %v8751
      %v8753 = vmul.f32 %v8699, 1.442695
      %v8754 = vpow.pop %v8753
      %v8755 = vmul.f32 %v8700, 1.442695
      %v8756 = vpow.pop %v8755
      %v8757 = vmul.f32 %v8701, 1.442695
      %v8758 = vpow.pop %v8757
      %v8759 = vmul.f32 %v8702, 1.442695
      %v8760 = vpow.pop %v8759
      %v8761 = vmul.f32 %v8703, 1.442695
      %v8762 = vpow.pop %v8761
      %v8763 = vmul.f32 %v8704, 1.442695
      %v8764 = vpow.pop %v8763
      %v8765 = vmul.f32 %v8705, 1.442695
      %v8766 = vpow.pop %v8765
      %v8767 = vmul.f32 %v8706, 1.442695
      %v8768 = vpow.pop %v8767
      %v8769 = vmul.f32 %v8707, 1.442695
      %v8770 = vpow.pop %v8769
      %v8771 = vmul.f32 %v8708, 1.442695
      %v8772 = vpow.pop %v8771
      %v8773 = vmul.f32 %v8709, 1.442695
      %v8774 = vpow.pop %v8773
      %v8775 = vmul.f32 %v8710, 1.442695
      %v8776 = vpow.pop %v8775
      %v8777 = vmul.f32 %v8711, 1.442695
      %v8778 = vpow.pop %v8777
      %v8779 = vmul.f32 %v8712, 1.442695
      %v8780 = vpow.pop %v8779
      %v8781 = vmul.f32 %v8713, 1.442695
      %v8782 = vpow.pop %v8781
      %v8783 = vmul.f32 %v8714, 1.442695
      %v8784 = vpow.pop %v8783
      %v8785 = vmul.f32 %v8715, 1.442695
      %v8786 = vpow.pop %v8785
      %v8787 = vmul.f32 %v8716, 1.442695
      %v8788 = vpow.pop %v8787
      %v8789 = vadd.f32 %v8718, 1.0
      %v8790 = vadd.f32 %v8720, 1.0
      %v8791 = vadd.f32 %v8722, 1.0
      %v8792 = vadd.f32 %v8724, 1.0
      %v8793 = vadd.f32 %v8726, 1.0
      %v8794 = vadd.f32 %v8728, 1.0
      %v8795 = vadd.f32 %v8730, 1.0
      %v8796 = vadd.f32 %v8732, 1.0
      %v8797 = vadd.f32 %v8734, 1.0
      %v8798 = vadd.f32 %v8736, 1.0
      %v8799 = vadd.f32 %v8738, 1.0
      %v8800 = vadd.f32 %v8740, 1.0
      %v8801 = vadd.f32 %v8742, 1.0
      %v8802 = vadd.f32 %v8744, 1.0
      %v8803 = vadd.f32 %v8746, 1.0
      %v8804 = vadd.f32 %v8748, 1.0
      %v8805 = vadd.f32 %v8750, 1.0
      %v8806 = vadd.f32 %v8752, 1.0
      %v8807 = vadd.f32 %v8754, 1.0
      %v8808 = vadd.f32 %v8756, 1.0
      %v8809 = vadd.f32 %v8758, 1.0
      %v8810 = vadd.f32 %v8760, 1.0
      %v8811 = vadd.f32 %v8762, 1.0
      %v8812 = vadd.f32 %v8764, 1.0
      %v8813 = vadd.f32 %v8766, 1.0
      %v8814 = vadd.f32 %v8768, 1.0
      %v8815 = vadd.f32 %v8770, 1.0
      %v8816 = vadd.f32 %v8772, 1.0
      %v8817 = vadd.f32 %v8774, 1.0
      %v8818 = vadd.f32 %v8776, 1.0
      %v8819 = vadd.f32 %v8778, 1.0
      %v8820 = vadd.f32 %v8780, 1.0
      %v8821 = vadd.f32 %v8782, 1.0
      %v8822 = vadd.f32 %v8784, 1.0
      %v8823 = vadd.f32 %v8786, 1.0
      %v8824 = vadd.f32 %v8788, 1.0
      %v8825 = vrcp.pop %v8789
      %v8826 = vmul.f32 1.0, %v8825
      %v8827 = vrcp.pop %v8790
      %v8828 = vmul.f32 1.0, %v8827
      %v8829 = vrcp.pop %v8791
      %v8830 = vmul.f32 1.0, %v8829
      %v8831 = vrcp.pop %v8792
      %v8832 = vmul.f32 1.0, %v8831
      %v8833 = vrcp.pop %v8793
      %v8834 = vmul.f32 1.0, %v8833
      %v8835 = vrcp.pop %v8794
      %v8836 = vmul.f32 1.0, %v8835
      %v8837 = vrcp.pop %v8795
      %v8838 = vmul.f32 1.0, %v8837
      %v8839 = vrcp.pop %v8796
      %v8840 = vmul.f32 1.0, %v8839
      %v8841 = vrcp.pop %v8797
      %v8842 = vmul.f32 1.0, %v8841
      %v8843 = vrcp.pop %v8798
      %v8844 = vmul.f32 1.0, %v8843
      %v8845 = vrcp.pop %v8799
      %v8846 = vmul.f32 1.0, %v8845
      %v8847 = vrcp.pop %v8800
      %v8848 = vmul.f32 1.0, %v8847
      %v8849 = vrcp.pop %v8801
      %v8850 = vmul.f32 1.0, %v8849
      %v8851 = vrcp.pop %v8802
      %v8852 = vmul.f32 1.0, %v8851
      %v8853 = vrcp.pop %v8803
      %v8854 = vmul.f32 1.0, %v8853
      %v8855 = vrcp.pop %v8804
      %v8856 = vmul.f32 1.0, %v8855
      %v8857 = vrcp.pop %v8805
      %v8858 = vmul.f32 1.0, %v8857
      %v8859 = vrcp.pop %v8806
      %v8860 = vmul.f32 1.0, %v8859
      %v8861 = vrcp.pop %v8807
      %v8862 = vmul.f32 1.0, %v8861
      %v8863 = vrcp.pop %v8808
      %v8864 = vmul.f32 1.0, %v8863
      %v8865 = vrcp.pop %v8809
      %v8866 = vmul.f32 1.0, %v8865
      %v8867 = vrcp.pop %v8810
      %v8868 = vmul.f32 1.0, %v8867
      %v8869 = vrcp.pop %v8811
      %v8870 = vmul.f32 1.0, %v8869
      %v8871 = vrcp.pop %v8812
      %v8872 = vmul.f32 1.0, %v8871
      %v8873 = vrcp.pop %v8813
      %v8874 = vmul.f32 1.0, %v8873
      %v8875 = vrcp.pop %v8814
      %v8876 = vmul.f32 1.0, %v8875
      %v8877 = vrcp.pop %v8815
      %v8878 = vmul.f32 1.0, %v8877
      %v8879 = vrcp.pop %v8816
      %v8880 = vmul.f32 1.0, %v8879
      %v8881 = vrcp.pop %v8817
      %v8882 = vmul.f32 1.0, %v8881
      %v8883 = vrcp.pop %v8818
      %v8884 = vmul.f32 1.0, %v8883
      %v8885 = vrcp.pop %v8819
      %v8886 = vmul.f32 1.0, %v8885
      %v8887 = vrcp.pop %v8820
      %v8888 = vmul.f32 1.0, %v8887
      %v8889 = vrcp.pop %v8821
      %v8890 = vmul.f32 1.0, %v8889
      %v8891 = vrcp.pop %v8822
      %v8892 = vmul.f32 1.0, %v8891
      %v8893 = vrcp.pop %v8823
      %v8894 = vmul.f32 1.0, %v8893
      %v8895 = vrcp.pop %v8824
      %v8896 = vmul.f32 1.0, %v8895
      %v8897 = vmul.f32 %v8503, %v8826
      %v8898 = vmul.f32 %v8507, %v8828
      %v8899 = vmul.f32 %v8513, %v8830
      %v8900 = vmul.f32 %v8517, %v8832
      %v8901 = vmul.f32 %v8523, %v8834
      %v8902 = vmul.f32 %v8527, %v8836
      %v8903 = vmul.f32 %v8533, %v8838
      %v8904 = vmul.f32 %v8537, %v8840
      %v8905 = vmul.f32 %v8543, %v8842
      %v8906 = vmul.f32 %v8547, %v8844
      %v8907 = vmul.f32 %v8553, %v8846
      %v8908 = vmul.f32 %v8557, %v8848
      %v8909 = vmul.f32 %v8563, %v8850
      %v8910 = vmul.f32 %v8567, %v8852
      %v8911 = vmul.f32 %v8573, %v8854
      %v8912 = vmul.f32 %v8577, %v8856
      %v8913 = vmul.f32 %v8583, %v8858
      %v8914 = vmul.f32 %v8587, %v8860
      %v8915 = vmul.f32 %v8593, %v8862
      %v8916 = vmul.f32 %v8597, %v8864
      %v8917 = vmul.f32 %v8603, %v8866
      %v8918 = vmul.f32 %v8607, %v8868
      %v8919 = vmul.f32 %v8613, %v8870
      %v8920 = vmul.f32 %v8617, %v8872
      %v8921 = vmul.f32 %v8623, %v8874
      %v8922 = vmul.f32 %v8627, %v8876
      %v8923 = vmul.f32 %v8633, %v8878
      %v8924 = vmul.f32 %v8637, %v8880
      %v8925 = vmul.f32 %v8643, %v8882
      %v8926 = vmul.f32 %v8647, %v8884
      %v8927 = vmul.f32 %v8653, %v8886
      %v8928 = vmul.f32 %v8657, %v8888
      %v8929 = vmul.f32 %v8663, %v8890
      %v8930 = vmul.f32 %v8667, %v8892
      %v8931 = vmul.f32 %v8673, %v8894
      %v8932 = vmul.f32 %v8677, %v8896
      %vm8933 = vcmp.ge.f32.partialorder %v8897, 0.0
      %vm8934 = vcmp.ge.f32.partialorder %v8898, 0.0
      %vm8935 = vcmp.ge.f32.partialorder %v8899, 0.0
      %vm8936 = vcmp.ge.f32.partialorder %v8900, 0.0
      %vm8937 = vcmp.ge.f32.partialorder %v8901, 0.0
      %vm8938 = vcmp.ge.f32.partialorder %v8902, 0.0
      %vm8939 = vcmp.ge.f32.partialorder %v8903, 0.0
      %vm8940 = vcmp.ge.f32.partialorder %v8904, 0.0
      %vm8941 = vcmp.ge.f32.partialorder %v8905, 0.0
      %vm8942 = vcmp.ge.f32.partialorder %v8906, 0.0
      %vm8943 = vcmp.ge.f32.partialorder %v8907, 0.0
      %vm8944 = vcmp.ge.f32.partialorder %v8908, 0.0
      %vm8945 = vcmp.ge.f32.partialorder %v8909, 0.0
      %vm8946 = vcmp.ge.f32.partialorder %v8910, 0.0
      %vm8947 = vcmp.ge.f32.partialorder %v8911, 0.0
      %vm8948 = vcmp.ge.f32.partialorder %v8912, 0.0
      %vm8949 = vcmp.ge.f32.partialorder %v8913, 0.0
      %vm8950 = vcmp.ge.f32.partialorder %v8914, 0.0
      %vm8951 = vcmp.ge.f32.partialorder %v8915, 0.0
      %vm8952 = vcmp.ge.f32.partialorder %v8916, 0.0
      %vm8953 = vcmp.ge.f32.partialorder %v8917, 0.0
      %vm8954 = vcmp.ge.f32.partialorder %v8918, 0.0
      %vm8955 = vcmp.ge.f32.partialorder %v8919, 0.0
      %vm8956 = vcmp.ge.f32.partialorder %v8920, 0.0
      %vm8957 = vcmp.ge.f32.partialorder %v8921, 0.0
      %vm8958 = vcmp.ge.f32.partialorder %v8922, 0.0
      %vm8959 = vcmp.ge.f32.partialorder %v8923, 0.0
      %vm8960 = vcmp.ge.f32.partialorder %v8924, 0.0
      %vm8961 = vcmp.ge.f32.partialorder %v8925, 0.0
      %vm8962 = vcmp.ge.f32.partialorder %v8926, 0.0
      %vm8963 = vcmp.ge.f32.partialorder %v8927, 0.0
      %vm8964 = vcmp.ge.f32.partialorder %v8928, 0.0
      %vm8965 = vcmp.ge.f32.partialorder %v8929, 0.0
      %vm8966 = vcmp.ge.f32.partialorder %v8930, 0.0
      %vm8967 = vcmp.ge.f32.partialorder %v8931, 0.0
      %vm8968 = vcmp.ge.f32.partialorder %v8932, 0.0
      %v8969 = vmul.f32 %v8897, 0.2
      %v8970 = vmul.f32 %v8898, 0.2
      %v8971 = vmul.f32 %v8899, 0.2
      %v8972 = vmul.f32 %v8900, 0.2
      %v8973 = vmul.f32 %v8901, 0.2
      %v8974 = vmul.f32 %v8902, 0.2
      %v8975 = vmul.f32 %v8903, 0.2
      %v8976 = vmul.f32 %v8904, 0.2
      %v8977 = vmul.f32 %v8905, 0.2
      %v8978 = vmul.f32 %v8906, 0.2
      %v8979 = vmul.f32 %v8907, 0.2
      %v8980 = vmul.f32 %v8908, 0.2
      %v8981 = vmul.f32 %v8909, 0.2
      %v8982 = vmul.f32 %v8910, 0.2
      %v8983 = vmul.f32 %v8911, 0.2
      %v8984 = vmul.f32 %v8912, 0.2
      %v8985 = vmul.f32 %v8913, 0.2
      %v8986 = vmul.f32 %v8914, 0.2
      %v8987 = vmul.f32 %v8915, 0.2
      %v8988 = vmul.f32 %v8916, 0.2
      %v8989 = vmul.f32 %v8917, 0.2
      %v8990 = vmul.f32 %v8918, 0.2
      %v8991 = vmul.f32 %v8919, 0.2
      %v8992 = vmul.f32 %v8920, 0.2
      %v8993 = vmul.f32 %v8921, 0.2
      %v8994 = vmul.f32 %v8922, 0.2
      %v8995 = vmul.f32 %v8923, 0.2
      %v8996 = vmul.f32 %v8924, 0.2
      %v8997 = vmul.f32 %v8925, 0.2
      %v8998 = vmul.f32 %v8926, 0.2
      %v8999 = vmul.f32 %v8927, 0.2
      %v9000 = vmul.f32 %v8928, 0.2
      %v9001 = vmul.f32 %v8929, 0.2
      %v9002 = vmul.f32 %v8930, 0.2
      %v9003 = vmul.f32 %v8931, 0.2
      %v9004 = vmul.f32 %v8932, 0.2
      %v9005 = vsel %vm8933, %v8897, %v8969
      %v9006 = vsel %vm8934, %v8898, %v8970
      %v9007 = vsel %vm8935, %v8899, %v8971
      %v9008 = vsel %vm8936, %v8900, %v8972
      %v9009 = vsel %vm8937, %v8901, %v8973
      %v9010 = vsel %vm8938, %v8902, %v8974
      %v9011 = vsel %vm8939, %v8903, %v8975
      %v9012 = vsel %vm8940, %v8904, %v8976
      %v9013 = vsel %vm8941, %v8905, %v8977
      %v9014 = vsel %vm8942, %v8906, %v8978
      %v9015 = vsel %vm8943, %v8907, %v8979
      %v9016 = vsel %vm8944, %v8908, %v8980
      %v9017 = vsel %vm8945, %v8909, %v8981
      %v9018 = vsel %vm8946, %v8910, %v8982
      %v9019 = vsel %vm8947, %v8911, %v8983
      %v9020 = vsel %vm8948, %v8912, %v8984
      %v9021 = vsel %vm8949, %v8913, %v8985
      %v9022 = vsel %vm8950, %v8914, %v8986
      %v9023 = vsel %vm8951, %v8915, %v8987
      %v9024 = vsel %vm8952, %v8916, %v8988
      %v9025 = vsel %vm8953, %v8917, %v8989
      %v9026 = vsel %vm8954, %v8918, %v8990
      %v9027 = vsel %vm8955, %v8919, %v8991
      %v9028 = vsel %vm8956, %v8920, %v8992
      %v9029 = vsel %vm8957, %v8921, %v8993
      %v9030 = vsel %vm8958, %v8922, %v8994
      %v9031 = vsel %vm8959, %v8923, %v8995
      %v9032 = vsel %vm8960, %v8924, %v8996
      %v9033 = vsel %vm8961, %v8925, %v8997
      %v9034 = vsel %vm8962, %v8926, %v8998
      %v9035 = vsel %vm8963, %v8927, %v8999
      %v9036 = vsel %vm8964, %v8928, %v9000
      %v9037 = vsel %vm8965, %v8929, %v9001
      %v9038 = vsel %vm8966, %v8930, %v9002
      %v9039 = vsel %vm8967, %v8931, %v9003
      %v9040 = vsel %vm8968, %v8932, %v9004
      %v9041 = vpack.c.bf16 %v9006, %v9005
      %v9042 = vpack.c.bf16 %v9008, %v9007
      %v9043 = vpack.c.bf16 %v9010, %v9009
      %v9044 = vpack.c.bf16 %v9012, %v9011
      %v9045 = vpack.c.bf16 %v9014, %v9013
      %v9046 = vpack.c.bf16 %v9016, %v9015
      %v9047 = vpack.c.bf16 %v9018, %v9017
      %v9048 = vpack.c.bf16 %v9020, %v9019
      %v9049 = vpack.c.bf16 %v9022, %v9021
      %v9050 = vpack.c.bf16 %v9024, %v9023
      %v9051 = vpack.c.bf16 %v9026, %v9025
      %v9052 = vpack.c.bf16 %v9028, %v9027
      %v9053 = vpack.c.bf16 %v9030, %v9029
      %v9054 = vpack.c.bf16 %v9032, %v9031
      %v9055 = vpack.c.bf16 %v9034, %v9033
      %v9056 = vpack.c.bf16 %v9036, %v9035
      %v9057 = vpack.c.bf16 %v9038, %v9037
      %v9058 = vpack.c.bf16 %v9040, %v9039
      %v9077 = vunpack.c.l.b16 %v9041
      %v9078 = vunpack.c.h.b16 %v9041
      %v9079 = vunpack.c.l.b16 %v9042
      %v9080 = vunpack.c.h.b16 %v9042
      %v9081 = vunpack.c.l.b16 %v9043
      %v9082 = vunpack.c.h.b16 %v9043
      %v9083 = vunpack.c.l.b16 %v9044
      %v9084 = vunpack.c.h.b16 %v9044
      %v9085 = vunpack.c.l.b16 %v9045
      %v9086 = vunpack.c.h.b16 %v9045
      %v9087 = vunpack.c.l.b16 %v9046
      %v9088 = vunpack.c.h.b16 %v9046
      %v9089 = vunpack.c.l.b16 %v9047
      %v9090 = vunpack.c.h.b16 %v9047
      %v9091 = vunpack.c.l.b16 %v9048
      %v9092 = vunpack.c.h.b16 %v9048
      %v9093 = vunpack.c.l.b16 %v9049
      %v9094 = vunpack.c.h.b16 %v9049
      %v9095 = vunpack.c.l.b16 %v9050
      %v9096 = vunpack.c.h.b16 %v9050
      %v9097 = vunpack.c.l.b16 %v9051
      %v9098 = vunpack.c.h.b16 %v9051
      %v9099 = vunpack.c.l.b16 %v9052
      %v9100 = vunpack.c.h.b16 %v9052
      %v9101 = vunpack.c.l.b16 %v9053
      %v9102 = vunpack.c.h.b16 %v9053
      %v9103 = vunpack.c.l.b16 %v9054
      %v9104 = vunpack.c.h.b16 %v9054
      %v9105 = vunpack.c.l.b16 %v9055
      %v9106 = vunpack.c.h.b16 %v9055
      %v9107 = vunpack.c.l.b16 %v9056
      %v9108 = vunpack.c.h.b16 %v9056
      %v9109 = vunpack.c.l.b16 %v9057
      %v9110 = vunpack.c.h.b16 %v9057
      %v9111 = vunpack.c.l.b16 %v9058
      %v9112 = vunpack.c.h.b16 %v9058
      %v9113 = vpack.c.b16 %v9077, %v9077
      %v9114 = vpack.c.b16 %v9078, %v9078
      %v9115 = vpack.c.b16 %v9079, %v9079
      %v9116 = vpack.c.b16 %v9080, %v9080
      %v9117 = vpack.c.b16 %v9081, %v9081
      %v9118 = vpack.c.b16 %v9082, %v9082
      %v9119 = vpack.c.b16 %v9083, %v9083
      %v9120 = vpack.c.b16 %v9084, %v9084
      %v9121 = vpack.c.b16 %v9085, %v9085
      %v9122 = vpack.c.b16 %v9086, %v9086
      %v9123 = vpack.c.b16 %v9087, %v9087
      %v9124 = vpack.c.b16 %v9088, %v9088
      %v9125 = vpack.c.b16 %v9089, %v9089
      %v9126 = vpack.c.b16 %v9090, %v9090
      %v9127 = vpack.c.b16 %v9091, %v9091
      %v9128 = vpack.c.b16 %v9092, %v9092
      %v9129 = vpack.c.b16 %v9093, %v9093
      %v9130 = vpack.c.b16 %v9094, %v9094
      %v9131 = vpack.c.b16 %v9095, %v9095
      %v9132 = vpack.c.b16 %v9096, %v9096
      %v9133 = vpack.c.b16 %v9097, %v9097
      %v9134 = vpack.c.b16 %v9098, %v9098
      %v9135 = vpack.c.b16 %v9099, %v9099
      %v9136 = vpack.c.b16 %v9100, %v9100
      %v9137 = vpack.c.b16 %v9101, %v9101
      %v9138 = vpack.c.b16 %v9102, %v9102
      %v9139 = vpack.c.b16 %v9103, %v9103
      %v9140 = vpack.c.b16 %v9104, %v9104
      %v9141 = vpack.c.b16 %v9105, %v9105
      %v9142 = vpack.c.b16 %v9106, %v9106
      %v9143 = vpack.c.b16 %v9107, %v9107
      %v9144 = vpack.c.b16 %v9108, %v9108
      %v9145 = vpack.c.b16 %v9109, %v9109
      %v9146 = vpack.c.b16 %v9110, %v9110
      %v9147 = vpack.c.b16 %v9111, %v9111
      %v9148 = vpack.c.b16 %v9112, %v9112
      %9185 = vst [vmem:[%s217] sm:$0xf] %v9113
      %9186 = vst [vmem:[%s217 + $0x4] sm:$0xf] %v9114
      %9187 = vst [vmem:[%s217 + $0x8] sm:$0xf] %v9115
      %9188 = vst [vmem:[%s217 + $0xc] sm:$0xf] %v9116
      %9189 = vst [vmem:[%s217 + $0x10] sm:$0xf] %v9117
      %9190 = vst [vmem:[%s217 + $0x14] sm:$0xf] %v9118
      %9191 = vst [vmem:[%s217 + $0x18] sm:$0xf] %v9119
      %9192 = vst [vmem:[%s217 + $0x1c] sm:$0xf] %v9120
      %9193 = vst [vmem:[%s217 + $0x20] sm:$0xf] %v9121
      %9194 = vst [vmem:[%s217 + $0x24] sm:$0xf] %v9122
      %9195 = vst [vmem:[%s217 + $0x28] sm:$0xf] %v9123
      %9196 = vst [vmem:[%s217 + $0x2c] sm:$0xf] %v9124
      %9197 = vst [vmem:[%s217 + $0x30] sm:$0xf] %v9125
      %9198 = vst [vmem:[%s217 + $0x34] sm:$0xf] %v9126
      %9199 = vst [vmem:[%s217 + $0x38] sm:$0xf] %v9127
      %9200 = vst [vmem:[%s217 + $0x3c] sm:$0xf] %v9128
      %9201 = vst [vmem:[%s217 + $0x40] sm:$0xf] %v9129
      %9202 = vst [vmem:[%s217 + $0x44] sm:$0xf] %v9130
      %9203 = vst [vmem:[%s217 + $0x48] sm:$0xf] %v9131
      %9204 = vst [vmem:[%s217 + $0x4c] sm:$0xf] %v9132
      %9205 = vst [vmem:[%s217 + $0x50] sm:$0xf] %v9133
      %9206 = vst [vmem:[%s217 + $0x54] sm:$0xf] %v9134
      %9207 = vst [vmem:[%s217 + $0x58] sm:$0xf] %v9135
      %9208 = vst [vmem:[%s217 + $0x5c] sm:$0xf] %v9136
      %9209 = vst [vmem:[%s217 + $0x60] sm:$0xf] %v9137
      %9210 = vst [vmem:[%s217 + $0x64] sm:$0xf] %v9138
      %9211 = vst [vmem:[%s217 + $0x68] sm:$0xf] %v9139
      %9212 = vst [vmem:[%s217 + $0x6c] sm:$0xf] %v9140
      %9213 = vst [vmem:[%s217 + $0x70] sm:$0xf] %v9141
      %9214 = vst [vmem:[%s217 + $0x74] sm:$0xf] %v9142
      %9215 = vst [vmem:[%s217 + $0x78] sm:$0xf] %v9143
      %9216 = vst [vmem:[%s217 + $0x7c] sm:$0xf] %v9144
      %9217 = vst [vmem:[%s217 + $0x80] sm:$0xf] %v9145
      %9218 = vst [vmem:[%s217 + $0x84] sm:$0xf] %v9146
      %9219 = vst [vmem:[%s217 + $0x88] sm:$0xf] %v9147
      %9220 = vst [vmem:[%s217 + $0x8c] sm:$0xf] %v9148
      %p9221 = scmp.lt.s32.totalorder %s15, 1
      %s9222 = scalar_select %p9221, %s15, 1
      %s9223 = smul.addr %s9222, 36
      %s9224 = smul.addr %s9223, 4
      %s9225 = scalar_lea.vmem %s4, %s9224
      // Predicated region
      $region37: #{gated_conv2d.1} parent=35 // pred_check
        %p9226 = pneg %p127
      $region38: #{gated_conv2d.1} parent=35 // pred_check_branch
        %9228 = sbr.rel (%p9226) target = $region40
      $region39: #{gated_conv2d.1} parent=35 // pred_region
        _
      $region40: #{gated_conv2d.1} parent=35 // pred_fallthru
        _
    $region36: #{gated_conv2d.1} parent=5 // pred_fallthru
      _
    %p9229 = scmp.le.s32.totalorder 2, %s10
    // Predicated region
    $region41: #{gated_conv2d.1} parent=5 // pred_check
      %p9230 = pneg %p9229
    $region42: #{gated_conv2d.1} parent=5 // pred_check_branch
      %9232 = sbr.rel (%p9230) target = $region44
    $region43: #{gated_conv2d.1} parent=5 // pred_region
      %s9233 = ssub.s32 %s10, 2
      // Predicated region
      $region45: #{gated_conv2d.1} parent=43 // pred_check
        %p9234 = pneg %p133
      $region46: #{gated_conv2d.1} parent=43 // pred_check_branch
        %9236 = sbr.rel (%p9234) target = $region48
      $region47: #{gated_conv2d.1} parent=43 // pred_region
        %p9237 = scmp.lt.s32.totalorder %s16, 1
        %s9238 = scalar_select %p9237, %s16, 1
        %s9239 = smul.addr %s9238, 36
        %s9240 = smul.addr %s9239, 4
        %s9241 = scalar_lea.vmem %s4, %s9240
      $region48: #{gated_conv2d.1} parent=43 // pred_fallthru
        _
    $region44: #{gated_conv2d.1} parent=5 // pred_fallthru
      _
  $region6: #{gated_conv2d.1} parent=0 // loop_footer
    %s14 = sadd.s32 1, %s10
  $region7: #{gated_conv2d.1} parent=0 // loop_footer_branch
    %9 = sbr.rel target = $region3
  $region8: #{gated_conv2d.1} parent=0 // loop_exit
    _

</llo_original>
